<compile_context>
chip_gen: v7x
topology: tpu7x:2x2x1
jax: 0.10.0
libtpu: 0.0.40
codegen_flags: <defaults>
</compile_context>

<pallas_src>
import jax
import jax.numpy as jnp
from jax.experimental import pallas as pl
from jax.experimental.pallas import tpu as pltpu

D_IN, D_H1, D_H2, D_OUT = 2048, 1024, 512, 256


def _siamese_mlp_kernel(x1_ref, x2_ref,
                        w1_ref, s1_ref, b1_ref,
                        w2_ref, s2_ref, b2_ref,
                        w3_ref, b3_ref,
                        o1_ref, o2_ref):
    """Shared-weight 3-layer MLP applied to both siamese inputs in one body."""
    # Dequantize the shared int8 weights once per grid step (int8 -> bf16 is
    # exact for values in [-127, 127]); reused by both branches.
    # TODO(synk): cache the dequantized copies in VMEM scratch (pl.when(pid==0),
    # requires "arbitrary" semantics) or feed native int8 (v5e/v6e) / fp8 (v7x)
    # MXU operands to skip this VPU convert entirely.
    w1 = w1_ref[...].astype(jnp.bfloat16)
    w2 = w2_ref[...].astype(jnp.bfloat16)
    w3 = w3_ref[...]                                   # bf16

    def branch(x_ref, o_ref):
        x = x_ref[...]                                 # bf16 (tm, 2048)
        h1 = jnp.dot(x, w1, preferred_element_type=jnp.float32)
        h1 = jnp.maximum(h1 * s1_ref[...] + b1_ref[...], 0.0)
        # Dropout(0.2) -> identity in eval mode.
        h2 = jnp.dot(h1.astype(jnp.bfloat16), w2, preferred_element_type=jnp.float32)
        h2 = jnp.maximum(h2 * s2_ref[...] + b2_ref[...], 0.0)
        # Dropout(0.2) -> identity in eval mode.
        h3 = jnp.dot(h2.astype(jnp.bfloat16), w3, preferred_element_type=jnp.float32)
        o_ref[...] = jnp.maximum(h3 + b3_ref[...], 0.0).astype(o_ref.dtype)

    branch(x1_ref, o1_ref)
    branch(x2_ref, o2_ref)


def _siamese_mlp(x1, x2, params):
    """x1, x2: [M, 2048] bf16 -> ([M, 256] f32, [M, 256] f32) via one pallas_call."""
    M = x1.shape[0]
    # Batch tile: multiple of 16 (bf16 sublane pack).  Partial last tile is
    # masked by Pallas; no reduction over M, so padded rows cannot contaminate
    # valid outputs.
    tm = 256 if M >= 256 else max(16, ((M + 15) // 16) * 16)
    num_tiles = pl.cdiv(M, tm)

    w1q, s1, b1, w2q, s2, b2, w3, b3 = params

    x_spec = pl.BlockSpec((tm, D_IN), lambda i: (i, 0))
    o_spec = pl.BlockSpec((tm, D_OUT), lambda i: (i, 0))

    def resident(shape):
        # Constant block index -> DMA'd from HBM exactly once, stays in VMEM.
        return pl.BlockSpec(shape, lambda i: (0, 0))

    flops = 2 * (2 * M) * (D_IN * D_H1 + D_H1 * D_H2 + D_H2 * D_OUT)
    weight_bytes = sum(int(a.size) * a.dtype.itemsize
                       for a in (w1q, s1, b1, w2q, s2, b2, w3, b3))
    bytes_accessed = 2 * M * D_IN * 2 + weight_bytes + 2 * M * D_OUT * 4

    # Only shard the batch grid across v7x's two TensorCores when there is
    # enough work to amortize the duplicated resident-weight DMA.
    semantics = ("parallel",) if num_tiles >= 4 else ("arbitrary",)

    out1, out2 = pl.pallas_call(
        _siamese_mlp_kernel,
        out_shape=(jax.ShapeDtypeStruct((M, D_OUT), jnp.float32),
                   jax.ShapeDtypeStruct((M, D_OUT), jnp.float32)),
        grid=(num_tiles,),
        in_specs=[
            x_spec, x_spec,
            resident((D_IN, D_H1)), resident((1, D_H1)), resident((1, D_H1)),
            resident((D_H1, D_H2)), resident((1, D_H2)), resident((1, D_H2)),
            resident((D_H2, D_OUT)), resident((1, D_OUT)),
        ],
        out_specs=(o_spec, o_spec),
        compiler_params=pltpu.CompilerParams(
            dimension_semantics=semantics,
            # Footprint at tm=256 is ~21 MiB (weights + double-buffered x/out
            # tiles + dequant temporaries); 32 MiB leaves headroom and fits
            # within v7x's 64 MiB physical VMEM.
            vmem_limit_bytes=32 * 1024 * 1024,
        ),
        cost_estimate=pl.CostEstimate(
            flops=flops, transcendentals=0, bytes_accessed=bytes_accessed),
    )(x1, x2, w1q, s1, b1, w2q, s2, b2, w3, b3)
    return out1, out2


def siamese_forward(input1, input2, params):
    """Mirrors Siamese_CNN.forward: shared weights applied to both inputs,
    both branches computed in a SINGLE pallas_call (weights loaded once)."""
    B = input1.shape[0]
    # torch.squeeze drops all size-1 dims; reshape keeps a (B, 2048) matrix even
    # when B == 1.  bf16 cast at the boundary halves input HBM bytes (ideally
    # the upstream feature extractor emits bf16 directly so this fuses away).
    x1 = input1.reshape(B, D_IN).astype(jnp.bfloat16)
    x2 = input2.reshape(B, D_IN).astype(jnp.bfloat16)
    return _siamese_mlp(x1, x2, params)


def _quantize_int8(w):
    """Per-output-channel symmetric int8: w ~= w_q * scale, scale shape (1, out)."""
    amax = jnp.max(jnp.abs(w), axis=0, keepdims=True)
    scale = jnp.maximum(amax, 1e-8) / 127.0
    wq = jnp.clip(jnp.round(w / scale), -127, 127).astype(jnp.int8)
    return wq, scale.astype(jnp.float32)


def init_params(key):
    """PyTorch Linear default init: U(-1/sqrt(in), 1/sqrt(in)).
    Weights stored transposed as (in, out): W1/W2 int8 + per-channel f32 scale,
    W3 bf16; biases f32 (1, out)."""
    ks = jax.random.split(key, 6)

    def lin(kw, kb, d_in, d_out):
        bound = 1.0 / jnp.sqrt(jnp.float32(d_in))
        w = jax.random.uniform(kw, (d_in, d_out), jnp.float32, -bound, bound)
        b = jax.random.uniform(kb, (1, d_out), jnp.float32, -bound, bound)
        return w, b

    w1, b1 = lin(ks[0], ks[1], D_IN, D_H1)
    w2, b2 = lin(ks[2], ks[3], D_H1, D_H2)
    w3, b3 = lin(ks[4], ks[5], D_H2, D_OUT)
    w1q, s1 = _quantize_int8(w1)
    w2q, s2 = _quantize_int8(w2)
    # TODO(synk): on v7x an fp8 (e4m3) weight path could feed the MXU directly
    # instead of the in-kernel VPU dequant used here.
    return (w1q, s1, b1, w2q, s2, b2, w3.astype(jnp.bfloat16), b3)


def _reference(x1, x2, params):
    """Pure-JAX f32 reference using the same (de)quantized weights."""
    w1q, s1, b1, w2q, s2, b2, w3, b3 = params
    w1 = w1q.astype(jnp.float32) * s1
    w2 = w2q.astype(jnp.float32) * s2
    w3f = w3.astype(jnp.float32)

    def mlp(x):
        h = jnp.maximum(x @ w1 + b1, 0.0)
        h = jnp.maximum(h @ w2 + b2, 0.0)
        return jnp.maximum(h @ w3f + b3, 0.0)

    return mlp(x1.astype(jnp.float32)), mlp(x2.astype(jnp.float32))


if __name__ == "__main__":
    key = jax.random.PRNGKey(0)
    k_p, k_x1, k_x2 = jax.random.split(key, 3)

    params = init_params(k_p)

    B = 2
    # Inputs carry singleton dims so the in-module squeeze/reshape is meaningful.
    input1 = jax.random.normal(k_x1, (B, 1, 1, D_IN), jnp.float32)
    input2 = jax.random.normal(k_x2, (B, 1, 1, D_IN), jnp.float32)

    out1, out2 = jax.jit(siamese_forward)(input1, input2, params)
    jax.block_until_ready((out1, out2))

    assert out1.shape == (B, D_OUT) and out2.shape == (B, D_OUT)
    assert out1.dtype == jnp.float32 and out2.dtype == jnp.float32
    # ReLU output must be non-negative.
    assert bool(jnp.all(out1 >= 0.0)) and bool(jnp.all(out2 >= 0.0))
    # Siamese: different inputs through shared weights should (generically) differ.
    assert bool(jnp.any(out1 != out2))

    # Loose-tolerance check vs an f32 reference built from the same quantized
    # weights (kernel differs only by bf16 intermediate rounding).
    r1, r2 = _reference(input1.reshape(B, D_IN).astype(jnp.bfloat16),
                        input2.reshape(B, D_IN).astype(jnp.bfloat16), params)
    assert bool(jnp.allclose(out1, r1, rtol=1e-1, atol=1e-1))
    assert bool(jnp.allclose(out2, r2, rtol=1e-1, atol=1e-1))

    print("KERNEL_OK")
</pallas_src>

<mosaic_0001>
module attributes {stable_mosaic.version = 11 : i64} {
  func.func @_siamese_mlp_kernel(%arg0: i32, %arg1: memref<16x2048xbf16, #tpu.memory_space<vmem>>, %arg2: memref<16x2048xbf16, #tpu.memory_space<vmem>>, %arg3: memref<2048x1024xi8, #tpu.memory_space<vmem>>, %arg4: memref<1x1024xf32, #tpu.memory_space<vmem>>, %arg5: memref<1x1024xf32, #tpu.memory_space<vmem>>, %arg6: memref<1024x512xi8, #tpu.memory_space<vmem>>, %arg7: memref<1x512xf32, #tpu.memory_space<vmem>>, %arg8: memref<1x512xf32, #tpu.memory_space<vmem>>, %arg9: memref<512x256xbf16, #tpu.memory_space<vmem>>, %arg10: memref<1x256xf32, #tpu.memory_space<vmem>>, %arg11: memref<16x256xf32, #tpu.memory_space<vmem>>, %arg12: memref<16x256xf32, #tpu.memory_space<vmem>>) attributes {dimension_semantics = [#tpu.dimension_semantics<arbitrary>], iteration_bounds = array<i64: 1>, scalar_prefetch = 0 : i64, scratch_operands = 0 : i64, tpu.core_type = #tpu.core_type<tc>, window_params = [{transform_indices = @transform_0, window_bounds = array<i64: 16, 2048>}, {transform_indices = @transform_1, window_bounds = array<i64: 16, 2048>}, {pipeline_mode = #tpu.pipeline_mode<synchronous>, transform_indices = @transform_2, window_bounds = array<i64: 2048, 1024>}, {pipeline_mode = #tpu.pipeline_mode<synchronous>, transform_indices = @transform_3, window_bounds = array<i64: 1, 1024>}, {pipeline_mode = #tpu.pipeline_mode<synchronous>, transform_indices = @transform_4, window_bounds = array<i64: 1, 1024>}, {pipeline_mode = #tpu.pipeline_mode<synchronous>, transform_indices = @transform_5, window_bounds = array<i64: 1024, 512>}, {pipeline_mode = #tpu.pipeline_mode<synchronous>, transform_indices = @transform_6, window_bounds = array<i64: 1, 512>}, {pipeline_mode = #tpu.pipeline_mode<synchronous>, transform_indices = @transform_7, window_bounds = array<i64: 1, 512>}, {pipeline_mode = #tpu.pipeline_mode<synchronous>, transform_indices = @transform_8, window_bounds = array<i64: 512, 256>}, {pipeline_mode = #tpu.pipeline_mode<synchronous>, transform_indices = @transform_9, window_bounds = array<i64: 1, 256>}, {transform_indices = @transform_10, window_bounds = array<i64: 16, 256>}, {transform_indices = @transform_11, window_bounds = array<i64: 16, 256>}]} {
    %c0 = arith.constant 0 : index
    %c0_0 = arith.constant 0 : index
    %0 = vector.load %arg3[%c0, %c0_0] : memref<2048x1024xi8, #tpu.memory_space<vmem>>, vector<2048x1024xi8>
    %1 = arith.sitofp %0 : vector<2048x1024xi8> to vector<2048x1024xbf16>
    %c0_1 = arith.constant 0 : index
    %c0_2 = arith.constant 0 : index
    %2 = vector.load %arg6[%c0_1, %c0_2] : memref<1024x512xi8, #tpu.memory_space<vmem>>, vector<1024x512xi8>
    %3 = arith.sitofp %2 : vector<1024x512xi8> to vector<1024x512xbf16>
    %c0_3 = arith.constant 0 : index
    %c0_4 = arith.constant 0 : index
    %4 = vector.load %arg9[%c0_3, %c0_4] : memref<512x256xbf16, #tpu.memory_space<vmem>>, vector<512x256xbf16>
    %c0_5 = arith.constant 0 : index
    %c0_6 = arith.constant 0 : index
    %5 = vector.load %arg1[%c0_5, %c0_6] : memref<16x2048xbf16, #tpu.memory_space<vmem>>, vector<16x2048xbf16>
    %cst = arith.constant dense<0.000000e+00> : vector<16x1024xf32>
    %6 = tpu.matmul %5, %1, %cst {dimension_numbers = #tpu.dot_dimension_numbers<[1], [0], [0], [1], [0, 0, 1, 1], [], []>} : vector<16x2048xbf16>, vector<2048x1024xbf16>, vector<16x1024xf32> -> vector<16x1024xf32>
    %c0_7 = arith.constant 0 : index
    %c0_8 = arith.constant 0 : index
    %7 = vector.load %arg4[%c0_7, %c0_8] : memref<1x1024xf32, #tpu.memory_space<vmem>>, vector<1x1024xf32>
    %8 = vector.broadcast %7 : vector<1x1024xf32> to vector<16x1024xf32>
    %9 = arith.mulf %6, %8 : vector<16x1024xf32>
    %c0_9 = arith.constant 0 : index
    %c0_10 = arith.constant 0 : index
    %10 = vector.load %arg5[%c0_9, %c0_10] : memref<1x1024xf32, #tpu.memory_space<vmem>>, vector<1x1024xf32>
    %11 = vector.broadcast %10 : vector<1x1024xf32> to vector<16x1024xf32>
    %12 = arith.addf %9, %11 : vector<16x1024xf32>
    %cst_11 = arith.constant 0.000000e+00 : f32
    %13 = vector.broadcast %cst_11 : f32 to vector<16x1024xf32>
    %14 = arith.maximumf %12, %13 : vector<16x1024xf32>
    %15 = arith.truncf %14 : vector<16x1024xf32> to vector<16x1024xbf16>
    %cst_12 = arith.constant dense<0.000000e+00> : vector<16x512xf32>
    %16 = tpu.matmul %15, %3, %cst_12 {dimension_numbers = #tpu.dot_dimension_numbers<[1], [0], [0], [1], [0, 0, 1, 1], [], []>} : vector<16x1024xbf16>, vector<1024x512xbf16>, vector<16x512xf32> -> vector<16x512xf32>
    %c0_13 = arith.constant 0 : index
    %c0_14 = arith.constant 0 : index
    %17 = vector.load %arg7[%c0_13, %c0_14] : memref<1x512xf32, #tpu.memory_space<vmem>>, vector<1x512xf32>
    %18 = vector.broadcast %17 : vector<1x512xf32> to vector<16x512xf32>
    %19 = arith.mulf %16, %18 : vector<16x512xf32>
    %c0_15 = arith.constant 0 : index
    %c0_16 = arith.constant 0 : index
    %20 = vector.load %arg8[%c0_15, %c0_16] : memref<1x512xf32, #tpu.memory_space<vmem>>, vector<1x512xf32>
    %21 = vector.broadcast %20 : vector<1x512xf32> to vector<16x512xf32>
    %22 = arith.addf %19, %21 : vector<16x512xf32>
    %cst_17 = arith.constant 0.000000e+00 : f32
    %23 = vector.broadcast %cst_17 : f32 to vector<16x512xf32>
    %24 = arith.maximumf %22, %23 : vector<16x512xf32>
    %25 = arith.truncf %24 : vector<16x512xf32> to vector<16x512xbf16>
    %cst_18 = arith.constant dense<0.000000e+00> : vector<16x256xf32>
    %26 = tpu.matmul %25, %4, %cst_18 {dimension_numbers = #tpu.dot_dimension_numbers<[1], [0], [0], [1], [0, 0, 1, 1], [], []>} : vector<16x512xbf16>, vector<512x256xbf16>, vector<16x256xf32> -> vector<16x256xf32>
    %c0_19 = arith.constant 0 : index
    %c0_20 = arith.constant 0 : index
    %27 = vector.load %arg10[%c0_19, %c0_20] : memref<1x256xf32, #tpu.memory_space<vmem>>, vector<1x256xf32>
    %28 = vector.broadcast %27 : vector<1x256xf32> to vector<16x256xf32>
    %29 = arith.addf %26, %28 : vector<16x256xf32>
    %cst_21 = arith.constant 0.000000e+00 : f32
    %30 = vector.broadcast %cst_21 : f32 to vector<16x256xf32>
    %31 = arith.maximumf %29, %30 : vector<16x256xf32>
    %c0_22 = arith.constant 0 : index
    %c0_23 = arith.constant 0 : index
    %32 = vector.load %arg11[%c0_22, %c0_23] : memref<16x256xf32, #tpu.memory_space<vmem>>, vector<16x256xf32>
    tpu.vector_store %arg11[%c0_22, %c0_23], %31 {strides = array<i32>} : memref<16x256xf32, #tpu.memory_space<vmem>>, vector<16x256xf32>,
    %c0_24 = arith.constant 0 : index
    %c0_25 = arith.constant 0 : index
    %33 = vector.load %arg2[%c0_24, %c0_25] : memref<16x2048xbf16, #tpu.memory_space<vmem>>, vector<16x2048xbf16>
    %cst_26 = arith.constant dense<0.000000e+00> : vector<16x1024xf32>
    %34 = tpu.matmul %33, %1, %cst_26 {dimension_numbers = #tpu.dot_dimension_numbers<[1], [0], [0], [1], [0, 0, 1, 1], [], []>} : vector<16x2048xbf16>, vector<2048x1024xbf16>, vector<16x1024xf32> -> vector<16x1024xf32>
    %c0_27 = arith.constant 0 : index
    %c0_28 = arith.constant 0 : index
    %35 = vector.load %arg4[%c0_27, %c0_28] : memref<1x1024xf32, #tpu.memory_space<vmem>>, vector<1x1024xf32>
    %36 = vector.broadcast %35 : vector<1x1024xf32> to vector<16x1024xf32>
    %37 = arith.mulf %34, %36 : vector<16x1024xf32>
    %c0_29 = arith.constant 0 : index
    %c0_30 = arith.constant 0 : index
    %38 = vector.load %arg5[%c0_29, %c0_30] : memref<1x1024xf32, #tpu.memory_space<vmem>>, vector<1x1024xf32>
    %39 = vector.broadcast %38 : vector<1x1024xf32> to vector<16x1024xf32>
    %40 = arith.addf %37, %39 : vector<16x1024xf32>
    %cst_31 = arith.constant 0.000000e+00 : f32
    %41 = vector.broadcast %cst_31 : f32 to vector<16x1024xf32>
    %42 = arith.maximumf %40, %41 : vector<16x1024xf32>
    %43 = arith.truncf %42 : vector<16x1024xf32> to vector<16x1024xbf16>
    %cst_32 = arith.constant dense<0.000000e+00> : vector<16x512xf32>
    %44 = tpu.matmul %43, %3, %cst_32 {dimension_numbers = #tpu.dot_dimension_numbers<[1], [0], [0], [1], [0, 0, 1, 1], [], []>} : vector<16x1024xbf16>, vector<1024x512xbf16>, vector<16x512xf32> -> vector<16x512xf32>
    %c0_33 = arith.constant 0 : index
    %c0_34 = arith.constant 0 : index
    %45 = vector.load %arg7[%c0_33, %c0_34] : memref<1x512xf32, #tpu.memory_space<vmem>>, vector<1x512xf32>
    %46 = vector.broadcast %45 : vector<1x512xf32> to vector<16x512xf32>
    %47 = arith.mulf %44, %46 : vector<16x512xf32>
    %c0_35 = arith.constant 0 : index
    %c0_36 = arith.constant 0 : index
    %48 = vector.load %arg8[%c0_35, %c0_36] : memref<1x512xf32, #tpu.memory_space<vmem>>, vector<1x512xf32>
    %49 = vector.broadcast %48 : vector<1x512xf32> to vector<16x512xf32>
    %50 = arith.addf %47, %49 : vector<16x512xf32>
    %cst_37 = arith.constant 0.000000e+00 : f32
    %51 = vector.broadcast %cst_37 : f32 to vector<16x512xf32>
    %52 = arith.maximumf %50, %51 : vector<16x512xf32>
    %53 = arith.truncf %52 : vector<16x512xf32> to vector<16x512xbf16>
    %cst_38 = arith.constant dense<0.000000e+00> : vector<16x256xf32>
    %54 = tpu.matmul %53, %4, %cst_38 {dimension_numbers = #tpu.dot_dimension_numbers<[1], [0], [0], [1], [0, 0, 1, 1], [], []>} : vector<16x512xbf16>, vector<512x256xbf16>, vector<16x256xf32> -> vector<16x256xf32>
    %c0_39 = arith.constant 0 : index
    %c0_40 = arith.constant 0 : index
    %55 = vector.load %arg10[%c0_39, %c0_40] : memref<1x256xf32, #tpu.memory_space<vmem>>, vector<1x256xf32>
    %56 = vector.broadcast %55 : vector<1x256xf32> to vector<16x256xf32>
    %57 = arith.addf %54, %56 : vector<16x256xf32>
    %cst_41 = arith.constant 0.000000e+00 : f32
    %58 = vector.broadcast %cst_41 : f32 to vector<16x256xf32>
    %59 = arith.maximumf %57, %58 : vector<16x256xf32>
    %c0_42 = arith.constant 0 : index
    %c0_43 = arith.constant 0 : index
    %60 = vector.load %arg12[%c0_42, %c0_43] : memref<16x256xf32, #tpu.memory_space<vmem>>, vector<16x256xf32>
    tpu.vector_store %arg12[%c0_42, %c0_43], %59 {strides = array<i32>} : memref<16x256xf32, #tpu.memory_space<vmem>>, vector<16x256xf32>,
    return
  }
  func.func @transform_0(%arg0: i32) -> (i32, i32) {
    %c0_i32 = arith.constant 0 : i32
    %c0_i32_0 = arith.constant 0 : i32
    return %arg0, %c0_i32 : i32, i32
  }
  func.func @transform_1(%arg0: i32) -> (i32, i32) {
    %c0_i32 = arith.constant 0 : i32
    %c0_i32_0 = arith.constant 0 : i32
    return %arg0, %c0_i32 : i32, i32
  }
  func.func @transform_2(%arg0: i32) -> (i32, i32) {
    %c0_i32 = arith.constant 0 : i32
    %c0_i32_0 = arith.constant 0 : i32
    %c0_i32_1 = arith.constant 0 : i32
    return %c0_i32, %c0_i32_0 : i32, i32
  }
  func.func @transform_3(%arg0: i32) -> (i32, i32) {
    %c0_i32 = arith.constant 0 : i32
    %c0_i32_0 = arith.constant 0 : i32
    %c0_i32_1 = arith.constant 0 : i32
    return %c0_i32, %c0_i32_0 : i32, i32
  }
  func.func @transform_4(%arg0: i32) -> (i32, i32) {
    %c0_i32 = arith.constant 0 : i32
    %c0_i32_0 = arith.constant 0 : i32
    %c0_i32_1 = arith.constant 0 : i32
    return %c0_i32, %c0_i32_0 : i32, i32
  }
  func.func @transform_5(%arg0: i32) -> (i32, i32) {
    %c0_i32 = arith.constant 0 : i32
    %c0_i32_0 = arith.constant 0 : i32
    %c0_i32_1 = arith.constant 0 : i32
    return %c0_i32, %c0_i32_0 : i32, i32
  }
  func.func @transform_6(%arg0: i32) -> (i32, i32) {
    %c0_i32 = arith.constant 0 : i32
    %c0_i32_0 = arith.constant 0 : i32
    %c0_i32_1 = arith.constant 0 : i32
    return %c0_i32, %c0_i32_0 : i32, i32
  }
  func.func @transform_7(%arg0: i32) -> (i32, i32) {
    %c0_i32 = arith.constant 0 : i32
    %c0_i32_0 = arith.constant 0 : i32
    %c0_i32_1 = arith.constant 0 : i32
    return %c0_i32, %c0_i32_0 : i32, i32
  }
  func.func @transform_8(%arg0: i32) -> (i32, i32) {
    %c0_i32 = arith.constant 0 : i32
    %c0_i32_0 = arith.constant 0 : i32
    %c0_i32_1 = arith.constant 0 : i32
    return %c0_i32, %c0_i32_0 : i32, i32
  }
  func.func @transform_9(%arg0: i32) -> (i32, i32) {
    %c0_i32 = arith.constant 0 : i32
    %c0_i32_0 = arith.constant 0 : i32
    %c0_i32_1 = arith.constant 0 : i32
    return %c0_i32, %c0_i32_0 : i32, i32
  }
  func.func @transform_10(%arg0: i32) -> (i32, i32) {
    %c0_i32 = arith.constant 0 : i32
    %c0_i32_0 = arith.constant 0 : i32
    return %arg0, %c0_i32 : i32, i32
  }
  func.func @transform_11(%arg0: i32) -> (i32, i32) {
    %c0_i32 = arith.constant 0 : i32
    %c0_i32_0 = arith.constant 0 : i32
    return %arg0, %c0_i32 : i32, i32
  }
}

</mosaic_0001>

<llo_original>
// kernel: siamese_forward.1
$region0: #{siamese_forward.1}
  #allocation0 [shape = 'u32[]', space=smem, size = 0x4, offset = 0x4, fixed_abs, tag = 'smem constant byte address 0x4 - core index']
  #allocation1 [shape = 'u32[144,128]{1,0:T(1,128)}', space=vmem, size = 0x12000, scoped, tag = 'internal scratch']
  %s0 = inlined_call_operand.vmem [shape: bf16[2,2048], index: 0, kind: input, shape index: {}]
  %s1 = inlined_call_operand.vmem [shape: bf16[2,2048], index: 1, kind: input, shape index: {}]
  %s2 = inlined_call_operand.hbm [shape: s8[2048,1024], index: 2, kind: input, shape index: {}]
  %s3 = inlined_call_operand.hbm [shape: f32[1,1024], index: 3, kind: input, shape index: {}]
  %s4 = inlined_call_operand.hbm [shape: f32[1,1024], index: 4, kind: input, shape index: {}]
  %s5 = inlined_call_operand.hbm [shape: s8[1024,512], index: 5, kind: input, shape index: {}]
  %s6 = inlined_call_operand.hbm [shape: f32[1,512], index: 6, kind: input, shape index: {}]
  %s7 = inlined_call_operand.hbm [shape: f32[1,512], index: 7, kind: input, shape index: {}]
  %s8 = inlined_call_operand.hbm [shape: bf16[512,256], index: 8, kind: input, shape index: {}]
  %s9 = inlined_call_operand.hbm [shape: f32[1,256], index: 9, kind: input, shape index: {}]
  %s10 = inlined_call_operand.hbm [shape: f32[2,256], index: 10, kind: output, shape index: {0}]
  %s11 = inlined_call_operand.hbm [shape: f32[2,256], index: 11, kind: output, shape index: {1}]
  %12 = xla_tuple %s10, %s11
  %s13 = sld [smem:[#allocation0]]
  $region90: #{siamese_forward.1} parent=0
    _
  %s15 = ssub.s32 1, %s13
  %s16 = scalar_select 0, %s15, %s13
  $region1: #{siamese_forward.1} parent=0
    #allocation2 [shape = 'u8[2097152]{0}', space=vmem, size = 0x200000, scoped, tag = 'input window, operand 2, single buffered']
    #allocation3 [shape = 's32[1]{0}', space=sflag, size = 0x4, scoped, tag = 'scoped memory for siamese_forward.1']
    #allocation4 [shape = 's32[1]{0}', space=sflag, size = 0x4, scoped, tag = 'scoped memory for siamese_forward.1']
    #allocation5 [shape = 'u8[4096]{0}', space=vmem, size = 0x1000, scoped, tag = 'input window, operand 3, single buffered']
    #allocation6 [shape = 's32[1]{0}', space=sflag, size = 0x4, scoped, tag = 'scoped memory for siamese_forward.1']
    #allocation7 [shape = 'u8[4096]{0}', space=vmem, size = 0x1000, scoped, tag = 'input window, operand 4, single buffered']
    #allocation8 [shape = 'u8[524288]{0}', space=vmem, size = 0x80000, scoped, tag = 'input window, operand 5, single buffered']
    #allocation9 [shape = 's32[1]{0}', space=sflag, size = 0x4, scoped, tag = 'scoped memory for siamese_forward.1']
    #allocation10 [shape = 'u8[2048]{0}', space=vmem, size = 0x800, scoped, tag = 'input window, operand 6, single buffered']
    #allocation11 [shape = 'u8[2048]{0}', space=vmem, size = 0x800, scoped, tag = 'input window, operand 7, single buffered']
    #allocation12 [shape = 's32[1]{0}', space=sflag, size = 0x4, scoped, tag = 'scoped memory for siamese_forward.1']
    #allocation13 [shape = 'u8[262144]{0}', space=vmem, size = 0x40000, scoped, tag = 'input window, operand 8, single buffered']
    #allocation14 [shape = 'u8[1024]{0}', space=vmem, size = 0x400, scoped, tag = 'input window, operand 9, single buffered']
    #allocation15 [shape = 's32[1]{0}', space=sflag, size = 0x4, scoped, tag = 'scoped memory for siamese_forward.1']
    #allocation16 [shape = 'u8[16384]{0}', space=vmem, size = 0x4000, scoped, tag = 'output window, operand 0, single buffered']
    #allocation17 [shape = 'u8[16384]{0}', space=vmem, size = 0x4000, scoped, tag = 'output window, operand 1, single buffered']
    #allocation18 [shape = 's32[1]{0}', space=sflag, size = 0x4, scoped, tag = 'scoped memory for siamese_forward.1']
    %17 = vsyncpa [#allocation3], 0
    %18 = vsyncpa [#allocation6], 0
    %19 = vsyncpa [#allocation9], 0
    %20 = vsyncpa [#allocation12], 0
    %21 = vsyncpa [#allocation15], 0
    %22 = vsyncpa [#allocation4], 0
    %23 = vsyncpa [#allocation18], 0
    // Predicated region
    $region2: #{siamese_forward.1} parent=1 // pred_check
      _
    $region3: #{siamese_forward.1} parent=1 // pred_check_branch
      %25 = sbr.rel (0) target = $region5
    $region4: #{siamese_forward.1} parent=1 // pred_region
      _
    $region5: #{siamese_forward.1} parent=1 // pred_fallthru
      _
    // Predicated region
    $region6: #{siamese_forward.1} parent=1 // pred_check
      _
    $region7: #{siamese_forward.1} parent=1 // pred_check_branch
      %27 = sbr.rel (0) target = $region9
    $region8: #{siamese_forward.1} parent=1 // pred_region
      _
    $region9: #{siamese_forward.1} parent=1 // pred_fallthru
      _
    // Predicated region
    $region10: #{siamese_forward.1} parent=1 // pred_check
      _
    $region11: #{siamese_forward.1} parent=1 // pred_check_branch
      %29 = sbr.rel (0) target = $region13
    $region12: #{siamese_forward.1} parent=1 // pred_region
      %s31 = ssub.s32 65536, 65536
      %32 = vsyncadd [#allocation3], %s31
      %s33 = sshll.u32 [#allocation2], 4
      %s34 = int_to_ptr.vmem [resolvable:$true] %s33
      %39 = dma.hbm_to_vmem [thread:$0]  %s2, 65536, %s34, [#allocation3], 1024, 1024, 64
    $region13: #{siamese_forward.1} parent=1 // pred_fallthru
      _
    // Predicated region
    $region14: #{siamese_forward.1} parent=1 // pred_check
      _
    $region15: #{siamese_forward.1} parent=1 // pred_check_branch
      %41 = sbr.rel (0) target = $region17
    $region16: #{siamese_forward.1} parent=1 // pred_region
      %s43 = ssub.s32 128, 128
      %44 = vsyncadd [#allocation6], %s43
      %s46 = sshll.u32 [#allocation5], 4
      %s47 = int_to_ptr.vmem [resolvable:$true] %s46
      %49 = dma.hbm_to_vmem [thread:$0]  %s3, 128, %s47, [#allocation6]
    $region17: #{siamese_forward.1} parent=1 // pred_fallthru
      _
    // Predicated region
    $region18: #{siamese_forward.1} parent=1 // pred_check
      _
    $region19: #{siamese_forward.1} parent=1 // pred_check_branch
      %51 = sbr.rel (0) target = $region21
    $region20: #{siamese_forward.1} parent=1 // pred_region
      %s53 = ssub.s32 128, 128
      %54 = vsyncadd [#allocation6], %s53
      %s56 = sshll.u32 [#allocation7], 4
      %s57 = int_to_ptr.vmem [resolvable:$true] %s56
      %59 = dma.hbm_to_vmem [thread:$0]  %s4, 128, %s57, [#allocation6]
    $region21: #{siamese_forward.1} parent=1 // pred_fallthru
      _
    // Predicated region
    $region22: #{siamese_forward.1} parent=1 // pred_check
      _
    $region23: #{siamese_forward.1} parent=1 // pred_check_branch
      %61 = sbr.rel (0) target = $region25
    $region24: #{siamese_forward.1} parent=1 // pred_region
      %s63 = ssub.s32 16384, 16384
      %64 = vsyncadd [#allocation9], %s63
      %s65 = sshll.u32 [#allocation8], 4
      %s66 = int_to_ptr.vmem [resolvable:$true] %s65
      %71 = dma.hbm_to_vmem [thread:$0]  %s5, 16384, %s66, [#allocation9], 512, 512, 32
    $region25: #{siamese_forward.1} parent=1 // pred_fallthru
      _
    // Predicated region
    $region26: #{siamese_forward.1} parent=1 // pred_check
      _
    $region27: #{siamese_forward.1} parent=1 // pred_check_branch
      %73 = sbr.rel (0) target = $region29
    $region28: #{siamese_forward.1} parent=1 // pred_region
      %s75 = ssub.s32 64, 64
      %76 = vsyncadd [#allocation9], %s75
      %s78 = sshll.u32 [#allocation10], 4
      %s79 = int_to_ptr.vmem [resolvable:$true] %s78
      %81 = dma.hbm_to_vmem [thread:$0]  %s6, 64, %s79, [#allocation9]
    $region29: #{siamese_forward.1} parent=1 // pred_fallthru
      _
    // Predicated region
    $region30: #{siamese_forward.1} parent=1 // pred_check
      _
    $region31: #{siamese_forward.1} parent=1 // pred_check_branch
      %83 = sbr.rel (0) target = $region33
    $region32: #{siamese_forward.1} parent=1 // pred_region
      %s85 = ssub.s32 64, 64
      %86 = vsyncadd [#allocation12], %s85
      %s88 = sshll.u32 [#allocation11], 4
      %s89 = int_to_ptr.vmem [resolvable:$true] %s88
      %91 = dma.hbm_to_vmem [thread:$0]  %s7, 64, %s89, [#allocation12]
    $region33: #{siamese_forward.1} parent=1 // pred_fallthru
      _
    // Predicated region
    $region34: #{siamese_forward.1} parent=1 // pred_check
      _
    $region35: #{siamese_forward.1} parent=1 // pred_check_branch
      %93 = sbr.rel (0) target = $region37
    $region36: #{siamese_forward.1} parent=1 // pred_region
      %s95 = ssub.s32 8192, 8192
      %96 = vsyncadd [#allocation12], %s95
      %s97 = sshll.u32 [#allocation13], 4
      %s98 = int_to_ptr.vmem [resolvable:$true] %s97
      %103 = dma.hbm_to_vmem [thread:$0]  %s8, 8192, %s98, [#allocation12], 128, 128, 8
    $region37: #{siamese_forward.1} parent=1 // pred_fallthru
      _
    // Predicated region
    $region38: #{siamese_forward.1} parent=1 // pred_check
      _
    $region39: #{siamese_forward.1} parent=1 // pred_check_branch
      %105 = sbr.rel (0) target = $region41
    $region40: #{siamese_forward.1} parent=1 // pred_region
      %s107 = ssub.s32 32, 32
      %108 = vsyncadd [#allocation15], %s107
      %s110 = sshll.u32 [#allocation14], 4
      %s111 = int_to_ptr.vmem [resolvable:$true] %s110
      %113 = dma.hbm_to_vmem [thread:$0]  %s9, 32, %s111, [#allocation15]
    $region41: #{siamese_forward.1} parent=1 // pred_fallthru
      _
    // Predicated region
    $region42: #{siamese_forward.1} parent=1 // pred_check
      _
    $region43: #{siamese_forward.1} parent=1 // pred_check_branch
      %115 = sbr.rel (0) target = $region45
    $region44: #{siamese_forward.1} parent=1 // pred_region
      %116 = dma.done [#allocation3], 65536
    $region45: #{siamese_forward.1} parent=1 // pred_fallthru
      _
    // Predicated region
    $region46: #{siamese_forward.1} parent=1 // pred_check
      _
    $region47: #{siamese_forward.1} parent=1 // pred_check_branch
      %118 = sbr.rel (0) target = $region49
    $region48: #{siamese_forward.1} parent=1 // pred_region
      %119 = dma.done [#allocation6], 128
    $region49: #{siamese_forward.1} parent=1 // pred_fallthru
      _
    // Predicated region
    $region50: #{siamese_forward.1} parent=1 // pred_check
      _
    $region51: #{siamese_forward.1} parent=1 // pred_check_branch
      %121 = sbr.rel (0) target = $region53
    $region52: #{siamese_forward.1} parent=1 // pred_region
      %122 = dma.done [#allocation6], 128
    $region53: #{siamese_forward.1} parent=1 // pred_fallthru
      _
    // Predicated region
    $region54: #{siamese_forward.1} parent=1 // pred_check
      _
    $region55: #{siamese_forward.1} parent=1 // pred_check_branch
      %124 = sbr.rel (0) target = $region57
    $region56: #{siamese_forward.1} parent=1 // pred_region
      %125 = dma.done [#allocation9], 16384
    $region57: #{siamese_forward.1} parent=1 // pred_fallthru
      _
    // Predicated region
    $region58: #{siamese_forward.1} parent=1 // pred_check
      _
    $region59: #{siamese_forward.1} parent=1 // pred_check_branch
      %127 = sbr.rel (0) target = $region61
    $region60: #{siamese_forward.1} parent=1 // pred_region
      %128 = dma.done [#allocation9], 64
    $region61: #{siamese_forward.1} parent=1 // pred_fallthru
      _
    // Predicated region
    $region62: #{siamese_forward.1} parent=1 // pred_check
      _
    $region63: #{siamese_forward.1} parent=1 // pred_check_branch
      %130 = sbr.rel (0) target = $region65
    $region64: #{siamese_forward.1} parent=1 // pred_region
      %131 = dma.done [#allocation12], 64
    $region65: #{siamese_forward.1} parent=1 // pred_fallthru
      _
    // Predicated region
    $region66: #{siamese_forward.1} parent=1 // pred_check
      _
    $region67: #{siamese_forward.1} parent=1 // pred_check_branch
      %133 = sbr.rel (0) target = $region69
    $region68: #{siamese_forward.1} parent=1 // pred_region
      %134 = dma.done [#allocation12], 8192
    $region69: #{siamese_forward.1} parent=1 // pred_fallthru
      _
    // Predicated region
    $region70: #{siamese_forward.1} parent=1 // pred_check
      _
    $region71: #{siamese_forward.1} parent=1 // pred_check_branch
      %136 = sbr.rel (0) target = $region73
    $region72: #{siamese_forward.1} parent=1 // pred_region
      %137 = dma.done [#allocation15], 32
    $region73: #{siamese_forward.1} parent=1 // pred_fallthru
      _
    %v138 = vld [vmem:[#allocation2] sm:$0xff]
    %v139 = vld [vmem:[#allocation2 + $0x8] sm:$0xff]
    %v140 = vld [vmem:[#allocation2 + $0x10] sm:$0xff]
    %v141 = vld [vmem:[#allocation2 + $0x18] sm:$0xff]
    %v142 = vld [vmem:[#allocation2 + $0x20] sm:$0xff]
    %v143 = vld [vmem:[#allocation2 + $0x28] sm:$0xff]
    %v144 = vld [vmem:[#allocation2 + $0x30] sm:$0xff]
    %v145 = vld [vmem:[#allocation2 + $0x38] sm:$0xff]
    %v146 = vld [vmem:[#allocation2 + $0x40] sm:$0xff]
    %v147 = vld [vmem:[#allocation2 + $0x48] sm:$0xff]
    %v148 = vld [vmem:[#allocation2 + $0x50] sm:$0xff]
    %v149 = vld [vmem:[#allocation2 + $0x58] sm:$0xff]
    %v150 = vld [vmem:[#allocation2 + $0x60] sm:$0xff]
    %v151 = vld [vmem:[#allocation2 + $0x68] sm:$0xff]
    %v152 = vld [vmem:[#allocation2 + $0x70] sm:$0xff]
    %v153 = vld [vmem:[#allocation2 + $0x78] sm:$0xff]
    %v154 = vld [vmem:[#allocation2 + $0x80] sm:$0xff]
    %v155 = vld [vmem:[#allocation2 + $0x88] sm:$0xff]
    %v156 = vld [vmem:[#allocation2 + $0x90] sm:$0xff]
    %v157 = vld [vmem:[#allocation2 + $0x98] sm:$0xff]
    %v158 = vld [vmem:[#allocation2 + $0xa0] sm:$0xff]
    %v159 = vld [vmem:[#allocation2 + $0xa8] sm:$0xff]
    %v160 = vld [vmem:[#allocation2 + $0xb0] sm:$0xff]
    %v161 = vld [vmem:[#allocation2 + $0xb8] sm:$0xff]
    %v162 = vld [vmem:[#allocation2 + $0xc0] sm:$0xff]
    %v163 = vld [vmem:[#allocation2 + $0xc8] sm:$0xff]
    %v164 = vld [vmem:[#allocation2 + $0xd0] sm:$0xff]
    %v165 = vld [vmem:[#allocation2 + $0xd8] sm:$0xff]
    %v166 = vld [vmem:[#allocation2 + $0xe0] sm:$0xff]
    %v167 = vld [vmem:[#allocation2 + $0xe8] sm:$0xff]
    %v168 = vld [vmem:[#allocation2 + $0xf0] sm:$0xff]
    %v169 = vld [vmem:[#allocation2 + $0xf8] sm:$0xff]
    %v170 = vld [vmem:[#allocation2 + $0x100] sm:$0xff]
    %v171 = vld [vmem:[#allocation2 + $0x108] sm:$0xff]
    %v172 = vld [vmem:[#allocation2 + $0x110] sm:$0xff]
    %v173 = vld [vmem:[#allocation2 + $0x118] sm:$0xff]
    %v174 = vld [vmem:[#allocation2 + $0x120] sm:$0xff]
    %v175 = vld [vmem:[#allocation2 + $0x128] sm:$0xff]
    %v176 = vld [vmem:[#allocation2 + $0x130] sm:$0xff]
    %v177 = vld [vmem:[#allocation2 + $0x138] sm:$0xff]
    %v178 = vld [vmem:[#allocation2 + $0x140] sm:$0xff]
    %v179 = vld [vmem:[#allocation2 + $0x148] sm:$0xff]
    %v180 = vld [vmem:[#allocation2 + $0x150] sm:$0xff]
    %v181 = vld [vmem:[#allocation2 + $0x158] sm:$0xff]
    %v182 = vld [vmem:[#allocation2 + $0x160] sm:$0xff]
    %v183 = vld [vmem:[#allocation2 + $0x168] sm:$0xff]
    %v184 = vld [vmem:[#allocation2 + $0x170] sm:$0xff]
    %v185 = vld [vmem:[#allocation2 + $0x178] sm:$0xff]
    %v186 = vld [vmem:[#allocation2 + $0x180] sm:$0xff]
    %v187 = vld [vmem:[#allocation2 + $0x188] sm:$0xff]
    %v188 = vld [vmem:[#allocation2 + $0x190] sm:$0xff]
    %v189 = vld [vmem:[#allocation2 + $0x198] sm:$0xff]
    %v190 = vld [vmem:[#allocation2 + $0x1a0] sm:$0xff]
    %v191 = vld [vmem:[#allocation2 + $0x1a8] sm:$0xff]
    %v192 = vld [vmem:[#allocation2 + $0x1b0] sm:$0xff]
    %v193 = vld [vmem:[#allocation2 + $0x1b8] sm:$0xff]
    %v194 = vld [vmem:[#allocation2 + $0x1c0] sm:$0xff]
    %v195 = vld [vmem:[#allocation2 + $0x1c8] sm:$0xff]
    %v196 = vld [vmem:[#allocation2 + $0x1d0] sm:$0xff]
    %v197 = vld [vmem:[#allocation2 + $0x1d8] sm:$0xff]
    %v198 = vld [vmem:[#allocation2 + $0x1e0] sm:$0xff]
    %v199 = vld [vmem:[#allocation2 + $0x1e8] sm:$0xff]
    %v200 = vld [vmem:[#allocation2 + $0x1f0] sm:$0xff]
    %v201 = vld [vmem:[#allocation2 + $0x1f8] sm:$0xff]
    %v202 = vld [vmem:[#allocation2 + $0x200] sm:$0xff]
    %v203 = vld [vmem:[#allocation2 + $0x208] sm:$0xff]
    %v204 = vld [vmem:[#allocation2 + $0x210] sm:$0xff]
    %v205 = vld [vmem:[#allocation2 + $0x218] sm:$0xff]
    %v206 = vld [vmem:[#allocation2 + $0x220] sm:$0xff]
    %v207 = vld [vmem:[#allocation2 + $0x228] sm:$0xff]
    %v208 = vld [vmem:[#allocation2 + $0x230] sm:$0xff]
    %v209 = vld [vmem:[#allocation2 + $0x238] sm:$0xff]
    %v210 = vld [vmem:[#allocation2 + $0x240] sm:$0xff]
    %v211 = vld [vmem:[#allocation2 + $0x248] sm:$0xff]
    %v212 = vld [vmem:[#allocation2 + $0x250] sm:$0xff]
    %v213 = vld [vmem:[#allocation2 + $0x258] sm:$0xff]
    %v214 = vld [vmem:[#allocation2 + $0x260] sm:$0xff]
    %v215 = vld [vmem:[#allocation2 + $0x268] sm:$0xff]
    %v216 = vld [vmem:[#allocation2 + $0x270] sm:$0xff]
    %v217 = vld [vmem:[#allocation2 + $0x278] sm:$0xff]
    %v218 = vld [vmem:[#allocation2 + $0x280] sm:$0xff]
    %v219 = vld [vmem:[#allocation2 + $0x288] sm:$0xff]
    %v220 = vld [vmem:[#allocation2 + $0x290] sm:$0xff]
    %v221 = vld [vmem:[#allocation2 + $0x298] sm:$0xff]
    %v222 = vld [vmem:[#allocation2 + $0x2a0] sm:$0xff]
    %v223 = vld [vmem:[#allocation2 + $0x2a8] sm:$0xff]
    %v224 = vld [vmem:[#allocation2 + $0x2b0] sm:$0xff]
    %v225 = vld [vmem:[#allocation2 + $0x2b8] sm:$0xff]
    %v226 = vld [vmem:[#allocation2 + $0x2c0] sm:$0xff]
    %v227 = vld [vmem:[#allocation2 + $0x2c8] sm:$0xff]
    %v228 = vld [vmem:[#allocation2 + $0x2d0] sm:$0xff]
    %v229 = vld [vmem:[#allocation2 + $0x2d8] sm:$0xff]
    %v230 = vld [vmem:[#allocation2 + $0x2e0] sm:$0xff]
    %v231 = vld [vmem:[#allocation2 + $0x2e8] sm:$0xff]
    %v232 = vld [vmem:[#allocation2 + $0x2f0] sm:$0xff]
    %v233 = vld [vmem:[#allocation2 + $0x2f8] sm:$0xff]
    %v234 = vld [vmem:[#allocation2 + $0x300] sm:$0xff]
    %v235 = vld [vmem:[#allocation2 + $0x308] sm:$0xff]
    %v236 = vld [vmem:[#allocation2 + $0x310] sm:$0xff]
    %v237 = vld [vmem:[#allocation2 + $0x318] sm:$0xff]
    %v238 = vld [vmem:[#allocation2 + $0x320] sm:$0xff]
    %v239 = vld [vmem:[#allocation2 + $0x328] sm:$0xff]
    %v240 = vld [vmem:[#allocation2 + $0x330] sm:$0xff]
    %v241 = vld [vmem:[#allocation2 + $0x338] sm:$0xff]
    %v242 = vld [vmem:[#allocation2 + $0x340] sm:$0xff]
    %v243 = vld [vmem:[#allocation2 + $0x348] sm:$0xff]
    %v244 = vld [vmem:[#allocation2 + $0x350] sm:$0xff]
    %v245 = vld [vmem:[#allocation2 + $0x358] sm:$0xff]
    %v246 = vld [vmem:[#allocation2 + $0x360] sm:$0xff]
    %v247 = vld [vmem:[#allocation2 + $0x368] sm:$0xff]
    %v248 = vld [vmem:[#allocation2 + $0x370] sm:$0xff]
    %v249 = vld [vmem:[#allocation2 + $0x378] sm:$0xff]
    %v250 = vld [vmem:[#allocation2 + $0x380] sm:$0xff]
    %v251 = vld [vmem:[#allocation2 + $0x388] sm:$0xff]
    %v252 = vld [vmem:[#allocation2 + $0x390] sm:$0xff]
    %v253 = vld [vmem:[#allocation2 + $0x398] sm:$0xff]
    %v254 = vld [vmem:[#allocation2 + $0x3a0] sm:$0xff]
    %v255 = vld [vmem:[#allocation2 + $0x3a8] sm:$0xff]
    %v256 = vld [vmem:[#allocation2 + $0x3b0] sm:$0xff]
    %v257 = vld [vmem:[#allocation2 + $0x3b8] sm:$0xff]
    %v258 = vld [vmem:[#allocation2 + $0x3c0] sm:$0xff]
    %v259 = vld [vmem:[#allocation2 + $0x3c8] sm:$0xff]
    %v260 = vld [vmem:[#allocation2 + $0x3d0] sm:$0xff]
    %v261 = vld [vmem:[#allocation2 + $0x3d8] sm:$0xff]
    %v262 = vld [vmem:[#allocation2 + $0x3e0] sm:$0xff]
    %v263 = vld [vmem:[#allocation2 + $0x3e8] sm:$0xff]
    %v264 = vld [vmem:[#allocation2 + $0x3f0] sm:$0xff]
    %v265 = vld [vmem:[#allocation2 + $0x3f8] sm:$0xff]
    %v266 = vld [vmem:[#allocation2 + $0x400] sm:$0xff]
    %v267 = vld [vmem:[#allocation2 + $0x408] sm:$0xff]
    %v268 = vld [vmem:[#allocation2 + $0x410] sm:$0xff]
    %v269 = vld [vmem:[#allocation2 + $0x418] sm:$0xff]
    %v270 = vld [vmem:[#allocation2 + $0x420] sm:$0xff]
    %v271 = vld [vmem:[#allocation2 + $0x428] sm:$0xff]
    %v272 = vld [vmem:[#allocation2 + $0x430] sm:$0xff]
    %v273 = vld [vmem:[#allocation2 + $0x438] sm:$0xff]
    %v274 = vld [vmem:[#allocation2 + $0x440] sm:$0xff]
    %v275 = vld [vmem:[#allocation2 + $0x448] sm:$0xff]
    %v276 = vld [vmem:[#allocation2 + $0x450] sm:$0xff]
    %v277 = vld [vmem:[#allocation2 + $0x458] sm:$0xff]
    %v278 = vld [vmem:[#allocation2 + $0x460] sm:$0xff]
    %v279 = vld [vmem:[#allocation2 + $0x468] sm:$0xff]
    %v280 = vld [vmem:[#allocation2 + $0x470] sm:$0xff]
    %v281 = vld [vmem:[#allocation2 + $0x478] sm:$0xff]
    %v282 = vld [vmem:[#allocation2 + $0x480] sm:$0xff]
    %v283 = vld [vmem:[#allocation2 + $0x488] sm:$0xff]
    %v284 = vld [vmem:[#allocation2 + $0x490] sm:$0xff]
    %v285 = vld [vmem:[#allocation2 + $0x498] sm:$0xff]
    %v286 = vld [vmem:[#allocation2 + $0x4a0] sm:$0xff]
    %v287 = vld [vmem:[#allocation2 + $0x4a8] sm:$0xff]
    %v288 = vld [vmem:[#allocation2 + $0x4b0] sm:$0xff]
    %v289 = vld [vmem:[#allocation2 + $0x4b8] sm:$0xff]
    %v290 = vld [vmem:[#allocation2 + $0x4c0] sm:$0xff]
    %v291 = vld [vmem:[#allocation2 + $0x4c8] sm:$0xff]
    %v292 = vld [vmem:[#allocation2 + $0x4d0] sm:$0xff]
    %v293 = vld [vmem:[#allocation2 + $0x4d8] sm:$0xff]
    %v294 = vld [vmem:[#allocation2 + $0x4e0] sm:$0xff]
    %v295 = vld [vmem:[#allocation2 + $0x4e8] sm:$0xff]
    %v296 = vld [vmem:[#allocation2 + $0x4f0] sm:$0xff]
    %v297 = vld [vmem:[#allocation2 + $0x4f8] sm:$0xff]
    %v298 = vld [vmem:[#allocation2 + $0x500] sm:$0xff]
    %v299 = vld [vmem:[#allocation2 + $0x508] sm:$0xff]
    %v300 = vld [vmem:[#allocation2 + $0x510] sm:$0xff]
    %v301 = vld [vmem:[#allocation2 + $0x518] sm:$0xff]
    %v302 = vld [vmem:[#allocation2 + $0x520] sm:$0xff]
    %v303 = vld [vmem:[#allocation2 + $0x528] sm:$0xff]
    %v304 = vld [vmem:[#allocation2 + $0x530] sm:$0xff]
    %v305 = vld [vmem:[#allocation2 + $0x538] sm:$0xff]
    %v306 = vld [vmem:[#allocation2 + $0x540] sm:$0xff]
    %v307 = vld [vmem:[#allocation2 + $0x548] sm:$0xff]
    %v308 = vld [vmem:[#allocation2 + $0x550] sm:$0xff]
    %v309 = vld [vmem:[#allocation2 + $0x558] sm:$0xff]
    %v310 = vld [vmem:[#allocation2 + $0x560] sm:$0xff]
    %v311 = vld [vmem:[#allocation2 + $0x568] sm:$0xff]
    %v312 = vld [vmem:[#allocation2 + $0x570] sm:$0xff]
    %v313 = vld [vmem:[#allocation2 + $0x578] sm:$0xff]
    %v314 = vld [vmem:[#allocation2 + $0x580] sm:$0xff]
    %v315 = vld [vmem:[#allocation2 + $0x588] sm:$0xff]
    %v316 = vld [vmem:[#allocation2 + $0x590] sm:$0xff]
    %v317 = vld [vmem:[#allocation2 + $0x598] sm:$0xff]
    %v318 = vld [vmem:[#allocation2 + $0x5a0] sm:$0xff]
    %v319 = vld [vmem:[#allocation2 + $0x5a8] sm:$0xff]
    %v320 = vld [vmem:[#allocation2 + $0x5b0] sm:$0xff]
    %v321 = vld [vmem:[#allocation2 + $0x5b8] sm:$0xff]
    %v322 = vld [vmem:[#allocation2 + $0x5c0] sm:$0xff]
    %v323 = vld [vmem:[#allocation2 + $0x5c8] sm:$0xff]
    %v324 = vld [vmem:[#allocation2 + $0x5d0] sm:$0xff]
    %v325 = vld [vmem:[#allocation2 + $0x5d8] sm:$0xff]
    %v326 = vld [vmem:[#allocation2 + $0x5e0] sm:$0xff]
    %v327 = vld [vmem:[#allocation2 + $0x5e8] sm:$0xff]
    %v328 = vld [vmem:[#allocation2 + $0x5f0] sm:$0xff]
    %v329 = vld [vmem:[#allocation2 + $0x5f8] sm:$0xff]
    %v330 = vld [vmem:[#allocation2 + $0x600] sm:$0xff]
    %v331 = vld [vmem:[#allocation2 + $0x608] sm:$0xff]
    %v332 = vld [vmem:[#allocation2 + $0x610] sm:$0xff]
    %v333 = vld [vmem:[#allocation2 + $0x618] sm:$0xff]
    %v334 = vld [vmem:[#allocation2 + $0x620] sm:$0xff]
    %v335 = vld [vmem:[#allocation2 + $0x628] sm:$0xff]
    %v336 = vld [vmem:[#allocation2 + $0x630] sm:$0xff]
    %v337 = vld [vmem:[#allocation2 + $0x638] sm:$0xff]
    %v338 = vld [vmem:[#allocation2 + $0x640] sm:$0xff]
    %v339 = vld [vmem:[#allocation2 + $0x648] sm:$0xff]
    %v340 = vld [vmem:[#allocation2 + $0x650] sm:$0xff]
    %v341 = vld [vmem:[#allocation2 + $0x658] sm:$0xff]
    %v342 = vld [vmem:[#allocation2 + $0x660] sm:$0xff]
    %v343 = vld [vmem:[#allocation2 + $0x668] sm:$0xff]
    %v344 = vld [vmem:[#allocation2 + $0x670] sm:$0xff]
    %v345 = vld [vmem:[#allocation2 + $0x678] sm:$0xff]
    %v346 = vld [vmem:[#allocation2 + $0x680] sm:$0xff]
    %v347 = vld [vmem:[#allocation2 + $0x688] sm:$0xff]
    %v348 = vld [vmem:[#allocation2 + $0x690] sm:$0xff]
    %v349 = vld [vmem:[#allocation2 + $0x698] sm:$0xff]
    %v350 = vld [vmem:[#allocation2 + $0x6a0] sm:$0xff]
    %v351 = vld [vmem:[#allocation2 + $0x6a8] sm:$0xff]
    %v352 = vld [vmem:[#allocation2 + $0x6b0] sm:$0xff]
    %v353 = vld [vmem:[#allocation2 + $0x6b8] sm:$0xff]
    %v354 = vld [vmem:[#allocation2 + $0x6c0] sm:$0xff]
    %v355 = vld [vmem:[#allocation2 + $0x6c8] sm:$0xff]
    %v356 = vld [vmem:[#allocation2 + $0x6d0] sm:$0xff]
    %v357 = vld [vmem:[#allocation2 + $0x6d8] sm:$0xff]
    %v358 = vld [vmem:[#allocation2 + $0x6e0] sm:$0xff]
    %v359 = vld [vmem:[#allocation2 + $0x6e8] sm:$0xff]
    %v360 = vld [vmem:[#allocation2 + $0x6f0] sm:$0xff]
    %v361 = vld [vmem:[#allocation2 + $0x6f8] sm:$0xff]
    %v362 = vld [vmem:[#allocation2 + $0x700] sm:$0xff]
    %v363 = vld [vmem:[#allocation2 + $0x708] sm:$0xff]
    %v364 = vld [vmem:[#allocation2 + $0x710] sm:$0xff]
    %v365 = vld [vmem:[#allocation2 + $0x718] sm:$0xff]
    %v366 = vld [vmem:[#allocation2 + $0x720] sm:$0xff]
    %v367 = vld [vmem:[#allocation2 + $0x728] sm:$0xff]
    %v368 = vld [vmem:[#allocation2 + $0x730] sm:$0xff]
    %v369 = vld [vmem:[#allocation2 + $0x738] sm:$0xff]
    %v370 = vld [vmem:[#allocation2 + $0x740] sm:$0xff]
    %v371 = vld [vmem:[#allocation2 + $0x748] sm:$0xff]
    %v372 = vld [vmem:[#allocation2 + $0x750] sm:$0xff]
    %v373 = vld [vmem:[#allocation2 + $0x758] sm:$0xff]
    %v374 = vld [vmem:[#allocation2 + $0x760] sm:$0xff]
    %v375 = vld [vmem:[#allocation2 + $0x768] sm:$0xff]
    %v376 = vld [vmem:[#allocation2 + $0x770] sm:$0xff]
    %v377 = vld [vmem:[#allocation2 + $0x778] sm:$0xff]
    %v378 = vld [vmem:[#allocation2 + $0x780] sm:$0xff]
    %v379 = vld [vmem:[#allocation2 + $0x788] sm:$0xff]
    %v380 = vld [vmem:[#allocation2 + $0x790] sm:$0xff]
    %v381 = vld [vmem:[#allocation2 + $0x798] sm:$0xff]
    %v382 = vld [vmem:[#allocation2 + $0x7a0] sm:$0xff]
    %v383 = vld [vmem:[#allocation2 + $0x7a8] sm:$0xff]
    %v384 = vld [vmem:[#allocation2 + $0x7b0] sm:$0xff]
    %v385 = vld [vmem:[#allocation2 + $0x7b8] sm:$0xff]
    %v386 = vld [vmem:[#allocation2 + $0x7c0] sm:$0xff]
    %v387 = vld [vmem:[#allocation2 + $0x7c8] sm:$0xff]
    %v388 = vld [vmem:[#allocation2 + $0x7d0] sm:$0xff]
    %v389 = vld [vmem:[#allocation2 + $0x7d8] sm:$0xff]
    %v390 = vld [vmem:[#allocation2 + $0x7e0] sm:$0xff]
    %v391 = vld [vmem:[#allocation2 + $0x7e8] sm:$0xff]
    %v392 = vld [vmem:[#allocation2 + $0x7f0] sm:$0xff]
    %v393 = vld [vmem:[#allocation2 + $0x7f8] sm:$0xff]
    %v394 = vld [vmem:[#allocation2 + $0x800] sm:$0xff]
    %v395 = vld [vmem:[#allocation2 + $0x808] sm:$0xff]
    %v396 = vld [vmem:[#allocation2 + $0x810] sm:$0xff]
    %v397 = vld [vmem:[#allocation2 + $0x818] sm:$0xff]
    %v398 = vld [vmem:[#allocation2 + $0x820] sm:$0xff]
    %v399 = vld [vmem:[#allocation2 + $0x828] sm:$0xff]
    %v400 = vld [vmem:[#allocation2 + $0x830] sm:$0xff]
    %v401 = vld [vmem:[#allocation2 + $0x838] sm:$0xff]
    %v402 = vld [vmem:[#allocation2 + $0x840] sm:$0xff]
    %v403 = vld [vmem:[#allocation2 + $0x848] sm:$0xff]
    %v404 = vld [vmem:[#allocation2 + $0x850] sm:$0xff]
    %v405 = vld [vmem:[#allocation2 + $0x858] sm:$0xff]
    %v406 = vld [vmem:[#allocation2 + $0x860] sm:$0xff]
    %v407 = vld [vmem:[#allocation2 + $0x868] sm:$0xff]
    %v408 = vld [vmem:[#allocation2 + $0x870] sm:$0xff]
    %v409 = vld [vmem:[#allocation2 + $0x878] sm:$0xff]
    %v410 = vld [vmem:[#allocation2 + $0x880] sm:$0xff]
    %v411 = vld [vmem:[#allocation2 + $0x888] sm:$0xff]
    %v412 = vld [vmem:[#allocation2 + $0x890] sm:$0xff]
    %v413 = vld [vmem:[#allocation2 + $0x898] sm:$0xff]
    %v414 = vld [vmem:[#allocation2 + $0x8a0] sm:$0xff]
    %v415 = vld [vmem:[#allocation2 + $0x8a8] sm:$0xff]
    %v416 = vld [vmem:[#allocation2 + $0x8b0] sm:$0xff]
    %v417 = vld [vmem:[#allocation2 + $0x8b8] sm:$0xff]
    %v418 = vld [vmem:[#allocation2 + $0x8c0] sm:$0xff]
    %v419 = vld [vmem:[#allocation2 + $0x8c8] sm:$0xff]
    %v420 = vld [vmem:[#allocation2 + $0x8d0] sm:$0xff]
    %v421 = vld [vmem:[#allocation2 + $0x8d8] sm:$0xff]
    %v422 = vld [vmem:[#allocation2 + $0x8e0] sm:$0xff]
    %v423 = vld [vmem:[#allocation2 + $0x8e8] sm:$0xff]
    %v424 = vld [vmem:[#allocation2 + $0x8f0] sm:$0xff]
    %v425 = vld [vmem:[#allocation2 + $0x8f8] sm:$0xff]
    %v426 = vld [vmem:[#allocation2 + $0x900] sm:$0xff]
    %v427 = vld [vmem:[#allocation2 + $0x908] sm:$0xff]
    %v428 = vld [vmem:[#allocation2 + $0x910] sm:$0xff]
    %v429 = vld [vmem:[#allocation2 + $0x918] sm:$0xff]
    %v430 = vld [vmem:[#allocation2 + $0x920] sm:$0xff]
    %v431 = vld [vmem:[#allocation2 + $0x928] sm:$0xff]
    %v432 = vld [vmem:[#allocation2 + $0x930] sm:$0xff]
    %v433 = vld [vmem:[#allocation2 + $0x938] sm:$0xff]
    %v434 = vld [vmem:[#allocation2 + $0x940] sm:$0xff]
    %v435 = vld [vmem:[#allocation2 + $0x948] sm:$0xff]
    %v436 = vld [vmem:[#allocation2 + $0x950] sm:$0xff]
    %v437 = vld [vmem:[#allocation2 + $0x958] sm:$0xff]
    %v438 = vld [vmem:[#allocation2 + $0x960] sm:$0xff]
    %v439 = vld [vmem:[#allocation2 + $0x968] sm:$0xff]
    %v440 = vld [vmem:[#allocation2 + $0x970] sm:$0xff]
    %v441 = vld [vmem:[#allocation2 + $0x978] sm:$0xff]
    %v442 = vld [vmem:[#allocation2 + $0x980] sm:$0xff]
    %v443 = vld [vmem:[#allocation2 + $0x988] sm:$0xff]
    %v444 = vld [vmem:[#allocation2 + $0x990] sm:$0xff]
    %v445 = vld [vmem:[#allocation2 + $0x998] sm:$0xff]
    %v446 = vld [vmem:[#allocation2 + $0x9a0] sm:$0xff]
    %v447 = vld [vmem:[#allocation2 + $0x9a8] sm:$0xff]
    %v448 = vld [vmem:[#allocation2 + $0x9b0] sm:$0xff]
    %v449 = vld [vmem:[#allocation2 + $0x9b8] sm:$0xff]
    %v450 = vld [vmem:[#allocation2 + $0x9c0] sm:$0xff]
    %v451 = vld [vmem:[#allocation2 + $0x9c8] sm:$0xff]
    %v452 = vld [vmem:[#allocation2 + $0x9d0] sm:$0xff]
    %v453 = vld [vmem:[#allocation2 + $0x9d8] sm:$0xff]
    %v454 = vld [vmem:[#allocation2 + $0x9e0] sm:$0xff]
    %v455 = vld [vmem:[#allocation2 + $0x9e8] sm:$0xff]
    %v456 = vld [vmem:[#allocation2 + $0x9f0] sm:$0xff]
    %v457 = vld [vmem:[#allocation2 + $0x9f8] sm:$0xff]
    %v458 = vld [vmem:[#allocation2 + $0xa00] sm:$0xff]
    %v459 = vld [vmem:[#allocation2 + $0xa08] sm:$0xff]
    %v460 = vld [vmem:[#allocation2 + $0xa10] sm:$0xff]
    %v461 = vld [vmem:[#allocation2 + $0xa18] sm:$0xff]
    %v462 = vld [vmem:[#allocation2 + $0xa20] sm:$0xff]
    %v463 = vld [vmem:[#allocation2 + $0xa28] sm:$0xff]
    %v464 = vld [vmem:[#allocation2 + $0xa30] sm:$0xff]
    %v465 = vld [vmem:[#allocation2 + $0xa38] sm:$0xff]
    %v466 = vld [vmem:[#allocation2 + $0xa40] sm:$0xff]
    %v467 = vld [vmem:[#allocation2 + $0xa48] sm:$0xff]
    %v468 = vld [vmem:[#allocation2 + $0xa50] sm:$0xff]
    %v469 = vld [vmem:[#allocation2 + $0xa58] sm:$0xff]
    %v470 = vld [vmem:[#allocation2 + $0xa60] sm:$0xff]
    %v471 = vld [vmem:[#allocation2 + $0xa68] sm:$0xff]
    %v472 = vld [vmem:[#allocation2 + $0xa70] sm:$0xff]
    %v473 = vld [vmem:[#allocation2 + $0xa78] sm:$0xff]
    %v474 = vld [vmem:[#allocation2 + $0xa80] sm:$0xff]
    %v475 = vld [vmem:[#allocation2 + $0xa88] sm:$0xff]
    %v476 = vld [vmem:[#allocation2 + $0xa90] sm:$0xff]
    %v477 = vld [vmem:[#allocation2 + $0xa98] sm:$0xff]
    %v478 = vld [vmem:[#allocation2 + $0xaa0] sm:$0xff]
    %v479 = vld [vmem:[#allocation2 + $0xaa8] sm:$0xff]
    %v480 = vld [vmem:[#allocation2 + $0xab0] sm:$0xff]
    %v481 = vld [vmem:[#allocation2 + $0xab8] sm:$0xff]
    %v482 = vld [vmem:[#allocation2 + $0xac0] sm:$0xff]
    %v483 = vld [vmem:[#allocation2 + $0xac8] sm:$0xff]
    %v484 = vld [vmem:[#allocation2 + $0xad0] sm:$0xff]
    %v485 = vld [vmem:[#allocation2 + $0xad8] sm:$0xff]
    %v486 = vld [vmem:[#allocation2 + $0xae0] sm:$0xff]
    %v487 = vld [vmem:[#allocation2 + $0xae8] sm:$0xff]
    %v488 = vld [vmem:[#allocation2 + $0xaf0] sm:$0xff]
    %v489 = vld [vmem:[#allocation2 + $0xaf8] sm:$0xff]
    %v490 = vld [vmem:[#allocation2 + $0xb00] sm:$0xff]
    %v491 = vld [vmem:[#allocation2 + $0xb08] sm:$0xff]
    %v492 = vld [vmem:[#allocation2 + $0xb10] sm:$0xff]
    %v493 = vld [vmem:[#allocation2 + $0xb18] sm:$0xff]
    %v494 = vld [vmem:[#allocation2 + $0xb20] sm:$0xff]
    %v495 = vld [vmem:[#allocation2 + $0xb28] sm:$0xff]
    %v496 = vld [vmem:[#allocation2 + $0xb30] sm:$0xff]
    %v497 = vld [vmem:[#allocation2 + $0xb38] sm:$0xff]
    %v498 = vld [vmem:[#allocation2 + $0xb40] sm:$0xff]
    %v499 = vld [vmem:[#allocation2 + $0xb48] sm:$0xff]
    %v500 = vld [vmem:[#allocation2 + $0xb50] sm:$0xff]
    %v501 = vld [vmem:[#allocation2 + $0xb58] sm:$0xff]
    %v502 = vld [vmem:[#allocation2 + $0xb60] sm:$0xff]
    %v503 = vld [vmem:[#allocation2 + $0xb68] sm:$0xff]
    %v504 = vld [vmem:[#allocation2 + $0xb70] sm:$0xff]
    %v505 = vld [vmem:[#allocation2 + $0xb78] sm:$0xff]
    %v506 = vld [vmem:[#allocation2 + $0xb80] sm:$0xff]
    %v507 = vld [vmem:[#allocation2 + $0xb88] sm:$0xff]
    %v508 = vld [vmem:[#allocation2 + $0xb90] sm:$0xff]
    %v509 = vld [vmem:[#allocation2 + $0xb98] sm:$0xff]
    %v510 = vld [vmem:[#allocation2 + $0xba0] sm:$0xff]
    %v511 = vld [vmem:[#allocation2 + $0xba8] sm:$0xff]
    %v512 = vld [vmem:[#allocation2 + $0xbb0] sm:$0xff]
    %v513 = vld [vmem:[#allocation2 + $0xbb8] sm:$0xff]
    %v514 = vld [vmem:[#allocation2 + $0xbc0] sm:$0xff]
    %v515 = vld [vmem:[#allocation2 + $0xbc8] sm:$0xff]
    %v516 = vld [vmem:[#allocation2 + $0xbd0] sm:$0xff]
    %v517 = vld [vmem:[#allocation2 + $0xbd8] sm:$0xff]
    %v518 = vld [vmem:[#allocation2 + $0xbe0] sm:$0xff]
    %v519 = vld [vmem:[#allocation2 + $0xbe8] sm:$0xff]
    %v520 = vld [vmem:[#allocation2 + $0xbf0] sm:$0xff]
    %v521 = vld [vmem:[#allocation2 + $0xbf8] sm:$0xff]
    %v522 = vld [vmem:[#allocation2 + $0xc00] sm:$0xff]
    %v523 = vld [vmem:[#allocation2 + $0xc08] sm:$0xff]
    %v524 = vld [vmem:[#allocation2 + $0xc10] sm:$0xff]
    %v525 = vld [vmem:[#allocation2 + $0xc18] sm:$0xff]
    %v526 = vld [vmem:[#allocation2 + $0xc20] sm:$0xff]
    %v527 = vld [vmem:[#allocation2 + $0xc28] sm:$0xff]
    %v528 = vld [vmem:[#allocation2 + $0xc30] sm:$0xff]
    %v529 = vld [vmem:[#allocation2 + $0xc38] sm:$0xff]
    %v530 = vld [vmem:[#allocation2 + $0xc40] sm:$0xff]
    %v531 = vld [vmem:[#allocation2 + $0xc48] sm:$0xff]
    %v532 = vld [vmem:[#allocation2 + $0xc50] sm:$0xff]
    %v533 = vld [vmem:[#allocation2 + $0xc58] sm:$0xff]
    %v534 = vld [vmem:[#allocation2 + $0xc60] sm:$0xff]
    %v535 = vld [vmem:[#allocation2 + $0xc68] sm:$0xff]
    %v536 = vld [vmem:[#allocation2 + $0xc70] sm:$0xff]
    %v537 = vld [vmem:[#allocation2 + $0xc78] sm:$0xff]
    %v538 = vld [vmem:[#allocation2 + $0xc80] sm:$0xff]
    %v539 = vld [vmem:[#allocation2 + $0xc88] sm:$0xff]
    %v540 = vld [vmem:[#allocation2 + $0xc90] sm:$0xff]
    %v541 = vld [vmem:[#allocation2 + $0xc98] sm:$0xff]
    %v542 = vld [vmem:[#allocation2 + $0xca0] sm:$0xff]
    %v543 = vld [vmem:[#allocation2 + $0xca8] sm:$0xff]
    %v544 = vld [vmem:[#allocation2 + $0xcb0] sm:$0xff]
    %v545 = vld [vmem:[#allocation2 + $0xcb8] sm:$0xff]
    %v546 = vld [vmem:[#allocation2 + $0xcc0] sm:$0xff]
    %v547 = vld [vmem:[#allocation2 + $0xcc8] sm:$0xff]
    %v548 = vld [vmem:[#allocation2 + $0xcd0] sm:$0xff]
    %v549 = vld [vmem:[#allocation2 + $0xcd8] sm:$0xff]
    %v550 = vld [vmem:[#allocation2 + $0xce0] sm:$0xff]
    %v551 = vld [vmem:[#allocation2 + $0xce8] sm:$0xff]
    %v552 = vld [vmem:[#allocation2 + $0xcf0] sm:$0xff]
    %v553 = vld [vmem:[#allocation2 + $0xcf8] sm:$0xff]
    %v554 = vld [vmem:[#allocation2 + $0xd00] sm:$0xff]
    %v555 = vld [vmem:[#allocation2 + $0xd08] sm:$0xff]
    %v556 = vld [vmem:[#allocation2 + $0xd10] sm:$0xff]
    %v557 = vld [vmem:[#allocation2 + $0xd18] sm:$0xff]
    %v558 = vld [vmem:[#allocation2 + $0xd20] sm:$0xff]
    %v559 = vld [vmem:[#allocation2 + $0xd28] sm:$0xff]
    %v560 = vld [vmem:[#allocation2 + $0xd30] sm:$0xff]
    %v561 = vld [vmem:[#allocation2 + $0xd38] sm:$0xff]
    %v562 = vld [vmem:[#allocation2 + $0xd40] sm:$0xff]
    %v563 = vld [vmem:[#allocation2 + $0xd48] sm:$0xff]
    %v564 = vld [vmem:[#allocation2 + $0xd50] sm:$0xff]
    %v565 = vld [vmem:[#allocation2 + $0xd58] sm:$0xff]
    %v566 = vld [vmem:[#allocation2 + $0xd60] sm:$0xff]
    %v567 = vld [vmem:[#allocation2 + $0xd68] sm:$0xff]
    %v568 = vld [vmem:[#allocation2 + $0xd70] sm:$0xff]
    %v569 = vld [vmem:[#allocation2 + $0xd78] sm:$0xff]
    %v570 = vld [vmem:[#allocation2 + $0xd80] sm:$0xff]
    %v571 = vld [vmem:[#allocation2 + $0xd88] sm:$0xff]
    %v572 = vld [vmem:[#allocation2 + $0xd90] sm:$0xff]
    %v573 = vld [vmem:[#allocation2 + $0xd98] sm:$0xff]
    %v574 = vld [vmem:[#allocation2 + $0xda0] sm:$0xff]
    %v575 = vld [vmem:[#allocation2 + $0xda8] sm:$0xff]
    %v576 = vld [vmem:[#allocation2 + $0xdb0] sm:$0xff]
    %v577 = vld [vmem:[#allocation2 + $0xdb8] sm:$0xff]
    %v578 = vld [vmem:[#allocation2 + $0xdc0] sm:$0xff]
    %v579 = vld [vmem:[#allocation2 + $0xdc8] sm:$0xff]
    %v580 = vld [vmem:[#allocation2 + $0xdd0] sm:$0xff]
    %v581 = vld [vmem:[#allocation2 + $0xdd8] sm:$0xff]
    %v582 = vld [vmem:[#allocation2 + $0xde0] sm:$0xff]
    %v583 = vld [vmem:[#allocation2 + $0xde8] sm:$0xff]
    %v584 = vld [vmem:[#allocation2 + $0xdf0] sm:$0xff]
    %v585 = vld [vmem:[#allocation2 + $0xdf8] sm:$0xff]
    %v586 = vld [vmem:[#allocation2 + $0xe00] sm:$0xff]
    %v587 = vld [vmem:[#allocation2 + $0xe08] sm:$0xff]
    %v588 = vld [vmem:[#allocation2 + $0xe10] sm:$0xff]
    %v589 = vld [vmem:[#allocation2 + $0xe18] sm:$0xff]
    %v590 = vld [vmem:[#allocation2 + $0xe20] sm:$0xff]
    %v591 = vld [vmem:[#allocation2 + $0xe28] sm:$0xff]
    %v592 = vld [vmem:[#allocation2 + $0xe30] sm:$0xff]
    %v593 = vld [vmem:[#allocation2 + $0xe38] sm:$0xff]
    %v594 = vld [vmem:[#allocation2 + $0xe40] sm:$0xff]
    %v595 = vld [vmem:[#allocation2 + $0xe48] sm:$0xff]
    %v596 = vld [vmem:[#allocation2 + $0xe50] sm:$0xff]
    %v597 = vld [vmem:[#allocation2 + $0xe58] sm:$0xff]
    %v598 = vld [vmem:[#allocation2 + $0xe60] sm:$0xff]
    %v599 = vld [vmem:[#allocation2 + $0xe68] sm:$0xff]
    %v600 = vld [vmem:[#allocation2 + $0xe70] sm:$0xff]
    %v601 = vld [vmem:[#allocation2 + $0xe78] sm:$0xff]
    %v602 = vld [vmem:[#allocation2 + $0xe80] sm:$0xff]
    %v603 = vld [vmem:[#allocation2 + $0xe88] sm:$0xff]
    %v604 = vld [vmem:[#allocation2 + $0xe90] sm:$0xff]
    %v605 = vld [vmem:[#allocation2 + $0xe98] sm:$0xff]
    %v606 = vld [vmem:[#allocation2 + $0xea0] sm:$0xff]
    %v607 = vld [vmem:[#allocation2 + $0xea8] sm:$0xff]
    %v608 = vld [vmem:[#allocation2 + $0xeb0] sm:$0xff]
    %v609 = vld [vmem:[#allocation2 + $0xeb8] sm:$0xff]
    %v610 = vld [vmem:[#allocation2 + $0xec0] sm:$0xff]
    %v611 = vld [vmem:[#allocation2 + $0xec8] sm:$0xff]
    %v612 = vld [vmem:[#allocation2 + $0xed0] sm:$0xff]
    %v613 = vld [vmem:[#allocation2 + $0xed8] sm:$0xff]
    %v614 = vld [vmem:[#allocation2 + $0xee0] sm:$0xff]
    %v615 = vld [vmem:[#allocation2 + $0xee8] sm:$0xff]
    %v616 = vld [vmem:[#allocation2 + $0xef0] sm:$0xff]
    %v617 = vld [vmem:[#allocation2 + $0xef8] sm:$0xff]
    %v618 = vld [vmem:[#allocation2 + $0xf00] sm:$0xff]
    %v619 = vld [vmem:[#allocation2 + $0xf08] sm:$0xff]
    %v620 = vld [vmem:[#allocation2 + $0xf10] sm:$0xff]
    %v621 = vld [vmem:[#allocation2 + $0xf18] sm:$0xff]
    %v622 = vld [vmem:[#allocation2 + $0xf20] sm:$0xff]
    %v623 = vld [vmem:[#allocation2 + $0xf28] sm:$0xff]
    %v624 = vld [vmem:[#allocation2 + $0xf30] sm:$0xff]
    %v625 = vld [vmem:[#allocation2 + $0xf38] sm:$0xff]
    %v626 = vld [vmem:[#allocation2 + $0xf40] sm:$0xff]
    %v627 = vld [vmem:[#allocation2 + $0xf48] sm:$0xff]
    %v628 = vld [vmem:[#allocation2 + $0xf50] sm:$0xff]
    %v629 = vld [vmem:[#allocation2 + $0xf58] sm:$0xff]
    %v630 = vld [vmem:[#allocation2 + $0xf60] sm:$0xff]
    %v631 = vld [vmem:[#allocation2 + $0xf68] sm:$0xff]
    %v632 = vld [vmem:[#allocation2 + $0xf70] sm:$0xff]
    %v633 = vld [vmem:[#allocation2 + $0xf78] sm:$0xff]
    %v634 = vld [vmem:[#allocation2 + $0xf80] sm:$0xff]
    %v635 = vld [vmem:[#allocation2 + $0xf88] sm:$0xff]
    %v636 = vld [vmem:[#allocation2 + $0xf90] sm:$0xff]
    %v637 = vld [vmem:[#allocation2 + $0xf98] sm:$0xff]
    %v638 = vld [vmem:[#allocation2 + $0xfa0] sm:$0xff]
    %v639 = vld [vmem:[#allocation2 + $0xfa8] sm:$0xff]
    %v640 = vld [vmem:[#allocation2 + $0xfb0] sm:$0xff]
    %v641 = vld [vmem:[#allocation2 + $0xfb8] sm:$0xff]
    %v642 = vld [vmem:[#allocation2 + $0xfc0] sm:$0xff]
    %v643 = vld [vmem:[#allocation2 + $0xfc8] sm:$0xff]
    %v644 = vld [vmem:[#allocation2 + $0xfd0] sm:$0xff]
    %v645 = vld [vmem:[#allocation2 + $0xfd8] sm:$0xff]
    %v646 = vld [vmem:[#allocation2 + $0xfe0] sm:$0xff]
    %v647 = vld [vmem:[#allocation2 + $0xfe8] sm:$0xff]
    %v648 = vld [vmem:[#allocation2 + $0xff0] sm:$0xff]
    %v649 = vld [vmem:[#allocation2 + $0xff8] sm:$0xff]
    %v650 = vunpack.c.l.s8.bf16 %v138
    %v651 = vunpack.c.l.s8.bf16 %v139
    %v652 = vunpack.c.l.s8.bf16 %v140
    %v653 = vunpack.c.l.s8.bf16 %v141
    %v654 = vunpack.c.l.s8.bf16 %v142
    %v655 = vunpack.c.l.s8.bf16 %v143
    %v656 = vunpack.c.l.s8.bf16 %v144
    %v657 = vunpack.c.l.s8.bf16 %v145
    %v658 = vunpack.c.h.s8.bf16 %v138
    %v659 = vunpack.c.h.s8.bf16 %v139
    %v660 = vunpack.c.h.s8.bf16 %v140
    %v661 = vunpack.c.h.s8.bf16 %v141
    %v662 = vunpack.c.h.s8.bf16 %v142
    %v663 = vunpack.c.h.s8.bf16 %v143
    %v664 = vunpack.c.h.s8.bf16 %v144
    %v665 = vunpack.c.h.s8.bf16 %v145
    %v666 = vunpack.c.l.s8.bf16 %v146
    %v667 = vunpack.c.l.s8.bf16 %v147
    %v668 = vunpack.c.l.s8.bf16 %v148
    %v669 = vunpack.c.l.s8.bf16 %v149
    %v670 = vunpack.c.l.s8.bf16 %v150
    %v671 = vunpack.c.l.s8.bf16 %v151
    %v672 = vunpack.c.l.s8.bf16 %v152
    %v673 = vunpack.c.l.s8.bf16 %v153
    %v674 = vunpack.c.h.s8.bf16 %v146
    %v675 = vunpack.c.h.s8.bf16 %v147
    %v676 = vunpack.c.h.s8.bf16 %v148
    %v677 = vunpack.c.h.s8.bf16 %v149
    %v678 = vunpack.c.h.s8.bf16 %v150
    %v679 = vunpack.c.h.s8.bf16 %v151
    %v680 = vunpack.c.h.s8.bf16 %v152
    %v681 = vunpack.c.h.s8.bf16 %v153
    %v682 = vunpack.c.l.s8.bf16 %v154
    %v683 = vunpack.c.l.s8.bf16 %v155
    %v684 = vunpack.c.l.s8.bf16 %v156
    %v685 = vunpack.c.l.s8.bf16 %v157
    %v686 = vunpack.c.l.s8.bf16 %v158
    %v687 = vunpack.c.l.s8.bf16 %v159
    %v688 = vunpack.c.l.s8.bf16 %v160
    %v689 = vunpack.c.l.s8.bf16 %v161
    %v690 = vunpack.c.h.s8.bf16 %v154
    %v691 = vunpack.c.h.s8.bf16 %v155
    %v692 = vunpack.c.h.s8.bf16 %v156
    %v693 = vunpack.c.h.s8.bf16 %v157
    %v694 = vunpack.c.h.s8.bf16 %v158
    %v695 = vunpack.c.h.s8.bf16 %v159
    %v696 = vunpack.c.h.s8.bf16 %v160
    %v697 = vunpack.c.h.s8.bf16 %v161
    %v698 = vunpack.c.l.s8.bf16 %v162
    %v699 = vunpack.c.l.s8.bf16 %v163
    %v700 = vunpack.c.l.s8.bf16 %v164
    %v701 = vunpack.c.l.s8.bf16 %v165
    %v702 = vunpack.c.l.s8.bf16 %v166
    %v703 = vunpack.c.l.s8.bf16 %v167
    %v704 = vunpack.c.l.s8.bf16 %v168
    %v705 = vunpack.c.l.s8.bf16 %v169
    %v706 = vunpack.c.h.s8.bf16 %v162
    %v707 = vunpack.c.h.s8.bf16 %v163
    %v708 = vunpack.c.h.s8.bf16 %v164
    %v709 = vunpack.c.h.s8.bf16 %v165
    %v710 = vunpack.c.h.s8.bf16 %v166
    %v711 = vunpack.c.h.s8.bf16 %v167
    %v712 = vunpack.c.h.s8.bf16 %v168
    %v713 = vunpack.c.h.s8.bf16 %v169
    %v714 = vunpack.c.l.s8.bf16 %v170
    %v715 = vunpack.c.l.s8.bf16 %v171
    %v716 = vunpack.c.l.s8.bf16 %v172
    %v717 = vunpack.c.l.s8.bf16 %v173
    %v718 = vunpack.c.l.s8.bf16 %v174
    %v719 = vunpack.c.l.s8.bf16 %v175
    %v720 = vunpack.c.l.s8.bf16 %v176
    %v721 = vunpack.c.l.s8.bf16 %v177
    %v722 = vunpack.c.h.s8.bf16 %v170
    %v723 = vunpack.c.h.s8.bf16 %v171
    %v724 = vunpack.c.h.s8.bf16 %v172
    %v725 = vunpack.c.h.s8.bf16 %v173
    %v726 = vunpack.c.h.s8.bf16 %v174
    %v727 = vunpack.c.h.s8.bf16 %v175
    %v728 = vunpack.c.h.s8.bf16 %v176
    %v729 = vunpack.c.h.s8.bf16 %v177
    %v730 = vunpack.c.l.s8.bf16 %v178
    %v731 = vunpack.c.l.s8.bf16 %v179
    %v732 = vunpack.c.l.s8.bf16 %v180
    %v733 = vunpack.c.l.s8.bf16 %v181
    %v734 = vunpack.c.l.s8.bf16 %v182
    %v735 = vunpack.c.l.s8.bf16 %v183
    %v736 = vunpack.c.l.s8.bf16 %v184
    %v737 = vunpack.c.l.s8.bf16 %v185
    %v738 = vunpack.c.h.s8.bf16 %v178
    %v739 = vunpack.c.h.s8.bf16 %v179
    %v740 = vunpack.c.h.s8.bf16 %v180
    %v741 = vunpack.c.h.s8.bf16 %v181
    %v742 = vunpack.c.h.s8.bf16 %v182
    %v743 = vunpack.c.h.s8.bf16 %v183
    %v744 = vunpack.c.h.s8.bf16 %v184
    %v745 = vunpack.c.h.s8.bf16 %v185
    %v746 = vunpack.c.l.s8.bf16 %v186
    %v747 = vunpack.c.l.s8.bf16 %v187
    %v748 = vunpack.c.l.s8.bf16 %v188
    %v749 = vunpack.c.l.s8.bf16 %v189
    %v750 = vunpack.c.l.s8.bf16 %v190
    %v751 = vunpack.c.l.s8.bf16 %v191
    %v752 = vunpack.c.l.s8.bf16 %v192
    %v753 = vunpack.c.l.s8.bf16 %v193
    %v754 = vunpack.c.h.s8.bf16 %v186
    %v755 = vunpack.c.h.s8.bf16 %v187
    %v756 = vunpack.c.h.s8.bf16 %v188
    %v757 = vunpack.c.h.s8.bf16 %v189
    %v758 = vunpack.c.h.s8.bf16 %v190
    %v759 = vunpack.c.h.s8.bf16 %v191
    %v760 = vunpack.c.h.s8.bf16 %v192
    %v761 = vunpack.c.h.s8.bf16 %v193
    %v762 = vunpack.c.l.s8.bf16 %v194
    %v763 = vunpack.c.l.s8.bf16 %v195
    %v764 = vunpack.c.l.s8.bf16 %v196
    %v765 = vunpack.c.l.s8.bf16 %v197
    %v766 = vunpack.c.l.s8.bf16 %v198
    %v767 = vunpack.c.l.s8.bf16 %v199
    %v768 = vunpack.c.l.s8.bf16 %v200
    %v769 = vunpack.c.l.s8.bf16 %v201
    %v770 = vunpack.c.h.s8.bf16 %v194
    %v771 = vunpack.c.h.s8.bf16 %v195
    %v772 = vunpack.c.h.s8.bf16 %v196
    %v773 = vunpack.c.h.s8.bf16 %v197
    %v774 = vunpack.c.h.s8.bf16 %v198
    %v775 = vunpack.c.h.s8.bf16 %v199
    %v776 = vunpack.c.h.s8.bf16 %v200
    %v777 = vunpack.c.h.s8.bf16 %v201
    %v778 = vunpack.c.l.s8.bf16 %v202
    %v779 = vunpack.c.l.s8.bf16 %v203
    %v780 = vunpack.c.l.s8.bf16 %v204
    %v781 = vunpack.c.l.s8.bf16 %v205
    %v782 = vunpack.c.l.s8.bf16 %v206
    %v783 = vunpack.c.l.s8.bf16 %v207
    %v784 = vunpack.c.l.s8.bf16 %v208
    %v785 = vunpack.c.l.s8.bf16 %v209
    %v786 = vunpack.c.h.s8.bf16 %v202
    %v787 = vunpack.c.h.s8.bf16 %v203
    %v788 = vunpack.c.h.s8.bf16 %v204
    %v789 = vunpack.c.h.s8.bf16 %v205
    %v790 = vunpack.c.h.s8.bf16 %v206
    %v791 = vunpack.c.h.s8.bf16 %v207
    %v792 = vunpack.c.h.s8.bf16 %v208
    %v793 = vunpack.c.h.s8.bf16 %v209
    %v794 = vunpack.c.l.s8.bf16 %v210
    %v795 = vunpack.c.l.s8.bf16 %v211
    %v796 = vunpack.c.l.s8.bf16 %v212
    %v797 = vunpack.c.l.s8.bf16 %v213
    %v798 = vunpack.c.l.s8.bf16 %v214
    %v799 = vunpack.c.l.s8.bf16 %v215
    %v800 = vunpack.c.l.s8.bf16 %v216
    %v801 = vunpack.c.l.s8.bf16 %v217
    %v802 = vunpack.c.h.s8.bf16 %v210
    %v803 = vunpack.c.h.s8.bf16 %v211
    %v804 = vunpack.c.h.s8.bf16 %v212
    %v805 = vunpack.c.h.s8.bf16 %v213
    %v806 = vunpack.c.h.s8.bf16 %v214
    %v807 = vunpack.c.h.s8.bf16 %v215
    %v808 = vunpack.c.h.s8.bf16 %v216
    %v809 = vunpack.c.h.s8.bf16 %v217
    %v810 = vunpack.c.l.s8.bf16 %v218
    %v811 = vunpack.c.l.s8.bf16 %v219
    %v812 = vunpack.c.l.s8.bf16 %v220
    %v813 = vunpack.c.l.s8.bf16 %v221
    %v814 = vunpack.c.l.s8.bf16 %v222
    %v815 = vunpack.c.l.s8.bf16 %v223
    %v816 = vunpack.c.l.s8.bf16 %v224
    %v817 = vunpack.c.l.s8.bf16 %v225
    %v818 = vunpack.c.h.s8.bf16 %v218
    %v819 = vunpack.c.h.s8.bf16 %v219
    %v820 = vunpack.c.h.s8.bf16 %v220
    %v821 = vunpack.c.h.s8.bf16 %v221
    %v822 = vunpack.c.h.s8.bf16 %v222
    %v823 = vunpack.c.h.s8.bf16 %v223
    %v824 = vunpack.c.h.s8.bf16 %v224
    %v825 = vunpack.c.h.s8.bf16 %v225
    %v826 = vunpack.c.l.s8.bf16 %v226
    %v827 = vunpack.c.l.s8.bf16 %v227
    %v828 = vunpack.c.l.s8.bf16 %v228
    %v829 = vunpack.c.l.s8.bf16 %v229
    %v830 = vunpack.c.l.s8.bf16 %v230
    %v831 = vunpack.c.l.s8.bf16 %v231
    %v832 = vunpack.c.l.s8.bf16 %v232
    %v833 = vunpack.c.l.s8.bf16 %v233
    %v834 = vunpack.c.h.s8.bf16 %v226
    %v835 = vunpack.c.h.s8.bf16 %v227
    %v836 = vunpack.c.h.s8.bf16 %v228
    %v837 = vunpack.c.h.s8.bf16 %v229
    %v838 = vunpack.c.h.s8.bf16 %v230
    %v839 = vunpack.c.h.s8.bf16 %v231
    %v840 = vunpack.c.h.s8.bf16 %v232
    %v841 = vunpack.c.h.s8.bf16 %v233
    %v842 = vunpack.c.l.s8.bf16 %v234
    %v843 = vunpack.c.l.s8.bf16 %v235
    %v844 = vunpack.c.l.s8.bf16 %v236
    %v845 = vunpack.c.l.s8.bf16 %v237
    %v846 = vunpack.c.l.s8.bf16 %v238
    %v847 = vunpack.c.l.s8.bf16 %v239
    %v848 = vunpack.c.l.s8.bf16 %v240
    %v849 = vunpack.c.l.s8.bf16 %v241
    %v850 = vunpack.c.h.s8.bf16 %v234
    %v851 = vunpack.c.h.s8.bf16 %v235
    %v852 = vunpack.c.h.s8.bf16 %v236
    %v853 = vunpack.c.h.s8.bf16 %v237
    %v854 = vunpack.c.h.s8.bf16 %v238
    %v855 = vunpack.c.h.s8.bf16 %v239
    %v856 = vunpack.c.h.s8.bf16 %v240
    %v857 = vunpack.c.h.s8.bf16 %v241
    %v858 = vunpack.c.l.s8.bf16 %v242
    %v859 = vunpack.c.l.s8.bf16 %v243
    %v860 = vunpack.c.l.s8.bf16 %v244
    %v861 = vunpack.c.l.s8.bf16 %v245
    %v862 = vunpack.c.l.s8.bf16 %v246
    %v863 = vunpack.c.l.s8.bf16 %v247
    %v864 = vunpack.c.l.s8.bf16 %v248
    %v865 = vunpack.c.l.s8.bf16 %v249
    %v866 = vunpack.c.h.s8.bf16 %v242
    %v867 = vunpack.c.h.s8.bf16 %v243
    %v868 = vunpack.c.h.s8.bf16 %v244
    %v869 = vunpack.c.h.s8.bf16 %v245
    %v870 = vunpack.c.h.s8.bf16 %v246
    %v871 = vunpack.c.h.s8.bf16 %v247
    %v872 = vunpack.c.h.s8.bf16 %v248
    %v873 = vunpack.c.h.s8.bf16 %v249
    %v874 = vunpack.c.l.s8.bf16 %v250
    %v875 = vunpack.c.l.s8.bf16 %v251
    %v876 = vunpack.c.l.s8.bf16 %v252
    %v877 = vunpack.c.l.s8.bf16 %v253
    %v878 = vunpack.c.l.s8.bf16 %v254
    %v879 = vunpack.c.l.s8.bf16 %v255
    %v880 = vunpack.c.l.s8.bf16 %v256
    %v881 = vunpack.c.l.s8.bf16 %v257
    %v882 = vunpack.c.h.s8.bf16 %v250
    %v883 = vunpack.c.h.s8.bf16 %v251
    %v884 = vunpack.c.h.s8.bf16 %v252
    %v885 = vunpack.c.h.s8.bf16 %v253
    %v886 = vunpack.c.h.s8.bf16 %v254
    %v887 = vunpack.c.h.s8.bf16 %v255
    %v888 = vunpack.c.h.s8.bf16 %v256
    %v889 = vunpack.c.h.s8.bf16 %v257
    %v890 = vunpack.c.l.s8.bf16 %v258
    %v891 = vunpack.c.l.s8.bf16 %v259
    %v892 = vunpack.c.l.s8.bf16 %v260
    %v893 = vunpack.c.l.s8.bf16 %v261
    %v894 = vunpack.c.l.s8.bf16 %v262
    %v895 = vunpack.c.l.s8.bf16 %v263
    %v896 = vunpack.c.l.s8.bf16 %v264
    %v897 = vunpack.c.l.s8.bf16 %v265
    %v898 = vunpack.c.h.s8.bf16 %v258
    %v899 = vunpack.c.h.s8.bf16 %v259
    %v900 = vunpack.c.h.s8.bf16 %v260
    %v901 = vunpack.c.h.s8.bf16 %v261
    %v902 = vunpack.c.h.s8.bf16 %v262
    %v903 = vunpack.c.h.s8.bf16 %v263
    %v904 = vunpack.c.h.s8.bf16 %v264
    %v905 = vunpack.c.h.s8.bf16 %v265
    %v906 = vunpack.c.l.s8.bf16 %v266
    %v907 = vunpack.c.l.s8.bf16 %v267
    %v908 = vunpack.c.l.s8.bf16 %v268
    %v909 = vunpack.c.l.s8.bf16 %v269
    %v910 = vunpack.c.l.s8.bf16 %v270
    %v911 = vunpack.c.l.s8.bf16 %v271
    %v912 = vunpack.c.l.s8.bf16 %v272
    %v913 = vunpack.c.l.s8.bf16 %v273
    %v914 = vunpack.c.h.s8.bf16 %v266
    %v915 = vunpack.c.h.s8.bf16 %v267
    %v916 = vunpack.c.h.s8.bf16 %v268
    %v917 = vunpack.c.h.s8.bf16 %v269
    %v918 = vunpack.c.h.s8.bf16 %v270
    %v919 = vunpack.c.h.s8.bf16 %v271
    %v920 = vunpack.c.h.s8.bf16 %v272
    %v921 = vunpack.c.h.s8.bf16 %v273
    %v922 = vunpack.c.l.s8.bf16 %v274
    %v923 = vunpack.c.l.s8.bf16 %v275
    %v924 = vunpack.c.l.s8.bf16 %v276
    %v925 = vunpack.c.l.s8.bf16 %v277
    %v926 = vunpack.c.l.s8.bf16 %v278
    %v927 = vunpack.c.l.s8.bf16 %v279
    %v928 = vunpack.c.l.s8.bf16 %v280
    %v929 = vunpack.c.l.s8.bf16 %v281
    %v930 = vunpack.c.h.s8.bf16 %v274
    %v931 = vunpack.c.h.s8.bf16 %v275
    %v932 = vunpack.c.h.s8.bf16 %v276
    %v933 = vunpack.c.h.s8.bf16 %v277
    %v934 = vunpack.c.h.s8.bf16 %v278
    %v935 = vunpack.c.h.s8.bf16 %v279
    %v936 = vunpack.c.h.s8.bf16 %v280
    %v937 = vunpack.c.h.s8.bf16 %v281
    %v938 = vunpack.c.l.s8.bf16 %v282
    %v939 = vunpack.c.l.s8.bf16 %v283
    %v940 = vunpack.c.l.s8.bf16 %v284
    %v941 = vunpack.c.l.s8.bf16 %v285
    %v942 = vunpack.c.l.s8.bf16 %v286
    %v943 = vunpack.c.l.s8.bf16 %v287
    %v944 = vunpack.c.l.s8.bf16 %v288
    %v945 = vunpack.c.l.s8.bf16 %v289
    %v946 = vunpack.c.h.s8.bf16 %v282
    %v947 = vunpack.c.h.s8.bf16 %v283
    %v948 = vunpack.c.h.s8.bf16 %v284
    %v949 = vunpack.c.h.s8.bf16 %v285
    %v950 = vunpack.c.h.s8.bf16 %v286
    %v951 = vunpack.c.h.s8.bf16 %v287
    %v952 = vunpack.c.h.s8.bf16 %v288
    %v953 = vunpack.c.h.s8.bf16 %v289
    %v954 = vunpack.c.l.s8.bf16 %v290
    %v955 = vunpack.c.l.s8.bf16 %v291
    %v956 = vunpack.c.l.s8.bf16 %v292
    %v957 = vunpack.c.l.s8.bf16 %v293
    %v958 = vunpack.c.l.s8.bf16 %v294
    %v959 = vunpack.c.l.s8.bf16 %v295
    %v960 = vunpack.c.l.s8.bf16 %v296
    %v961 = vunpack.c.l.s8.bf16 %v297
    %v962 = vunpack.c.h.s8.bf16 %v290
    %v963 = vunpack.c.h.s8.bf16 %v291
    %v964 = vunpack.c.h.s8.bf16 %v292
    %v965 = vunpack.c.h.s8.bf16 %v293
    %v966 = vunpack.c.h.s8.bf16 %v294
    %v967 = vunpack.c.h.s8.bf16 %v295
    %v968 = vunpack.c.h.s8.bf16 %v296
    %v969 = vunpack.c.h.s8.bf16 %v297
    %v970 = vunpack.c.l.s8.bf16 %v298
    %v971 = vunpack.c.l.s8.bf16 %v299
    %v972 = vunpack.c.l.s8.bf16 %v300
    %v973 = vunpack.c.l.s8.bf16 %v301
    %v974 = vunpack.c.l.s8.bf16 %v302
    %v975 = vunpack.c.l.s8.bf16 %v303
    %v976 = vunpack.c.l.s8.bf16 %v304
    %v977 = vunpack.c.l.s8.bf16 %v305
    %v978 = vunpack.c.h.s8.bf16 %v298
    %v979 = vunpack.c.h.s8.bf16 %v299
    %v980 = vunpack.c.h.s8.bf16 %v300
    %v981 = vunpack.c.h.s8.bf16 %v301
    %v982 = vunpack.c.h.s8.bf16 %v302
    %v983 = vunpack.c.h.s8.bf16 %v303
    %v984 = vunpack.c.h.s8.bf16 %v304
    %v985 = vunpack.c.h.s8.bf16 %v305
    %v986 = vunpack.c.l.s8.bf16 %v306
    %v987 = vunpack.c.l.s8.bf16 %v307
    %v988 = vunpack.c.l.s8.bf16 %v308
    %v989 = vunpack.c.l.s8.bf16 %v309
    %v990 = vunpack.c.l.s8.bf16 %v310
    %v991 = vunpack.c.l.s8.bf16 %v311
    %v992 = vunpack.c.l.s8.bf16 %v312
    %v993 = vunpack.c.l.s8.bf16 %v313
    %v994 = vunpack.c.h.s8.bf16 %v306
    %v995 = vunpack.c.h.s8.bf16 %v307
    %v996 = vunpack.c.h.s8.bf16 %v308
    %v997 = vunpack.c.h.s8.bf16 %v309
    %v998 = vunpack.c.h.s8.bf16 %v310
    %v999 = vunpack.c.h.s8.bf16 %v311
    %v1000 = vunpack.c.h.s8.bf16 %v312
    %v1001 = vunpack.c.h.s8.bf16 %v313
    %v1002 = vunpack.c.l.s8.bf16 %v314
    %v1003 = vunpack.c.l.s8.bf16 %v315
    %v1004 = vunpack.c.l.s8.bf16 %v316
    %v1005 = vunpack.c.l.s8.bf16 %v317
    %v1006 = vunpack.c.l.s8.bf16 %v318
    %v1007 = vunpack.c.l.s8.bf16 %v319
    %v1008 = vunpack.c.l.s8.bf16 %v320
    %v1009 = vunpack.c.l.s8.bf16 %v321
    %v1010 = vunpack.c.h.s8.bf16 %v314
    %v1011 = vunpack.c.h.s8.bf16 %v315
    %v1012 = vunpack.c.h.s8.bf16 %v316
    %v1013 = vunpack.c.h.s8.bf16 %v317
    %v1014 = vunpack.c.h.s8.bf16 %v318
    %v1015 = vunpack.c.h.s8.bf16 %v319
    %v1016 = vunpack.c.h.s8.bf16 %v320
    %v1017 = vunpack.c.h.s8.bf16 %v321
    %v1018 = vunpack.c.l.s8.bf16 %v322
    %v1019 = vunpack.c.l.s8.bf16 %v323
    %v1020 = vunpack.c.l.s8.bf16 %v324
    %v1021 = vunpack.c.l.s8.bf16 %v325
    %v1022 = vunpack.c.l.s8.bf16 %v326
    %v1023 = vunpack.c.l.s8.bf16 %v327
    %v1024 = vunpack.c.l.s8.bf16 %v328
    %v1025 = vunpack.c.l.s8.bf16 %v329
    %v1026 = vunpack.c.h.s8.bf16 %v322
    %v1027 = vunpack.c.h.s8.bf16 %v323
    %v1028 = vunpack.c.h.s8.bf16 %v324
    %v1029 = vunpack.c.h.s8.bf16 %v325
    %v1030 = vunpack.c.h.s8.bf16 %v326
    %v1031 = vunpack.c.h.s8.bf16 %v327
    %v1032 = vunpack.c.h.s8.bf16 %v328
    %v1033 = vunpack.c.h.s8.bf16 %v329
    %v1034 = vunpack.c.l.s8.bf16 %v330
    %v1035 = vunpack.c.l.s8.bf16 %v331
    %v1036 = vunpack.c.l.s8.bf16 %v332
    %v1037 = vunpack.c.l.s8.bf16 %v333
    %v1038 = vunpack.c.l.s8.bf16 %v334
    %v1039 = vunpack.c.l.s8.bf16 %v335
    %v1040 = vunpack.c.l.s8.bf16 %v336
    %v1041 = vunpack.c.l.s8.bf16 %v337
    %v1042 = vunpack.c.h.s8.bf16 %v330
    %v1043 = vunpack.c.h.s8.bf16 %v331
    %v1044 = vunpack.c.h.s8.bf16 %v332
    %v1045 = vunpack.c.h.s8.bf16 %v333
    %v1046 = vunpack.c.h.s8.bf16 %v334
    %v1047 = vunpack.c.h.s8.bf16 %v335
    %v1048 = vunpack.c.h.s8.bf16 %v336
    %v1049 = vunpack.c.h.s8.bf16 %v337
    %v1050 = vunpack.c.l.s8.bf16 %v338
    %v1051 = vunpack.c.l.s8.bf16 %v339
    %v1052 = vunpack.c.l.s8.bf16 %v340
    %v1053 = vunpack.c.l.s8.bf16 %v341
    %v1054 = vunpack.c.l.s8.bf16 %v342
    %v1055 = vunpack.c.l.s8.bf16 %v343
    %v1056 = vunpack.c.l.s8.bf16 %v344
    %v1057 = vunpack.c.l.s8.bf16 %v345
    %v1058 = vunpack.c.h.s8.bf16 %v338
    %v1059 = vunpack.c.h.s8.bf16 %v339
    %v1060 = vunpack.c.h.s8.bf16 %v340
    %v1061 = vunpack.c.h.s8.bf16 %v341
    %v1062 = vunpack.c.h.s8.bf16 %v342
    %v1063 = vunpack.c.h.s8.bf16 %v343
    %v1064 = vunpack.c.h.s8.bf16 %v344
    %v1065 = vunpack.c.h.s8.bf16 %v345
    %v1066 = vunpack.c.l.s8.bf16 %v346
    %v1067 = vunpack.c.l.s8.bf16 %v347
    %v1068 = vunpack.c.l.s8.bf16 %v348
    %v1069 = vunpack.c.l.s8.bf16 %v349
    %v1070 = vunpack.c.l.s8.bf16 %v350
    %v1071 = vunpack.c.l.s8.bf16 %v351
    %v1072 = vunpack.c.l.s8.bf16 %v352
    %v1073 = vunpack.c.l.s8.bf16 %v353
    %v1074 = vunpack.c.h.s8.bf16 %v346
    %v1075 = vunpack.c.h.s8.bf16 %v347
    %v1076 = vunpack.c.h.s8.bf16 %v348
    %v1077 = vunpack.c.h.s8.bf16 %v349
    %v1078 = vunpack.c.h.s8.bf16 %v350
    %v1079 = vunpack.c.h.s8.bf16 %v351
    %v1080 = vunpack.c.h.s8.bf16 %v352
    %v1081 = vunpack.c.h.s8.bf16 %v353
    %v1082 = vunpack.c.l.s8.bf16 %v354
    %v1083 = vunpack.c.l.s8.bf16 %v355
    %v1084 = vunpack.c.l.s8.bf16 %v356
    %v1085 = vunpack.c.l.s8.bf16 %v357
    %v1086 = vunpack.c.l.s8.bf16 %v358
    %v1087 = vunpack.c.l.s8.bf16 %v359
    %v1088 = vunpack.c.l.s8.bf16 %v360
    %v1089 = vunpack.c.l.s8.bf16 %v361
    %v1090 = vunpack.c.h.s8.bf16 %v354
    %v1091 = vunpack.c.h.s8.bf16 %v355
    %v1092 = vunpack.c.h.s8.bf16 %v356
    %v1093 = vunpack.c.h.s8.bf16 %v357
    %v1094 = vunpack.c.h.s8.bf16 %v358
    %v1095 = vunpack.c.h.s8.bf16 %v359
    %v1096 = vunpack.c.h.s8.bf16 %v360
    %v1097 = vunpack.c.h.s8.bf16 %v361
    %v1098 = vunpack.c.l.s8.bf16 %v362
    %v1099 = vunpack.c.l.s8.bf16 %v363
    %v1100 = vunpack.c.l.s8.bf16 %v364
    %v1101 = vunpack.c.l.s8.bf16 %v365
    %v1102 = vunpack.c.l.s8.bf16 %v366
    %v1103 = vunpack.c.l.s8.bf16 %v367
    %v1104 = vunpack.c.l.s8.bf16 %v368
    %v1105 = vunpack.c.l.s8.bf16 %v369
    %v1106 = vunpack.c.h.s8.bf16 %v362
    %v1107 = vunpack.c.h.s8.bf16 %v363
    %v1108 = vunpack.c.h.s8.bf16 %v364
    %v1109 = vunpack.c.h.s8.bf16 %v365
    %v1110 = vunpack.c.h.s8.bf16 %v366
    %v1111 = vunpack.c.h.s8.bf16 %v367
    %v1112 = vunpack.c.h.s8.bf16 %v368
    %v1113 = vunpack.c.h.s8.bf16 %v369
    %v1114 = vunpack.c.l.s8.bf16 %v370
    %v1115 = vunpack.c.l.s8.bf16 %v371
    %v1116 = vunpack.c.l.s8.bf16 %v372
    %v1117 = vunpack.c.l.s8.bf16 %v373
    %v1118 = vunpack.c.l.s8.bf16 %v374
    %v1119 = vunpack.c.l.s8.bf16 %v375
    %v1120 = vunpack.c.l.s8.bf16 %v376
    %v1121 = vunpack.c.l.s8.bf16 %v377
    %v1122 = vunpack.c.h.s8.bf16 %v370
    %v1123 = vunpack.c.h.s8.bf16 %v371
    %v1124 = vunpack.c.h.s8.bf16 %v372
    %v1125 = vunpack.c.h.s8.bf16 %v373
    %v1126 = vunpack.c.h.s8.bf16 %v374
    %v1127 = vunpack.c.h.s8.bf16 %v375
    %v1128 = vunpack.c.h.s8.bf16 %v376
    %v1129 = vunpack.c.h.s8.bf16 %v377
    %v1130 = vunpack.c.l.s8.bf16 %v378
    %v1131 = vunpack.c.l.s8.bf16 %v379
    %v1132 = vunpack.c.l.s8.bf16 %v380
    %v1133 = vunpack.c.l.s8.bf16 %v381
    %v1134 = vunpack.c.l.s8.bf16 %v382
    %v1135 = vunpack.c.l.s8.bf16 %v383
    %v1136 = vunpack.c.l.s8.bf16 %v384
    %v1137 = vunpack.c.l.s8.bf16 %v385
    %v1138 = vunpack.c.h.s8.bf16 %v378
    %v1139 = vunpack.c.h.s8.bf16 %v379
    %v1140 = vunpack.c.h.s8.bf16 %v380
    %v1141 = vunpack.c.h.s8.bf16 %v381
    %v1142 = vunpack.c.h.s8.bf16 %v382
    %v1143 = vunpack.c.h.s8.bf16 %v383
    %v1144 = vunpack.c.h.s8.bf16 %v384
    %v1145 = vunpack.c.h.s8.bf16 %v385
    %v1146 = vunpack.c.l.s8.bf16 %v386
    %v1147 = vunpack.c.l.s8.bf16 %v387
    %v1148 = vunpack.c.l.s8.bf16 %v388
    %v1149 = vunpack.c.l.s8.bf16 %v389
    %v1150 = vunpack.c.l.s8.bf16 %v390
    %v1151 = vunpack.c.l.s8.bf16 %v391
    %v1152 = vunpack.c.l.s8.bf16 %v392
    %v1153 = vunpack.c.l.s8.bf16 %v393
    %v1154 = vunpack.c.h.s8.bf16 %v386
    %v1155 = vunpack.c.h.s8.bf16 %v387
    %v1156 = vunpack.c.h.s8.bf16 %v388
    %v1157 = vunpack.c.h.s8.bf16 %v389
    %v1158 = vunpack.c.h.s8.bf16 %v390
    %v1159 = vunpack.c.h.s8.bf16 %v391
    %v1160 = vunpack.c.h.s8.bf16 %v392
    %v1161 = vunpack.c.h.s8.bf16 %v393
    %v1162 = vunpack.c.l.s8.bf16 %v394
    %v1163 = vunpack.c.l.s8.bf16 %v395
    %v1164 = vunpack.c.l.s8.bf16 %v396
    %v1165 = vunpack.c.l.s8.bf16 %v397
    %v1166 = vunpack.c.l.s8.bf16 %v398
    %v1167 = vunpack.c.l.s8.bf16 %v399
    %v1168 = vunpack.c.l.s8.bf16 %v400
    %v1169 = vunpack.c.l.s8.bf16 %v401
    %v1170 = vunpack.c.h.s8.bf16 %v394
    %v1171 = vunpack.c.h.s8.bf16 %v395
    %v1172 = vunpack.c.h.s8.bf16 %v396
    %v1173 = vunpack.c.h.s8.bf16 %v397
    %v1174 = vunpack.c.h.s8.bf16 %v398
    %v1175 = vunpack.c.h.s8.bf16 %v399
    %v1176 = vunpack.c.h.s8.bf16 %v400
    %v1177 = vunpack.c.h.s8.bf16 %v401
    %v1178 = vunpack.c.l.s8.bf16 %v402
    %v1179 = vunpack.c.l.s8.bf16 %v403
    %v1180 = vunpack.c.l.s8.bf16 %v404
    %v1181 = vunpack.c.l.s8.bf16 %v405
    %v1182 = vunpack.c.l.s8.bf16 %v406
    %v1183 = vunpack.c.l.s8.bf16 %v407
    %v1184 = vunpack.c.l.s8.bf16 %v408
    %v1185 = vunpack.c.l.s8.bf16 %v409
    %v1186 = vunpack.c.h.s8.bf16 %v402
    %v1187 = vunpack.c.h.s8.bf16 %v403
    %v1188 = vunpack.c.h.s8.bf16 %v404
    %v1189 = vunpack.c.h.s8.bf16 %v405
    %v1190 = vunpack.c.h.s8.bf16 %v406
    %v1191 = vunpack.c.h.s8.bf16 %v407
    %v1192 = vunpack.c.h.s8.bf16 %v408
    %v1193 = vunpack.c.h.s8.bf16 %v409
    %v1194 = vunpack.c.l.s8.bf16 %v410
    %v1195 = vunpack.c.l.s8.bf16 %v411
    %v1196 = vunpack.c.l.s8.bf16 %v412
    %v1197 = vunpack.c.l.s8.bf16 %v413
    %v1198 = vunpack.c.l.s8.bf16 %v414
    %v1199 = vunpack.c.l.s8.bf16 %v415
    %v1200 = vunpack.c.l.s8.bf16 %v416
    %v1201 = vunpack.c.l.s8.bf16 %v417
    %v1202 = vunpack.c.h.s8.bf16 %v410
    %v1203 = vunpack.c.h.s8.bf16 %v411
    %v1204 = vunpack.c.h.s8.bf16 %v412
    %v1205 = vunpack.c.h.s8.bf16 %v413
    %v1206 = vunpack.c.h.s8.bf16 %v414
    %v1207 = vunpack.c.h.s8.bf16 %v415
    %v1208 = vunpack.c.h.s8.bf16 %v416
    %v1209 = vunpack.c.h.s8.bf16 %v417
    %v1210 = vunpack.c.l.s8.bf16 %v418
    %v1211 = vunpack.c.l.s8.bf16 %v419
    %v1212 = vunpack.c.l.s8.bf16 %v420
    %v1213 = vunpack.c.l.s8.bf16 %v421
    %v1214 = vunpack.c.l.s8.bf16 %v422
    %v1215 = vunpack.c.l.s8.bf16 %v423
    %v1216 = vunpack.c.l.s8.bf16 %v424
    %v1217 = vunpack.c.l.s8.bf16 %v425
    %v1218 = vunpack.c.h.s8.bf16 %v418
    %v1219 = vunpack.c.h.s8.bf16 %v419
    %v1220 = vunpack.c.h.s8.bf16 %v420
    %v1221 = vunpack.c.h.s8.bf16 %v421
    %v1222 = vunpack.c.h.s8.bf16 %v422
    %v1223 = vunpack.c.h.s8.bf16 %v423
    %v1224 = vunpack.c.h.s8.bf16 %v424
    %v1225 = vunpack.c.h.s8.bf16 %v425
    %v1226 = vunpack.c.l.s8.bf16 %v426
    %v1227 = vunpack.c.l.s8.bf16 %v427
    %v1228 = vunpack.c.l.s8.bf16 %v428
    %v1229 = vunpack.c.l.s8.bf16 %v429
    %v1230 = vunpack.c.l.s8.bf16 %v430
    %v1231 = vunpack.c.l.s8.bf16 %v431
    %v1232 = vunpack.c.l.s8.bf16 %v432
    %v1233 = vunpack.c.l.s8.bf16 %v433
    %v1234 = vunpack.c.h.s8.bf16 %v426
    %v1235 = vunpack.c.h.s8.bf16 %v427
    %v1236 = vunpack.c.h.s8.bf16 %v428
    %v1237 = vunpack.c.h.s8.bf16 %v429
    %v1238 = vunpack.c.h.s8.bf16 %v430
    %v1239 = vunpack.c.h.s8.bf16 %v431
    %v1240 = vunpack.c.h.s8.bf16 %v432
    %v1241 = vunpack.c.h.s8.bf16 %v433
    %v1242 = vunpack.c.l.s8.bf16 %v434
    %v1243 = vunpack.c.l.s8.bf16 %v435
    %v1244 = vunpack.c.l.s8.bf16 %v436
    %v1245 = vunpack.c.l.s8.bf16 %v437
    %v1246 = vunpack.c.l.s8.bf16 %v438
    %v1247 = vunpack.c.l.s8.bf16 %v439
    %v1248 = vunpack.c.l.s8.bf16 %v440
    %v1249 = vunpack.c.l.s8.bf16 %v441
    %v1250 = vunpack.c.h.s8.bf16 %v434
    %v1251 = vunpack.c.h.s8.bf16 %v435
    %v1252 = vunpack.c.h.s8.bf16 %v436
    %v1253 = vunpack.c.h.s8.bf16 %v437
    %v1254 = vunpack.c.h.s8.bf16 %v438
    %v1255 = vunpack.c.h.s8.bf16 %v439
    %v1256 = vunpack.c.h.s8.bf16 %v440
    %v1257 = vunpack.c.h.s8.bf16 %v441
    %v1258 = vunpack.c.l.s8.bf16 %v442
    %v1259 = vunpack.c.l.s8.bf16 %v443
    %v1260 = vunpack.c.l.s8.bf16 %v444
    %v1261 = vunpack.c.l.s8.bf16 %v445
    %v1262 = vunpack.c.l.s8.bf16 %v446
    %v1263 = vunpack.c.l.s8.bf16 %v447
    %v1264 = vunpack.c.l.s8.bf16 %v448
    %v1265 = vunpack.c.l.s8.bf16 %v449
    %v1266 = vunpack.c.h.s8.bf16 %v442
    %v1267 = vunpack.c.h.s8.bf16 %v443
    %v1268 = vunpack.c.h.s8.bf16 %v444
    %v1269 = vunpack.c.h.s8.bf16 %v445
    %v1270 = vunpack.c.h.s8.bf16 %v446
    %v1271 = vunpack.c.h.s8.bf16 %v447
    %v1272 = vunpack.c.h.s8.bf16 %v448
    %v1273 = vunpack.c.h.s8.bf16 %v449
    %v1274 = vunpack.c.l.s8.bf16 %v450
    %v1275 = vunpack.c.l.s8.bf16 %v451
    %v1276 = vunpack.c.l.s8.bf16 %v452
    %v1277 = vunpack.c.l.s8.bf16 %v453
    %v1278 = vunpack.c.l.s8.bf16 %v454
    %v1279 = vunpack.c.l.s8.bf16 %v455
    %v1280 = vunpack.c.l.s8.bf16 %v456
    %v1281 = vunpack.c.l.s8.bf16 %v457
    %v1282 = vunpack.c.h.s8.bf16 %v450
    %v1283 = vunpack.c.h.s8.bf16 %v451
    %v1284 = vunpack.c.h.s8.bf16 %v452
    %v1285 = vunpack.c.h.s8.bf16 %v453
    %v1286 = vunpack.c.h.s8.bf16 %v454
    %v1287 = vunpack.c.h.s8.bf16 %v455
    %v1288 = vunpack.c.h.s8.bf16 %v456
    %v1289 = vunpack.c.h.s8.bf16 %v457
    %v1290 = vunpack.c.l.s8.bf16 %v458
    %v1291 = vunpack.c.l.s8.bf16 %v459
    %v1292 = vunpack.c.l.s8.bf16 %v460
    %v1293 = vunpack.c.l.s8.bf16 %v461
    %v1294 = vunpack.c.l.s8.bf16 %v462
    %v1295 = vunpack.c.l.s8.bf16 %v463
    %v1296 = vunpack.c.l.s8.bf16 %v464
    %v1297 = vunpack.c.l.s8.bf16 %v465
    %v1298 = vunpack.c.h.s8.bf16 %v458
    %v1299 = vunpack.c.h.s8.bf16 %v459
    %v1300 = vunpack.c.h.s8.bf16 %v460
    %v1301 = vunpack.c.h.s8.bf16 %v461
    %v1302 = vunpack.c.h.s8.bf16 %v462
    %v1303 = vunpack.c.h.s8.bf16 %v463
    %v1304 = vunpack.c.h.s8.bf16 %v464
    %v1305 = vunpack.c.h.s8.bf16 %v465
    %v1306 = vunpack.c.l.s8.bf16 %v466
    %v1307 = vunpack.c.l.s8.bf16 %v467
    %v1308 = vunpack.c.l.s8.bf16 %v468
    %v1309 = vunpack.c.l.s8.bf16 %v469
    %v1310 = vunpack.c.l.s8.bf16 %v470
    %v1311 = vunpack.c.l.s8.bf16 %v471
    %v1312 = vunpack.c.l.s8.bf16 %v472
    %v1313 = vunpack.c.l.s8.bf16 %v473
    %v1314 = vunpack.c.h.s8.bf16 %v466
    %v1315 = vunpack.c.h.s8.bf16 %v467
    %v1316 = vunpack.c.h.s8.bf16 %v468
    %v1317 = vunpack.c.h.s8.bf16 %v469
    %v1318 = vunpack.c.h.s8.bf16 %v470
    %v1319 = vunpack.c.h.s8.bf16 %v471
    %v1320 = vunpack.c.h.s8.bf16 %v472
    %v1321 = vunpack.c.h.s8.bf16 %v473
    %v1322 = vunpack.c.l.s8.bf16 %v474
    %v1323 = vunpack.c.l.s8.bf16 %v475
    %v1324 = vunpack.c.l.s8.bf16 %v476
    %v1325 = vunpack.c.l.s8.bf16 %v477
    %v1326 = vunpack.c.l.s8.bf16 %v478
    %v1327 = vunpack.c.l.s8.bf16 %v479
    %v1328 = vunpack.c.l.s8.bf16 %v480
    %v1329 = vunpack.c.l.s8.bf16 %v481
    %v1330 = vunpack.c.h.s8.bf16 %v474
    %v1331 = vunpack.c.h.s8.bf16 %v475
    %v1332 = vunpack.c.h.s8.bf16 %v476
    %v1333 = vunpack.c.h.s8.bf16 %v477
    %v1334 = vunpack.c.h.s8.bf16 %v478
    %v1335 = vunpack.c.h.s8.bf16 %v479
    %v1336 = vunpack.c.h.s8.bf16 %v480
    %v1337 = vunpack.c.h.s8.bf16 %v481
    %v1338 = vunpack.c.l.s8.bf16 %v482
    %v1339 = vunpack.c.l.s8.bf16 %v483
    %v1340 = vunpack.c.l.s8.bf16 %v484
    %v1341 = vunpack.c.l.s8.bf16 %v485
    %v1342 = vunpack.c.l.s8.bf16 %v486
    %v1343 = vunpack.c.l.s8.bf16 %v487
    %v1344 = vunpack.c.l.s8.bf16 %v488
    %v1345 = vunpack.c.l.s8.bf16 %v489
    %v1346 = vunpack.c.h.s8.bf16 %v482
    %v1347 = vunpack.c.h.s8.bf16 %v483
    %v1348 = vunpack.c.h.s8.bf16 %v484
    %v1349 = vunpack.c.h.s8.bf16 %v485
    %v1350 = vunpack.c.h.s8.bf16 %v486
    %v1351 = vunpack.c.h.s8.bf16 %v487
    %v1352 = vunpack.c.h.s8.bf16 %v488
    %v1353 = vunpack.c.h.s8.bf16 %v489
    %v1354 = vunpack.c.l.s8.bf16 %v490
    %v1355 = vunpack.c.l.s8.bf16 %v491
    %v1356 = vunpack.c.l.s8.bf16 %v492
    %v1357 = vunpack.c.l.s8.bf16 %v493
    %v1358 = vunpack.c.l.s8.bf16 %v494
    %v1359 = vunpack.c.l.s8.bf16 %v495
    %v1360 = vunpack.c.l.s8.bf16 %v496
    %v1361 = vunpack.c.l.s8.bf16 %v497
    %v1362 = vunpack.c.h.s8.bf16 %v490
    %v1363 = vunpack.c.h.s8.bf16 %v491
    %v1364 = vunpack.c.h.s8.bf16 %v492
    %v1365 = vunpack.c.h.s8.bf16 %v493
    %v1366 = vunpack.c.h.s8.bf16 %v494
    %v1367 = vunpack.c.h.s8.bf16 %v495
    %v1368 = vunpack.c.h.s8.bf16 %v496
    %v1369 = vunpack.c.h.s8.bf16 %v497
    %v1370 = vunpack.c.l.s8.bf16 %v498
    %v1371 = vunpack.c.l.s8.bf16 %v499
    %v1372 = vunpack.c.l.s8.bf16 %v500
    %v1373 = vunpack.c.l.s8.bf16 %v501
    %v1374 = vunpack.c.l.s8.bf16 %v502
    %v1375 = vunpack.c.l.s8.bf16 %v503
    %v1376 = vunpack.c.l.s8.bf16 %v504
    %v1377 = vunpack.c.l.s8.bf16 %v505
    %v1378 = vunpack.c.h.s8.bf16 %v498
    %v1379 = vunpack.c.h.s8.bf16 %v499
    %v1380 = vunpack.c.h.s8.bf16 %v500
    %v1381 = vunpack.c.h.s8.bf16 %v501
    %v1382 = vunpack.c.h.s8.bf16 %v502
    %v1383 = vunpack.c.h.s8.bf16 %v503
    %v1384 = vunpack.c.h.s8.bf16 %v504
    %v1385 = vunpack.c.h.s8.bf16 %v505
    %v1386 = vunpack.c.l.s8.bf16 %v506
    %v1387 = vunpack.c.l.s8.bf16 %v507
    %v1388 = vunpack.c.l.s8.bf16 %v508
    %v1389 = vunpack.c.l.s8.bf16 %v509
    %v1390 = vunpack.c.l.s8.bf16 %v510
    %v1391 = vunpack.c.l.s8.bf16 %v511
    %v1392 = vunpack.c.l.s8.bf16 %v512
    %v1393 = vunpack.c.l.s8.bf16 %v513
    %v1394 = vunpack.c.h.s8.bf16 %v506
    %v1395 = vunpack.c.h.s8.bf16 %v507
    %v1396 = vunpack.c.h.s8.bf16 %v508
    %v1397 = vunpack.c.h.s8.bf16 %v509
    %v1398 = vunpack.c.h.s8.bf16 %v510
    %v1399 = vunpack.c.h.s8.bf16 %v511
    %v1400 = vunpack.c.h.s8.bf16 %v512
    %v1401 = vunpack.c.h.s8.bf16 %v513
    %v1402 = vunpack.c.l.s8.bf16 %v514
    %v1403 = vunpack.c.l.s8.bf16 %v515
    %v1404 = vunpack.c.l.s8.bf16 %v516
    %v1405 = vunpack.c.l.s8.bf16 %v517
    %v1406 = vunpack.c.l.s8.bf16 %v518
    %v1407 = vunpack.c.l.s8.bf16 %v519
    %v1408 = vunpack.c.l.s8.bf16 %v520
    %v1409 = vunpack.c.l.s8.bf16 %v521
    %v1410 = vunpack.c.h.s8.bf16 %v514
    %v1411 = vunpack.c.h.s8.bf16 %v515
    %v1412 = vunpack.c.h.s8.bf16 %v516
    %v1413 = vunpack.c.h.s8.bf16 %v517
    %v1414 = vunpack.c.h.s8.bf16 %v518
    %v1415 = vunpack.c.h.s8.bf16 %v519
    %v1416 = vunpack.c.h.s8.bf16 %v520
    %v1417 = vunpack.c.h.s8.bf16 %v521
    %v1418 = vunpack.c.l.s8.bf16 %v522
    %v1419 = vunpack.c.l.s8.bf16 %v523
    %v1420 = vunpack.c.l.s8.bf16 %v524
    %v1421 = vunpack.c.l.s8.bf16 %v525
    %v1422 = vunpack.c.l.s8.bf16 %v526
    %v1423 = vunpack.c.l.s8.bf16 %v527
    %v1424 = vunpack.c.l.s8.bf16 %v528
    %v1425 = vunpack.c.l.s8.bf16 %v529
    %v1426 = vunpack.c.h.s8.bf16 %v522
    %v1427 = vunpack.c.h.s8.bf16 %v523
    %v1428 = vunpack.c.h.s8.bf16 %v524
    %v1429 = vunpack.c.h.s8.bf16 %v525
    %v1430 = vunpack.c.h.s8.bf16 %v526
    %v1431 = vunpack.c.h.s8.bf16 %v527
    %v1432 = vunpack.c.h.s8.bf16 %v528
    %v1433 = vunpack.c.h.s8.bf16 %v529
    %v1434 = vunpack.c.l.s8.bf16 %v530
    %v1435 = vunpack.c.l.s8.bf16 %v531
    %v1436 = vunpack.c.l.s8.bf16 %v532
    %v1437 = vunpack.c.l.s8.bf16 %v533
    %v1438 = vunpack.c.l.s8.bf16 %v534
    %v1439 = vunpack.c.l.s8.bf16 %v535
    %v1440 = vunpack.c.l.s8.bf16 %v536
    %v1441 = vunpack.c.l.s8.bf16 %v537
    %v1442 = vunpack.c.h.s8.bf16 %v530
    %v1443 = vunpack.c.h.s8.bf16 %v531
    %v1444 = vunpack.c.h.s8.bf16 %v532
    %v1445 = vunpack.c.h.s8.bf16 %v533
    %v1446 = vunpack.c.h.s8.bf16 %v534
    %v1447 = vunpack.c.h.s8.bf16 %v535
    %v1448 = vunpack.c.h.s8.bf16 %v536
    %v1449 = vunpack.c.h.s8.bf16 %v537
    %v1450 = vunpack.c.l.s8.bf16 %v538
    %v1451 = vunpack.c.l.s8.bf16 %v539
    %v1452 = vunpack.c.l.s8.bf16 %v540
    %v1453 = vunpack.c.l.s8.bf16 %v541
    %v1454 = vunpack.c.l.s8.bf16 %v542
    %v1455 = vunpack.c.l.s8.bf16 %v543
    %v1456 = vunpack.c.l.s8.bf16 %v544
    %v1457 = vunpack.c.l.s8.bf16 %v545
    %v1458 = vunpack.c.h.s8.bf16 %v538
    %v1459 = vunpack.c.h.s8.bf16 %v539
    %v1460 = vunpack.c.h.s8.bf16 %v540
    %v1461 = vunpack.c.h.s8.bf16 %v541
    %v1462 = vunpack.c.h.s8.bf16 %v542
    %v1463 = vunpack.c.h.s8.bf16 %v543
    %v1464 = vunpack.c.h.s8.bf16 %v544
    %v1465 = vunpack.c.h.s8.bf16 %v545
    %v1466 = vunpack.c.l.s8.bf16 %v546
    %v1467 = vunpack.c.l.s8.bf16 %v547
    %v1468 = vunpack.c.l.s8.bf16 %v548
    %v1469 = vunpack.c.l.s8.bf16 %v549
    %v1470 = vunpack.c.l.s8.bf16 %v550
    %v1471 = vunpack.c.l.s8.bf16 %v551
    %v1472 = vunpack.c.l.s8.bf16 %v552
    %v1473 = vunpack.c.l.s8.bf16 %v553
    %v1474 = vunpack.c.h.s8.bf16 %v546
    %v1475 = vunpack.c.h.s8.bf16 %v547
    %v1476 = vunpack.c.h.s8.bf16 %v548
    %v1477 = vunpack.c.h.s8.bf16 %v549
    %v1478 = vunpack.c.h.s8.bf16 %v550
    %v1479 = vunpack.c.h.s8.bf16 %v551
    %v1480 = vunpack.c.h.s8.bf16 %v552
    %v1481 = vunpack.c.h.s8.bf16 %v553
    %v1482 = vunpack.c.l.s8.bf16 %v554
    %v1483 = vunpack.c.l.s8.bf16 %v555
    %v1484 = vunpack.c.l.s8.bf16 %v556
    %v1485 = vunpack.c.l.s8.bf16 %v557
    %v1486 = vunpack.c.l.s8.bf16 %v558
    %v1487 = vunpack.c.l.s8.bf16 %v559
    %v1488 = vunpack.c.l.s8.bf16 %v560
    %v1489 = vunpack.c.l.s8.bf16 %v561
    %v1490 = vunpack.c.h.s8.bf16 %v554
    %v1491 = vunpack.c.h.s8.bf16 %v555
    %v1492 = vunpack.c.h.s8.bf16 %v556
    %v1493 = vunpack.c.h.s8.bf16 %v557
    %v1494 = vunpack.c.h.s8.bf16 %v558
    %v1495 = vunpack.c.h.s8.bf16 %v559
    %v1496 = vunpack.c.h.s8.bf16 %v560
    %v1497 = vunpack.c.h.s8.bf16 %v561
    %v1498 = vunpack.c.l.s8.bf16 %v562
    %v1499 = vunpack.c.l.s8.bf16 %v563
    %v1500 = vunpack.c.l.s8.bf16 %v564
    %v1501 = vunpack.c.l.s8.bf16 %v565
    %v1502 = vunpack.c.l.s8.bf16 %v566
    %v1503 = vunpack.c.l.s8.bf16 %v567
    %v1504 = vunpack.c.l.s8.bf16 %v568
    %v1505 = vunpack.c.l.s8.bf16 %v569
    %v1506 = vunpack.c.h.s8.bf16 %v562
    %v1507 = vunpack.c.h.s8.bf16 %v563
    %v1508 = vunpack.c.h.s8.bf16 %v564
    %v1509 = vunpack.c.h.s8.bf16 %v565
    %v1510 = vunpack.c.h.s8.bf16 %v566
    %v1511 = vunpack.c.h.s8.bf16 %v567
    %v1512 = vunpack.c.h.s8.bf16 %v568
    %v1513 = vunpack.c.h.s8.bf16 %v569
    %v1514 = vunpack.c.l.s8.bf16 %v570
    %v1515 = vunpack.c.l.s8.bf16 %v571
    %v1516 = vunpack.c.l.s8.bf16 %v572
    %v1517 = vunpack.c.l.s8.bf16 %v573
    %v1518 = vunpack.c.l.s8.bf16 %v574
    %v1519 = vunpack.c.l.s8.bf16 %v575
    %v1520 = vunpack.c.l.s8.bf16 %v576
    %v1521 = vunpack.c.l.s8.bf16 %v577
    %v1522 = vunpack.c.h.s8.bf16 %v570
    %v1523 = vunpack.c.h.s8.bf16 %v571
    %v1524 = vunpack.c.h.s8.bf16 %v572
    %v1525 = vunpack.c.h.s8.bf16 %v573
    %v1526 = vunpack.c.h.s8.bf16 %v574
    %v1527 = vunpack.c.h.s8.bf16 %v575
    %v1528 = vunpack.c.h.s8.bf16 %v576
    %v1529 = vunpack.c.h.s8.bf16 %v577
    %v1530 = vunpack.c.l.s8.bf16 %v578
    %v1531 = vunpack.c.l.s8.bf16 %v579
    %v1532 = vunpack.c.l.s8.bf16 %v580
    %v1533 = vunpack.c.l.s8.bf16 %v581
    %v1534 = vunpack.c.l.s8.bf16 %v582
    %v1535 = vunpack.c.l.s8.bf16 %v583
    %v1536 = vunpack.c.l.s8.bf16 %v584
    %v1537 = vunpack.c.l.s8.bf16 %v585
    %v1538 = vunpack.c.h.s8.bf16 %v578
    %v1539 = vunpack.c.h.s8.bf16 %v579
    %v1540 = vunpack.c.h.s8.bf16 %v580
    %v1541 = vunpack.c.h.s8.bf16 %v581
    %v1542 = vunpack.c.h.s8.bf16 %v582
    %v1543 = vunpack.c.h.s8.bf16 %v583
    %v1544 = vunpack.c.h.s8.bf16 %v584
    %v1545 = vunpack.c.h.s8.bf16 %v585
    %v1546 = vunpack.c.l.s8.bf16 %v586
    %v1547 = vunpack.c.l.s8.bf16 %v587
    %v1548 = vunpack.c.l.s8.bf16 %v588
    %v1549 = vunpack.c.l.s8.bf16 %v589
    %v1550 = vunpack.c.l.s8.bf16 %v590
    %v1551 = vunpack.c.l.s8.bf16 %v591
    %v1552 = vunpack.c.l.s8.bf16 %v592
    %v1553 = vunpack.c.l.s8.bf16 %v593
    %v1554 = vunpack.c.h.s8.bf16 %v586
    %v1555 = vunpack.c.h.s8.bf16 %v587
    %v1556 = vunpack.c.h.s8.bf16 %v588
    %v1557 = vunpack.c.h.s8.bf16 %v589
    %v1558 = vunpack.c.h.s8.bf16 %v590
    %v1559 = vunpack.c.h.s8.bf16 %v591
    %v1560 = vunpack.c.h.s8.bf16 %v592
    %v1561 = vunpack.c.h.s8.bf16 %v593
    %v1562 = vunpack.c.l.s8.bf16 %v594
    %v1563 = vunpack.c.l.s8.bf16 %v595
    %v1564 = vunpack.c.l.s8.bf16 %v596
    %v1565 = vunpack.c.l.s8.bf16 %v597
    %v1566 = vunpack.c.l.s8.bf16 %v598
    %v1567 = vunpack.c.l.s8.bf16 %v599
    %v1568 = vunpack.c.l.s8.bf16 %v600
    %v1569 = vunpack.c.l.s8.bf16 %v601
    %v1570 = vunpack.c.h.s8.bf16 %v594
    %v1571 = vunpack.c.h.s8.bf16 %v595
    %v1572 = vunpack.c.h.s8.bf16 %v596
    %v1573 = vunpack.c.h.s8.bf16 %v597
    %v1574 = vunpack.c.h.s8.bf16 %v598
    %v1575 = vunpack.c.h.s8.bf16 %v599
    %v1576 = vunpack.c.h.s8.bf16 %v600
    %v1577 = vunpack.c.h.s8.bf16 %v601
    %v1578 = vunpack.c.l.s8.bf16 %v602
    %v1579 = vunpack.c.l.s8.bf16 %v603
    %v1580 = vunpack.c.l.s8.bf16 %v604
    %v1581 = vunpack.c.l.s8.bf16 %v605
    %v1582 = vunpack.c.l.s8.bf16 %v606
    %v1583 = vunpack.c.l.s8.bf16 %v607
    %v1584 = vunpack.c.l.s8.bf16 %v608
    %v1585 = vunpack.c.l.s8.bf16 %v609
    %v1586 = vunpack.c.h.s8.bf16 %v602
    %v1587 = vunpack.c.h.s8.bf16 %v603
    %v1588 = vunpack.c.h.s8.bf16 %v604
    %v1589 = vunpack.c.h.s8.bf16 %v605
    %v1590 = vunpack.c.h.s8.bf16 %v606
    %v1591 = vunpack.c.h.s8.bf16 %v607
    %v1592 = vunpack.c.h.s8.bf16 %v608
    %v1593 = vunpack.c.h.s8.bf16 %v609
    %v1594 = vunpack.c.l.s8.bf16 %v610
    %v1595 = vunpack.c.l.s8.bf16 %v611
    %v1596 = vunpack.c.l.s8.bf16 %v612
    %v1597 = vunpack.c.l.s8.bf16 %v613
    %v1598 = vunpack.c.l.s8.bf16 %v614
    %v1599 = vunpack.c.l.s8.bf16 %v615
    %v1600 = vunpack.c.l.s8.bf16 %v616
    %v1601 = vunpack.c.l.s8.bf16 %v617
    %v1602 = vunpack.c.h.s8.bf16 %v610
    %v1603 = vunpack.c.h.s8.bf16 %v611
    %v1604 = vunpack.c.h.s8.bf16 %v612
    %v1605 = vunpack.c.h.s8.bf16 %v613
    %v1606 = vunpack.c.h.s8.bf16 %v614
    %v1607 = vunpack.c.h.s8.bf16 %v615
    %v1608 = vunpack.c.h.s8.bf16 %v616
    %v1609 = vunpack.c.h.s8.bf16 %v617
    %v1610 = vunpack.c.l.s8.bf16 %v618
    %v1611 = vunpack.c.l.s8.bf16 %v619
    %v1612 = vunpack.c.l.s8.bf16 %v620
    %v1613 = vunpack.c.l.s8.bf16 %v621
    %v1614 = vunpack.c.l.s8.bf16 %v622
    %v1615 = vunpack.c.l.s8.bf16 %v623
    %v1616 = vunpack.c.l.s8.bf16 %v624
    %v1617 = vunpack.c.l.s8.bf16 %v625
    %v1618 = vunpack.c.h.s8.bf16 %v618
    %v1619 = vunpack.c.h.s8.bf16 %v619
    %v1620 = vunpack.c.h.s8.bf16 %v620
    %v1621 = vunpack.c.h.s8.bf16 %v621
    %v1622 = vunpack.c.h.s8.bf16 %v622
    %v1623 = vunpack.c.h.s8.bf16 %v623
    %v1624 = vunpack.c.h.s8.bf16 %v624
    %v1625 = vunpack.c.h.s8.bf16 %v625
    %v1626 = vunpack.c.l.s8.bf16 %v626
    %v1627 = vunpack.c.l.s8.bf16 %v627
    %v1628 = vunpack.c.l.s8.bf16 %v628
    %v1629 = vunpack.c.l.s8.bf16 %v629
    %v1630 = vunpack.c.l.s8.bf16 %v630
    %v1631 = vunpack.c.l.s8.bf16 %v631
    %v1632 = vunpack.c.l.s8.bf16 %v632
    %v1633 = vunpack.c.l.s8.bf16 %v633
    %v1634 = vunpack.c.h.s8.bf16 %v626
    %v1635 = vunpack.c.h.s8.bf16 %v627
    %v1636 = vunpack.c.h.s8.bf16 %v628
    %v1637 = vunpack.c.h.s8.bf16 %v629
    %v1638 = vunpack.c.h.s8.bf16 %v630
    %v1639 = vunpack.c.h.s8.bf16 %v631
    %v1640 = vunpack.c.h.s8.bf16 %v632
    %v1641 = vunpack.c.h.s8.bf16 %v633
    %v1642 = vunpack.c.l.s8.bf16 %v634
    %v1643 = vunpack.c.l.s8.bf16 %v635
    %v1644 = vunpack.c.l.s8.bf16 %v636
    %v1645 = vunpack.c.l.s8.bf16 %v637
    %v1646 = vunpack.c.l.s8.bf16 %v638
    %v1647 = vunpack.c.l.s8.bf16 %v639
    %v1648 = vunpack.c.l.s8.bf16 %v640
    %v1649 = vunpack.c.l.s8.bf16 %v641
    %v1650 = vunpack.c.h.s8.bf16 %v634
    %v1651 = vunpack.c.h.s8.bf16 %v635
    %v1652 = vunpack.c.h.s8.bf16 %v636
    %v1653 = vunpack.c.h.s8.bf16 %v637
    %v1654 = vunpack.c.h.s8.bf16 %v638
    %v1655 = vunpack.c.h.s8.bf16 %v639
    %v1656 = vunpack.c.h.s8.bf16 %v640
    %v1657 = vunpack.c.h.s8.bf16 %v641
    %v1658 = vunpack.c.l.s8.bf16 %v642
    %v1659 = vunpack.c.l.s8.bf16 %v643
    %v1660 = vunpack.c.l.s8.bf16 %v644
    %v1661 = vunpack.c.l.s8.bf16 %v645
    %v1662 = vunpack.c.l.s8.bf16 %v646
    %v1663 = vunpack.c.l.s8.bf16 %v647
    %v1664 = vunpack.c.l.s8.bf16 %v648
    %v1665 = vunpack.c.l.s8.bf16 %v649
    %v1666 = vunpack.c.h.s8.bf16 %v642
    %v1667 = vunpack.c.h.s8.bf16 %v643
    %v1668 = vunpack.c.h.s8.bf16 %v644
    %v1669 = vunpack.c.h.s8.bf16 %v645
    %v1670 = vunpack.c.h.s8.bf16 %v646
    %v1671 = vunpack.c.h.s8.bf16 %v647
    %v1672 = vunpack.c.h.s8.bf16 %v648
    %v1673 = vunpack.c.h.s8.bf16 %v649
    %v1674 = vld [vmem:[#allocation8] sm:$0xff]
    %v1675 = vld [vmem:[#allocation8 + $0x8] sm:$0xff]
    %v1676 = vld [vmem:[#allocation8 + $0x10] sm:$0xff]
    %v1677 = vld [vmem:[#allocation8 + $0x18] sm:$0xff]
    %v1678 = vld [vmem:[#allocation8 + $0x20] sm:$0xff]
    %v1679 = vld [vmem:[#allocation8 + $0x28] sm:$0xff]
    %v1680 = vld [vmem:[#allocation8 + $0x30] sm:$0xff]
    %v1681 = vld [vmem:[#allocation8 + $0x38] sm:$0xff]
    %v1682 = vld [vmem:[#allocation8 + $0x40] sm:$0xff]
    %v1683 = vld [vmem:[#allocation8 + $0x48] sm:$0xff]
    %v1684 = vld [vmem:[#allocation8 + $0x50] sm:$0xff]
    %v1685 = vld [vmem:[#allocation8 + $0x58] sm:$0xff]
    %v1686 = vld [vmem:[#allocation8 + $0x60] sm:$0xff]
    %v1687 = vld [vmem:[#allocation8 + $0x68] sm:$0xff]
    %v1688 = vld [vmem:[#allocation8 + $0x70] sm:$0xff]
    %v1689 = vld [vmem:[#allocation8 + $0x78] sm:$0xff]
    %v1690 = vld [vmem:[#allocation8 + $0x80] sm:$0xff]
    %v1691 = vld [vmem:[#allocation8 + $0x88] sm:$0xff]
    %v1692 = vld [vmem:[#allocation8 + $0x90] sm:$0xff]
    %v1693 = vld [vmem:[#allocation8 + $0x98] sm:$0xff]
    %v1694 = vld [vmem:[#allocation8 + $0xa0] sm:$0xff]
    %v1695 = vld [vmem:[#allocation8 + $0xa8] sm:$0xff]
    %v1696 = vld [vmem:[#allocation8 + $0xb0] sm:$0xff]
    %v1697 = vld [vmem:[#allocation8 + $0xb8] sm:$0xff]
    %v1698 = vld [vmem:[#allocation8 + $0xc0] sm:$0xff]
    %v1699 = vld [vmem:[#allocation8 + $0xc8] sm:$0xff]
    %v1700 = vld [vmem:[#allocation8 + $0xd0] sm:$0xff]
    %v1701 = vld [vmem:[#allocation8 + $0xd8] sm:$0xff]
    %v1702 = vld [vmem:[#allocation8 + $0xe0] sm:$0xff]
    %v1703 = vld [vmem:[#allocation8 + $0xe8] sm:$0xff]
    %v1704 = vld [vmem:[#allocation8 + $0xf0] sm:$0xff]
    %v1705 = vld [vmem:[#allocation8 + $0xf8] sm:$0xff]
    %v1706 = vld [vmem:[#allocation8 + $0x100] sm:$0xff]
    %v1707 = vld [vmem:[#allocation8 + $0x108] sm:$0xff]
    %v1708 = vld [vmem:[#allocation8 + $0x110] sm:$0xff]
    %v1709 = vld [vmem:[#allocation8 + $0x118] sm:$0xff]
    %v1710 = vld [vmem:[#allocation8 + $0x120] sm:$0xff]
    %v1711 = vld [vmem:[#allocation8 + $0x128] sm:$0xff]
    %v1712 = vld [vmem:[#allocation8 + $0x130] sm:$0xff]
    %v1713 = vld [vmem:[#allocation8 + $0x138] sm:$0xff]
    %v1714 = vld [vmem:[#allocation8 + $0x140] sm:$0xff]
    %v1715 = vld [vmem:[#allocation8 + $0x148] sm:$0xff]
    %v1716 = vld [vmem:[#allocation8 + $0x150] sm:$0xff]
    %v1717 = vld [vmem:[#allocation8 + $0x158] sm:$0xff]
    %v1718 = vld [vmem:[#allocation8 + $0x160] sm:$0xff]
    %v1719 = vld [vmem:[#allocation8 + $0x168] sm:$0xff]
    %v1720 = vld [vmem:[#allocation8 + $0x170] sm:$0xff]
    %v1721 = vld [vmem:[#allocation8 + $0x178] sm:$0xff]
    %v1722 = vld [vmem:[#allocation8 + $0x180] sm:$0xff]
    %v1723 = vld [vmem:[#allocation8 + $0x188] sm:$0xff]
    %v1724 = vld [vmem:[#allocation8 + $0x190] sm:$0xff]
    %v1725 = vld [vmem:[#allocation8 + $0x198] sm:$0xff]
    %v1726 = vld [vmem:[#allocation8 + $0x1a0] sm:$0xff]
    %v1727 = vld [vmem:[#allocation8 + $0x1a8] sm:$0xff]
    %v1728 = vld [vmem:[#allocation8 + $0x1b0] sm:$0xff]
    %v1729 = vld [vmem:[#allocation8 + $0x1b8] sm:$0xff]
    %v1730 = vld [vmem:[#allocation8 + $0x1c0] sm:$0xff]
    %v1731 = vld [vmem:[#allocation8 + $0x1c8] sm:$0xff]
    %v1732 = vld [vmem:[#allocation8 + $0x1d0] sm:$0xff]
    %v1733 = vld [vmem:[#allocation8 + $0x1d8] sm:$0xff]
    %v1734 = vld [vmem:[#allocation8 + $0x1e0] sm:$0xff]
    %v1735 = vld [vmem:[#allocation8 + $0x1e8] sm:$0xff]
    %v1736 = vld [vmem:[#allocation8 + $0x1f0] sm:$0xff]
    %v1737 = vld [vmem:[#allocation8 + $0x1f8] sm:$0xff]
    %v1738 = vld [vmem:[#allocation8 + $0x200] sm:$0xff]
    %v1739 = vld [vmem:[#allocation8 + $0x208] sm:$0xff]
    %v1740 = vld [vmem:[#allocation8 + $0x210] sm:$0xff]
    %v1741 = vld [vmem:[#allocation8 + $0x218] sm:$0xff]
    %v1742 = vld [vmem:[#allocation8 + $0x220] sm:$0xff]
    %v1743 = vld [vmem:[#allocation8 + $0x228] sm:$0xff]
    %v1744 = vld [vmem:[#allocation8 + $0x230] sm:$0xff]
    %v1745 = vld [vmem:[#allocation8 + $0x238] sm:$0xff]
    %v1746 = vld [vmem:[#allocation8 + $0x240] sm:$0xff]
    %v1747 = vld [vmem:[#allocation8 + $0x248] sm:$0xff]
    %v1748 = vld [vmem:[#allocation8 + $0x250] sm:$0xff]
    %v1749 = vld [vmem:[#allocation8 + $0x258] sm:$0xff]
    %v1750 = vld [vmem:[#allocation8 + $0x260] sm:$0xff]
    %v1751 = vld [vmem:[#allocation8 + $0x268] sm:$0xff]
    %v1752 = vld [vmem:[#allocation8 + $0x270] sm:$0xff]
    %v1753 = vld [vmem:[#allocation8 + $0x278] sm:$0xff]
    %v1754 = vld [vmem:[#allocation8 + $0x280] sm:$0xff]
    %v1755 = vld [vmem:[#allocation8 + $0x288] sm:$0xff]
    %v1756 = vld [vmem:[#allocation8 + $0x290] sm:$0xff]
    %v1757 = vld [vmem:[#allocation8 + $0x298] sm:$0xff]
    %v1758 = vld [vmem:[#allocation8 + $0x2a0] sm:$0xff]
    %v1759 = vld [vmem:[#allocation8 + $0x2a8] sm:$0xff]
    %v1760 = vld [vmem:[#allocation8 + $0x2b0] sm:$0xff]
    %v1761 = vld [vmem:[#allocation8 + $0x2b8] sm:$0xff]
    %v1762 = vld [vmem:[#allocation8 + $0x2c0] sm:$0xff]
    %v1763 = vld [vmem:[#allocation8 + $0x2c8] sm:$0xff]
    %v1764 = vld [vmem:[#allocation8 + $0x2d0] sm:$0xff]
    %v1765 = vld [vmem:[#allocation8 + $0x2d8] sm:$0xff]
    %v1766 = vld [vmem:[#allocation8 + $0x2e0] sm:$0xff]
    %v1767 = vld [vmem:[#allocation8 + $0x2e8] sm:$0xff]
    %v1768 = vld [vmem:[#allocation8 + $0x2f0] sm:$0xff]
    %v1769 = vld [vmem:[#allocation8 + $0x2f8] sm:$0xff]
    %v1770 = vld [vmem:[#allocation8 + $0x300] sm:$0xff]
    %v1771 = vld [vmem:[#allocation8 + $0x308] sm:$0xff]
    %v1772 = vld [vmem:[#allocation8 + $0x310] sm:$0xff]
    %v1773 = vld [vmem:[#allocation8 + $0x318] sm:$0xff]
    %v1774 = vld [vmem:[#allocation8 + $0x320] sm:$0xff]
    %v1775 = vld [vmem:[#allocation8 + $0x328] sm:$0xff]
    %v1776 = vld [vmem:[#allocation8 + $0x330] sm:$0xff]
    %v1777 = vld [vmem:[#allocation8 + $0x338] sm:$0xff]
    %v1778 = vld [vmem:[#allocation8 + $0x340] sm:$0xff]
    %v1779 = vld [vmem:[#allocation8 + $0x348] sm:$0xff]
    %v1780 = vld [vmem:[#allocation8 + $0x350] sm:$0xff]
    %v1781 = vld [vmem:[#allocation8 + $0x358] sm:$0xff]
    %v1782 = vld [vmem:[#allocation8 + $0x360] sm:$0xff]
    %v1783 = vld [vmem:[#allocation8 + $0x368] sm:$0xff]
    %v1784 = vld [vmem:[#allocation8 + $0x370] sm:$0xff]
    %v1785 = vld [vmem:[#allocation8 + $0x378] sm:$0xff]
    %v1786 = vld [vmem:[#allocation8 + $0x380] sm:$0xff]
    %v1787 = vld [vmem:[#allocation8 + $0x388] sm:$0xff]
    %v1788 = vld [vmem:[#allocation8 + $0x390] sm:$0xff]
    %v1789 = vld [vmem:[#allocation8 + $0x398] sm:$0xff]
    %v1790 = vld [vmem:[#allocation8 + $0x3a0] sm:$0xff]
    %v1791 = vld [vmem:[#allocation8 + $0x3a8] sm:$0xff]
    %v1792 = vld [vmem:[#allocation8 + $0x3b0] sm:$0xff]
    %v1793 = vld [vmem:[#allocation8 + $0x3b8] sm:$0xff]
    %v1794 = vld [vmem:[#allocation8 + $0x3c0] sm:$0xff]
    %v1795 = vld [vmem:[#allocation8 + $0x3c8] sm:$0xff]
    %v1796 = vld [vmem:[#allocation8 + $0x3d0] sm:$0xff]
    %v1797 = vld [vmem:[#allocation8 + $0x3d8] sm:$0xff]
    %v1798 = vld [vmem:[#allocation8 + $0x3e0] sm:$0xff]
    %v1799 = vld [vmem:[#allocation8 + $0x3e8] sm:$0xff]
    %v1800 = vld [vmem:[#allocation8 + $0x3f0] sm:$0xff]
    %v1801 = vld [vmem:[#allocation8 + $0x3f8] sm:$0xff]
    %v1802 = vunpack.c.l.s8.bf16 %v1674
    %v1803 = vunpack.c.l.s8.bf16 %v1675
    %v1804 = vunpack.c.l.s8.bf16 %v1676
    %v1805 = vunpack.c.l.s8.bf16 %v1677
    %v1806 = vunpack.c.h.s8.bf16 %v1674
    %v1807 = vunpack.c.h.s8.bf16 %v1675
    %v1808 = vunpack.c.h.s8.bf16 %v1676
    %v1809 = vunpack.c.h.s8.bf16 %v1677
    %v1810 = vunpack.c.l.s8.bf16 %v1678
    %v1811 = vunpack.c.l.s8.bf16 %v1679
    %v1812 = vunpack.c.l.s8.bf16 %v1680
    %v1813 = vunpack.c.l.s8.bf16 %v1681
    %v1814 = vunpack.c.h.s8.bf16 %v1678
    %v1815 = vunpack.c.h.s8.bf16 %v1679
    %v1816 = vunpack.c.h.s8.bf16 %v1680
    %v1817 = vunpack.c.h.s8.bf16 %v1681
    %v1818 = vunpack.c.l.s8.bf16 %v1682
    %v1819 = vunpack.c.l.s8.bf16 %v1683
    %v1820 = vunpack.c.l.s8.bf16 %v1684
    %v1821 = vunpack.c.l.s8.bf16 %v1685
    %v1822 = vunpack.c.h.s8.bf16 %v1682
    %v1823 = vunpack.c.h.s8.bf16 %v1683
    %v1824 = vunpack.c.h.s8.bf16 %v1684
    %v1825 = vunpack.c.h.s8.bf16 %v1685
    %v1826 = vunpack.c.l.s8.bf16 %v1686
    %v1827 = vunpack.c.l.s8.bf16 %v1687
    %v1828 = vunpack.c.l.s8.bf16 %v1688
    %v1829 = vunpack.c.l.s8.bf16 %v1689
    %v1830 = vunpack.c.h.s8.bf16 %v1686
    %v1831 = vunpack.c.h.s8.bf16 %v1687
    %v1832 = vunpack.c.h.s8.bf16 %v1688
    %v1833 = vunpack.c.h.s8.bf16 %v1689
    %v1834 = vunpack.c.l.s8.bf16 %v1690
    %v1835 = vunpack.c.l.s8.bf16 %v1691
    %v1836 = vunpack.c.l.s8.bf16 %v1692
    %v1837 = vunpack.c.l.s8.bf16 %v1693
    %v1838 = vunpack.c.h.s8.bf16 %v1690
    %v1839 = vunpack.c.h.s8.bf16 %v1691
    %v1840 = vunpack.c.h.s8.bf16 %v1692
    %v1841 = vunpack.c.h.s8.bf16 %v1693
    %v1842 = vunpack.c.l.s8.bf16 %v1694
    %v1843 = vunpack.c.l.s8.bf16 %v1695
    %v1844 = vunpack.c.l.s8.bf16 %v1696
    %v1845 = vunpack.c.l.s8.bf16 %v1697
    %v1846 = vunpack.c.h.s8.bf16 %v1694
    %v1847 = vunpack.c.h.s8.bf16 %v1695
    %v1848 = vunpack.c.h.s8.bf16 %v1696
    %v1849 = vunpack.c.h.s8.bf16 %v1697
    %v1850 = vunpack.c.l.s8.bf16 %v1698
    %v1851 = vunpack.c.l.s8.bf16 %v1699
    %v1852 = vunpack.c.l.s8.bf16 %v1700
    %v1853 = vunpack.c.l.s8.bf16 %v1701
    %v1854 = vunpack.c.h.s8.bf16 %v1698
    %v1855 = vunpack.c.h.s8.bf16 %v1699
    %v1856 = vunpack.c.h.s8.bf16 %v1700
    %v1857 = vunpack.c.h.s8.bf16 %v1701
    %v1858 = vunpack.c.l.s8.bf16 %v1702
    %v1859 = vunpack.c.l.s8.bf16 %v1703
    %v1860 = vunpack.c.l.s8.bf16 %v1704
    %v1861 = vunpack.c.l.s8.bf16 %v1705
    %v1862 = vunpack.c.h.s8.bf16 %v1702
    %v1863 = vunpack.c.h.s8.bf16 %v1703
    %v1864 = vunpack.c.h.s8.bf16 %v1704
    %v1865 = vunpack.c.h.s8.bf16 %v1705
    %v1866 = vunpack.c.l.s8.bf16 %v1706
    %v1867 = vunpack.c.l.s8.bf16 %v1707
    %v1868 = vunpack.c.l.s8.bf16 %v1708
    %v1869 = vunpack.c.l.s8.bf16 %v1709
    %v1870 = vunpack.c.h.s8.bf16 %v1706
    %v1871 = vunpack.c.h.s8.bf16 %v1707
    %v1872 = vunpack.c.h.s8.bf16 %v1708
    %v1873 = vunpack.c.h.s8.bf16 %v1709
    %v1874 = vunpack.c.l.s8.bf16 %v1710
    %v1875 = vunpack.c.l.s8.bf16 %v1711
    %v1876 = vunpack.c.l.s8.bf16 %v1712
    %v1877 = vunpack.c.l.s8.bf16 %v1713
    %v1878 = vunpack.c.h.s8.bf16 %v1710
    %v1879 = vunpack.c.h.s8.bf16 %v1711
    %v1880 = vunpack.c.h.s8.bf16 %v1712
    %v1881 = vunpack.c.h.s8.bf16 %v1713
    %v1882 = vunpack.c.l.s8.bf16 %v1714
    %v1883 = vunpack.c.l.s8.bf16 %v1715
    %v1884 = vunpack.c.l.s8.bf16 %v1716
    %v1885 = vunpack.c.l.s8.bf16 %v1717
    %v1886 = vunpack.c.h.s8.bf16 %v1714
    %v1887 = vunpack.c.h.s8.bf16 %v1715
    %v1888 = vunpack.c.h.s8.bf16 %v1716
    %v1889 = vunpack.c.h.s8.bf16 %v1717
    %v1890 = vunpack.c.l.s8.bf16 %v1718
    %v1891 = vunpack.c.l.s8.bf16 %v1719
    %v1892 = vunpack.c.l.s8.bf16 %v1720
    %v1893 = vunpack.c.l.s8.bf16 %v1721
    %v1894 = vunpack.c.h.s8.bf16 %v1718
    %v1895 = vunpack.c.h.s8.bf16 %v1719
    %v1896 = vunpack.c.h.s8.bf16 %v1720
    %v1897 = vunpack.c.h.s8.bf16 %v1721
    %v1898 = vunpack.c.l.s8.bf16 %v1722
    %v1899 = vunpack.c.l.s8.bf16 %v1723
    %v1900 = vunpack.c.l.s8.bf16 %v1724
    %v1901 = vunpack.c.l.s8.bf16 %v1725
    %v1902 = vunpack.c.h.s8.bf16 %v1722
    %v1903 = vunpack.c.h.s8.bf16 %v1723
    %v1904 = vunpack.c.h.s8.bf16 %v1724
    %v1905 = vunpack.c.h.s8.bf16 %v1725
    %v1906 = vunpack.c.l.s8.bf16 %v1726
    %v1907 = vunpack.c.l.s8.bf16 %v1727
    %v1908 = vunpack.c.l.s8.bf16 %v1728
    %v1909 = vunpack.c.l.s8.bf16 %v1729
    %v1910 = vunpack.c.h.s8.bf16 %v1726
    %v1911 = vunpack.c.h.s8.bf16 %v1727
    %v1912 = vunpack.c.h.s8.bf16 %v1728
    %v1913 = vunpack.c.h.s8.bf16 %v1729
    %v1914 = vunpack.c.l.s8.bf16 %v1730
    %v1915 = vunpack.c.l.s8.bf16 %v1731
    %v1916 = vunpack.c.l.s8.bf16 %v1732
    %v1917 = vunpack.c.l.s8.bf16 %v1733
    %v1918 = vunpack.c.h.s8.bf16 %v1730
    %v1919 = vunpack.c.h.s8.bf16 %v1731
    %v1920 = vunpack.c.h.s8.bf16 %v1732
    %v1921 = vunpack.c.h.s8.bf16 %v1733
    %v1922 = vunpack.c.l.s8.bf16 %v1734
    %v1923 = vunpack.c.l.s8.bf16 %v1735
    %v1924 = vunpack.c.l.s8.bf16 %v1736
    %v1925 = vunpack.c.l.s8.bf16 %v1737
    %v1926 = vunpack.c.h.s8.bf16 %v1734
    %v1927 = vunpack.c.h.s8.bf16 %v1735
    %v1928 = vunpack.c.h.s8.bf16 %v1736
    %v1929 = vunpack.c.h.s8.bf16 %v1737
    %v1930 = vunpack.c.l.s8.bf16 %v1738
    %v1931 = vunpack.c.l.s8.bf16 %v1739
    %v1932 = vunpack.c.l.s8.bf16 %v1740
    %v1933 = vunpack.c.l.s8.bf16 %v1741
    %v1934 = vunpack.c.h.s8.bf16 %v1738
    %v1935 = vunpack.c.h.s8.bf16 %v1739
    %v1936 = vunpack.c.h.s8.bf16 %v1740
    %v1937 = vunpack.c.h.s8.bf16 %v1741
    %v1938 = vunpack.c.l.s8.bf16 %v1742
    %v1939 = vunpack.c.l.s8.bf16 %v1743
    %v1940 = vunpack.c.l.s8.bf16 %v1744
    %v1941 = vunpack.c.l.s8.bf16 %v1745
    %v1942 = vunpack.c.h.s8.bf16 %v1742
    %v1943 = vunpack.c.h.s8.bf16 %v1743
    %v1944 = vunpack.c.h.s8.bf16 %v1744
    %v1945 = vunpack.c.h.s8.bf16 %v1745
    %v1946 = vunpack.c.l.s8.bf16 %v1746
    %v1947 = vunpack.c.l.s8.bf16 %v1747
    %v1948 = vunpack.c.l.s8.bf16 %v1748
    %v1949 = vunpack.c.l.s8.bf16 %v1749
    %v1950 = vunpack.c.h.s8.bf16 %v1746
    %v1951 = vunpack.c.h.s8.bf16 %v1747
    %v1952 = vunpack.c.h.s8.bf16 %v1748
    %v1953 = vunpack.c.h.s8.bf16 %v1749
    %v1954 = vunpack.c.l.s8.bf16 %v1750
    %v1955 = vunpack.c.l.s8.bf16 %v1751
    %v1956 = vunpack.c.l.s8.bf16 %v1752
    %v1957 = vunpack.c.l.s8.bf16 %v1753
    %v1958 = vunpack.c.h.s8.bf16 %v1750
    %v1959 = vunpack.c.h.s8.bf16 %v1751
    %v1960 = vunpack.c.h.s8.bf16 %v1752
    %v1961 = vunpack.c.h.s8.bf16 %v1753
    %v1962 = vunpack.c.l.s8.bf16 %v1754
    %v1963 = vunpack.c.l.s8.bf16 %v1755
    %v1964 = vunpack.c.l.s8.bf16 %v1756
    %v1965 = vunpack.c.l.s8.bf16 %v1757
    %v1966 = vunpack.c.h.s8.bf16 %v1754
    %v1967 = vunpack.c.h.s8.bf16 %v1755
    %v1968 = vunpack.c.h.s8.bf16 %v1756
    %v1969 = vunpack.c.h.s8.bf16 %v1757
    %v1970 = vunpack.c.l.s8.bf16 %v1758
    %v1971 = vunpack.c.l.s8.bf16 %v1759
    %v1972 = vunpack.c.l.s8.bf16 %v1760
    %v1973 = vunpack.c.l.s8.bf16 %v1761
    %v1974 = vunpack.c.h.s8.bf16 %v1758
    %v1975 = vunpack.c.h.s8.bf16 %v1759
    %v1976 = vunpack.c.h.s8.bf16 %v1760
    %v1977 = vunpack.c.h.s8.bf16 %v1761
    %v1978 = vunpack.c.l.s8.bf16 %v1762
    %v1979 = vunpack.c.l.s8.bf16 %v1763
    %v1980 = vunpack.c.l.s8.bf16 %v1764
    %v1981 = vunpack.c.l.s8.bf16 %v1765
    %v1982 = vunpack.c.h.s8.bf16 %v1762
    %v1983 = vunpack.c.h.s8.bf16 %v1763
    %v1984 = vunpack.c.h.s8.bf16 %v1764
    %v1985 = vunpack.c.h.s8.bf16 %v1765
    %v1986 = vunpack.c.l.s8.bf16 %v1766
    %v1987 = vunpack.c.l.s8.bf16 %v1767
    %v1988 = vunpack.c.l.s8.bf16 %v1768
    %v1989 = vunpack.c.l.s8.bf16 %v1769
    %v1990 = vunpack.c.h.s8.bf16 %v1766
    %v1991 = vunpack.c.h.s8.bf16 %v1767
    %v1992 = vunpack.c.h.s8.bf16 %v1768
    %v1993 = vunpack.c.h.s8.bf16 %v1769
    %v1994 = vunpack.c.l.s8.bf16 %v1770
    %v1995 = vunpack.c.l.s8.bf16 %v1771
    %v1996 = vunpack.c.l.s8.bf16 %v1772
    %v1997 = vunpack.c.l.s8.bf16 %v1773
    %v1998 = vunpack.c.h.s8.bf16 %v1770
    %v1999 = vunpack.c.h.s8.bf16 %v1771
    %v2000 = vunpack.c.h.s8.bf16 %v1772
    %v2001 = vunpack.c.h.s8.bf16 %v1773
    %v2002 = vunpack.c.l.s8.bf16 %v1774
    %v2003 = vunpack.c.l.s8.bf16 %v1775
    %v2004 = vunpack.c.l.s8.bf16 %v1776
    %v2005 = vunpack.c.l.s8.bf16 %v1777
    %v2006 = vunpack.c.h.s8.bf16 %v1774
    %v2007 = vunpack.c.h.s8.bf16 %v1775
    %v2008 = vunpack.c.h.s8.bf16 %v1776
    %v2009 = vunpack.c.h.s8.bf16 %v1777
    %v2010 = vunpack.c.l.s8.bf16 %v1778
    %v2011 = vunpack.c.l.s8.bf16 %v1779
    %v2012 = vunpack.c.l.s8.bf16 %v1780
    %v2013 = vunpack.c.l.s8.bf16 %v1781
    %v2014 = vunpack.c.h.s8.bf16 %v1778
    %v2015 = vunpack.c.h.s8.bf16 %v1779
    %v2016 = vunpack.c.h.s8.bf16 %v1780
    %v2017 = vunpack.c.h.s8.bf16 %v1781
    %v2018 = vunpack.c.l.s8.bf16 %v1782
    %v2019 = vunpack.c.l.s8.bf16 %v1783
    %v2020 = vunpack.c.l.s8.bf16 %v1784
    %v2021 = vunpack.c.l.s8.bf16 %v1785
    %v2022 = vunpack.c.h.s8.bf16 %v1782
    %v2023 = vunpack.c.h.s8.bf16 %v1783
    %v2024 = vunpack.c.h.s8.bf16 %v1784
    %v2025 = vunpack.c.h.s8.bf16 %v1785
    %v2026 = vunpack.c.l.s8.bf16 %v1786
    %v2027 = vunpack.c.l.s8.bf16 %v1787
    %v2028 = vunpack.c.l.s8.bf16 %v1788
    %v2029 = vunpack.c.l.s8.bf16 %v1789
    %v2030 = vunpack.c.h.s8.bf16 %v1786
    %v2031 = vunpack.c.h.s8.bf16 %v1787
    %v2032 = vunpack.c.h.s8.bf16 %v1788
    %v2033 = vunpack.c.h.s8.bf16 %v1789
    %v2034 = vunpack.c.l.s8.bf16 %v1790
    %v2035 = vunpack.c.l.s8.bf16 %v1791
    %v2036 = vunpack.c.l.s8.bf16 %v1792
    %v2037 = vunpack.c.l.s8.bf16 %v1793
    %v2038 = vunpack.c.h.s8.bf16 %v1790
    %v2039 = vunpack.c.h.s8.bf16 %v1791
    %v2040 = vunpack.c.h.s8.bf16 %v1792
    %v2041 = vunpack.c.h.s8.bf16 %v1793
    %v2042 = vunpack.c.l.s8.bf16 %v1794
    %v2043 = vunpack.c.l.s8.bf16 %v1795
    %v2044 = vunpack.c.l.s8.bf16 %v1796
    %v2045 = vunpack.c.l.s8.bf16 %v1797
    %v2046 = vunpack.c.h.s8.bf16 %v1794
    %v2047 = vunpack.c.h.s8.bf16 %v1795
    %v2048 = vunpack.c.h.s8.bf16 %v1796
    %v2049 = vunpack.c.h.s8.bf16 %v1797
    %v2050 = vunpack.c.l.s8.bf16 %v1798
    %v2051 = vunpack.c.l.s8.bf16 %v1799
    %v2052 = vunpack.c.l.s8.bf16 %v1800
    %v2053 = vunpack.c.l.s8.bf16 %v1801
    %v2054 = vunpack.c.h.s8.bf16 %v1798
    %v2055 = vunpack.c.h.s8.bf16 %v1799
    %v2056 = vunpack.c.h.s8.bf16 %v1800
    %v2057 = vunpack.c.h.s8.bf16 %v1801
    %v2058 = vld [vmem:[#allocation13] sm:$0xff]
    %v2059 = vld [vmem:[#allocation13 + $0x8] sm:$0xff]
    %v2060 = vld [vmem:[#allocation13 + $0x10] sm:$0xff]
    %v2061 = vld [vmem:[#allocation13 + $0x18] sm:$0xff]
    %v2062 = vld [vmem:[#allocation13 + $0x20] sm:$0xff]
    %v2063 = vld [vmem:[#allocation13 + $0x28] sm:$0xff]
    %v2064 = vld [vmem:[#allocation13 + $0x30] sm:$0xff]
    %v2065 = vld [vmem:[#allocation13 + $0x38] sm:$0xff]
    %v2066 = vld [vmem:[#allocation13 + $0x40] sm:$0xff]
    %v2067 = vld [vmem:[#allocation13 + $0x48] sm:$0xff]
    %v2068 = vld [vmem:[#allocation13 + $0x50] sm:$0xff]
    %v2069 = vld [vmem:[#allocation13 + $0x58] sm:$0xff]
    %v2070 = vld [vmem:[#allocation13 + $0x60] sm:$0xff]
    %v2071 = vld [vmem:[#allocation13 + $0x68] sm:$0xff]
    %v2072 = vld [vmem:[#allocation13 + $0x70] sm:$0xff]
    %v2073 = vld [vmem:[#allocation13 + $0x78] sm:$0xff]
    %v2074 = vld [vmem:[#allocation13 + $0x80] sm:$0xff]
    %v2075 = vld [vmem:[#allocation13 + $0x88] sm:$0xff]
    %v2076 = vld [vmem:[#allocation13 + $0x90] sm:$0xff]
    %v2077 = vld [vmem:[#allocation13 + $0x98] sm:$0xff]
    %v2078 = vld [vmem:[#allocation13 + $0xa0] sm:$0xff]
    %v2079 = vld [vmem:[#allocation13 + $0xa8] sm:$0xff]
    %v2080 = vld [vmem:[#allocation13 + $0xb0] sm:$0xff]
    %v2081 = vld [vmem:[#allocation13 + $0xb8] sm:$0xff]
    %v2082 = vld [vmem:[#allocation13 + $0xc0] sm:$0xff]
    %v2083 = vld [vmem:[#allocation13 + $0xc8] sm:$0xff]
    %v2084 = vld [vmem:[#allocation13 + $0xd0] sm:$0xff]
    %v2085 = vld [vmem:[#allocation13 + $0xd8] sm:$0xff]
    %v2086 = vld [vmem:[#allocation13 + $0xe0] sm:$0xff]
    %v2087 = vld [vmem:[#allocation13 + $0xe8] sm:$0xff]
    %v2088 = vld [vmem:[#allocation13 + $0xf0] sm:$0xff]
    %v2089 = vld [vmem:[#allocation13 + $0xf8] sm:$0xff]
    %v2090 = vld [vmem:[#allocation13 + $0x100] sm:$0xff]
    %v2091 = vld [vmem:[#allocation13 + $0x108] sm:$0xff]
    %v2092 = vld [vmem:[#allocation13 + $0x110] sm:$0xff]
    %v2093 = vld [vmem:[#allocation13 + $0x118] sm:$0xff]
    %v2094 = vld [vmem:[#allocation13 + $0x120] sm:$0xff]
    %v2095 = vld [vmem:[#allocation13 + $0x128] sm:$0xff]
    %v2096 = vld [vmem:[#allocation13 + $0x130] sm:$0xff]
    %v2097 = vld [vmem:[#allocation13 + $0x138] sm:$0xff]
    %v2098 = vld [vmem:[#allocation13 + $0x140] sm:$0xff]
    %v2099 = vld [vmem:[#allocation13 + $0x148] sm:$0xff]
    %v2100 = vld [vmem:[#allocation13 + $0x150] sm:$0xff]
    %v2101 = vld [vmem:[#allocation13 + $0x158] sm:$0xff]
    %v2102 = vld [vmem:[#allocation13 + $0x160] sm:$0xff]
    %v2103 = vld [vmem:[#allocation13 + $0x168] sm:$0xff]
    %v2104 = vld [vmem:[#allocation13 + $0x170] sm:$0xff]
    %v2105 = vld [vmem:[#allocation13 + $0x178] sm:$0xff]
    %v2106 = vld [vmem:[#allocation13 + $0x180] sm:$0xff]
    %v2107 = vld [vmem:[#allocation13 + $0x188] sm:$0xff]
    %v2108 = vld [vmem:[#allocation13 + $0x190] sm:$0xff]
    %v2109 = vld [vmem:[#allocation13 + $0x198] sm:$0xff]
    %v2110 = vld [vmem:[#allocation13 + $0x1a0] sm:$0xff]
    %v2111 = vld [vmem:[#allocation13 + $0x1a8] sm:$0xff]
    %v2112 = vld [vmem:[#allocation13 + $0x1b0] sm:$0xff]
    %v2113 = vld [vmem:[#allocation13 + $0x1b8] sm:$0xff]
    %v2114 = vld [vmem:[#allocation13 + $0x1c0] sm:$0xff]
    %v2115 = vld [vmem:[#allocation13 + $0x1c8] sm:$0xff]
    %v2116 = vld [vmem:[#allocation13 + $0x1d0] sm:$0xff]
    %v2117 = vld [vmem:[#allocation13 + $0x1d8] sm:$0xff]
    %v2118 = vld [vmem:[#allocation13 + $0x1e0] sm:$0xff]
    %v2119 = vld [vmem:[#allocation13 + $0x1e8] sm:$0xff]
    %v2120 = vld [vmem:[#allocation13 + $0x1f0] sm:$0xff]
    %v2121 = vld [vmem:[#allocation13 + $0x1f8] sm:$0xff]
    %v2122 = vld [vmem:[%s0] sm:$0xff]
    %v2123 = vld [vmem:[%s0 + $0x8] sm:$0xff]
    %v2124 = vld [vmem:[%s0 + $0x10] sm:$0xff]
    %v2125 = vld [vmem:[%s0 + $0x18] sm:$0xff]
    %v2126 = vld [vmem:[%s0 + $0x20] sm:$0xff]
    %v2127 = vld [vmem:[%s0 + $0x28] sm:$0xff]
    %v2128 = vld [vmem:[%s0 + $0x30] sm:$0xff]
    %v2129 = vld [vmem:[%s0 + $0x38] sm:$0xff]
    %v2130 = vld [vmem:[%s0 + $0x40] sm:$0xff]
    %v2131 = vld [vmem:[%s0 + $0x48] sm:$0xff]
    %v2132 = vld [vmem:[%s0 + $0x50] sm:$0xff]
    %v2133 = vld [vmem:[%s0 + $0x58] sm:$0xff]
    %v2134 = vld [vmem:[%s0 + $0x60] sm:$0xff]
    %v2135 = vld [vmem:[%s0 + $0x68] sm:$0xff]
    %v2136 = vld [vmem:[%s0 + $0x70] sm:$0xff]
    %v2137 = vld [vmem:[%s0 + $0x78] sm:$0xff]
    %v2154 = vcombine.low %v2122, %v2124
    %v2155 = vcombine.high %v2122, %v2124
    %v2156 = vcombine.low %v2126, %v2128
    %v2157 = vcombine.high %v2126, %v2128
    %v2158 = vcombine.low %v2130, %v2132
    %v2159 = vcombine.high %v2130, %v2132
    %v2160 = vcombine.low %v2134, %v2136
    %v2161 = vcombine.high %v2134, %v2136
    %v2163 = vunpack.c.l.s4 1966171168
    %v2164 = vunpack.c.0.s8 %v2163
    %v2165 = vlaneseq
    %v2166 = vshrl.u32 %v2165, 7
    %v2167 = vsub.s32 %v2164, %v2166
    %v2168 = vrot.slane %v2154, %v2167
    %v2170 = vunpack.c.l.s4 1966171168
    %v2171 = vunpack.c.0.s8 %v2170
    %v2172 = vlaneseq
    %v2173 = vshrl.u32 %v2172, 7
    %v2174 = vsub.s32 %v2171, %v2173
    %v2175 = vrot.slane %v2155, %v2174
    %v2177 = vunpack.c.l.s4 1966171168
    %v2178 = vunpack.c.0.s8 %v2177
    %v2179 = vlaneseq
    %v2180 = vshrl.u32 %v2179, 7
    %v2181 = vsub.s32 %v2178, %v2180
    %v2182 = vrot.slane %v2156, %v2181
    %v2184 = vunpack.c.l.s4 1966171168
    %v2185 = vunpack.c.0.s8 %v2184
    %v2186 = vlaneseq
    %v2187 = vshrl.u32 %v2186, 7
    %v2188 = vsub.s32 %v2185, %v2187
    %v2189 = vrot.slane %v2157, %v2188
    %v2191 = vunpack.c.l.s4 1966171168
    %v2192 = vunpack.c.0.s8 %v2191
    %v2193 = vlaneseq
    %v2194 = vshrl.u32 %v2193, 7
    %v2195 = vsub.s32 %v2192, %v2194
    %v2196 = vrot.slane %v2158, %v2195
    %v2198 = vunpack.c.l.s4 1966171168
    %v2199 = vunpack.c.0.s8 %v2198
    %v2200 = vlaneseq
    %v2201 = vshrl.u32 %v2200, 7
    %v2202 = vsub.s32 %v2199, %v2201
    %v2203 = vrot.slane %v2159, %v2202
    %v2205 = vunpack.c.l.s4 1966171168
    %v2206 = vunpack.c.0.s8 %v2205
    %v2207 = vlaneseq
    %v2208 = vshrl.u32 %v2207, 7
    %v2209 = vsub.s32 %v2206, %v2208
    %v2210 = vrot.slane %v2160, %v2209
    %v2212 = vunpack.c.l.s4 1966171168
    %v2213 = vunpack.c.0.s8 %v2212
    %v2214 = vlaneseq
    %v2215 = vshrl.u32 %v2214, 7
    %v2216 = vsub.s32 %v2213, %v2215
    %v2217 = vrot.slane %v2161, %v2216
    %v2218 = vcombine.low %v2168, %v2182
    %v2219 = vcombine.high %v2168, %v2182
    %v2220 = vcombine.low %v2175, %v2189
    %v2221 = vcombine.high %v2175, %v2189
    %v2222 = vcombine.low %v2196, %v2210
    %v2223 = vcombine.high %v2196, %v2210
    %v2224 = vcombine.low %v2203, %v2217
    %v2225 = vcombine.high %v2203, %v2217
    %v2227 = vunpack.c.l.s4 1966171168
    %v2228 = vunpack.c.0.s8 %v2227
    %v2229 = vlaneseq
    %v2230 = vshrl.u32 %v2229, 7
    %v2231 = vsub.s32 %v2228, %v2230
    %v2232 = vrot.slane %v2218, %v2231
    %v2234 = vunpack.c.l.s4 1966171168
    %v2235 = vunpack.c.0.s8 %v2234
    %v2236 = vlaneseq
    %v2237 = vshrl.u32 %v2236, 7
    %v2238 = vsub.s32 %v2235, %v2237
    %v2239 = vrot.slane %v2220, %v2238
    %v2241 = vunpack.c.l.s4 1966171168
    %v2242 = vunpack.c.0.s8 %v2241
    %v2243 = vlaneseq
    %v2244 = vshrl.u32 %v2243, 7
    %v2245 = vsub.s32 %v2242, %v2244
    %v2246 = vrot.slane %v2219, %v2245
    %v2248 = vunpack.c.l.s4 1966171168
    %v2249 = vunpack.c.0.s8 %v2248
    %v2250 = vlaneseq
    %v2251 = vshrl.u32 %v2250, 7
    %v2252 = vsub.s32 %v2249, %v2251
    %v2253 = vrot.slane %v2221, %v2252
    %v2255 = vunpack.c.l.s4 1966171168
    %v2256 = vunpack.c.0.s8 %v2255
    %v2257 = vlaneseq
    %v2258 = vshrl.u32 %v2257, 7
    %v2259 = vsub.s32 %v2256, %v2258
    %v2260 = vrot.slane %v2222, %v2259
    %v2262 = vunpack.c.l.s4 1966171168
    %v2263 = vunpack.c.0.s8 %v2262
    %v2264 = vlaneseq
    %v2265 = vshrl.u32 %v2264, 7
    %v2266 = vsub.s32 %v2263, %v2265
    %v2267 = vrot.slane %v2224, %v2266
    %v2269 = vunpack.c.l.s4 1966171168
    %v2270 = vunpack.c.0.s8 %v2269
    %v2271 = vlaneseq
    %v2272 = vshrl.u32 %v2271, 7
    %v2273 = vsub.s32 %v2270, %v2272
    %v2274 = vrot.slane %v2223, %v2273
    %v2276 = vunpack.c.l.s4 1966171168
    %v2277 = vunpack.c.0.s8 %v2276
    %v2278 = vlaneseq
    %v2279 = vshrl.u32 %v2278, 7
    %v2280 = vsub.s32 %v2277, %v2279
    %v2281 = vrot.slane %v2225, %v2280
    %v2282 = vcombine.low %v2232, %v2260
    %v2283 = vcombine.high %v2232, %v2260
    %v2284 = vcombine.low %v2239, %v2267
    %v2285 = vcombine.high %v2239, %v2267
    %v2286 = vcombine.low %v2246, %v2274
    %v2287 = vcombine.high %v2246, %v2274
    %v2288 = vcombine.low %v2253, %v2281
    %v2289 = vcombine.high %v2253, %v2281
    %v2290 = vcombine.low %v2123, %v2125
    %v2291 = vcombine.high %v2123, %v2125
    %v2292 = vcombine.low %v2127, %v2129
    %v2293 = vcombine.high %v2127, %v2129
    %v2294 = vcombine.low %v2131, %v2133
    %v2295 = vcombine.high %v2131, %v2133
    %v2296 = vcombine.low %v2135, %v2137
    %v2297 = vcombine.high %v2135, %v2137
    %v2299 = vunpack.c.l.s4 1966171168
    %v2300 = vunpack.c.0.s8 %v2299
    %v2301 = vlaneseq
    %v2302 = vshrl.u32 %v2301, 7
    %v2303 = vsub.s32 %v2300, %v2302
    %v2304 = vrot.slane %v2290, %v2303
    %v2306 = vunpack.c.l.s4 1966171168
    %v2307 = vunpack.c.0.s8 %v2306
    %v2308 = vlaneseq
    %v2309 = vshrl.u32 %v2308, 7
    %v2310 = vsub.s32 %v2307, %v2309
    %v2311 = vrot.slane %v2291, %v2310
    %v2313 = vunpack.c.l.s4 1966171168
    %v2314 = vunpack.c.0.s8 %v2313
    %v2315 = vlaneseq
    %v2316 = vshrl.u32 %v2315, 7
    %v2317 = vsub.s32 %v2314, %v2316
    %v2318 = vrot.slane %v2292, %v2317
    %v2320 = vunpack.c.l.s4 1966171168
    %v2321 = vunpack.c.0.s8 %v2320
    %v2322 = vlaneseq
    %v2323 = vshrl.u32 %v2322, 7
    %v2324 = vsub.s32 %v2321, %v2323
    %v2325 = vrot.slane %v2293, %v2324
    %v2327 = vunpack.c.l.s4 1966171168
    %v2328 = vunpack.c.0.s8 %v2327
    %v2329 = vlaneseq
    %v2330 = vshrl.u32 %v2329, 7
    %v2331 = vsub.s32 %v2328, %v2330
    %v2332 = vrot.slane %v2294, %v2331
    %v2334 = vunpack.c.l.s4 1966171168
    %v2335 = vunpack.c.0.s8 %v2334
    %v2336 = vlaneseq
    %v2337 = vshrl.u32 %v2336, 7
    %v2338 = vsub.s32 %v2335, %v2337
    %v2339 = vrot.slane %v2295, %v2338
    %v2341 = vunpack.c.l.s4 1966171168
    %v2342 = vunpack.c.0.s8 %v2341
    %v2343 = vlaneseq
    %v2344 = vshrl.u32 %v2343, 7
    %v2345 = vsub.s32 %v2342, %v2344
    %v2346 = vrot.slane %v2296, %v2345
    %v2348 = vunpack.c.l.s4 1966171168
    %v2349 = vunpack.c.0.s8 %v2348
    %v2350 = vlaneseq
    %v2351 = vshrl.u32 %v2350, 7
    %v2352 = vsub.s32 %v2349, %v2351
    %v2353 = vrot.slane %v2297, %v2352
    %v2354 = vcombine.low %v2304, %v2318
    %v2355 = vcombine.high %v2304, %v2318
    %v2356 = vcombine.low %v2311, %v2325
    %v2357 = vcombine.high %v2311, %v2325
    %v2358 = vcombine.low %v2332, %v2346
    %v2359 = vcombine.high %v2332, %v2346
    %v2360 = vcombine.low %v2339, %v2353
    %v2361 = vcombine.high %v2339, %v2353
    %v2363 = vunpack.c.l.s4 1966171168
    %v2364 = vunpack.c.0.s8 %v2363
    %v2365 = vlaneseq
    %v2366 = vshrl.u32 %v2365, 7
    %v2367 = vsub.s32 %v2364, %v2366
    %v2368 = vrot.slane %v2354, %v2367
    %v2370 = vunpack.c.l.s4 1966171168
    %v2371 = vunpack.c.0.s8 %v2370
    %v2372 = vlaneseq
    %v2373 = vshrl.u32 %v2372, 7
    %v2374 = vsub.s32 %v2371, %v2373
    %v2375 = vrot.slane %v2356, %v2374
    %v2377 = vunpack.c.l.s4 1966171168
    %v2378 = vunpack.c.0.s8 %v2377
    %v2379 = vlaneseq
    %v2380 = vshrl.u32 %v2379, 7
    %v2381 = vsub.s32 %v2378, %v2380
    %v2382 = vrot.slane %v2355, %v2381
    %v2384 = vunpack.c.l.s4 1966171168
    %v2385 = vunpack.c.0.s8 %v2384
    %v2386 = vlaneseq
    %v2387 = vshrl.u32 %v2386, 7
    %v2388 = vsub.s32 %v2385, %v2387
    %v2389 = vrot.slane %v2357, %v2388
    %v2391 = vunpack.c.l.s4 1966171168
    %v2392 = vunpack.c.0.s8 %v2391
    %v2393 = vlaneseq
    %v2394 = vshrl.u32 %v2393, 7
    %v2395 = vsub.s32 %v2392, %v2394
    %v2396 = vrot.slane %v2358, %v2395
    %v2398 = vunpack.c.l.s4 1966171168
    %v2399 = vunpack.c.0.s8 %v2398
    %v2400 = vlaneseq
    %v2401 = vshrl.u32 %v2400, 7
    %v2402 = vsub.s32 %v2399, %v2401
    %v2403 = vrot.slane %v2360, %v2402
    %v2405 = vunpack.c.l.s4 1966171168
    %v2406 = vunpack.c.0.s8 %v2405
    %v2407 = vlaneseq
    %v2408 = vshrl.u32 %v2407, 7
    %v2409 = vsub.s32 %v2406, %v2408
    %v2410 = vrot.slane %v2359, %v2409
    %v2412 = vunpack.c.l.s4 1966171168
    %v2413 = vunpack.c.0.s8 %v2412
    %v2414 = vlaneseq
    %v2415 = vshrl.u32 %v2414, 7
    %v2416 = vsub.s32 %v2413, %v2415
    %v2417 = vrot.slane %v2361, %v2416
    %v2418 = vcombine.low %v2368, %v2396
    %v2419 = vcombine.high %v2368, %v2396
    %v2420 = vcombine.low %v2375, %v2403
    %v2421 = vcombine.high %v2375, %v2403
    %v2422 = vcombine.low %v2382, %v2410
    %v2423 = vcombine.high %v2382, %v2410
    %v2424 = vcombine.low %v2389, %v2417
    %v2425 = vcombine.high %v2389, %v2417
    %2442 = vmatprep.subr.bf16.mxu0 %v651
    %2443 = vmatpush1.bf16.msra.mxu0 %v650
    %2444 = vmatprep.subr.bf16.mxu0 %v659
    %2445 = vmatpush1.bf16.msra.mxu0 %v658
    %2446 = vmatprep.subr.bf16.mxu0 %v667
    %2447 = vmatpush1.bf16.msra.mxu0 %v666
    %2448 = vmatprep.subr.bf16.mxu0 %v675
    %2449 = vmatpush1.bf16.msra.mxu0 %v674
    %2450 = vmatprep.subr.bf16.mxu0 %v683
    %2451 = vmatpush1.bf16.msra.mxu0 %v682
    %2452 = vmatprep.subr.bf16.mxu0 %v691
    %2453 = vmatpush1.bf16.msra.mxu0 %v690
    %2454 = vmatprep.subr.bf16.mxu0 %v699
    %2455 = vmatpush1.bf16.msra.mxu0 %v698
    %2456 = vmatprep.subr.bf16.mxu0 %v707
    %2457 = vmatpush1.bf16.msra.mxu0 %v706
    %2458 = vmatprep.subr.bf16.mxu0 %v715
    %2459 = vmatpush1.bf16.msra.mxu0 %v714
    %2460 = vmatprep.subr.bf16.mxu0 %v723
    %2461 = vmatpush1.bf16.msra.mxu0 %v722
    %2462 = vmatprep.subr.bf16.mxu0 %v731
    %2463 = vmatpush1.bf16.msra.mxu0 %v730
    %2464 = vmatprep.subr.bf16.mxu0 %v739
    %2465 = vmatpush1.bf16.msra.mxu0 %v738
    %2466 = vmatprep.subr.bf16.mxu0 %v747
    %2467 = vmatpush1.bf16.msra.mxu0 %v746
    %2468 = vmatprep.subr.bf16.mxu0 %v755
    %2469 = vmatpush1.bf16.msra.mxu0 %v754
    %2470 = vmatprep.subr.bf16.mxu0 %v763
    %2471 = vmatpush1.bf16.msra.mxu0 %v762
    %2472 = vmatprep.subr.bf16.mxu0 %v771
    %2473 = vmatpush1.bf16.msra.mxu0 %v770
    %2474 = vmatprep.mubr.bf16.mxu0 %v2286
    %2475 = vmatmul.mubr.bf16.gmra.mrb[0].mxu0 %v2282
    %v2476 = vpop.f32.mrb[0].mxu0
    %v2477 = vadd.f32 0.0, %v2476
    %v2478 = vpop.f32.mrb[0].mxu0
    %v2479 = vadd.f32 0.0, %v2478
    %v2480 = vpop.f32.mrb[0].mxu0
    %v2481 = vadd.f32 0.0, %v2480
    %v2482 = vpop.f32.mrb[0].mxu0
    %v2483 = vadd.f32 0.0, %v2482
    %2484 = vdwg.mxu0
    %2485 = vmatprep.subr.bf16.mxu0 %v779
    %2486 = vmatpush1.bf16.msra.mxu0 %v778
    %2487 = vmatprep.subr.bf16.mxu0 %v787
    %2488 = vmatpush1.bf16.msra.mxu0 %v786
    %2489 = vmatprep.subr.bf16.mxu0 %v795
    %2490 = vmatpush1.bf16.msra.mxu0 %v794
    %2491 = vmatprep.subr.bf16.mxu0 %v803
    %2492 = vmatpush1.bf16.msra.mxu0 %v802
    %2493 = vmatprep.subr.bf16.mxu0 %v811
    %2494 = vmatpush1.bf16.msra.mxu0 %v810
    %2495 = vmatprep.subr.bf16.mxu0 %v819
    %2496 = vmatpush1.bf16.msra.mxu0 %v818
    %2497 = vmatprep.subr.bf16.mxu0 %v827
    %2498 = vmatpush1.bf16.msra.mxu0 %v826
    %2499 = vmatprep.subr.bf16.mxu0 %v835
    %2500 = vmatpush1.bf16.msra.mxu0 %v834
    %2501 = vmatprep.subr.bf16.mxu0 %v843
    %2502 = vmatpush1.bf16.msra.mxu0 %v842
    %2503 = vmatprep.subr.bf16.mxu0 %v851
    %2504 = vmatpush1.bf16.msra.mxu0 %v850
    %2505 = vmatprep.subr.bf16.mxu0 %v859
    %2506 = vmatpush1.bf16.msra.mxu0 %v858
    %2507 = vmatprep.subr.bf16.mxu0 %v867
    %2508 = vmatpush1.bf16.msra.mxu0 %v866
    %2509 = vmatprep.subr.bf16.mxu0 %v875
    %2510 = vmatpush1.bf16.msra.mxu0 %v874
    %2511 = vmatprep.subr.bf16.mxu0 %v883
    %2512 = vmatpush1.bf16.msra.mxu0 %v882
    %2513 = vmatprep.subr.bf16.mxu0 %v891
    %2514 = vmatpush1.bf16.msra.mxu0 %v890
    %2515 = vmatprep.subr.bf16.mxu0 %v899
    %2516 = vmatpush1.bf16.msra.mxu0 %v898
    %2517 = vmatprep.mubr.bf16.mxu0 %v2287
    %2518 = vmatmul.mubr.bf16.gmra.mrb[0].mxu0 %v2283
    %v2519 = vpop.f32.mrb[0].mxu0
    %v2520 = vadd.f32 %v2477, %v2519
    %v2521 = vpop.f32.mrb[0].mxu0
    %v2522 = vadd.f32 %v2479, %v2521
    %v2523 = vpop.f32.mrb[0].mxu0
    %v2524 = vadd.f32 %v2481, %v2523
    %v2525 = vpop.f32.mrb[0].mxu0
    %v2526 = vadd.f32 %v2483, %v2525
    %2527 = vdwg.mxu0
    %2528 = vmatprep.subr.bf16.mxu0 %v907
    %2529 = vmatpush1.bf16.msra.mxu0 %v906
    %2530 = vmatprep.subr.bf16.mxu0 %v915
    %2531 = vmatpush1.bf16.msra.mxu0 %v914
    %2532 = vmatprep.subr.bf16.mxu0 %v923
    %2533 = vmatpush1.bf16.msra.mxu0 %v922
    %2534 = vmatprep.subr.bf16.mxu0 %v931
    %2535 = vmatpush1.bf16.msra.mxu0 %v930
    %2536 = vmatprep.subr.bf16.mxu0 %v939
    %2537 = vmatpush1.bf16.msra.mxu0 %v938
    %2538 = vmatprep.subr.bf16.mxu0 %v947
    %2539 = vmatpush1.bf16.msra.mxu0 %v946
    %2540 = vmatprep.subr.bf16.mxu0 %v955
    %2541 = vmatpush1.bf16.msra.mxu0 %v954
    %2542 = vmatprep.subr.bf16.mxu0 %v963
    %2543 = vmatpush1.bf16.msra.mxu0 %v962
    %2544 = vmatprep.subr.bf16.mxu0 %v971
    %2545 = vmatpush1.bf16.msra.mxu0 %v970
    %2546 = vmatprep.subr.bf16.mxu0 %v979
    %2547 = vmatpush1.bf16.msra.mxu0 %v978
    %2548 = vmatprep.subr.bf16.mxu0 %v987
    %2549 = vmatpush1.bf16.msra.mxu0 %v986
    %2550 = vmatprep.subr.bf16.mxu0 %v995
    %2551 = vmatpush1.bf16.msra.mxu0 %v994
    %2552 = vmatprep.subr.bf16.mxu0 %v1003
    %2553 = vmatpush1.bf16.msra.mxu0 %v1002
    %2554 = vmatprep.subr.bf16.mxu0 %v1011
    %2555 = vmatpush1.bf16.msra.mxu0 %v1010
    %2556 = vmatprep.subr.bf16.mxu0 %v1019
    %2557 = vmatpush1.bf16.msra.mxu0 %v1018
    %2558 = vmatprep.subr.bf16.mxu0 %v1027
    %2559 = vmatpush1.bf16.msra.mxu0 %v1026
    %2560 = vmatprep.mubr.bf16.mxu0 %v2288
    %2561 = vmatmul.mubr.bf16.gmra.mrb[0].mxu0 %v2284
    %v2562 = vpop.f32.mrb[0].mxu0
    %v2563 = vadd.f32 %v2520, %v2562
    %v2564 = vpop.f32.mrb[0].mxu0
    %v2565 = vadd.f32 %v2522, %v2564
    %v2566 = vpop.f32.mrb[0].mxu0
    %v2567 = vadd.f32 %v2524, %v2566
    %v2568 = vpop.f32.mrb[0].mxu0
    %v2569 = vadd.f32 %v2526, %v2568
    %2570 = vdwg.mxu0
    %2571 = vmatprep.subr.bf16.mxu0 %v1035
    %2572 = vmatpush1.bf16.msra.mxu0 %v1034
    %2573 = vmatprep.subr.bf16.mxu0 %v1043
    %2574 = vmatpush1.bf16.msra.mxu0 %v1042
    %2575 = vmatprep.subr.bf16.mxu0 %v1051
    %2576 = vmatpush1.bf16.msra.mxu0 %v1050
    %2577 = vmatprep.subr.bf16.mxu0 %v1059
    %2578 = vmatpush1.bf16.msra.mxu0 %v1058
    %2579 = vmatprep.subr.bf16.mxu0 %v1067
    %2580 = vmatpush1.bf16.msra.mxu0 %v1066
    %2581 = vmatprep.subr.bf16.mxu0 %v1075
    %2582 = vmatpush1.bf16.msra.mxu0 %v1074
    %2583 = vmatprep.subr.bf16.mxu0 %v1083
    %2584 = vmatpush1.bf16.msra.mxu0 %v1082
    %2585 = vmatprep.subr.bf16.mxu0 %v1091
    %2586 = vmatpush1.bf16.msra.mxu0 %v1090
    %2587 = vmatprep.subr.bf16.mxu0 %v1099
    %2588 = vmatpush1.bf16.msra.mxu0 %v1098
    %2589 = vmatprep.subr.bf16.mxu0 %v1107
    %2590 = vmatpush1.bf16.msra.mxu0 %v1106
    %2591 = vmatprep.subr.bf16.mxu0 %v1115
    %2592 = vmatpush1.bf16.msra.mxu0 %v1114
    %2593 = vmatprep.subr.bf16.mxu0 %v1123
    %2594 = vmatpush1.bf16.msra.mxu0 %v1122
    %2595 = vmatprep.subr.bf16.mxu0 %v1131
    %2596 = vmatpush1.bf16.msra.mxu0 %v1130
    %2597 = vmatprep.subr.bf16.mxu0 %v1139
    %2598 = vmatpush1.bf16.msra.mxu0 %v1138
    %2599 = vmatprep.subr.bf16.mxu0 %v1147
    %2600 = vmatpush1.bf16.msra.mxu0 %v1146
    %2601 = vmatprep.subr.bf16.mxu0 %v1155
    %2602 = vmatpush1.bf16.msra.mxu0 %v1154
    %2603 = vmatprep.mubr.bf16.mxu0 %v2289
    %2604 = vmatmul.mubr.bf16.gmra.mrb[0].mxu0 %v2285
    %v2605 = vpop.f32.mrb[0].mxu0
    %v2606 = vadd.f32 %v2563, %v2605
    %v2607 = vpop.f32.mrb[0].mxu0
    %v2608 = vadd.f32 %v2565, %v2607
    %v2609 = vpop.f32.mrb[0].mxu0
    %v2610 = vadd.f32 %v2567, %v2609
    %v2611 = vpop.f32.mrb[0].mxu0
    %v2612 = vadd.f32 %v2569, %v2611
    %2613 = vdwg.mxu0
    %2614 = vmatprep.subr.bf16.mxu0 %v1163
    %2615 = vmatpush1.bf16.msra.mxu0 %v1162
    %2616 = vmatprep.subr.bf16.mxu0 %v1171
    %2617 = vmatpush1.bf16.msra.mxu0 %v1170
    %2618 = vmatprep.subr.bf16.mxu0 %v1179
    %2619 = vmatpush1.bf16.msra.mxu0 %v1178
    %2620 = vmatprep.subr.bf16.mxu0 %v1187
    %2621 = vmatpush1.bf16.msra.mxu0 %v1186
    %2622 = vmatprep.subr.bf16.mxu0 %v1195
    %2623 = vmatpush1.bf16.msra.mxu0 %v1194
    %2624 = vmatprep.subr.bf16.mxu0 %v1203
    %2625 = vmatpush1.bf16.msra.mxu0 %v1202
    %2626 = vmatprep.subr.bf16.mxu0 %v1211
    %2627 = vmatpush1.bf16.msra.mxu0 %v1210
    %2628 = vmatprep.subr.bf16.mxu0 %v1219
    %2629 = vmatpush1.bf16.msra.mxu0 %v1218
    %2630 = vmatprep.subr.bf16.mxu0 %v1227
    %2631 = vmatpush1.bf16.msra.mxu0 %v1226
    %2632 = vmatprep.subr.bf16.mxu0 %v1235
    %2633 = vmatpush1.bf16.msra.mxu0 %v1234
    %2634 = vmatprep.subr.bf16.mxu0 %v1243
    %2635 = vmatpush1.bf16.msra.mxu0 %v1242
    %2636 = vmatprep.subr.bf16.mxu0 %v1251
    %2637 = vmatpush1.bf16.msra.mxu0 %v1250
    %2638 = vmatprep.subr.bf16.mxu0 %v1259
    %2639 = vmatpush1.bf16.msra.mxu0 %v1258
    %2640 = vmatprep.subr.bf16.mxu0 %v1267
    %2641 = vmatpush1.bf16.msra.mxu0 %v1266
    %2642 = vmatprep.subr.bf16.mxu0 %v1275
    %2643 = vmatpush1.bf16.msra.mxu0 %v1274
    %2644 = vmatprep.subr.bf16.mxu0 %v1283
    %2645 = vmatpush1.bf16.msra.mxu0 %v1282
    %2646 = vmatprep.mubr.bf16.mxu0 %v2422
    %2647 = vmatmul.mubr.bf16.gmra.mrb[0].mxu0 %v2418
    %v2648 = vpop.f32.mrb[0].mxu0
    %v2649 = vadd.f32 %v2606, %v2648
    %v2650 = vpop.f32.mrb[0].mxu0
    %v2651 = vadd.f32 %v2608, %v2650
    %v2652 = vpop.f32.mrb[0].mxu0
    %v2653 = vadd.f32 %v2610, %v2652
    %v2654 = vpop.f32.mrb[0].mxu0
    %v2655 = vadd.f32 %v2612, %v2654
    %2656 = vdwg.mxu0
    %2657 = vmatprep.subr.bf16.mxu0 %v1291
    %2658 = vmatpush1.bf16.msra.mxu0 %v1290
    %2659 = vmatprep.subr.bf16.mxu0 %v1299
    %2660 = vmatpush1.bf16.msra.mxu0 %v1298
    %2661 = vmatprep.subr.bf16.mxu0 %v1307
    %2662 = vmatpush1.bf16.msra.mxu0 %v1306
    %2663 = vmatprep.subr.bf16.mxu0 %v1315
    %2664 = vmatpush1.bf16.msra.mxu0 %v1314
    %2665 = vmatprep.subr.bf16.mxu0 %v1323
    %2666 = vmatpush1.bf16.msra.mxu0 %v1322
    %2667 = vmatprep.subr.bf16.mxu0 %v1331
    %2668 = vmatpush1.bf16.msra.mxu0 %v1330
    %2669 = vmatprep.subr.bf16.mxu0 %v1339
    %2670 = vmatpush1.bf16.msra.mxu0 %v1338
    %2671 = vmatprep.subr.bf16.mxu0 %v1347
    %2672 = vmatpush1.bf16.msra.mxu0 %v1346
    %2673 = vmatprep.subr.bf16.mxu0 %v1355
    %2674 = vmatpush1.bf16.msra.mxu0 %v1354
    %2675 = vmatprep.subr.bf16.mxu0 %v1363
    %2676 = vmatpush1.bf16.msra.mxu0 %v1362
    %2677 = vmatprep.subr.bf16.mxu0 %v1371
    %2678 = vmatpush1.bf16.msra.mxu0 %v1370
    %2679 = vmatprep.subr.bf16.mxu0 %v1379
    %2680 = vmatpush1.bf16.msra.mxu0 %v1378
    %2681 = vmatprep.subr.bf16.mxu0 %v1387
    %2682 = vmatpush1.bf16.msra.mxu0 %v1386
    %2683 = vmatprep.subr.bf16.mxu0 %v1395
    %2684 = vmatpush1.bf16.msra.mxu0 %v1394
    %2685 = vmatprep.subr.bf16.mxu0 %v1403
    %2686 = vmatpush1.bf16.msra.mxu0 %v1402
    %2687 = vmatprep.subr.bf16.mxu0 %v1411
    %2688 = vmatpush1.bf16.msra.mxu0 %v1410
    %2689 = vmatprep.mubr.bf16.mxu0 %v2423
    %2690 = vmatmul.mubr.bf16.gmra.mrb[0].mxu0 %v2419
    %v2691 = vpop.f32.mrb[0].mxu0
    %v2692 = vadd.f32 %v2649, %v2691
    %v2693 = vpop.f32.mrb[0].mxu0
    %v2694 = vadd.f32 %v2651, %v2693
    %v2695 = vpop.f32.mrb[0].mxu0
    %v2696 = vadd.f32 %v2653, %v2695
    %v2697 = vpop.f32.mrb[0].mxu0
    %v2698 = vadd.f32 %v2655, %v2697
    %2699 = vdwg.mxu0
    %2700 = vmatprep.subr.bf16.mxu0 %v1419
    %2701 = vmatpush1.bf16.msra.mxu0 %v1418
    %2702 = vmatprep.subr.bf16.mxu0 %v1427
    %2703 = vmatpush1.bf16.msra.mxu0 %v1426
    %2704 = vmatprep.subr.bf16.mxu0 %v1435
    %2705 = vmatpush1.bf16.msra.mxu0 %v1434
    %2706 = vmatprep.subr.bf16.mxu0 %v1443
    %2707 = vmatpush1.bf16.msra.mxu0 %v1442
    %2708 = vmatprep.subr.bf16.mxu0 %v1451
    %2709 = vmatpush1.bf16.msra.mxu0 %v1450
    %2710 = vmatprep.subr.bf16.mxu0 %v1459
    %2711 = vmatpush1.bf16.msra.mxu0 %v1458
    %2712 = vmatprep.subr.bf16.mxu0 %v1467
    %2713 = vmatpush1.bf16.msra.mxu0 %v1466
    %2714 = vmatprep.subr.bf16.mxu0 %v1475
    %2715 = vmatpush1.bf16.msra.mxu0 %v1474
    %2716 = vmatprep.subr.bf16.mxu0 %v1483
    %2717 = vmatpush1.bf16.msra.mxu0 %v1482
    %2718 = vmatprep.subr.bf16.mxu0 %v1491
    %2719 = vmatpush1.bf16.msra.mxu0 %v1490
    %2720 = vmatprep.subr.bf16.mxu0 %v1499
    %2721 = vmatpush1.bf16.msra.mxu0 %v1498
    %2722 = vmatprep.subr.bf16.mxu0 %v1507
    %2723 = vmatpush1.bf16.msra.mxu0 %v1506
    %2724 = vmatprep.subr.bf16.mxu0 %v1515
    %2725 = vmatpush1.bf16.msra.mxu0 %v1514
    %2726 = vmatprep.subr.bf16.mxu0 %v1523
    %2727 = vmatpush1.bf16.msra.mxu0 %v1522
    %2728 = vmatprep.subr.bf16.mxu0 %v1531
    %2729 = vmatpush1.bf16.msra.mxu0 %v1530
    %2730 = vmatprep.subr.bf16.mxu0 %v1539
    %2731 = vmatpush1.bf16.msra.mxu0 %v1538
    %2732 = vmatprep.mubr.bf16.mxu0 %v2424
    %2733 = vmatmul.mubr.bf16.gmra.mrb[0].mxu0 %v2420
    %v2734 = vpop.f32.mrb[0].mxu0
    %v2735 = vadd.f32 %v2692, %v2734
    %v2736 = vpop.f32.mrb[0].mxu0
    %v2737 = vadd.f32 %v2694, %v2736
    %v2738 = vpop.f32.mrb[0].mxu0
    %v2739 = vadd.f32 %v2696, %v2738
    %v2740 = vpop.f32.mrb[0].mxu0
    %v2741 = vadd.f32 %v2698, %v2740
    %2742 = vdwg.mxu0
    %2743 = vmatprep.subr.bf16.mxu0 %v1547
    %2744 = vmatpush1.bf16.msra.mxu0 %v1546
    %2745 = vmatprep.subr.bf16.mxu0 %v1555
    %2746 = vmatpush1.bf16.msra.mxu0 %v1554
    %2747 = vmatprep.subr.bf16.mxu0 %v1563
    %2748 = vmatpush1.bf16.msra.mxu0 %v1562
    %2749 = vmatprep.subr.bf16.mxu0 %v1571
    %2750 = vmatpush1.bf16.msra.mxu0 %v1570
    %2751 = vmatprep.subr.bf16.mxu0 %v1579
    %2752 = vmatpush1.bf16.msra.mxu0 %v1578
    %2753 = vmatprep.subr.bf16.mxu0 %v1587
    %2754 = vmatpush1.bf16.msra.mxu0 %v1586
    %2755 = vmatprep.subr.bf16.mxu0 %v1595
    %2756 = vmatpush1.bf16.msra.mxu0 %v1594
    %2757 = vmatprep.subr.bf16.mxu0 %v1603
    %2758 = vmatpush1.bf16.msra.mxu0 %v1602
    %2759 = vmatprep.subr.bf16.mxu0 %v1611
    %2760 = vmatpush1.bf16.msra.mxu0 %v1610
    %2761 = vmatprep.subr.bf16.mxu0 %v1619
    %2762 = vmatpush1.bf16.msra.mxu0 %v1618
    %2763 = vmatprep.subr.bf16.mxu0 %v1627
    %2764 = vmatpush1.bf16.msra.mxu0 %v1626
    %2765 = vmatprep.subr.bf16.mxu0 %v1635
    %2766 = vmatpush1.bf16.msra.mxu0 %v1634
    %2767 = vmatprep.subr.bf16.mxu0 %v1643
    %2768 = vmatpush1.bf16.msra.mxu0 %v1642
    %2769 = vmatprep.subr.bf16.mxu0 %v1651
    %2770 = vmatpush1.bf16.msra.mxu0 %v1650
    %2771 = vmatprep.subr.bf16.mxu0 %v1659
    %2772 = vmatpush1.bf16.msra.mxu0 %v1658
    %2773 = vmatprep.subr.bf16.mxu0 %v1667
    %2774 = vmatpush1.bf16.msra.mxu0 %v1666
    %2775 = vmatprep.mubr.bf16.mxu0 %v2425
    %2776 = vmatmul.mubr.bf16.gmra.mrb[0].mxu0 %v2421
    %v2777 = vpop.f32.mrb[0].mxu0
    %v2778 = vadd.f32 %v2735, %v2777
    %v2779 = vpop.f32.mrb[0].mxu0
    %v2780 = vadd.f32 %v2737, %v2779
    %v2781 = vpop.f32.mrb[0].mxu0
    %v2782 = vadd.f32 %v2739, %v2781
    %v2783 = vpop.f32.mrb[0].mxu0
    %v2784 = vadd.f32 %v2741, %v2783
    %2785 = vdwg.mxu0
    %2786 = vmatprep.subr.bf16.mxu0 %v653
    %2787 = vmatpush1.bf16.msra.mxu0 %v652
    %2788 = vmatprep.subr.bf16.mxu0 %v661
    %2789 = vmatpush1.bf16.msra.mxu0 %v660
    %2790 = vmatprep.subr.bf16.mxu0 %v669
    %2791 = vmatpush1.bf16.msra.mxu0 %v668
    %2792 = vmatprep.subr.bf16.mxu0 %v677
    %2793 = vmatpush1.bf16.msra.mxu0 %v676
    %2794 = vmatprep.subr.bf16.mxu0 %v685
    %2795 = vmatpush1.bf16.msra.mxu0 %v684
    %2796 = vmatprep.subr.bf16.mxu0 %v693
    %2797 = vmatpush1.bf16.msra.mxu0 %v692
    %2798 = vmatprep.subr.bf16.mxu0 %v701
    %2799 = vmatpush1.bf16.msra.mxu0 %v700
    %2800 = vmatprep.subr.bf16.mxu0 %v709
    %2801 = vmatpush1.bf16.msra.mxu0 %v708
    %2802 = vmatprep.subr.bf16.mxu0 %v717
    %2803 = vmatpush1.bf16.msra.mxu0 %v716
    %2804 = vmatprep.subr.bf16.mxu0 %v725
    %2805 = vmatpush1.bf16.msra.mxu0 %v724
    %2806 = vmatprep.subr.bf16.mxu0 %v733
    %2807 = vmatpush1.bf16.msra.mxu0 %v732
    %2808 = vmatprep.subr.bf16.mxu0 %v741
    %2809 = vmatpush1.bf16.msra.mxu0 %v740
    %2810 = vmatprep.subr.bf16.mxu0 %v749
    %2811 = vmatpush1.bf16.msra.mxu0 %v748
    %2812 = vmatprep.subr.bf16.mxu0 %v757
    %2813 = vmatpush1.bf16.msra.mxu0 %v756
    %2814 = vmatprep.subr.bf16.mxu0 %v765
    %2815 = vmatpush1.bf16.msra.mxu0 %v764
    %2816 = vmatprep.subr.bf16.mxu0 %v773
    %2817 = vmatpush1.bf16.msra.mxu0 %v772
    %2818 = vmatprep.mubr.bf16.mxu0 %v2286
    %2819 = vmatmul.mubr.bf16.gmra.mrb[0].mxu0 %v2282
    %v2820 = vpop.f32.mrb[0].mxu0
    %v2821 = vadd.f32 0.0, %v2820
    %v2822 = vpop.f32.mrb[0].mxu0
    %v2823 = vadd.f32 0.0, %v2822
    %v2824 = vpop.f32.mrb[0].mxu0
    %v2825 = vadd.f32 0.0, %v2824
    %v2826 = vpop.f32.mrb[0].mxu0
    %v2827 = vadd.f32 0.0, %v2826
    %2828 = vdwg.mxu0
    %2829 = vmatprep.subr.bf16.mxu0 %v781
    %2830 = vmatpush1.bf16.msra.mxu0 %v780
    %2831 = vmatprep.subr.bf16.mxu0 %v789
    %2832 = vmatpush1.bf16.msra.mxu0 %v788
    %2833 = vmatprep.subr.bf16.mxu0 %v797
    %2834 = vmatpush1.bf16.msra.mxu0 %v796
    %2835 = vmatprep.subr.bf16.mxu0 %v805
    %2836 = vmatpush1.bf16.msra.mxu0 %v804
    %2837 = vmatprep.subr.bf16.mxu0 %v813
    %2838 = vmatpush1.bf16.msra.mxu0 %v812
    %2839 = vmatprep.subr.bf16.mxu0 %v821
    %2840 = vmatpush1.bf16.msra.mxu0 %v820
    %2841 = vmatprep.subr.bf16.mxu0 %v829
    %2842 = vmatpush1.bf16.msra.mxu0 %v828
    %2843 = vmatprep.subr.bf16.mxu0 %v837
    %2844 = vmatpush1.bf16.msra.mxu0 %v836
    %2845 = vmatprep.subr.bf16.mxu0 %v845
    %2846 = vmatpush1.bf16.msra.mxu0 %v844
    %2847 = vmatprep.subr.bf16.mxu0 %v853
    %2848 = vmatpush1.bf16.msra.mxu0 %v852
    %2849 = vmatprep.subr.bf16.mxu0 %v861
    %2850 = vmatpush1.bf16.msra.mxu0 %v860
    %2851 = vmatprep.subr.bf16.mxu0 %v869
    %2852 = vmatpush1.bf16.msra.mxu0 %v868
    %2853 = vmatprep.subr.bf16.mxu0 %v877
    %2854 = vmatpush1.bf16.msra.mxu0 %v876
    %2855 = vmatprep.subr.bf16.mxu0 %v885
    %2856 = vmatpush1.bf16.msra.mxu0 %v884
    %2857 = vmatprep.subr.bf16.mxu0 %v893
    %2858 = vmatpush1.bf16.msra.mxu0 %v892
    %2859 = vmatprep.subr.bf16.mxu0 %v901
    %2860 = vmatpush1.bf16.msra.mxu0 %v900
    %2861 = vmatprep.mubr.bf16.mxu0 %v2287
    %2862 = vmatmul.mubr.bf16.gmra.mrb[0].mxu0 %v2283
    %v2863 = vpop.f32.mrb[0].mxu0
    %v2864 = vadd.f32 %v2821, %v2863
    %v2865 = vpop.f32.mrb[0].mxu0
    %v2866 = vadd.f32 %v2823, %v2865
    %v2867 = vpop.f32.mrb[0].mxu0
    %v2868 = vadd.f32 %v2825, %v2867
    %v2869 = vpop.f32.mrb[0].mxu0
    %v2870 = vadd.f32 %v2827, %v2869
    %2871 = vdwg.mxu0
    %2872 = vmatprep.subr.bf16.mxu0 %v909
    %2873 = vmatpush1.bf16.msra.mxu0 %v908
    %2874 = vmatprep.subr.bf16.mxu0 %v917
    %2875 = vmatpush1.bf16.msra.mxu0 %v916
    %2876 = vmatprep.subr.bf16.mxu0 %v925
    %2877 = vmatpush1.bf16.msra.mxu0 %v924
    %2878 = vmatprep.subr.bf16.mxu0 %v933
    %2879 = vmatpush1.bf16.msra.mxu0 %v932
    %2880 = vmatprep.subr.bf16.mxu0 %v941
    %2881 = vmatpush1.bf16.msra.mxu0 %v940
    %2882 = vmatprep.subr.bf16.mxu0 %v949
    %2883 = vmatpush1.bf16.msra.mxu0 %v948
    %2884 = vmatprep.subr.bf16.mxu0 %v957
    %2885 = vmatpush1.bf16.msra.mxu0 %v956
    %2886 = vmatprep.subr.bf16.mxu0 %v965
    %2887 = vmatpush1.bf16.msra.mxu0 %v964
    %2888 = vmatprep.subr.bf16.mxu0 %v973
    %2889 = vmatpush1.bf16.msra.mxu0 %v972
    %2890 = vmatprep.subr.bf16.mxu0 %v981
    %2891 = vmatpush1.bf16.msra.mxu0 %v980
    %2892 = vmatprep.subr.bf16.mxu0 %v989
    %2893 = vmatpush1.bf16.msra.mxu0 %v988
    %2894 = vmatprep.subr.bf16.mxu0 %v997
    %2895 = vmatpush1.bf16.msra.mxu0 %v996
    %2896 = vmatprep.subr.bf16.mxu0 %v1005
    %2897 = vmatpush1.bf16.msra.mxu0 %v1004
    %2898 = vmatprep.subr.bf16.mxu0 %v1013
    %2899 = vmatpush1.bf16.msra.mxu0 %v1012
    %2900 = vmatprep.subr.bf16.mxu0 %v1021
    %2901 = vmatpush1.bf16.msra.mxu0 %v1020
    %2902 = vmatprep.subr.bf16.mxu0 %v1029
    %2903 = vmatpush1.bf16.msra.mxu0 %v1028
    %2904 = vmatprep.mubr.bf16.mxu0 %v2288
    %2905 = vmatmul.mubr.bf16.gmra.mrb[0].mxu0 %v2284
    %v2906 = vpop.f32.mrb[0].mxu0
    %v2907 = vadd.f32 %v2864, %v2906
    %v2908 = vpop.f32.mrb[0].mxu0
    %v2909 = vadd.f32 %v2866, %v2908
    %v2910 = vpop.f32.mrb[0].mxu0
    %v2911 = vadd.f32 %v2868, %v2910
    %v2912 = vpop.f32.mrb[0].mxu0
    %v2913 = vadd.f32 %v2870, %v2912
    %2914 = vdwg.mxu0
    %2915 = vmatprep.subr.bf16.mxu0 %v1037
    %2916 = vmatpush1.bf16.msra.mxu0 %v1036
    %2917 = vmatprep.subr.bf16.mxu0 %v1045
    %2918 = vmatpush1.bf16.msra.mxu0 %v1044
    %2919 = vmatprep.subr.bf16.mxu0 %v1053
    %2920 = vmatpush1.bf16.msra.mxu0 %v1052
    %2921 = vmatprep.subr.bf16.mxu0 %v1061
    %2922 = vmatpush1.bf16.msra.mxu0 %v1060
    %2923 = vmatprep.subr.bf16.mxu0 %v1069
    %2924 = vmatpush1.bf16.msra.mxu0 %v1068
    %2925 = vmatprep.subr.bf16.mxu0 %v1077
    %2926 = vmatpush1.bf16.msra.mxu0 %v1076
    %2927 = vmatprep.subr.bf16.mxu0 %v1085
    %2928 = vmatpush1.bf16.msra.mxu0 %v1084
    %2929 = vmatprep.subr.bf16.mxu0 %v1093
    %2930 = vmatpush1.bf16.msra.mxu0 %v1092
    %2931 = vmatprep.subr.bf16.mxu0 %v1101
    %2932 = vmatpush1.bf16.msra.mxu0 %v1100
    %2933 = vmatprep.subr.bf16.mxu0 %v1109
    %2934 = vmatpush1.bf16.msra.mxu0 %v1108
    %2935 = vmatprep.subr.bf16.mxu0 %v1117
    %2936 = vmatpush1.bf16.msra.mxu0 %v1116
    %2937 = vmatprep.subr.bf16.mxu0 %v1125
    %2938 = vmatpush1.bf16.msra.mxu0 %v1124
    %2939 = vmatprep.subr.bf16.mxu0 %v1133
    %2940 = vmatpush1.bf16.msra.mxu0 %v1132
    %2941 = vmatprep.subr.bf16.mxu0 %v1141
    %2942 = vmatpush1.bf16.msra.mxu0 %v1140
    %2943 = vmatprep.subr.bf16.mxu0 %v1149
    %2944 = vmatpush1.bf16.msra.mxu0 %v1148
    %2945 = vmatprep.subr.bf16.mxu0 %v1157
    %2946 = vmatpush1.bf16.msra.mxu0 %v1156
    %2947 = vmatprep.mubr.bf16.mxu0 %v2289
    %2948 = vmatmul.mubr.bf16.gmra.mrb[0].mxu0 %v2285
    %v2949 = vpop.f32.mrb[0].mxu0
    %v2950 = vadd.f32 %v2907, %v2949
    %v2951 = vpop.f32.mrb[0].mxu0
    %v2952 = vadd.f32 %v2909, %v2951
    %v2953 = vpop.f32.mrb[0].mxu0
    %v2954 = vadd.f32 %v2911, %v2953
    %v2955 = vpop.f32.mrb[0].mxu0
    %v2956 = vadd.f32 %v2913, %v2955
    %2957 = vdwg.mxu0
    %2958 = vmatprep.subr.bf16.mxu0 %v1165
    %2959 = vmatpush1.bf16.msra.mxu0 %v1164
    %2960 = vmatprep.subr.bf16.mxu0 %v1173
    %2961 = vmatpush1.bf16.msra.mxu0 %v1172
    %2962 = vmatprep.subr.bf16.mxu0 %v1181
    %2963 = vmatpush1.bf16.msra.mxu0 %v1180
    %2964 = vmatprep.subr.bf16.mxu0 %v1189
    %2965 = vmatpush1.bf16.msra.mxu0 %v1188
    %2966 = vmatprep.subr.bf16.mxu0 %v1197
    %2967 = vmatpush1.bf16.msra.mxu0 %v1196
    %2968 = vmatprep.subr.bf16.mxu0 %v1205
    %2969 = vmatpush1.bf16.msra.mxu0 %v1204
    %2970 = vmatprep.subr.bf16.mxu0 %v1213
    %2971 = vmatpush1.bf16.msra.mxu0 %v1212
    %2972 = vmatprep.subr.bf16.mxu0 %v1221
    %2973 = vmatpush1.bf16.msra.mxu0 %v1220
    %2974 = vmatprep.subr.bf16.mxu0 %v1229
    %2975 = vmatpush1.bf16.msra.mxu0 %v1228
    %2976 = vmatprep.subr.bf16.mxu0 %v1237
    %2977 = vmatpush1.bf16.msra.mxu0 %v1236
    %2978 = vmatprep.subr.bf16.mxu0 %v1245
    %2979 = vmatpush1.bf16.msra.mxu0 %v1244
    %2980 = vmatprep.subr.bf16.mxu0 %v1253
    %2981 = vmatpush1.bf16.msra.mxu0 %v1252
    %2982 = vmatprep.subr.bf16.mxu0 %v1261
    %2983 = vmatpush1.bf16.msra.mxu0 %v1260
    %2984 = vmatprep.subr.bf16.mxu0 %v1269
    %2985 = vmatpush1.bf16.msra.mxu0 %v1268
    %2986 = vmatprep.subr.bf16.mxu0 %v1277
    %2987 = vmatpush1.bf16.msra.mxu0 %v1276
    %2988 = vmatprep.subr.bf16.mxu0 %v1285
    %2989 = vmatpush1.bf16.msra.mxu0 %v1284
    %2990 = vmatprep.mubr.bf16.mxu0 %v2422
    %2991 = vmatmul.mubr.bf16.gmra.mrb[0].mxu0 %v2418
    %v2992 = vpop.f32.mrb[0].mxu0
    %v2993 = vadd.f32 %v2950, %v2992
    %v2994 = vpop.f32.mrb[0].mxu0
    %v2995 = vadd.f32 %v2952, %v2994
    %v2996 = vpop.f32.mrb[0].mxu0
    %v2997 = vadd.f32 %v2954, %v2996
    %v2998 = vpop.f32.mrb[0].mxu0
    %v2999 = vadd.f32 %v2956, %v2998
    %3000 = vdwg.mxu0
    %3001 = vmatprep.subr.bf16.mxu0 %v1293
    %3002 = vmatpush1.bf16.msra.mxu0 %v1292
    %3003 = vmatprep.subr.bf16.mxu0 %v1301
    %3004 = vmatpush1.bf16.msra.mxu0 %v1300
    %3005 = vmatprep.subr.bf16.mxu0 %v1309
    %3006 = vmatpush1.bf16.msra.mxu0 %v1308
    %3007 = vmatprep.subr.bf16.mxu0 %v1317
    %3008 = vmatpush1.bf16.msra.mxu0 %v1316
    %3009 = vmatprep.subr.bf16.mxu0 %v1325
    %3010 = vmatpush1.bf16.msra.mxu0 %v1324
    %3011 = vmatprep.subr.bf16.mxu0 %v1333
    %3012 = vmatpush1.bf16.msra.mxu0 %v1332
    %3013 = vmatprep.subr.bf16.mxu0 %v1341
    %3014 = vmatpush1.bf16.msra.mxu0 %v1340
    %3015 = vmatprep.subr.bf16.mxu0 %v1349
    %3016 = vmatpush1.bf16.msra.mxu0 %v1348
    %3017 = vmatprep.subr.bf16.mxu0 %v1357
    %3018 = vmatpush1.bf16.msra.mxu0 %v1356
    %3019 = vmatprep.subr.bf16.mxu0 %v1365
    %3020 = vmatpush1.bf16.msra.mxu0 %v1364
    %3021 = vmatprep.subr.bf16.mxu0 %v1373
    %3022 = vmatpush1.bf16.msra.mxu0 %v1372
    %3023 = vmatprep.subr.bf16.mxu0 %v1381
    %3024 = vmatpush1.bf16.msra.mxu0 %v1380
    %3025 = vmatprep.subr.bf16.mxu0 %v1389
    %3026 = vmatpush1.bf16.msra.mxu0 %v1388
    %3027 = vmatprep.subr.bf16.mxu0 %v1397
    %3028 = vmatpush1.bf16.msra.mxu0 %v1396
    %3029 = vmatprep.subr.bf16.mxu0 %v1405
    %3030 = vmatpush1.bf16.msra.mxu0 %v1404
    %3031 = vmatprep.subr.bf16.mxu0 %v1413
    %3032 = vmatpush1.bf16.msra.mxu0 %v1412
    %3033 = vmatprep.mubr.bf16.mxu0 %v2423
    %3034 = vmatmul.mubr.bf16.gmra.mrb[0].mxu0 %v2419
    %v3035 = vpop.f32.mrb[0].mxu0
    %v3036 = vadd.f32 %v2993, %v3035
    %v3037 = vpop.f32.mrb[0].mxu0
    %v3038 = vadd.f32 %v2995, %v3037
    %v3039 = vpop.f32.mrb[0].mxu0
    %v3040 = vadd.f32 %v2997, %v3039
    %v3041 = vpop.f32.mrb[0].mxu0
    %v3042 = vadd.f32 %v2999, %v3041
    %3043 = vdwg.mxu0
    %3044 = vmatprep.subr.bf16.mxu0 %v1421
    %3045 = vmatpush1.bf16.msra.mxu0 %v1420
    %3046 = vmatprep.subr.bf16.mxu0 %v1429
    %3047 = vmatpush1.bf16.msra.mxu0 %v1428
    %3048 = vmatprep.subr.bf16.mxu0 %v1437
    %3049 = vmatpush1.bf16.msra.mxu0 %v1436
    %3050 = vmatprep.subr.bf16.mxu0 %v1445
    %3051 = vmatpush1.bf16.msra.mxu0 %v1444
    %3052 = vmatprep.subr.bf16.mxu0 %v1453
    %3053 = vmatpush1.bf16.msra.mxu0 %v1452
    %3054 = vmatprep.subr.bf16.mxu0 %v1461
    %3055 = vmatpush1.bf16.msra.mxu0 %v1460
    %3056 = vmatprep.subr.bf16.mxu0 %v1469
    %3057 = vmatpush1.bf16.msra.mxu0 %v1468
    %3058 = vmatprep.subr.bf16.mxu0 %v1477
    %3059 = vmatpush1.bf16.msra.mxu0 %v1476
    %3060 = vmatprep.subr.bf16.mxu0 %v1485
    %3061 = vmatpush1.bf16.msra.mxu0 %v1484
    %3062 = vmatprep.subr.bf16.mxu0 %v1493
    %3063 = vmatpush1.bf16.msra.mxu0 %v1492
    %3064 = vmatprep.subr.bf16.mxu0 %v1501
    %3065 = vmatpush1.bf16.msra.mxu0 %v1500
    %3066 = vmatprep.subr.bf16.mxu0 %v1509
    %3067 = vmatpush1.bf16.msra.mxu0 %v1508
    %3068 = vmatprep.subr.bf16.mxu0 %v1517
    %3069 = vmatpush1.bf16.msra.mxu0 %v1516
    %3070 = vmatprep.subr.bf16.mxu0 %v1525
    %3071 = vmatpush1.bf16.msra.mxu0 %v1524
    %3072 = vmatprep.subr.bf16.mxu0 %v1533
    %3073 = vmatpush1.bf16.msra.mxu0 %v1532
    %3074 = vmatprep.subr.bf16.mxu0 %v1541
    %3075 = vmatpush1.bf16.msra.mxu0 %v1540
    %3076 = vmatprep.mubr.bf16.mxu0 %v2424
    %3077 = vmatmul.mubr.bf16.gmra.mrb[0].mxu0 %v2420
    %v3078 = vpop.f32.mrb[0].mxu0
    %v3079 = vadd.f32 %v3036, %v3078
    %v3080 = vpop.f32.mrb[0].mxu0
    %v3081 = vadd.f32 %v3038, %v3080
    %v3082 = vpop.f32.mrb[0].mxu0
    %v3083 = vadd.f32 %v3040, %v3082
    %v3084 = vpop.f32.mrb[0].mxu0
    %v3085 = vadd.f32 %v3042, %v3084
    %3086 = vdwg.mxu0
    %3087 = vmatprep.subr.bf16.mxu0 %v1549
    %3088 = vmatpush1.bf16.msra.mxu0 %v1548
    %3089 = vmatprep.subr.bf16.mxu0 %v1557
    %3090 = vmatpush1.bf16.msra.mxu0 %v1556
    %3091 = vmatprep.subr.bf16.mxu0 %v1565
    %3092 = vmatpush1.bf16.msra.mxu0 %v1564
    %3093 = vmatprep.subr.bf16.mxu0 %v1573
    %3094 = vmatpush1.bf16.msra.mxu0 %v1572
    %3095 = vmatprep.subr.bf16.mxu0 %v1581
    %3096 = vmatpush1.bf16.msra.mxu0 %v1580
    %3097 = vmatprep.subr.bf16.mxu0 %v1589
    %3098 = vmatpush1.bf16.msra.mxu0 %v1588
    %3099 = vmatprep.subr.bf16.mxu0 %v1597
    %3100 = vmatpush1.bf16.msra.mxu0 %v1596
    %3101 = vmatprep.subr.bf16.mxu0 %v1605
    %3102 = vmatpush1.bf16.msra.mxu0 %v1604
    %3103 = vmatprep.subr.bf16.mxu0 %v1613
    %3104 = vmatpush1.bf16.msra.mxu0 %v1612
    %3105 = vmatprep.subr.bf16.mxu0 %v1621
    %3106 = vmatpush1.bf16.msra.mxu0 %v1620
    %3107 = vmatprep.subr.bf16.mxu0 %v1629
    %3108 = vmatpush1.bf16.msra.mxu0 %v1628
    %3109 = vmatprep.subr.bf16.mxu0 %v1637
    %3110 = vmatpush1.bf16.msra.mxu0 %v1636
    %3111 = vmatprep.subr.bf16.mxu0 %v1645
    %3112 = vmatpush1.bf16.msra.mxu0 %v1644
    %3113 = vmatprep.subr.bf16.mxu0 %v1653
    %3114 = vmatpush1.bf16.msra.mxu0 %v1652
    %3115 = vmatprep.subr.bf16.mxu0 %v1661
    %3116 = vmatpush1.bf16.msra.mxu0 %v1660
    %3117 = vmatprep.subr.bf16.mxu0 %v1669
    %3118 = vmatpush1.bf16.msra.mxu0 %v1668
    %3119 = vmatprep.mubr.bf16.mxu0 %v2425
    %3120 = vmatmul.mubr.bf16.gmra.mrb[0].mxu0 %v2421
    %v3121 = vpop.f32.mrb[0].mxu0
    %v3122 = vadd.f32 %v3079, %v3121
    %v3123 = vpop.f32.mrb[0].mxu0
    %v3124 = vadd.f32 %v3081, %v3123
    %v3125 = vpop.f32.mrb[0].mxu0
    %v3126 = vadd.f32 %v3083, %v3125
    %v3127 = vpop.f32.mrb[0].mxu0
    %v3128 = vadd.f32 %v3085, %v3127
    %3129 = vdwg.mxu0
    %3130 = vmatprep.subr.bf16.mxu0 %v655
    %3131 = vmatpush1.bf16.msra.mxu0 %v654
    %3132 = vmatprep.subr.bf16.mxu0 %v663
    %3133 = vmatpush1.bf16.msra.mxu0 %v662
    %3134 = vmatprep.subr.bf16.mxu0 %v671
    %3135 = vmatpush1.bf16.msra.mxu0 %v670
    %3136 = vmatprep.subr.bf16.mxu0 %v679
    %3137 = vmatpush1.bf16.msra.mxu0 %v678
    %3138 = vmatprep.subr.bf16.mxu0 %v687
    %3139 = vmatpush1.bf16.msra.mxu0 %v686
    %3140 = vmatprep.subr.bf16.mxu0 %v695
    %3141 = vmatpush1.bf16.msra.mxu0 %v694
    %3142 = vmatprep.subr.bf16.mxu0 %v703
    %3143 = vmatpush1.bf16.msra.mxu0 %v702
    %3144 = vmatprep.subr.bf16.mxu0 %v711
    %3145 = vmatpush1.bf16.msra.mxu0 %v710
    %3146 = vmatprep.subr.bf16.mxu0 %v719
    %3147 = vmatpush1.bf16.msra.mxu0 %v718
    %3148 = vmatprep.subr.bf16.mxu0 %v727
    %3149 = vmatpush1.bf16.msra.mxu0 %v726
    %3150 = vmatprep.subr.bf16.mxu0 %v735
    %3151 = vmatpush1.bf16.msra.mxu0 %v734
    %3152 = vmatprep.subr.bf16.mxu0 %v743
    %3153 = vmatpush1.bf16.msra.mxu0 %v742
    %3154 = vmatprep.subr.bf16.mxu0 %v751
    %3155 = vmatpush1.bf16.msra.mxu0 %v750
    %3156 = vmatprep.subr.bf16.mxu0 %v759
    %3157 = vmatpush1.bf16.msra.mxu0 %v758
    %3158 = vmatprep.subr.bf16.mxu0 %v767
    %3159 = vmatpush1.bf16.msra.mxu0 %v766
    %3160 = vmatprep.subr.bf16.mxu0 %v775
    %3161 = vmatpush1.bf16.msra.mxu0 %v774
    %3162 = vmatprep.mubr.bf16.mxu0 %v2286
    %3163 = vmatmul.mubr.bf16.gmra.mrb[0].mxu0 %v2282
    %v3164 = vpop.f32.mrb[0].mxu0
    %v3165 = vadd.f32 0.0, %v3164
    %v3166 = vpop.f32.mrb[0].mxu0
    %v3167 = vadd.f32 0.0, %v3166
    %v3168 = vpop.f32.mrb[0].mxu0
    %v3169 = vadd.f32 0.0, %v3168
    %v3170 = vpop.f32.mrb[0].mxu0
    %v3171 = vadd.f32 0.0, %v3170
    %3172 = vdwg.mxu0
    %3173 = vmatprep.subr.bf16.mxu0 %v783
    %3174 = vmatpush1.bf16.msra.mxu0 %v782
    %3175 = vmatprep.subr.bf16.mxu0 %v791
    %3176 = vmatpush1.bf16.msra.mxu0 %v790
    %3177 = vmatprep.subr.bf16.mxu0 %v799
    %3178 = vmatpush1.bf16.msra.mxu0 %v798
    %3179 = vmatprep.subr.bf16.mxu0 %v807
    %3180 = vmatpush1.bf16.msra.mxu0 %v806
    %3181 = vmatprep.subr.bf16.mxu0 %v815
    %3182 = vmatpush1.bf16.msra.mxu0 %v814
    %3183 = vmatprep.subr.bf16.mxu0 %v823
    %3184 = vmatpush1.bf16.msra.mxu0 %v822
    %3185 = vmatprep.subr.bf16.mxu0 %v831
    %3186 = vmatpush1.bf16.msra.mxu0 %v830
    %3187 = vmatprep.subr.bf16.mxu0 %v839
    %3188 = vmatpush1.bf16.msra.mxu0 %v838
    %3189 = vmatprep.subr.bf16.mxu0 %v847
    %3190 = vmatpush1.bf16.msra.mxu0 %v846
    %3191 = vmatprep.subr.bf16.mxu0 %v855
    %3192 = vmatpush1.bf16.msra.mxu0 %v854
    %3193 = vmatprep.subr.bf16.mxu0 %v863
    %3194 = vmatpush1.bf16.msra.mxu0 %v862
    %3195 = vmatprep.subr.bf16.mxu0 %v871
    %3196 = vmatpush1.bf16.msra.mxu0 %v870
    %3197 = vmatprep.subr.bf16.mxu0 %v879
    %3198 = vmatpush1.bf16.msra.mxu0 %v878
    %3199 = vmatprep.subr.bf16.mxu0 %v887
    %3200 = vmatpush1.bf16.msra.mxu0 %v886
    %3201 = vmatprep.subr.bf16.mxu0 %v895
    %3202 = vmatpush1.bf16.msra.mxu0 %v894
    %3203 = vmatprep.subr.bf16.mxu0 %v903
    %3204 = vmatpush1.bf16.msra.mxu0 %v902
    %3205 = vmatprep.mubr.bf16.mxu0 %v2287
    %3206 = vmatmul.mubr.bf16.gmra.mrb[0].mxu0 %v2283
    %v3207 = vpop.f32.mrb[0].mxu0
    %v3208 = vadd.f32 %v3165, %v3207
    %v3209 = vpop.f32.mrb[0].mxu0
    %v3210 = vadd.f32 %v3167, %v3209
    %v3211 = vpop.f32.mrb[0].mxu0
    %v3212 = vadd.f32 %v3169, %v3211
    %v3213 = vpop.f32.mrb[0].mxu0
    %v3214 = vadd.f32 %v3171, %v3213
    %3215 = vdwg.mxu0
    %3216 = vmatprep.subr.bf16.mxu0 %v911
    %3217 = vmatpush1.bf16.msra.mxu0 %v910
    %3218 = vmatprep.subr.bf16.mxu0 %v919
    %3219 = vmatpush1.bf16.msra.mxu0 %v918
    %3220 = vmatprep.subr.bf16.mxu0 %v927
    %3221 = vmatpush1.bf16.msra.mxu0 %v926
    %3222 = vmatprep.subr.bf16.mxu0 %v935
    %3223 = vmatpush1.bf16.msra.mxu0 %v934
    %3224 = vmatprep.subr.bf16.mxu0 %v943
    %3225 = vmatpush1.bf16.msra.mxu0 %v942
    %3226 = vmatprep.subr.bf16.mxu0 %v951
    %3227 = vmatpush1.bf16.msra.mxu0 %v950
    %3228 = vmatprep.subr.bf16.mxu0 %v959
    %3229 = vmatpush1.bf16.msra.mxu0 %v958
    %3230 = vmatprep.subr.bf16.mxu0 %v967
    %3231 = vmatpush1.bf16.msra.mxu0 %v966
    %3232 = vmatprep.subr.bf16.mxu0 %v975
    %3233 = vmatpush1.bf16.msra.mxu0 %v974
    %3234 = vmatprep.subr.bf16.mxu0 %v983
    %3235 = vmatpush1.bf16.msra.mxu0 %v982
    %3236 = vmatprep.subr.bf16.mxu0 %v991
    %3237 = vmatpush1.bf16.msra.mxu0 %v990
    %3238 = vmatprep.subr.bf16.mxu0 %v999
    %3239 = vmatpush1.bf16.msra.mxu0 %v998
    %3240 = vmatprep.subr.bf16.mxu0 %v1007
    %3241 = vmatpush1.bf16.msra.mxu0 %v1006
    %3242 = vmatprep.subr.bf16.mxu0 %v1015
    %3243 = vmatpush1.bf16.msra.mxu0 %v1014
    %3244 = vmatprep.subr.bf16.mxu0 %v1023
    %3245 = vmatpush1.bf16.msra.mxu0 %v1022
    %3246 = vmatprep.subr.bf16.mxu0 %v1031
    %3247 = vmatpush1.bf16.msra.mxu0 %v1030
    %3248 = vmatprep.mubr.bf16.mxu0 %v2288
    %3249 = vmatmul.mubr.bf16.gmra.mrb[0].mxu0 %v2284
    %v3250 = vpop.f32.mrb[0].mxu0
    %v3251 = vadd.f32 %v3208, %v3250
    %v3252 = vpop.f32.mrb[0].mxu0
    %v3253 = vadd.f32 %v3210, %v3252
    %v3254 = vpop.f32.mrb[0].mxu0
    %v3255 = vadd.f32 %v3212, %v3254
    %v3256 = vpop.f32.mrb[0].mxu0
    %v3257 = vadd.f32 %v3214, %v3256
    %3258 = vdwg.mxu0
    %3259 = vmatprep.subr.bf16.mxu0 %v1039
    %3260 = vmatpush1.bf16.msra.mxu0 %v1038
    %3261 = vmatprep.subr.bf16.mxu0 %v1047
    %3262 = vmatpush1.bf16.msra.mxu0 %v1046
    %3263 = vmatprep.subr.bf16.mxu0 %v1055
    %3264 = vmatpush1.bf16.msra.mxu0 %v1054
    %3265 = vmatprep.subr.bf16.mxu0 %v1063
    %3266 = vmatpush1.bf16.msra.mxu0 %v1062
    %3267 = vmatprep.subr.bf16.mxu0 %v1071
    %3268 = vmatpush1.bf16.msra.mxu0 %v1070
    %3269 = vmatprep.subr.bf16.mxu0 %v1079
    %3270 = vmatpush1.bf16.msra.mxu0 %v1078
    %3271 = vmatprep.subr.bf16.mxu0 %v1087
    %3272 = vmatpush1.bf16.msra.mxu0 %v1086
    %3273 = vmatprep.subr.bf16.mxu0 %v1095
    %3274 = vmatpush1.bf16.msra.mxu0 %v1094
    %3275 = vmatprep.subr.bf16.mxu0 %v1103
    %3276 = vmatpush1.bf16.msra.mxu0 %v1102
    %3277 = vmatprep.subr.bf16.mxu0 %v1111
    %3278 = vmatpush1.bf16.msra.mxu0 %v1110
    %3279 = vmatprep.subr.bf16.mxu0 %v1119
    %3280 = vmatpush1.bf16.msra.mxu0 %v1118
    %3281 = vmatprep.subr.bf16.mxu0 %v1127
    %3282 = vmatpush1.bf16.msra.mxu0 %v1126
    %3283 = vmatprep.subr.bf16.mxu0 %v1135
    %3284 = vmatpush1.bf16.msra.mxu0 %v1134
    %3285 = vmatprep.subr.bf16.mxu0 %v1143
    %3286 = vmatpush1.bf16.msra.mxu0 %v1142
    %3287 = vmatprep.subr.bf16.mxu0 %v1151
    %3288 = vmatpush1.bf16.msra.mxu0 %v1150
    %3289 = vmatprep.subr.bf16.mxu0 %v1159
    %3290 = vmatpush1.bf16.msra.mxu0 %v1158
    %3291 = vmatprep.mubr.bf16.mxu0 %v2289
    %3292 = vmatmul.mubr.bf16.gmra.mrb[0].mxu0 %v2285
    %v3293 = vpop.f32.mrb[0].mxu0
    %v3294 = vadd.f32 %v3251, %v3293
    %v3295 = vpop.f32.mrb[0].mxu0
    %v3296 = vadd.f32 %v3253, %v3295
    %v3297 = vpop.f32.mrb[0].mxu0
    %v3298 = vadd.f32 %v3255, %v3297
    %v3299 = vpop.f32.mrb[0].mxu0
    %v3300 = vadd.f32 %v3257, %v3299
    %3301 = vdwg.mxu0
    %3302 = vmatprep.subr.bf16.mxu0 %v1167
    %3303 = vmatpush1.bf16.msra.mxu0 %v1166
    %3304 = vmatprep.subr.bf16.mxu0 %v1175
    %3305 = vmatpush1.bf16.msra.mxu0 %v1174
    %3306 = vmatprep.subr.bf16.mxu0 %v1183
    %3307 = vmatpush1.bf16.msra.mxu0 %v1182
    %3308 = vmatprep.subr.bf16.mxu0 %v1191
    %3309 = vmatpush1.bf16.msra.mxu0 %v1190
    %3310 = vmatprep.subr.bf16.mxu0 %v1199
    %3311 = vmatpush1.bf16.msra.mxu0 %v1198
    %3312 = vmatprep.subr.bf16.mxu0 %v1207
    %3313 = vmatpush1.bf16.msra.mxu0 %v1206
    %3314 = vmatprep.subr.bf16.mxu0 %v1215
    %3315 = vmatpush1.bf16.msra.mxu0 %v1214
    %3316 = vmatprep.subr.bf16.mxu0 %v1223
    %3317 = vmatpush1.bf16.msra.mxu0 %v1222
    %3318 = vmatprep.subr.bf16.mxu0 %v1231
    %3319 = vmatpush1.bf16.msra.mxu0 %v1230
    %3320 = vmatprep.subr.bf16.mxu0 %v1239
    %3321 = vmatpush1.bf16.msra.mxu0 %v1238
    %3322 = vmatprep.subr.bf16.mxu0 %v1247
    %3323 = vmatpush1.bf16.msra.mxu0 %v1246
    %3324 = vmatprep.subr.bf16.mxu0 %v1255
    %3325 = vmatpush1.bf16.msra.mxu0 %v1254
    %3326 = vmatprep.subr.bf16.mxu0 %v1263
    %3327 = vmatpush1.bf16.msra.mxu0 %v1262
    %3328 = vmatprep.subr.bf16.mxu0 %v1271
    %3329 = vmatpush1.bf16.msra.mxu0 %v1270
    %3330 = vmatprep.subr.bf16.mxu0 %v1279
    %3331 = vmatpush1.bf16.msra.mxu0 %v1278
    %3332 = vmatprep.subr.bf16.mxu0 %v1287
    %3333 = vmatpush1.bf16.msra.mxu0 %v1286
    %3334 = vmatprep.mubr.bf16.mxu0 %v2422
    %3335 = vmatmul.mubr.bf16.gmra.mrb[0].mxu0 %v2418
    %v3336 = vpop.f32.mrb[0].mxu0
    %v3337 = vadd.f32 %v3294, %v3336
    %v3338 = vpop.f32.mrb[0].mxu0
    %v3339 = vadd.f32 %v3296, %v3338
    %v3340 = vpop.f32.mrb[0].mxu0
    %v3341 = vadd.f32 %v3298, %v3340
    %v3342 = vpop.f32.mrb[0].mxu0
    %v3343 = vadd.f32 %v3300, %v3342
    %3344 = vdwg.mxu0
    %3345 = vmatprep.subr.bf16.mxu0 %v1295
    %3346 = vmatpush1.bf16.msra.mxu0 %v1294
    %3347 = vmatprep.subr.bf16.mxu0 %v1303
    %3348 = vmatpush1.bf16.msra.mxu0 %v1302
    %3349 = vmatprep.subr.bf16.mxu0 %v1311
    %3350 = vmatpush1.bf16.msra.mxu0 %v1310
    %3351 = vmatprep.subr.bf16.mxu0 %v1319
    %3352 = vmatpush1.bf16.msra.mxu0 %v1318
    %3353 = vmatprep.subr.bf16.mxu0 %v1327
    %3354 = vmatpush1.bf16.msra.mxu0 %v1326
    %3355 = vmatprep.subr.bf16.mxu0 %v1335
    %3356 = vmatpush1.bf16.msra.mxu0 %v1334
    %3357 = vmatprep.subr.bf16.mxu0 %v1343
    %3358 = vmatpush1.bf16.msra.mxu0 %v1342
    %3359 = vmatprep.subr.bf16.mxu0 %v1351
    %3360 = vmatpush1.bf16.msra.mxu0 %v1350
    %3361 = vmatprep.subr.bf16.mxu0 %v1359
    %3362 = vmatpush1.bf16.msra.mxu0 %v1358
    %3363 = vmatprep.subr.bf16.mxu0 %v1367
    %3364 = vmatpush1.bf16.msra.mxu0 %v1366
    %3365 = vmatprep.subr.bf16.mxu0 %v1375
    %3366 = vmatpush1.bf16.msra.mxu0 %v1374
    %3367 = vmatprep.subr.bf16.mxu0 %v1383
    %3368 = vmatpush1.bf16.msra.mxu0 %v1382
    %3369 = vmatprep.subr.bf16.mxu0 %v1391
    %3370 = vmatpush1.bf16.msra.mxu0 %v1390
    %3371 = vmatprep.subr.bf16.mxu0 %v1399
    %3372 = vmatpush1.bf16.msra.mxu0 %v1398
    %3373 = vmatprep.subr.bf16.mxu0 %v1407
    %3374 = vmatpush1.bf16.msra.mxu0 %v1406
    %3375 = vmatprep.subr.bf16.mxu0 %v1415
    %3376 = vmatpush1.bf16.msra.mxu0 %v1414
    %3377 = vmatprep.mubr.bf16.mxu0 %v2423
    %3378 = vmatmul.mubr.bf16.gmra.mrb[0].mxu0 %v2419
    %v3379 = vpop.f32.mrb[0].mxu0
    %v3380 = vadd.f32 %v3337, %v3379
    %v3381 = vpop.f32.mrb[0].mxu0
    %v3382 = vadd.f32 %v3339, %v3381
    %v3383 = vpop.f32.mrb[0].mxu0
    %v3384 = vadd.f32 %v3341, %v3383
    %v3385 = vpop.f32.mrb[0].mxu0
    %v3386 = vadd.f32 %v3343, %v3385
    %3387 = vdwg.mxu0
    %3388 = vmatprep.subr.bf16.mxu0 %v1423
    %3389 = vmatpush1.bf16.msra.mxu0 %v1422
    %3390 = vmatprep.subr.bf16.mxu0 %v1431
    %3391 = vmatpush1.bf16.msra.mxu0 %v1430
    %3392 = vmatprep.subr.bf16.mxu0 %v1439
    %3393 = vmatpush1.bf16.msra.mxu0 %v1438
    %3394 = vmatprep.subr.bf16.mxu0 %v1447
    %3395 = vmatpush1.bf16.msra.mxu0 %v1446
    %3396 = vmatprep.subr.bf16.mxu0 %v1455
    %3397 = vmatpush1.bf16.msra.mxu0 %v1454
    %3398 = vmatprep.subr.bf16.mxu0 %v1463
    %3399 = vmatpush1.bf16.msra.mxu0 %v1462
    %3400 = vmatprep.subr.bf16.mxu0 %v1471
    %3401 = vmatpush1.bf16.msra.mxu0 %v1470
    %3402 = vmatprep.subr.bf16.mxu0 %v1479
    %3403 = vmatpush1.bf16.msra.mxu0 %v1478
    %3404 = vmatprep.subr.bf16.mxu0 %v1487
    %3405 = vmatpush1.bf16.msra.mxu0 %v1486
    %3406 = vmatprep.subr.bf16.mxu0 %v1495
    %3407 = vmatpush1.bf16.msra.mxu0 %v1494
    %3408 = vmatprep.subr.bf16.mxu0 %v1503
    %3409 = vmatpush1.bf16.msra.mxu0 %v1502
    %3410 = vmatprep.subr.bf16.mxu0 %v1511
    %3411 = vmatpush1.bf16.msra.mxu0 %v1510
    %3412 = vmatprep.subr.bf16.mxu0 %v1519
    %3413 = vmatpush1.bf16.msra.mxu0 %v1518
    %3414 = vmatprep.subr.bf16.mxu0 %v1527
    %3415 = vmatpush1.bf16.msra.mxu0 %v1526
    %3416 = vmatprep.subr.bf16.mxu0 %v1535
    %3417 = vmatpush1.bf16.msra.mxu0 %v1534
    %3418 = vmatprep.subr.bf16.mxu0 %v1543
    %3419 = vmatpush1.bf16.msra.mxu0 %v1542
    %3420 = vmatprep.mubr.bf16.mxu0 %v2424
    %3421 = vmatmul.mubr.bf16.gmra.mrb[0].mxu0 %v2420
    %v3422 = vpop.f32.mrb[0].mxu0
    %v3423 = vadd.f32 %v3380, %v3422
    %v3424 = vpop.f32.mrb[0].mxu0
    %v3425 = vadd.f32 %v3382, %v3424
    %v3426 = vpop.f32.mrb[0].mxu0
    %v3427 = vadd.f32 %v3384, %v3426
    %v3428 = vpop.f32.mrb[0].mxu0
    %v3429 = vadd.f32 %v3386, %v3428
    %3430 = vdwg.mxu0
    %3431 = vmatprep.subr.bf16.mxu0 %v1551
    %3432 = vmatpush1.bf16.msra.mxu0 %v1550
    %3433 = vmatprep.subr.bf16.mxu0 %v1559
    %3434 = vmatpush1.bf16.msra.mxu0 %v1558
    %3435 = vmatprep.subr.bf16.mxu0 %v1567
    %3436 = vmatpush1.bf16.msra.mxu0 %v1566
    %3437 = vmatprep.subr.bf16.mxu0 %v1575
    %3438 = vmatpush1.bf16.msra.mxu0 %v1574
    %3439 = vmatprep.subr.bf16.mxu0 %v1583
    %3440 = vmatpush1.bf16.msra.mxu0 %v1582
    %3441 = vmatprep.subr.bf16.mxu0 %v1591
    %3442 = vmatpush1.bf16.msra.mxu0 %v1590
    %3443 = vmatprep.subr.bf16.mxu0 %v1599
    %3444 = vmatpush1.bf16.msra.mxu0 %v1598
    %3445 = vmatprep.subr.bf16.mxu0 %v1607
    %3446 = vmatpush1.bf16.msra.mxu0 %v1606
    %3447 = vmatprep.subr.bf16.mxu0 %v1615
    %3448 = vmatpush1.bf16.msra.mxu0 %v1614
    %3449 = vmatprep.subr.bf16.mxu0 %v1623
    %3450 = vmatpush1.bf16.msra.mxu0 %v1622
    %3451 = vmatprep.subr.bf16.mxu0 %v1631
    %3452 = vmatpush1.bf16.msra.mxu0 %v1630
    %3453 = vmatprep.subr.bf16.mxu0 %v1639
    %3454 = vmatpush1.bf16.msra.mxu0 %v1638
    %3455 = vmatprep.subr.bf16.mxu0 %v1647
    %3456 = vmatpush1.bf16.msra.mxu0 %v1646
    %3457 = vmatprep.subr.bf16.mxu0 %v1655
    %3458 = vmatpush1.bf16.msra.mxu0 %v1654
    %3459 = vmatprep.subr.bf16.mxu0 %v1663
    %3460 = vmatpush1.bf16.msra.mxu0 %v1662
    %3461 = vmatprep.subr.bf16.mxu0 %v1671
    %3462 = vmatpush1.bf16.msra.mxu0 %v1670
    %3463 = vmatprep.mubr.bf16.mxu0 %v2425
    %3464 = vmatmul.mubr.bf16.gmra.mrb[0].mxu0 %v2421
    %v3465 = vpop.f32.mrb[0].mxu0
    %v3466 = vadd.f32 %v3423, %v3465
    %v3467 = vpop.f32.mrb[0].mxu0
    %v3468 = vadd.f32 %v3425, %v3467
    %v3469 = vpop.f32.mrb[0].mxu0
    %v3470 = vadd.f32 %v3427, %v3469
    %v3471 = vpop.f32.mrb[0].mxu0
    %v3472 = vadd.f32 %v3429, %v3471
    %3473 = vdwg.mxu0
    %3474 = vmatprep.subr.bf16.mxu0 %v657
    %3475 = vmatpush1.bf16.msra.mxu0 %v656
    %3476 = vmatprep.subr.bf16.mxu0 %v665
    %3477 = vmatpush1.bf16.msra.mxu0 %v664
    %3478 = vmatprep.subr.bf16.mxu0 %v673
    %3479 = vmatpush1.bf16.msra.mxu0 %v672
    %3480 = vmatprep.subr.bf16.mxu0 %v681
    %3481 = vmatpush1.bf16.msra.mxu0 %v680
    %3482 = vmatprep.subr.bf16.mxu0 %v689
    %3483 = vmatpush1.bf16.msra.mxu0 %v688
    %3484 = vmatprep.subr.bf16.mxu0 %v697
    %3485 = vmatpush1.bf16.msra.mxu0 %v696
    %3486 = vmatprep.subr.bf16.mxu0 %v705
    %3487 = vmatpush1.bf16.msra.mxu0 %v704
    %3488 = vmatprep.subr.bf16.mxu0 %v713
    %3489 = vmatpush1.bf16.msra.mxu0 %v712
    %3490 = vmatprep.subr.bf16.mxu0 %v721
    %3491 = vmatpush1.bf16.msra.mxu0 %v720
    %3492 = vmatprep.subr.bf16.mxu0 %v729
    %3493 = vmatpush1.bf16.msra.mxu0 %v728
    %3494 = vmatprep.subr.bf16.mxu0 %v737
    %3495 = vmatpush1.bf16.msra.mxu0 %v736
    %3496 = vmatprep.subr.bf16.mxu0 %v745
    %3497 = vmatpush1.bf16.msra.mxu0 %v744
    %3498 = vmatprep.subr.bf16.mxu0 %v753
    %3499 = vmatpush1.bf16.msra.mxu0 %v752
    %3500 = vmatprep.subr.bf16.mxu0 %v761
    %3501 = vmatpush1.bf16.msra.mxu0 %v760
    %3502 = vmatprep.subr.bf16.mxu0 %v769
    %3503 = vmatpush1.bf16.msra.mxu0 %v768
    %3504 = vmatprep.subr.bf16.mxu0 %v777
    %3505 = vmatpush1.bf16.msra.mxu0 %v776
    %3506 = vmatprep.mubr.bf16.mxu0 %v2286
    %3507 = vmatmul.mubr.bf16.gmra.mrb[0].mxu0 %v2282
    %v3508 = vpop.f32.mrb[0].mxu0
    %v3509 = vadd.f32 0.0, %v3508
    %v3510 = vpop.f32.mrb[0].mxu0
    %v3511 = vadd.f32 0.0, %v3510
    %v3512 = vpop.f32.mrb[0].mxu0
    %v3513 = vadd.f32 0.0, %v3512
    %v3514 = vpop.f32.mrb[0].mxu0
    %v3515 = vadd.f32 0.0, %v3514
    %3516 = vdwg.mxu0
    %3517 = vmatprep.subr.bf16.mxu0 %v785
    %3518 = vmatpush1.bf16.msra.mxu0 %v784
    %3519 = vmatprep.subr.bf16.mxu0 %v793
    %3520 = vmatpush1.bf16.msra.mxu0 %v792
    %3521 = vmatprep.subr.bf16.mxu0 %v801
    %3522 = vmatpush1.bf16.msra.mxu0 %v800
    %3523 = vmatprep.subr.bf16.mxu0 %v809
    %3524 = vmatpush1.bf16.msra.mxu0 %v808
    %3525 = vmatprep.subr.bf16.mxu0 %v817
    %3526 = vmatpush1.bf16.msra.mxu0 %v816
    %3527 = vmatprep.subr.bf16.mxu0 %v825
    %3528 = vmatpush1.bf16.msra.mxu0 %v824
    %3529 = vmatprep.subr.bf16.mxu0 %v833
    %3530 = vmatpush1.bf16.msra.mxu0 %v832
    %3531 = vmatprep.subr.bf16.mxu0 %v841
    %3532 = vmatpush1.bf16.msra.mxu0 %v840
    %3533 = vmatprep.subr.bf16.mxu0 %v849
    %3534 = vmatpush1.bf16.msra.mxu0 %v848
    %3535 = vmatprep.subr.bf16.mxu0 %v857
    %3536 = vmatpush1.bf16.msra.mxu0 %v856
    %3537 = vmatprep.subr.bf16.mxu0 %v865
    %3538 = vmatpush1.bf16.msra.mxu0 %v864
    %3539 = vmatprep.subr.bf16.mxu0 %v873
    %3540 = vmatpush1.bf16.msra.mxu0 %v872
    %3541 = vmatprep.subr.bf16.mxu0 %v881
    %3542 = vmatpush1.bf16.msra.mxu0 %v880
    %3543 = vmatprep.subr.bf16.mxu0 %v889
    %3544 = vmatpush1.bf16.msra.mxu0 %v888
    %3545 = vmatprep.subr.bf16.mxu0 %v897
    %3546 = vmatpush1.bf16.msra.mxu0 %v896
    %3547 = vmatprep.subr.bf16.mxu0 %v905
    %3548 = vmatpush1.bf16.msra.mxu0 %v904
    %3549 = vmatprep.mubr.bf16.mxu0 %v2287
    %3550 = vmatmul.mubr.bf16.gmra.mrb[0].mxu0 %v2283
    %v3551 = vpop.f32.mrb[0].mxu0
    %v3552 = vadd.f32 %v3509, %v3551
    %v3553 = vpop.f32.mrb[0].mxu0
    %v3554 = vadd.f32 %v3511, %v3553
    %v3555 = vpop.f32.mrb[0].mxu0
    %v3556 = vadd.f32 %v3513, %v3555
    %v3557 = vpop.f32.mrb[0].mxu0
    %v3558 = vadd.f32 %v3515, %v3557
    %3559 = vdwg.mxu0
    %3560 = vmatprep.subr.bf16.mxu0 %v913
    %3561 = vmatpush1.bf16.msra.mxu0 %v912
    %3562 = vmatprep.subr.bf16.mxu0 %v921
    %3563 = vmatpush1.bf16.msra.mxu0 %v920
    %3564 = vmatprep.subr.bf16.mxu0 %v929
    %3565 = vmatpush1.bf16.msra.mxu0 %v928
    %3566 = vmatprep.subr.bf16.mxu0 %v937
    %3567 = vmatpush1.bf16.msra.mxu0 %v936
    %3568 = vmatprep.subr.bf16.mxu0 %v945
    %3569 = vmatpush1.bf16.msra.mxu0 %v944
    %3570 = vmatprep.subr.bf16.mxu0 %v953
    %3571 = vmatpush1.bf16.msra.mxu0 %v952
    %3572 = vmatprep.subr.bf16.mxu0 %v961
    %3573 = vmatpush1.bf16.msra.mxu0 %v960
    %3574 = vmatprep.subr.bf16.mxu0 %v969
    %3575 = vmatpush1.bf16.msra.mxu0 %v968
    %3576 = vmatprep.subr.bf16.mxu0 %v977
    %3577 = vmatpush1.bf16.msra.mxu0 %v976
    %3578 = vmatprep.subr.bf16.mxu0 %v985
    %3579 = vmatpush1.bf16.msra.mxu0 %v984
    %3580 = vmatprep.subr.bf16.mxu0 %v993
    %3581 = vmatpush1.bf16.msra.mxu0 %v992
    %3582 = vmatprep.subr.bf16.mxu0 %v1001
    %3583 = vmatpush1.bf16.msra.mxu0 %v1000
    %3584 = vmatprep.subr.bf16.mxu0 %v1009
    %3585 = vmatpush1.bf16.msra.mxu0 %v1008
    %3586 = vmatprep.subr.bf16.mxu0 %v1017
    %3587 = vmatpush1.bf16.msra.mxu0 %v1016
    %3588 = vmatprep.subr.bf16.mxu0 %v1025
    %3589 = vmatpush1.bf16.msra.mxu0 %v1024
    %3590 = vmatprep.subr.bf16.mxu0 %v1033
    %3591 = vmatpush1.bf16.msra.mxu0 %v1032
    %3592 = vmatprep.mubr.bf16.mxu0 %v2288
    %3593 = vmatmul.mubr.bf16.gmra.mrb[0].mxu0 %v2284
    %v3594 = vpop.f32.mrb[0].mxu0
    %v3595 = vadd.f32 %v3552, %v3594
    %v3596 = vpop.f32.mrb[0].mxu0
    %v3597 = vadd.f32 %v3554, %v3596
    %v3598 = vpop.f32.mrb[0].mxu0
    %v3599 = vadd.f32 %v3556, %v3598
    %v3600 = vpop.f32.mrb[0].mxu0
    %v3601 = vadd.f32 %v3558, %v3600
    %3602 = vdwg.mxu0
    %3603 = vmatprep.subr.bf16.mxu0 %v1041
    %3604 = vmatpush1.bf16.msra.mxu0 %v1040
    %3605 = vmatprep.subr.bf16.mxu0 %v1049
    %3606 = vmatpush1.bf16.msra.mxu0 %v1048
    %3607 = vmatprep.subr.bf16.mxu0 %v1057
    %3608 = vmatpush1.bf16.msra.mxu0 %v1056
    %3609 = vmatprep.subr.bf16.mxu0 %v1065
    %3610 = vmatpush1.bf16.msra.mxu0 %v1064
    %3611 = vmatprep.subr.bf16.mxu0 %v1073
    %3612 = vmatpush1.bf16.msra.mxu0 %v1072
    %3613 = vmatprep.subr.bf16.mxu0 %v1081
    %3614 = vmatpush1.bf16.msra.mxu0 %v1080
    %3615 = vmatprep.subr.bf16.mxu0 %v1089
    %3616 = vmatpush1.bf16.msra.mxu0 %v1088
    %3617 = vmatprep.subr.bf16.mxu0 %v1097
    %3618 = vmatpush1.bf16.msra.mxu0 %v1096
    %3619 = vmatprep.subr.bf16.mxu0 %v1105
    %3620 = vmatpush1.bf16.msra.mxu0 %v1104
    %3621 = vmatprep.subr.bf16.mxu0 %v1113
    %3622 = vmatpush1.bf16.msra.mxu0 %v1112
    %3623 = vmatprep.subr.bf16.mxu0 %v1121
    %3624 = vmatpush1.bf16.msra.mxu0 %v1120
    %3625 = vmatprep.subr.bf16.mxu0 %v1129
    %3626 = vmatpush1.bf16.msra.mxu0 %v1128
    %3627 = vmatprep.subr.bf16.mxu0 %v1137
    %3628 = vmatpush1.bf16.msra.mxu0 %v1136
    %3629 = vmatprep.subr.bf16.mxu0 %v1145
    %3630 = vmatpush1.bf16.msra.mxu0 %v1144
    %3631 = vmatprep.subr.bf16.mxu0 %v1153
    %3632 = vmatpush1.bf16.msra.mxu0 %v1152
    %3633 = vmatprep.subr.bf16.mxu0 %v1161
    %3634 = vmatpush1.bf16.msra.mxu0 %v1160
    %3635 = vmatprep.mubr.bf16.mxu0 %v2289
    %3636 = vmatmul.mubr.bf16.gmra.mrb[0].mxu0 %v2285
    %v3637 = vpop.f32.mrb[0].mxu0
    %v3638 = vadd.f32 %v3595, %v3637
    %v3639 = vpop.f32.mrb[0].mxu0
    %v3640 = vadd.f32 %v3597, %v3639
    %v3641 = vpop.f32.mrb[0].mxu0
    %v3642 = vadd.f32 %v3599, %v3641
    %v3643 = vpop.f32.mrb[0].mxu0
    %v3644 = vadd.f32 %v3601, %v3643
    %3645 = vdwg.mxu0
    %3646 = vmatprep.subr.bf16.mxu0 %v1169
    %3647 = vmatpush1.bf16.msra.mxu0 %v1168
    %3648 = vmatprep.subr.bf16.mxu0 %v1177
    %3649 = vmatpush1.bf16.msra.mxu0 %v1176
    %3650 = vmatprep.subr.bf16.mxu0 %v1185
    %3651 = vmatpush1.bf16.msra.mxu0 %v1184
    %3652 = vmatprep.subr.bf16.mxu0 %v1193
    %3653 = vmatpush1.bf16.msra.mxu0 %v1192
    %3654 = vmatprep.subr.bf16.mxu0 %v1201
    %3655 = vmatpush1.bf16.msra.mxu0 %v1200
    %3656 = vmatprep.subr.bf16.mxu0 %v1209
    %3657 = vmatpush1.bf16.msra.mxu0 %v1208
    %3658 = vmatprep.subr.bf16.mxu0 %v1217
    %3659 = vmatpush1.bf16.msra.mxu0 %v1216
    %3660 = vmatprep.subr.bf16.mxu0 %v1225
    %3661 = vmatpush1.bf16.msra.mxu0 %v1224
    %3662 = vmatprep.subr.bf16.mxu0 %v1233
    %3663 = vmatpush1.bf16.msra.mxu0 %v1232
    %3664 = vmatprep.subr.bf16.mxu0 %v1241
    %3665 = vmatpush1.bf16.msra.mxu0 %v1240
    %3666 = vmatprep.subr.bf16.mxu0 %v1249
    %3667 = vmatpush1.bf16.msra.mxu0 %v1248
    %3668 = vmatprep.subr.bf16.mxu0 %v1257
    %3669 = vmatpush1.bf16.msra.mxu0 %v1256
    %3670 = vmatprep.subr.bf16.mxu0 %v1265
    %3671 = vmatpush1.bf16.msra.mxu0 %v1264
    %3672 = vmatprep.subr.bf16.mxu0 %v1273
    %3673 = vmatpush1.bf16.msra.mxu0 %v1272
    %3674 = vmatprep.subr.bf16.mxu0 %v1281
    %3675 = vmatpush1.bf16.msra.mxu0 %v1280
    %3676 = vmatprep.subr.bf16.mxu0 %v1289
    %3677 = vmatpush1.bf16.msra.mxu0 %v1288
    %3678 = vmatprep.mubr.bf16.mxu0 %v2422
    %3679 = vmatmul.mubr.bf16.gmra.mrb[0].mxu0 %v2418
    %v3680 = vpop.f32.mrb[0].mxu0
    %v3681 = vadd.f32 %v3638, %v3680
    %v3682 = vpop.f32.mrb[0].mxu0
    %v3683 = vadd.f32 %v3640, %v3682
    %v3684 = vpop.f32.mrb[0].mxu0
    %v3685 = vadd.f32 %v3642, %v3684
    %v3686 = vpop.f32.mrb[0].mxu0
    %v3687 = vadd.f32 %v3644, %v3686
    %3688 = vdwg.mxu0
    %3689 = vmatprep.subr.bf16.mxu0 %v1297
    %3690 = vmatpush1.bf16.msra.mxu0 %v1296
    %3691 = vmatprep.subr.bf16.mxu0 %v1305
    %3692 = vmatpush1.bf16.msra.mxu0 %v1304
    %3693 = vmatprep.subr.bf16.mxu0 %v1313
    %3694 = vmatpush1.bf16.msra.mxu0 %v1312
    %3695 = vmatprep.subr.bf16.mxu0 %v1321
    %3696 = vmatpush1.bf16.msra.mxu0 %v1320
    %3697 = vmatprep.subr.bf16.mxu0 %v1329
    %3698 = vmatpush1.bf16.msra.mxu0 %v1328
    %3699 = vmatprep.subr.bf16.mxu0 %v1337
    %3700 = vmatpush1.bf16.msra.mxu0 %v1336
    %3701 = vmatprep.subr.bf16.mxu0 %v1345
    %3702 = vmatpush1.bf16.msra.mxu0 %v1344
    %3703 = vmatprep.subr.bf16.mxu0 %v1353
    %3704 = vmatpush1.bf16.msra.mxu0 %v1352
    %3705 = vmatprep.subr.bf16.mxu0 %v1361
    %3706 = vmatpush1.bf16.msra.mxu0 %v1360
    %3707 = vmatprep.subr.bf16.mxu0 %v1369
    %3708 = vmatpush1.bf16.msra.mxu0 %v1368
    %3709 = vmatprep.subr.bf16.mxu0 %v1377
    %3710 = vmatpush1.bf16.msra.mxu0 %v1376
    %3711 = vmatprep.subr.bf16.mxu0 %v1385
    %3712 = vmatpush1.bf16.msra.mxu0 %v1384
    %3713 = vmatprep.subr.bf16.mxu0 %v1393
    %3714 = vmatpush1.bf16.msra.mxu0 %v1392
    %3715 = vmatprep.subr.bf16.mxu0 %v1401
    %3716 = vmatpush1.bf16.msra.mxu0 %v1400
    %3717 = vmatprep.subr.bf16.mxu0 %v1409
    %3718 = vmatpush1.bf16.msra.mxu0 %v1408
    %3719 = vmatprep.subr.bf16.mxu0 %v1417
    %3720 = vmatpush1.bf16.msra.mxu0 %v1416
    %3721 = vmatprep.mubr.bf16.mxu0 %v2423
    %3722 = vmatmul.mubr.bf16.gmra.mrb[0].mxu0 %v2419
    %v3723 = vpop.f32.mrb[0].mxu0
    %v3724 = vadd.f32 %v3681, %v3723
    %v3725 = vpop.f32.mrb[0].mxu0
    %v3726 = vadd.f32 %v3683, %v3725
    %v3727 = vpop.f32.mrb[0].mxu0
    %v3728 = vadd.f32 %v3685, %v3727
    %v3729 = vpop.f32.mrb[0].mxu0
    %v3730 = vadd.f32 %v3687, %v3729
    %3731 = vdwg.mxu0
    %3732 = vmatprep.subr.bf16.mxu0 %v1425
    %3733 = vmatpush1.bf16.msra.mxu0 %v1424
    %3734 = vmatprep.subr.bf16.mxu0 %v1433
    %3735 = vmatpush1.bf16.msra.mxu0 %v1432
    %3736 = vmatprep.subr.bf16.mxu0 %v1441
    %3737 = vmatpush1.bf16.msra.mxu0 %v1440
    %3738 = vmatprep.subr.bf16.mxu0 %v1449
    %3739 = vmatpush1.bf16.msra.mxu0 %v1448
    %3740 = vmatprep.subr.bf16.mxu0 %v1457
    %3741 = vmatpush1.bf16.msra.mxu0 %v1456
    %3742 = vmatprep.subr.bf16.mxu0 %v1465
    %3743 = vmatpush1.bf16.msra.mxu0 %v1464
    %3744 = vmatprep.subr.bf16.mxu0 %v1473
    %3745 = vmatpush1.bf16.msra.mxu0 %v1472
    %3746 = vmatprep.subr.bf16.mxu0 %v1481
    %3747 = vmatpush1.bf16.msra.mxu0 %v1480
    %3748 = vmatprep.subr.bf16.mxu0 %v1489
    %3749 = vmatpush1.bf16.msra.mxu0 %v1488
    %3750 = vmatprep.subr.bf16.mxu0 %v1497
    %3751 = vmatpush1.bf16.msra.mxu0 %v1496
    %3752 = vmatprep.subr.bf16.mxu0 %v1505
    %3753 = vmatpush1.bf16.msra.mxu0 %v1504
    %3754 = vmatprep.subr.bf16.mxu0 %v1513
    %3755 = vmatpush1.bf16.msra.mxu0 %v1512
    %3756 = vmatprep.subr.bf16.mxu0 %v1521
    %3757 = vmatpush1.bf16.msra.mxu0 %v1520
    %3758 = vmatprep.subr.bf16.mxu0 %v1529
    %3759 = vmatpush1.bf16.msra.mxu0 %v1528
    %3760 = vmatprep.subr.bf16.mxu0 %v1537
    %3761 = vmatpush1.bf16.msra.mxu0 %v1536
    %3762 = vmatprep.subr.bf16.mxu0 %v1545
    %3763 = vmatpush1.bf16.msra.mxu0 %v1544
    %3764 = vmatprep.mubr.bf16.mxu0 %v2424
    %3765 = vmatmul.mubr.bf16.gmra.mrb[0].mxu0 %v2420
    %v3766 = vpop.f32.mrb[0].mxu0
    %v3767 = vadd.f32 %v3724, %v3766
    %v3768 = vpop.f32.mrb[0].mxu0
    %v3769 = vadd.f32 %v3726, %v3768
    %v3770 = vpop.f32.mrb[0].mxu0
    %v3771 = vadd.f32 %v3728, %v3770
    %v3772 = vpop.f32.mrb[0].mxu0
    %v3773 = vadd.f32 %v3730, %v3772
    %3774 = vdwg.mxu0
    %3775 = vmatprep.subr.bf16.mxu0 %v1553
    %3776 = vmatpush1.bf16.msra.mxu0 %v1552
    %3777 = vmatprep.subr.bf16.mxu0 %v1561
    %3778 = vmatpush1.bf16.msra.mxu0 %v1560
    %3779 = vmatprep.subr.bf16.mxu0 %v1569
    %3780 = vmatpush1.bf16.msra.mxu0 %v1568
    %3781 = vmatprep.subr.bf16.mxu0 %v1577
    %3782 = vmatpush1.bf16.msra.mxu0 %v1576
    %3783 = vmatprep.subr.bf16.mxu0 %v1585
    %3784 = vmatpush1.bf16.msra.mxu0 %v1584
    %3785 = vmatprep.subr.bf16.mxu0 %v1593
    %3786 = vmatpush1.bf16.msra.mxu0 %v1592
    %3787 = vmatprep.subr.bf16.mxu0 %v1601
    %3788 = vmatpush1.bf16.msra.mxu0 %v1600
    %3789 = vmatprep.subr.bf16.mxu0 %v1609
    %3790 = vmatpush1.bf16.msra.mxu0 %v1608
    %3791 = vmatprep.subr.bf16.mxu0 %v1617
    %3792 = vmatpush1.bf16.msra.mxu0 %v1616
    %3793 = vmatprep.subr.bf16.mxu0 %v1625
    %3794 = vmatpush1.bf16.msra.mxu0 %v1624
    %3795 = vmatprep.subr.bf16.mxu0 %v1633
    %3796 = vmatpush1.bf16.msra.mxu0 %v1632
    %3797 = vmatprep.subr.bf16.mxu0 %v1641
    %3798 = vmatpush1.bf16.msra.mxu0 %v1640
    %3799 = vmatprep.subr.bf16.mxu0 %v1649
    %3800 = vmatpush1.bf16.msra.mxu0 %v1648
    %3801 = vmatprep.subr.bf16.mxu0 %v1657
    %3802 = vmatpush1.bf16.msra.mxu0 %v1656
    %3803 = vmatprep.subr.bf16.mxu0 %v1665
    %3804 = vmatpush1.bf16.msra.mxu0 %v1664
    %3805 = vmatprep.subr.bf16.mxu0 %v1673
    %3806 = vmatpush1.bf16.msra.mxu0 %v1672
    %3807 = vmatprep.mubr.bf16.mxu0 %v2425
    %3808 = vmatmul.mubr.bf16.gmra.mrb[0].mxu0 %v2421
    %v3809 = vpop.f32.mrb[0].mxu0
    %v3810 = vadd.f32 %v3767, %v3809
    %v3811 = vpop.f32.mrb[0].mxu0
    %v3812 = vadd.f32 %v3769, %v3811
    %v3813 = vpop.f32.mrb[0].mxu0
    %v3814 = vadd.f32 %v3771, %v3813
    %v3815 = vpop.f32.mrb[0].mxu0
    %v3816 = vadd.f32 %v3773, %v3815
    %3817 = vdwg.mxu0
    %v3818 = vld [vmem:[#allocation5] sm:$0xff]
    %v3820 = vlaneseq
    %v3821 = vshrl.u32 %v3820, 7
    %v3822 = vsub.s32 0, %v3821
    %v3823 = vrot.slane %v3818, %v3822
    %v3824 = vlaneseq
    %v3825 = vshrl.u32 %v3824, 7
    %v3826 = vsub.s32 1, %v3825
    %v3827 = vrot.slane %v3818, %v3826
    %v3828 = vlaneseq
    %v3829 = vshrl.u32 %v3828, 7
    %v3830 = vsub.s32 2, %v3829
    %v3831 = vrot.slane %v3818, %v3830
    %v3832 = vlaneseq
    %v3833 = vshrl.u32 %v3832, 7
    %v3834 = vsub.s32 3, %v3833
    %v3835 = vrot.slane %v3818, %v3834
    %v3836 = vlaneseq
    %v3837 = vshrl.u32 %v3836, 7
    %v3838 = vsub.s32 4, %v3837
    %v3839 = vrot.slane %v3818, %v3838
    %v3840 = vlaneseq
    %v3841 = vshrl.u32 %v3840, 7
    %v3842 = vsub.s32 5, %v3841
    %v3843 = vrot.slane %v3818, %v3842
    %v3844 = vlaneseq
    %v3845 = vshrl.u32 %v3844, 7
    %v3846 = vsub.s32 6, %v3845
    %v3847 = vrot.slane %v3818, %v3846
    %v3848 = vlaneseq
    %v3849 = vshrl.u32 %v3848, 7
    %v3850 = vsub.s32 7, %v3849
    %v3851 = vrot.slane %v3818, %v3850
    %v3860 = vmul.f32 %v2778, %v3823
    %v3861 = vmul.f32 %v2780, %v3827
    %v3862 = vmul.f32 %v3122, %v3831
    %v3863 = vmul.f32 %v3124, %v3835
    %v3864 = vmul.f32 %v3466, %v3839
    %v3865 = vmul.f32 %v3468, %v3843
    %v3866 = vmul.f32 %v3810, %v3847
    %v3867 = vmul.f32 %v3812, %v3851
    %v3868 = vmul.f32 %v2782, %v3823
    %v3869 = vmul.f32 %v2784, %v3827
    %v3870 = vmul.f32 %v3126, %v3831
    %v3871 = vmul.f32 %v3128, %v3835
    %v3872 = vmul.f32 %v3470, %v3839
    %v3873 = vmul.f32 %v3472, %v3843
    %v3874 = vmul.f32 %v3814, %v3847
    %v3875 = vmul.f32 %v3816, %v3851
    %v3876 = vld [vmem:[#allocation7] sm:$0xff]
    %v3878 = vlaneseq
    %v3879 = vshrl.u32 %v3878, 7
    %v3880 = vsub.s32 0, %v3879
    %v3881 = vrot.slane %v3876, %v3880
    %v3882 = vlaneseq
    %v3883 = vshrl.u32 %v3882, 7
    %v3884 = vsub.s32 1, %v3883
    %v3885 = vrot.slane %v3876, %v3884
    %v3886 = vlaneseq
    %v3887 = vshrl.u32 %v3886, 7
    %v3888 = vsub.s32 2, %v3887
    %v3889 = vrot.slane %v3876, %v3888
    %v3890 = vlaneseq
    %v3891 = vshrl.u32 %v3890, 7
    %v3892 = vsub.s32 3, %v3891
    %v3893 = vrot.slane %v3876, %v3892
    %v3894 = vlaneseq
    %v3895 = vshrl.u32 %v3894, 7
    %v3896 = vsub.s32 4, %v3895
    %v3897 = vrot.slane %v3876, %v3896
    %v3898 = vlaneseq
    %v3899 = vshrl.u32 %v3898, 7
    %v3900 = vsub.s32 5, %v3899
    %v3901 = vrot.slane %v3876, %v3900
    %v3902 = vlaneseq
    %v3903 = vshrl.u32 %v3902, 7
    %v3904 = vsub.s32 6, %v3903
    %v3905 = vrot.slane %v3876, %v3904
    %v3906 = vlaneseq
    %v3907 = vshrl.u32 %v3906, 7
    %v3908 = vsub.s32 7, %v3907
    %v3909 = vrot.slane %v3876, %v3908
    %v3918 = vadd.f32 %v3860, %v3881
    %v3919 = vadd.f32 %v3861, %v3885
    %v3920 = vadd.f32 %v3862, %v3889
    %v3921 = vadd.f32 %v3863, %v3893
    %v3922 = vadd.f32 %v3864, %v3897
    %v3923 = vadd.f32 %v3865, %v3901
    %v3924 = vadd.f32 %v3866, %v3905
    %v3925 = vadd.f32 %v3867, %v3909
    %v3926 = vadd.f32 %v3868, %v3881
    %v3927 = vadd.f32 %v3869, %v3885
    %v3928 = vadd.f32 %v3870, %v3889
    %v3929 = vadd.f32 %v3871, %v3893
    %v3930 = vadd.f32 %v3872, %v3897
    %v3931 = vadd.f32 %v3873, %v3901
    %v3932 = vadd.f32 %v3874, %v3905
    %v3933 = vadd.f32 %v3875, %v3909
    %v3934 = vmax.f32 %v3918, 0.0
    %v3935 = vmax.f32 %v3919, 0.0
    %v3936 = vmax.f32 %v3920, 0.0
    %v3937 = vmax.f32 %v3921, 0.0
    %v3938 = vmax.f32 %v3922, 0.0
    %v3939 = vmax.f32 %v3923, 0.0
    %v3940 = vmax.f32 %v3924, 0.0
    %v3941 = vmax.f32 %v3925, 0.0
    %v3942 = vmax.f32 %v3926, 0.0
    %v3943 = vmax.f32 %v3927, 0.0
    %v3944 = vmax.f32 %v3928, 0.0
    %v3945 = vmax.f32 %v3929, 0.0
    %v3946 = vmax.f32 %v3930, 0.0
    %v3947 = vmax.f32 %v3931, 0.0
    %v3948 = vmax.f32 %v3932, 0.0
    %v3949 = vmax.f32 %v3933, 0.0
    %v3950 = vpack.c.bf16 %v3942, %v3934
    %v3951 = vpack.c.bf16 %v3943, %v3935
    %v3952 = vpack.c.bf16 %v3944, %v3936
    %v3953 = vpack.c.bf16 %v3945, %v3937
    %v3954 = vpack.c.bf16 %v3946, %v3938
    %v3955 = vpack.c.bf16 %v3947, %v3939
    %v3956 = vpack.c.bf16 %v3948, %v3940
    %v3957 = vpack.c.bf16 %v3949, %v3941
    %3958 = vmatprep.subr.bf16.mxu0 %v1803
    %3959 = vmatpush1.bf16.msra.mxu0 %v1802
    %3960 = vmatprep.subr.bf16.mxu0 %v1807
    %3961 = vmatpush1.bf16.msra.mxu0 %v1806
    %3962 = vmatprep.subr.bf16.mxu0 %v1811
    %3963 = vmatpush1.bf16.msra.mxu0 %v1810
    %3964 = vmatprep.subr.bf16.mxu0 %v1815
    %3965 = vmatpush1.bf16.msra.mxu0 %v1814
    %3966 = vmatprep.subr.bf16.mxu0 %v1819
    %3967 = vmatpush1.bf16.msra.mxu0 %v1818
    %3968 = vmatprep.subr.bf16.mxu0 %v1823
    %3969 = vmatpush1.bf16.msra.mxu0 %v1822
    %3970 = vmatprep.subr.bf16.mxu0 %v1827
    %3971 = vmatpush1.bf16.msra.mxu0 %v1826
    %3972 = vmatprep.subr.bf16.mxu0 %v1831
    %3973 = vmatpush1.bf16.msra.mxu0 %v1830
    %3974 = vmatprep.subr.bf16.mxu0 %v1835
    %3975 = vmatpush1.bf16.msra.mxu0 %v1834
    %3976 = vmatprep.subr.bf16.mxu0 %v1839
    %3977 = vmatpush1.bf16.msra.mxu0 %v1838
    %3978 = vmatprep.subr.bf16.mxu0 %v1843
    %3979 = vmatpush1.bf16.msra.mxu0 %v1842
    %3980 = vmatprep.subr.bf16.mxu0 %v1847
    %3981 = vmatpush1.bf16.msra.mxu0 %v1846
    %3982 = vmatprep.subr.bf16.mxu0 %v1851
    %3983 = vmatpush1.bf16.msra.mxu0 %v1850
    %3984 = vmatprep.subr.bf16.mxu0 %v1855
    %3985 = vmatpush1.bf16.msra.mxu0 %v1854
    %3986 = vmatprep.subr.bf16.mxu0 %v1859
    %3987 = vmatpush1.bf16.msra.mxu0 %v1858
    %3988 = vmatprep.subr.bf16.mxu0 %v1863
    %3989 = vmatpush1.bf16.msra.mxu0 %v1862
    %3990 = vmatprep.mubr.bf16.mxu0 %v3951
    %3991 = vmatmul.mubr.bf16.gmra.mrb[0].mxu0 %v3950
    %v3992 = vpop.f32.mrb[0].mxu0
    %v3993 = vadd.f32 0.0, %v3992
    %v3994 = vpop.f32.mrb[0].mxu0
    %v3995 = vadd.f32 0.0, %v3994
    %v3996 = vpop.f32.mrb[0].mxu0
    %v3997 = vadd.f32 0.0, %v3996
    %v3998 = vpop.f32.mrb[0].mxu0
    %v3999 = vadd.f32 0.0, %v3998
    %4000 = vdwg.mxu0
    %4001 = vmatprep.subr.bf16.mxu0 %v1867
    %4002 = vmatpush1.bf16.msra.mxu0 %v1866
    %4003 = vmatprep.subr.bf16.mxu0 %v1871
    %4004 = vmatpush1.bf16.msra.mxu0 %v1870
    %4005 = vmatprep.subr.bf16.mxu0 %v1875
    %4006 = vmatpush1.bf16.msra.mxu0 %v1874
    %4007 = vmatprep.subr.bf16.mxu0 %v1879
    %4008 = vmatpush1.bf16.msra.mxu0 %v1878
    %4009 = vmatprep.subr.bf16.mxu0 %v1883
    %4010 = vmatpush1.bf16.msra.mxu0 %v1882
    %4011 = vmatprep.subr.bf16.mxu0 %v1887
    %4012 = vmatpush1.bf16.msra.mxu0 %v1886
    %4013 = vmatprep.subr.bf16.mxu0 %v1891
    %4014 = vmatpush1.bf16.msra.mxu0 %v1890
    %4015 = vmatprep.subr.bf16.mxu0 %v1895
    %4016 = vmatpush1.bf16.msra.mxu0 %v1894
    %4017 = vmatprep.subr.bf16.mxu0 %v1899
    %4018 = vmatpush1.bf16.msra.mxu0 %v1898
    %4019 = vmatprep.subr.bf16.mxu0 %v1903
    %4020 = vmatpush1.bf16.msra.mxu0 %v1902
    %4021 = vmatprep.subr.bf16.mxu0 %v1907
    %4022 = vmatpush1.bf16.msra.mxu0 %v1906
    %4023 = vmatprep.subr.bf16.mxu0 %v1911
    %4024 = vmatpush1.bf16.msra.mxu0 %v1910
    %4025 = vmatprep.subr.bf16.mxu0 %v1915
    %4026 = vmatpush1.bf16.msra.mxu0 %v1914
    %4027 = vmatprep.subr.bf16.mxu0 %v1919
    %4028 = vmatpush1.bf16.msra.mxu0 %v1918
    %4029 = vmatprep.subr.bf16.mxu0 %v1923
    %4030 = vmatpush1.bf16.msra.mxu0 %v1922
    %4031 = vmatprep.subr.bf16.mxu0 %v1927
    %4032 = vmatpush1.bf16.msra.mxu0 %v1926
    %4033 = vmatprep.mubr.bf16.mxu0 %v3953
    %4034 = vmatmul.mubr.bf16.gmra.mrb[0].mxu0 %v3952
    %v4035 = vpop.f32.mrb[0].mxu0
    %v4036 = vadd.f32 %v3993, %v4035
    %v4037 = vpop.f32.mrb[0].mxu0
    %v4038 = vadd.f32 %v3995, %v4037
    %v4039 = vpop.f32.mrb[0].mxu0
    %v4040 = vadd.f32 %v3997, %v4039
    %v4041 = vpop.f32.mrb[0].mxu0
    %v4042 = vadd.f32 %v3999, %v4041
    %4043 = vdwg.mxu0
    %4044 = vmatprep.subr.bf16.mxu0 %v1931
    %4045 = vmatpush1.bf16.msra.mxu0 %v1930
    %4046 = vmatprep.subr.bf16.mxu0 %v1935
    %4047 = vmatpush1.bf16.msra.mxu0 %v1934
    %4048 = vmatprep.subr.bf16.mxu0 %v1939
    %4049 = vmatpush1.bf16.msra.mxu0 %v1938
    %4050 = vmatprep.subr.bf16.mxu0 %v1943
    %4051 = vmatpush1.bf16.msra.mxu0 %v1942
    %4052 = vmatprep.subr.bf16.mxu0 %v1947
    %4053 = vmatpush1.bf16.msra.mxu0 %v1946
    %4054 = vmatprep.subr.bf16.mxu0 %v1951
    %4055 = vmatpush1.bf16.msra.mxu0 %v1950
    %4056 = vmatprep.subr.bf16.mxu0 %v1955
    %4057 = vmatpush1.bf16.msra.mxu0 %v1954
    %4058 = vmatprep.subr.bf16.mxu0 %v1959
    %4059 = vmatpush1.bf16.msra.mxu0 %v1958
    %4060 = vmatprep.subr.bf16.mxu0 %v1963
    %4061 = vmatpush1.bf16.msra.mxu0 %v1962
    %4062 = vmatprep.subr.bf16.mxu0 %v1967
    %4063 = vmatpush1.bf16.msra.mxu0 %v1966
    %4064 = vmatprep.subr.bf16.mxu0 %v1971
    %4065 = vmatpush1.bf16.msra.mxu0 %v1970
    %4066 = vmatprep.subr.bf16.mxu0 %v1975
    %4067 = vmatpush1.bf16.msra.mxu0 %v1974
    %4068 = vmatprep.subr.bf16.mxu0 %v1979
    %4069 = vmatpush1.bf16.msra.mxu0 %v1978
    %4070 = vmatprep.subr.bf16.mxu0 %v1983
    %4071 = vmatpush1.bf16.msra.mxu0 %v1982
    %4072 = vmatprep.subr.bf16.mxu0 %v1987
    %4073 = vmatpush1.bf16.msra.mxu0 %v1986
    %4074 = vmatprep.subr.bf16.mxu0 %v1991
    %4075 = vmatpush1.bf16.msra.mxu0 %v1990
    %4076 = vmatprep.mubr.bf16.mxu0 %v3955
    %4077 = vmatmul.mubr.bf16.gmra.mrb[0].mxu0 %v3954
    %v4078 = vpop.f32.mrb[0].mxu0
    %v4079 = vadd.f32 %v4036, %v4078
    %v4080 = vpop.f32.mrb[0].mxu0
    %v4081 = vadd.f32 %v4038, %v4080
    %v4082 = vpop.f32.mrb[0].mxu0
    %v4083 = vadd.f32 %v4040, %v4082
    %v4084 = vpop.f32.mrb[0].mxu0
    %v4085 = vadd.f32 %v4042, %v4084
    %4086 = vdwg.mxu0
    %4087 = vmatprep.subr.bf16.mxu0 %v1995
    %4088 = vmatpush1.bf16.msra.mxu0 %v1994
    %4089 = vmatprep.subr.bf16.mxu0 %v1999
    %4090 = vmatpush1.bf16.msra.mxu0 %v1998
    %4091 = vmatprep.subr.bf16.mxu0 %v2003
    %4092 = vmatpush1.bf16.msra.mxu0 %v2002
    %4093 = vmatprep.subr.bf16.mxu0 %v2007
    %4094 = vmatpush1.bf16.msra.mxu0 %v2006
    %4095 = vmatprep.subr.bf16.mxu0 %v2011
    %4096 = vmatpush1.bf16.msra.mxu0 %v2010
    %4097 = vmatprep.subr.bf16.mxu0 %v2015
    %4098 = vmatpush1.bf16.msra.mxu0 %v2014
    %4099 = vmatprep.subr.bf16.mxu0 %v2019
    %4100 = vmatpush1.bf16.msra.mxu0 %v2018
    %4101 = vmatprep.subr.bf16.mxu0 %v2023
    %4102 = vmatpush1.bf16.msra.mxu0 %v2022
    %4103 = vmatprep.subr.bf16.mxu0 %v2027
    %4104 = vmatpush1.bf16.msra.mxu0 %v2026
    %4105 = vmatprep.subr.bf16.mxu0 %v2031
    %4106 = vmatpush1.bf16.msra.mxu0 %v2030
    %4107 = vmatprep.subr.bf16.mxu0 %v2035
    %4108 = vmatpush1.bf16.msra.mxu0 %v2034
    %4109 = vmatprep.subr.bf16.mxu0 %v2039
    %4110 = vmatpush1.bf16.msra.mxu0 %v2038
    %4111 = vmatprep.subr.bf16.mxu0 %v2043
    %4112 = vmatpush1.bf16.msra.mxu0 %v2042
    %4113 = vmatprep.subr.bf16.mxu0 %v2047
    %4114 = vmatpush1.bf16.msra.mxu0 %v2046
    %4115 = vmatprep.subr.bf16.mxu0 %v2051
    %4116 = vmatpush1.bf16.msra.mxu0 %v2050
    %4117 = vmatprep.subr.bf16.mxu0 %v2055
    %4118 = vmatpush1.bf16.msra.mxu0 %v2054
    %4119 = vmatprep.mubr.bf16.mxu0 %v3957
    %4120 = vmatmul.mubr.bf16.gmra.mrb[0].mxu0 %v3956
    %v4121 = vpop.f32.mrb[0].mxu0
    %v4122 = vadd.f32 %v4079, %v4121
    %v4123 = vpop.f32.mrb[0].mxu0
    %v4124 = vadd.f32 %v4081, %v4123
    %v4125 = vpop.f32.mrb[0].mxu0
    %v4126 = vadd.f32 %v4083, %v4125
    %v4127 = vpop.f32.mrb[0].mxu0
    %v4128 = vadd.f32 %v4085, %v4127
    %4129 = vdwg.mxu0
    %4130 = vmatprep.subr.bf16.mxu0 %v1805
    %4131 = vmatpush1.bf16.msra.mxu0 %v1804
    %4132 = vmatprep.subr.bf16.mxu0 %v1809
    %4133 = vmatpush1.bf16.msra.mxu0 %v1808
    %4134 = vmatprep.subr.bf16.mxu0 %v1813
    %4135 = vmatpush1.bf16.msra.mxu0 %v1812
    %4136 = vmatprep.subr.bf16.mxu0 %v1817
    %4137 = vmatpush1.bf16.msra.mxu0 %v1816
    %4138 = vmatprep.subr.bf16.mxu0 %v1821
    %4139 = vmatpush1.bf16.msra.mxu0 %v1820
    %4140 = vmatprep.subr.bf16.mxu0 %v1825
    %4141 = vmatpush1.bf16.msra.mxu0 %v1824
    %4142 = vmatprep.subr.bf16.mxu0 %v1829
    %4143 = vmatpush1.bf16.msra.mxu0 %v1828
    %4144 = vmatprep.subr.bf16.mxu0 %v1833
    %4145 = vmatpush1.bf16.msra.mxu0 %v1832
    %4146 = vmatprep.subr.bf16.mxu0 %v1837
    %4147 = vmatpush1.bf16.msra.mxu0 %v1836
    %4148 = vmatprep.subr.bf16.mxu0 %v1841
    %4149 = vmatpush1.bf16.msra.mxu0 %v1840
    %4150 = vmatprep.subr.bf16.mxu0 %v1845
    %4151 = vmatpush1.bf16.msra.mxu0 %v1844
    %4152 = vmatprep.subr.bf16.mxu0 %v1849
    %4153 = vmatpush1.bf16.msra.mxu0 %v1848
    %4154 = vmatprep.subr.bf16.mxu0 %v1853
    %4155 = vmatpush1.bf16.msra.mxu0 %v1852
    %4156 = vmatprep.subr.bf16.mxu0 %v1857
    %4157 = vmatpush1.bf16.msra.mxu0 %v1856
    %4158 = vmatprep.subr.bf16.mxu0 %v1861
    %4159 = vmatpush1.bf16.msra.mxu0 %v1860
    %4160 = vmatprep.subr.bf16.mxu0 %v1865
    %4161 = vmatpush1.bf16.msra.mxu0 %v1864
    %4162 = vmatprep.mubr.bf16.mxu0 %v3951
    %4163 = vmatmul.mubr.bf16.gmra.mrb[0].mxu0 %v3950
    %v4164 = vpop.f32.mrb[0].mxu0
    %v4165 = vadd.f32 0.0, %v4164
    %v4166 = vpop.f32.mrb[0].mxu0
    %v4167 = vadd.f32 0.0, %v4166
    %v4168 = vpop.f32.mrb[0].mxu0
    %v4169 = vadd.f32 0.0, %v4168
    %v4170 = vpop.f32.mrb[0].mxu0
    %v4171 = vadd.f32 0.0, %v4170
    %4172 = vdwg.mxu0
    %4173 = vmatprep.subr.bf16.mxu0 %v1869
    %4174 = vmatpush1.bf16.msra.mxu0 %v1868
    %4175 = vmatprep.subr.bf16.mxu0 %v1873
    %4176 = vmatpush1.bf16.msra.mxu0 %v1872
    %4177 = vmatprep.subr.bf16.mxu0 %v1877
    %4178 = vmatpush1.bf16.msra.mxu0 %v1876
    %4179 = vmatprep.subr.bf16.mxu0 %v1881
    %4180 = vmatpush1.bf16.msra.mxu0 %v1880
    %4181 = vmatprep.subr.bf16.mxu0 %v1885
    %4182 = vmatpush1.bf16.msra.mxu0 %v1884
    %4183 = vmatprep.subr.bf16.mxu0 %v1889
    %4184 = vmatpush1.bf16.msra.mxu0 %v1888
    %4185 = vmatprep.subr.bf16.mxu0 %v1893
    %4186 = vmatpush1.bf16.msra.mxu0 %v1892
    %4187 = vmatprep.subr.bf16.mxu0 %v1897
    %4188 = vmatpush1.bf16.msra.mxu0 %v1896
    %4189 = vmatprep.subr.bf16.mxu0 %v1901
    %4190 = vmatpush1.bf16.msra.mxu0 %v1900
    %4191 = vmatprep.subr.bf16.mxu0 %v1905
    %4192 = vmatpush1.bf16.msra.mxu0 %v1904
    %4193 = vmatprep.subr.bf16.mxu0 %v1909
    %4194 = vmatpush1.bf16.msra.mxu0 %v1908
    %4195 = vmatprep.subr.bf16.mxu0 %v1913
    %4196 = vmatpush1.bf16.msra.mxu0 %v1912
    %4197 = vmatprep.subr.bf16.mxu0 %v1917
    %4198 = vmatpush1.bf16.msra.mxu0 %v1916
    %4199 = vmatprep.subr.bf16.mxu0 %v1921
    %4200 = vmatpush1.bf16.msra.mxu0 %v1920
    %4201 = vmatprep.subr.bf16.mxu0 %v1925
    %4202 = vmatpush1.bf16.msra.mxu0 %v1924
    %4203 = vmatprep.subr.bf16.mxu0 %v1929
    %4204 = vmatpush1.bf16.msra.mxu0 %v1928
    %4205 = vmatprep.mubr.bf16.mxu0 %v3953
    %4206 = vmatmul.mubr.bf16.gmra.mrb[0].mxu0 %v3952
    %v4207 = vpop.f32.mrb[0].mxu0
    %v4208 = vadd.f32 %v4165, %v4207
    %v4209 = vpop.f32.mrb[0].mxu0
    %v4210 = vadd.f32 %v4167, %v4209
    %v4211 = vpop.f32.mrb[0].mxu0
    %v4212 = vadd.f32 %v4169, %v4211
    %v4213 = vpop.f32.mrb[0].mxu0
    %v4214 = vadd.f32 %v4171, %v4213
    %4215 = vdwg.mxu0
    %4216 = vmatprep.subr.bf16.mxu0 %v1933
    %4217 = vmatpush1.bf16.msra.mxu0 %v1932
    %4218 = vmatprep.subr.bf16.mxu0 %v1937
    %4219 = vmatpush1.bf16.msra.mxu0 %v1936
    %4220 = vmatprep.subr.bf16.mxu0 %v1941
    %4221 = vmatpush1.bf16.msra.mxu0 %v1940
    %4222 = vmatprep.subr.bf16.mxu0 %v1945
    %4223 = vmatpush1.bf16.msra.mxu0 %v1944
    %4224 = vmatprep.subr.bf16.mxu0 %v1949
    %4225 = vmatpush1.bf16.msra.mxu0 %v1948
    %4226 = vmatprep.subr.bf16.mxu0 %v1953
    %4227 = vmatpush1.bf16.msra.mxu0 %v1952
    %4228 = vmatprep.subr.bf16.mxu0 %v1957
    %4229 = vmatpush1.bf16.msra.mxu0 %v1956
    %4230 = vmatprep.subr.bf16.mxu0 %v1961
    %4231 = vmatpush1.bf16.msra.mxu0 %v1960
    %4232 = vmatprep.subr.bf16.mxu0 %v1965
    %4233 = vmatpush1.bf16.msra.mxu0 %v1964
    %4234 = vmatprep.subr.bf16.mxu0 %v1969
    %4235 = vmatpush1.bf16.msra.mxu0 %v1968
    %4236 = vmatprep.subr.bf16.mxu0 %v1973
    %4237 = vmatpush1.bf16.msra.mxu0 %v1972
    %4238 = vmatprep.subr.bf16.mxu0 %v1977
    %4239 = vmatpush1.bf16.msra.mxu0 %v1976
    %4240 = vmatprep.subr.bf16.mxu0 %v1981
    %4241 = vmatpush1.bf16.msra.mxu0 %v1980
    %4242 = vmatprep.subr.bf16.mxu0 %v1985
    %4243 = vmatpush1.bf16.msra.mxu0 %v1984
    %4244 = vmatprep.subr.bf16.mxu0 %v1989
    %4245 = vmatpush1.bf16.msra.mxu0 %v1988
    %4246 = vmatprep.subr.bf16.mxu0 %v1993
    %4247 = vmatpush1.bf16.msra.mxu0 %v1992
    %4248 = vmatprep.mubr.bf16.mxu0 %v3955
    %4249 = vmatmul.mubr.bf16.gmra.mrb[0].mxu0 %v3954
    %v4250 = vpop.f32.mrb[0].mxu0
    %v4251 = vadd.f32 %v4208, %v4250
    %v4252 = vpop.f32.mrb[0].mxu0
    %v4253 = vadd.f32 %v4210, %v4252
    %v4254 = vpop.f32.mrb[0].mxu0
    %v4255 = vadd.f32 %v4212, %v4254
    %v4256 = vpop.f32.mrb[0].mxu0
    %v4257 = vadd.f32 %v4214, %v4256
    %4258 = vdwg.mxu0
    %4259 = vmatprep.subr.bf16.mxu0 %v1997
    %4260 = vmatpush1.bf16.msra.mxu0 %v1996
    %4261 = vmatprep.subr.bf16.mxu0 %v2001
    %4262 = vmatpush1.bf16.msra.mxu0 %v2000
    %4263 = vmatprep.subr.bf16.mxu0 %v2005
    %4264 = vmatpush1.bf16.msra.mxu0 %v2004
    %4265 = vmatprep.subr.bf16.mxu0 %v2009
    %4266 = vmatpush1.bf16.msra.mxu0 %v2008
    %4267 = vmatprep.subr.bf16.mxu0 %v2013
    %4268 = vmatpush1.bf16.msra.mxu0 %v2012
    %4269 = vmatprep.subr.bf16.mxu0 %v2017
    %4270 = vmatpush1.bf16.msra.mxu0 %v2016
    %4271 = vmatprep.subr.bf16.mxu0 %v2021
    %4272 = vmatpush1.bf16.msra.mxu0 %v2020
    %4273 = vmatprep.subr.bf16.mxu0 %v2025
    %4274 = vmatpush1.bf16.msra.mxu0 %v2024
    %4275 = vmatprep.subr.bf16.mxu0 %v2029
    %4276 = vmatpush1.bf16.msra.mxu0 %v2028
    %4277 = vmatprep.subr.bf16.mxu0 %v2033
    %4278 = vmatpush1.bf16.msra.mxu0 %v2032
    %4279 = vmatprep.subr.bf16.mxu0 %v2037
    %4280 = vmatpush1.bf16.msra.mxu0 %v2036
    %4281 = vmatprep.subr.bf16.mxu0 %v2041
    %4282 = vmatpush1.bf16.msra.mxu0 %v2040
    %4283 = vmatprep.subr.bf16.mxu0 %v2045
    %4284 = vmatpush1.bf16.msra.mxu0 %v2044
    %4285 = vmatprep.subr.bf16.mxu0 %v2049
    %4286 = vmatpush1.bf16.msra.mxu0 %v2048
    %4287 = vmatprep.subr.bf16.mxu0 %v2053
    %4288 = vmatpush1.bf16.msra.mxu0 %v2052
    %4289 = vmatprep.subr.bf16.mxu0 %v2057
    %4290 = vmatpush1.bf16.msra.mxu0 %v2056
    %4291 = vmatprep.mubr.bf16.mxu0 %v3957
    %4292 = vmatmul.mubr.bf16.gmra.mrb[0].mxu0 %v3956
    %v4293 = vpop.f32.mrb[0].mxu0
    %v4294 = vadd.f32 %v4251, %v4293
    %v4295 = vpop.f32.mrb[0].mxu0
    %v4296 = vadd.f32 %v4253, %v4295
    %v4297 = vpop.f32.mrb[0].mxu0
    %v4298 = vadd.f32 %v4255, %v4297
    %v4299 = vpop.f32.mrb[0].mxu0
    %v4300 = vadd.f32 %v4257, %v4299
    %4301 = vdwg.mxu0
    %v4302 = vld [vmem:[#allocation10] sm:$0xf]
    %v4304 = vlaneseq
    %v4305 = vshrl.u32 %v4304, 7
    %v4306 = vsub.s32 0, %v4305
    %v4307 = vrot.slane %v4302, %v4306
    %v4308 = vlaneseq
    %v4309 = vshrl.u32 %v4308, 7
    %v4310 = vsub.s32 1, %v4309
    %v4311 = vrot.slane %v4302, %v4310
    %v4312 = vlaneseq
    %v4313 = vshrl.u32 %v4312, 7
    %v4314 = vsub.s32 2, %v4313
    %v4315 = vrot.slane %v4302, %v4314
    %v4316 = vlaneseq
    %v4317 = vshrl.u32 %v4316, 7
    %v4318 = vsub.s32 3, %v4317
    %v4319 = vrot.slane %v4302, %v4318
    %v4324 = vmul.f32 %v4122, %v4307
    %v4325 = vmul.f32 %v4124, %v4311
    %v4326 = vmul.f32 %v4294, %v4315
    %v4327 = vmul.f32 %v4296, %v4319
    %v4328 = vmul.f32 %v4126, %v4307
    %v4329 = vmul.f32 %v4128, %v4311
    %v4330 = vmul.f32 %v4298, %v4315
    %v4331 = vmul.f32 %v4300, %v4319
    %v4332 = vld [vmem:[#allocation11] sm:$0xf]
    %v4334 = vlaneseq
    %v4335 = vshrl.u32 %v4334, 7
    %v4336 = vsub.s32 0, %v4335
    %v4337 = vrot.slane %v4332, %v4336
    %v4338 = vlaneseq
    %v4339 = vshrl.u32 %v4338, 7
    %v4340 = vsub.s32 1, %v4339
    %v4341 = vrot.slane %v4332, %v4340
    %v4342 = vlaneseq
    %v4343 = vshrl.u32 %v4342, 7
    %v4344 = vsub.s32 2, %v4343
    %v4345 = vrot.slane %v4332, %v4344
    %v4346 = vlaneseq
    %v4347 = vshrl.u32 %v4346, 7
    %v4348 = vsub.s32 3, %v4347
    %v4349 = vrot.slane %v4332, %v4348
    %v4354 = vadd.f32 %v4324, %v4337
    %v4355 = vadd.f32 %v4325, %v4341
    %v4356 = vadd.f32 %v4326, %v4345
    %v4357 = vadd.f32 %v4327, %v4349
    %v4358 = vadd.f32 %v4328, %v4337
    %v4359 = vadd.f32 %v4329, %v4341
    %v4360 = vadd.f32 %v4330, %v4345
    %v4361 = vadd.f32 %v4331, %v4349
    %v4362 = vmax.f32 %v4354, 0.0
    %v4363 = vmax.f32 %v4355, 0.0
    %v4364 = vmax.f32 %v4356, 0.0
    %v4365 = vmax.f32 %v4357, 0.0
    %v4366 = vmax.f32 %v4358, 0.0
    %v4367 = vmax.f32 %v4359, 0.0
    %v4368 = vmax.f32 %v4360, 0.0
    %v4369 = vmax.f32 %v4361, 0.0
    %v4370 = vpack.c.bf16 %v4366, %v4362
    %v4371 = vpack.c.bf16 %v4367, %v4363
    %v4372 = vpack.c.bf16 %v4368, %v4364
    %v4373 = vpack.c.bf16 %v4369, %v4365
    %v4374 = vld [vmem:[#allocation14] sm:$0x3]
    %v4376 = vlaneseq
    %v4377 = vshrl.u32 %v4376, 7
    %v4378 = vsub.s32 0, %v4377
    %v4379 = vrot.slane %v4374, %v4378
    %v4380 = vlaneseq
    %v4381 = vshrl.u32 %v4380, 7
    %v4382 = vsub.s32 1, %v4381
    %v4383 = vrot.slane %v4374, %v4382
    %v4450 = vunpack.c.l.b16 %v2058
    %v4451 = vunpack.c.h.b16 %v2058
    %v4452 = vunpack.c.l.b16 %v2059
    %v4453 = vunpack.c.h.b16 %v2059
    %v4454 = vunpack.c.l.b16 %v2060
    %v4455 = vunpack.c.h.b16 %v2060
    %v4456 = vunpack.c.l.b16 %v2061
    %v4457 = vunpack.c.h.b16 %v2061
    %v4458 = vunpack.c.l.b16 %v2062
    %v4459 = vunpack.c.h.b16 %v2062
    %v4460 = vunpack.c.l.b16 %v2063
    %v4461 = vunpack.c.h.b16 %v2063
    %v4462 = vunpack.c.l.b16 %v2064
    %v4463 = vunpack.c.h.b16 %v2064
    %v4464 = vunpack.c.l.b16 %v2065
    %v4465 = vunpack.c.h.b16 %v2065
    %v4466 = vunpack.c.l.b16 %v2066
    %v4467 = vunpack.c.h.b16 %v2066
    %v4468 = vunpack.c.l.b16 %v2067
    %v4469 = vunpack.c.h.b16 %v2067
    %v4470 = vunpack.c.l.b16 %v2068
    %v4471 = vunpack.c.h.b16 %v2068
    %v4472 = vunpack.c.l.b16 %v2069
    %v4473 = vunpack.c.h.b16 %v2069
    %v4474 = vunpack.c.l.b16 %v2070
    %v4475 = vunpack.c.h.b16 %v2070
    %v4476 = vunpack.c.l.b16 %v2071
    %v4477 = vunpack.c.h.b16 %v2071
    %v4478 = vunpack.c.l.b16 %v2072
    %v4479 = vunpack.c.h.b16 %v2072
    %v4480 = vunpack.c.l.b16 %v2073
    %v4481 = vunpack.c.h.b16 %v2073
    %v4482 = vunpack.c.l.b16 %v2074
    %v4483 = vunpack.c.h.b16 %v2074
    %v4484 = vunpack.c.l.b16 %v2075
    %v4485 = vunpack.c.h.b16 %v2075
    %v4486 = vunpack.c.l.b16 %v2076
    %v4487 = vunpack.c.h.b16 %v2076
    %v4488 = vunpack.c.l.b16 %v2077
    %v4489 = vunpack.c.h.b16 %v2077
    %v4490 = vunpack.c.l.b16 %v2078
    %v4491 = vunpack.c.h.b16 %v2078
    %v4492 = vunpack.c.l.b16 %v2079
    %v4493 = vunpack.c.h.b16 %v2079
    %v4494 = vunpack.c.l.b16 %v2080
    %v4495 = vunpack.c.h.b16 %v2080
    %v4496 = vunpack.c.l.b16 %v2081
    %v4497 = vunpack.c.h.b16 %v2081
    %v4498 = vunpack.c.l.b16 %v2082
    %v4499 = vunpack.c.h.b16 %v2082
    %v4500 = vunpack.c.l.b16 %v2083
    %v4501 = vunpack.c.h.b16 %v2083
    %v4502 = vunpack.c.l.b16 %v2084
    %v4503 = vunpack.c.h.b16 %v2084
    %v4504 = vunpack.c.l.b16 %v2085
    %v4505 = vunpack.c.h.b16 %v2085
    %v4506 = vunpack.c.l.b16 %v2086
    %v4507 = vunpack.c.h.b16 %v2086
    %v4508 = vunpack.c.l.b16 %v2087
    %v4509 = vunpack.c.h.b16 %v2087
    %v4510 = vunpack.c.l.b16 %v2088
    %v4511 = vunpack.c.h.b16 %v2088
    %v4512 = vunpack.c.l.b16 %v2089
    %v4513 = vunpack.c.h.b16 %v2089
    %v4514 = vunpack.c.l.b16 %v2090
    %v4515 = vunpack.c.h.b16 %v2090
    %v4516 = vunpack.c.l.b16 %v2091
    %v4517 = vunpack.c.h.b16 %v2091
    %v4518 = vunpack.c.l.b16 %v2092
    %v4519 = vunpack.c.h.b16 %v2092
    %v4520 = vunpack.c.l.b16 %v2093
    %v4521 = vunpack.c.h.b16 %v2093
    %v4522 = vunpack.c.l.b16 %v2094
    %v4523 = vunpack.c.h.b16 %v2094
    %v4524 = vunpack.c.l.b16 %v2095
    %v4525 = vunpack.c.h.b16 %v2095
    %v4526 = vunpack.c.l.b16 %v2096
    %v4527 = vunpack.c.h.b16 %v2096
    %v4528 = vunpack.c.l.b16 %v2097
    %v4529 = vunpack.c.h.b16 %v2097
    %v4530 = vunpack.c.l.b16 %v2098
    %v4531 = vunpack.c.h.b16 %v2098
    %v4532 = vunpack.c.l.b16 %v2099
    %v4533 = vunpack.c.h.b16 %v2099
    %v4534 = vunpack.c.l.b16 %v2100
    %v4535 = vunpack.c.h.b16 %v2100
    %v4536 = vunpack.c.l.b16 %v2101
    %v4537 = vunpack.c.h.b16 %v2101
    %v4538 = vunpack.c.l.b16 %v2102
    %v4539 = vunpack.c.h.b16 %v2102
    %v4540 = vunpack.c.l.b16 %v2103
    %v4541 = vunpack.c.h.b16 %v2103
    %v4542 = vunpack.c.l.b16 %v2104
    %v4543 = vunpack.c.h.b16 %v2104
    %v4544 = vunpack.c.l.b16 %v2105
    %v4545 = vunpack.c.h.b16 %v2105
    %v4546 = vunpack.c.l.b16 %v2106
    %v4547 = vunpack.c.h.b16 %v2106
    %v4548 = vunpack.c.l.b16 %v2107
    %v4549 = vunpack.c.h.b16 %v2107
    %v4550 = vunpack.c.l.b16 %v2108
    %v4551 = vunpack.c.h.b16 %v2108
    %v4552 = vunpack.c.l.b16 %v2109
    %v4553 = vunpack.c.h.b16 %v2109
    %v4554 = vunpack.c.l.b16 %v2110
    %v4555 = vunpack.c.h.b16 %v2110
    %v4556 = vunpack.c.l.b16 %v2111
    %v4557 = vunpack.c.h.b16 %v2111
    %v4558 = vunpack.c.l.b16 %v2112
    %v4559 = vunpack.c.h.b16 %v2112
    %v4560 = vunpack.c.l.b16 %v2113
    %v4561 = vunpack.c.h.b16 %v2113
    %v4562 = vunpack.c.l.b16 %v2114
    %v4563 = vunpack.c.h.b16 %v2114
    %v4564 = vunpack.c.l.b16 %v2115
    %v4565 = vunpack.c.h.b16 %v2115
    %v4566 = vunpack.c.l.b16 %v2116
    %v4567 = vunpack.c.h.b16 %v2116
    %v4568 = vunpack.c.l.b16 %v2117
    %v4569 = vunpack.c.h.b16 %v2117
    %v4570 = vunpack.c.l.b16 %v2118
    %v4571 = vunpack.c.h.b16 %v2118
    %v4572 = vunpack.c.l.b16 %v2119
    %v4573 = vunpack.c.h.b16 %v2119
    %v4574 = vunpack.c.l.b16 %v2120
    %v4575 = vunpack.c.h.b16 %v2120
    %v4576 = vunpack.c.l.b16 %v2121
    %v4577 = vunpack.c.h.b16 %v2121
    %v4578 = vpack.c.b16 %v4452, %v4450
    %v4579 = vpack.c.b16 %v4453, %v4451
    %v4580 = vpack.c.b16 %v4456, %v4454
    %v4581 = vpack.c.b16 %v4457, %v4455
    %v4582 = vpack.c.b16 %v4460, %v4458
    %v4583 = vpack.c.b16 %v4461, %v4459
    %v4584 = vpack.c.b16 %v4464, %v4462
    %v4585 = vpack.c.b16 %v4465, %v4463
    %v4586 = vpack.c.b16 %v4468, %v4466
    %v4587 = vpack.c.b16 %v4469, %v4467
    %v4588 = vpack.c.b16 %v4472, %v4470
    %v4589 = vpack.c.b16 %v4473, %v4471
    %v4590 = vpack.c.b16 %v4476, %v4474
    %v4591 = vpack.c.b16 %v4477, %v4475
    %v4592 = vpack.c.b16 %v4480, %v4478
    %v4593 = vpack.c.b16 %v4481, %v4479
    %v4594 = vpack.c.b16 %v4484, %v4482
    %v4595 = vpack.c.b16 %v4485, %v4483
    %v4596 = vpack.c.b16 %v4488, %v4486
    %v4597 = vpack.c.b16 %v4489, %v4487
    %v4598 = vpack.c.b16 %v4492, %v4490
    %v4599 = vpack.c.b16 %v4493, %v4491
    %v4600 = vpack.c.b16 %v4496, %v4494
    %v4601 = vpack.c.b16 %v4497, %v4495
    %v4602 = vpack.c.b16 %v4500, %v4498
    %v4603 = vpack.c.b16 %v4501, %v4499
    %v4604 = vpack.c.b16 %v4504, %v4502
    %v4605 = vpack.c.b16 %v4505, %v4503
    %v4606 = vpack.c.b16 %v4508, %v4506
    %v4607 = vpack.c.b16 %v4509, %v4507
    %v4608 = vpack.c.b16 %v4512, %v4510
    %v4609 = vpack.c.b16 %v4513, %v4511
    %v4610 = vpack.c.b16 %v4516, %v4514
    %v4611 = vpack.c.b16 %v4517, %v4515
    %v4612 = vpack.c.b16 %v4520, %v4518
    %v4613 = vpack.c.b16 %v4521, %v4519
    %v4614 = vpack.c.b16 %v4524, %v4522
    %v4615 = vpack.c.b16 %v4525, %v4523
    %v4616 = vpack.c.b16 %v4528, %v4526
    %v4617 = vpack.c.b16 %v4529, %v4527
    %v4618 = vpack.c.b16 %v4532, %v4530
    %v4619 = vpack.c.b16 %v4533, %v4531
    %v4620 = vpack.c.b16 %v4536, %v4534
    %v4621 = vpack.c.b16 %v4537, %v4535
    %v4622 = vpack.c.b16 %v4540, %v4538
    %v4623 = vpack.c.b16 %v4541, %v4539
    %v4624 = vpack.c.b16 %v4544, %v4542
    %v4625 = vpack.c.b16 %v4545, %v4543
    %v4626 = vpack.c.b16 %v4548, %v4546
    %v4627 = vpack.c.b16 %v4549, %v4547
    %v4628 = vpack.c.b16 %v4552, %v4550
    %v4629 = vpack.c.b16 %v4553, %v4551
    %v4630 = vpack.c.b16 %v4556, %v4554
    %v4631 = vpack.c.b16 %v4557, %v4555
    %v4632 = vpack.c.b16 %v4560, %v4558
    %v4633 = vpack.c.b16 %v4561, %v4559
    %v4634 = vpack.c.b16 %v4564, %v4562
    %v4635 = vpack.c.b16 %v4565, %v4563
    %v4636 = vpack.c.b16 %v4568, %v4566
    %v4637 = vpack.c.b16 %v4569, %v4567
    %v4638 = vpack.c.b16 %v4572, %v4570
    %v4639 = vpack.c.b16 %v4573, %v4571
    %v4640 = vpack.c.b16 %v4576, %v4574
    %v4641 = vpack.c.b16 %v4577, %v4575
    %4706 = vmatprep.subr.bf16.mxu0 %v4579
    %4707 = vmatpush1.bf16.msra.mxu0 %v4578
    %4708 = vmatprep.subr.bf16.mxu0 %v4581
    %4709 = vmatpush1.bf16.msra.mxu0 %v4580
    %4710 = vmatprep.subr.bf16.mxu0 %v4583
    %4711 = vmatpush1.bf16.msra.mxu0 %v4582
    %4712 = vmatprep.subr.bf16.mxu0 %v4585
    %4713 = vmatpush1.bf16.msra.mxu0 %v4584
    %4714 = vmatprep.subr.bf16.mxu0 %v4587
    %4715 = vmatpush1.bf16.msra.mxu0 %v4586
    %4716 = vmatprep.subr.bf16.mxu0 %v4589
    %4717 = vmatpush1.bf16.msra.mxu0 %v4588
    %4718 = vmatprep.subr.bf16.mxu0 %v4591
    %4719 = vmatpush1.bf16.msra.mxu0 %v4590
    %4720 = vmatprep.subr.bf16.mxu0 %v4593
    %4721 = vmatpush1.bf16.msra.mxu0 %v4592
    %4722 = vmatprep.subr.bf16.mxu0 %v4595
    %4723 = vmatpush1.bf16.msra.mxu0 %v4594
    %4724 = vmatprep.subr.bf16.mxu0 %v4597
    %4725 = vmatpush1.bf16.msra.mxu0 %v4596
    %4726 = vmatprep.subr.bf16.mxu0 %v4599
    %4727 = vmatpush1.bf16.msra.mxu0 %v4598
    %4728 = vmatprep.subr.bf16.mxu0 %v4601
    %4729 = vmatpush1.bf16.msra.mxu0 %v4600
    %4730 = vmatprep.subr.bf16.mxu0 %v4603
    %4731 = vmatpush1.bf16.msra.mxu0 %v4602
    %4732 = vmatprep.subr.bf16.mxu0 %v4605
    %4733 = vmatpush1.bf16.msra.mxu0 %v4604
    %4734 = vmatprep.subr.bf16.mxu0 %v4607
    %4735 = vmatpush1.bf16.msra.mxu0 %v4606
    %4736 = vmatprep.subr.bf16.mxu0 %v4609
    %4737 = vmatpush1.bf16.msra.mxu0 %v4608
    %4738 = vmatprep.mubr.bf16.mxu0 %v4371
    %4739 = vmatmul.mubr.bf16.gmra.mrb[0].mxu0 %v4370
    %v4740 = vpop.f32.mrb[0].mxu0
    %v4741 = vadd.f32 %v4379, %v4740
    %v4742 = vpop.f32.mrb[0].mxu0
    %v4743 = vadd.f32 %v4383, %v4742
    %v4744 = vpop.f32.mrb[0].mxu0
    %v4745 = vadd.f32 %v4379, %v4744
    %v4746 = vpop.f32.mrb[0].mxu0
    %v4747 = vadd.f32 %v4383, %v4746
    %4748 = vdwg.mxu0
    %4749 = vmatprep.subr.bf16.mxu0 %v4611
    %4750 = vmatpush1.bf16.msra.mxu0 %v4610
    %4751 = vmatprep.subr.bf16.mxu0 %v4613
    %4752 = vmatpush1.bf16.msra.mxu0 %v4612
    %4753 = vmatprep.subr.bf16.mxu0 %v4615
    %4754 = vmatpush1.bf16.msra.mxu0 %v4614
    %4755 = vmatprep.subr.bf16.mxu0 %v4617
    %4756 = vmatpush1.bf16.msra.mxu0 %v4616
    %4757 = vmatprep.subr.bf16.mxu0 %v4619
    %4758 = vmatpush1.bf16.msra.mxu0 %v4618
    %4759 = vmatprep.subr.bf16.mxu0 %v4621
    %4760 = vmatpush1.bf16.msra.mxu0 %v4620
    %4761 = vmatprep.subr.bf16.mxu0 %v4623
    %4762 = vmatpush1.bf16.msra.mxu0 %v4622
    %4763 = vmatprep.subr.bf16.mxu0 %v4625
    %4764 = vmatpush1.bf16.msra.mxu0 %v4624
    %4765 = vmatprep.subr.bf16.mxu0 %v4627
    %4766 = vmatpush1.bf16.msra.mxu0 %v4626
    %4767 = vmatprep.subr.bf16.mxu0 %v4629
    %4768 = vmatpush1.bf16.msra.mxu0 %v4628
    %4769 = vmatprep.subr.bf16.mxu0 %v4631
    %4770 = vmatpush1.bf16.msra.mxu0 %v4630
    %4771 = vmatprep.subr.bf16.mxu0 %v4633
    %4772 = vmatpush1.bf16.msra.mxu0 %v4632
    %4773 = vmatprep.subr.bf16.mxu0 %v4635
    %4774 = vmatpush1.bf16.msra.mxu0 %v4634
    %4775 = vmatprep.subr.bf16.mxu0 %v4637
    %4776 = vmatpush1.bf16.msra.mxu0 %v4636
    %4777 = vmatprep.subr.bf16.mxu0 %v4639
    %4778 = vmatpush1.bf16.msra.mxu0 %v4638
    %4779 = vmatprep.subr.bf16.mxu0 %v4641
    %4780 = vmatpush1.bf16.msra.mxu0 %v4640
    %4781 = vmatprep.mubr.bf16.mxu0 %v4373
    %4782 = vmatmul.mubr.bf16.gmra.mrb[0].mxu0 %v4372
    %v4783 = vpop.f32.mrb[0].mxu0
    %v4784 = vadd.f32 %v4741, %v4783
    %v4785 = vpop.f32.mrb[0].mxu0
    %v4786 = vadd.f32 %v4743, %v4785
    %v4787 = vpop.f32.mrb[0].mxu0
    %v4788 = vadd.f32 %v4745, %v4787
    %v4789 = vpop.f32.mrb[0].mxu0
    %v4790 = vadd.f32 %v4747, %v4789
    %4791 = vdwg.mxu0
    %v4792 = vmax.f32 %v4784, 0.0
    %v4793 = vmax.f32 %v4786, 0.0
    %v4794 = vmax.f32 %v4788, 0.0
    %v4795 = vmax.f32 %v4790, 0.0
    %v4800 = vcombine.low %v4792, %v4793
    %v4801 = vcombine.high %v4792, %v4793
    %v4803 = vunpack.c.l.s4 1983009808
    %v4804 = vunpack.c.0.s8 %v4803
    %v4805 = vlaneseq
    %v4806 = vshrl.u32 %v4805, 7
    %v4807 = vsub.s32 %v4804, %v4806
    %v4808 = vrot.slane %v4800, %v4807
    %v4810 = vunpack.c.l.s4 1983009808
    %v4811 = vunpack.c.0.s8 %v4810
    %v4812 = vlaneseq
    %v4813 = vshrl.u32 %v4812, 7
    %v4814 = vsub.s32 %v4811, %v4813
    %v4815 = vrot.slane %v4801, %v4814
    %v4816 = vcombine.high %v4808, %v4808
    %v4817 = vcombine.high %v4815, %v4815
    %v4818 = vcombine.low %v4794, %v4795
    %v4819 = vcombine.high %v4794, %v4795
    %v4821 = vunpack.c.l.s4 1983009808
    %v4822 = vunpack.c.0.s8 %v4821
    %v4823 = vlaneseq
    %v4824 = vshrl.u32 %v4823, 7
    %v4825 = vsub.s32 %v4822, %v4824
    %v4826 = vrot.slane %v4818, %v4825
    %v4828 = vunpack.c.l.s4 1983009808
    %v4829 = vunpack.c.0.s8 %v4828
    %v4830 = vlaneseq
    %v4831 = vshrl.u32 %v4830, 7
    %v4832 = vsub.s32 %v4829, %v4831
    %v4833 = vrot.slane %v4819, %v4832
    %v4834 = vcombine.high %v4826, %v4826
    %v4835 = vcombine.high %v4833, %v4833
    %4844 = vst [vmem:[#allocation16] sm:$0xf] %v4808
    %4845 = vst [vmem:[#allocation16 + $0x4] sm:$0xf] %v4816
    %4846 = vst [vmem:[#allocation16 + $0x8] sm:$0xf] %v4815
    %4847 = vst [vmem:[#allocation16 + $0xc] sm:$0xf] %v4817
    %4848 = vst [vmem:[#allocation16 + $0x10] sm:$0xf] %v4826
    %4849 = vst [vmem:[#allocation16 + $0x14] sm:$0xf] %v4834
    %4850 = vst [vmem:[#allocation16 + $0x18] sm:$0xf] %v4833
    %4851 = vst [vmem:[#allocation16 + $0x1c] sm:$0xf] %v4835
    %v4852 = vld [vmem:[%s1] sm:$0xff]
    %v4853 = vld [vmem:[%s1 + $0x8] sm:$0xff]
    %v4854 = vld [vmem:[%s1 + $0x10] sm:$0xff]
    %v4855 = vld [vmem:[%s1 + $0x18] sm:$0xff]
    %v4856 = vld [vmem:[%s1 + $0x20] sm:$0xff]
    %v4857 = vld [vmem:[%s1 + $0x28] sm:$0xff]
    %v4858 = vld [vmem:[%s1 + $0x30] sm:$0xff]
    %v4859 = vld [vmem:[%s1 + $0x38] sm:$0xff]
    %v4860 = vld [vmem:[%s1 + $0x40] sm:$0xff]
    %v4861 = vld [vmem:[%s1 + $0x48] sm:$0xff]
    %v4862 = vld [vmem:[%s1 + $0x50] sm:$0xff]
    %v4863 = vld [vmem:[%s1 + $0x58] sm:$0xff]
    %v4864 = vld [vmem:[%s1 + $0x60] sm:$0xff]
    %v4865 = vld [vmem:[%s1 + $0x68] sm:$0xff]
    %v4866 = vld [vmem:[%s1 + $0x70] sm:$0xff]
    %v4867 = vld [vmem:[%s1 + $0x78] sm:$0xff]
    %v4884 = vcombine.low %v4852, %v4854
    %v4885 = vcombine.high %v4852, %v4854
    %v4886 = vcombine.low %v4856, %v4858
    %v4887 = vcombine.high %v4856, %v4858
    %v4888 = vcombine.low %v4860, %v4862
    %v4889 = vcombine.high %v4860, %v4862
    %v4890 = vcombine.low %v4864, %v4866
    %v4891 = vcombine.high %v4864, %v4866
    %v4893 = vunpack.c.l.s4 1966171168
    %v4894 = vunpack.c.0.s8 %v4893
    %v4895 = vlaneseq
    %v4896 = vshrl.u32 %v4895, 7
    %v4897 = vsub.s32 %v4894, %v4896
    %v4898 = vrot.slane %v4884, %v4897
    %v4900 = vunpack.c.l.s4 1966171168
    %v4901 = vunpack.c.0.s8 %v4900
    %v4902 = vlaneseq
    %v4903 = vshrl.u32 %v4902, 7
    %v4904 = vsub.s32 %v4901, %v4903
    %v4905 = vrot.slane %v4885, %v4904
    %v4907 = vunpack.c.l.s4 1966171168
    %v4908 = vunpack.c.0.s8 %v4907
    %v4909 = vlaneseq
    %v4910 = vshrl.u32 %v4909, 7
    %v4911 = vsub.s32 %v4908, %v4910
    %v4912 = vrot.slane %v4886, %v4911
    %v4914 = vunpack.c.l.s4 1966171168
    %v4915 = vunpack.c.0.s8 %v4914
    %v4916 = vlaneseq
    %v4917 = vshrl.u32 %v4916, 7
    %v4918 = vsub.s32 %v4915, %v4917
    %v4919 = vrot.slane %v4887, %v4918
    %v4921 = vunpack.c.l.s4 1966171168
    %v4922 = vunpack.c.0.s8 %v4921
    %v4923 = vlaneseq
    %v4924 = vshrl.u32 %v4923, 7
    %v4925 = vsub.s32 %v4922, %v4924
    %v4926 = vrot.slane %v4888, %v4925
    %v4928 = vunpack.c.l.s4 1966171168
    %v4929 = vunpack.c.0.s8 %v4928
    %v4930 = vlaneseq
    %v4931 = vshrl.u32 %v4930, 7
    %v4932 = vsub.s32 %v4929, %v4931
    %v4933 = vrot.slane %v4889, %v4932
    %v4935 = vunpack.c.l.s4 1966171168
    %v4936 = vunpack.c.0.s8 %v4935
    %v4937 = vlaneseq
    %v4938 = vshrl.u32 %v4937, 7
    %v4939 = vsub.s32 %v4936, %v4938
    %v4940 = vrot.slane %v4890, %v4939
    %v4942 = vunpack.c.l.s4 1966171168
    %v4943 = vunpack.c.0.s8 %v4942
    %v4944 = vlaneseq
    %v4945 = vshrl.u32 %v4944, 7
    %v4946 = vsub.s32 %v4943, %v4945
    %v4947 = vrot.slane %v4891, %v4946
    %v4948 = vcombine.low %v4898, %v4912
    %v4949 = vcombine.high %v4898, %v4912
    %v4950 = vcombine.low %v4905, %v4919
    %v4951 = vcombine.high %v4905, %v4919
    %v4952 = vcombine.low %v4926, %v4940
    %v4953 = vcombine.high %v4926, %v4940
    %v4954 = vcombine.low %v4933, %v4947
    %v4955 = vcombine.high %v4933, %v4947
    %v4957 = vunpack.c.l.s4 1966171168
    %v4958 = vunpack.c.0.s8 %v4957
    %v4959 = vlaneseq
    %v4960 = vshrl.u32 %v4959, 7
    %v4961 = vsub.s32 %v4958, %v4960
    %v4962 = vrot.slane %v4948, %v4961
    %v4964 = vunpack.c.l.s4 1966171168
    %v4965 = vunpack.c.0.s8 %v4964
    %v4966 = vlaneseq
    %v4967 = vshrl.u32 %v4966, 7
    %v4968 = vsub.s32 %v4965, %v4967
    %v4969 = vrot.slane %v4950, %v4968
    %v4971 = vunpack.c.l.s4 1966171168
    %v4972 = vunpack.c.0.s8 %v4971
    %v4973 = vlaneseq
    %v4974 = vshrl.u32 %v4973, 7
    %v4975 = vsub.s32 %v4972, %v4974
    %v4976 = vrot.slane %v4949, %v4975
    %v4978 = vunpack.c.l.s4 1966171168
    %v4979 = vunpack.c.0.s8 %v4978
    %v4980 = vlaneseq
    %v4981 = vshrl.u32 %v4980, 7
    %v4982 = vsub.s32 %v4979, %v4981
    %v4983 = vrot.slane %v4951, %v4982
    %v4985 = vunpack.c.l.s4 1966171168
    %v4986 = vunpack.c.0.s8 %v4985
    %v4987 = vlaneseq
    %v4988 = vshrl.u32 %v4987, 7
    %v4989 = vsub.s32 %v4986, %v4988
    %v4990 = vrot.slane %v4952, %v4989
    %v4992 = vunpack.c.l.s4 1966171168
    %v4993 = vunpack.c.0.s8 %v4992
    %v4994 = vlaneseq
    %v4995 = vshrl.u32 %v4994, 7
    %v4996 = vsub.s32 %v4993, %v4995
    %v4997 = vrot.slane %v4954, %v4996
    %v4999 = vunpack.c.l.s4 1966171168
    %v5000 = vunpack.c.0.s8 %v4999
    %v5001 = vlaneseq
    %v5002 = vshrl.u32 %v5001, 7
    %v5003 = vsub.s32 %v5000, %v5002
    %v5004 = vrot.slane %v4953, %v5003
    %v5006 = vunpack.c.l.s4 1966171168
    %v5007 = vunpack.c.0.s8 %v5006
    %v5008 = vlaneseq
    %v5009 = vshrl.u32 %v5008, 7
    %v5010 = vsub.s32 %v5007, %v5009
    %v5011 = vrot.slane %v4955, %v5010
    %v5012 = vcombine.low %v4962, %v4990
    %v5013 = vcombine.high %v4962, %v4990
    %v5014 = vcombine.low %v4969, %v4997
    %v5015 = vcombine.high %v4969, %v4997
    %v5016 = vcombine.low %v4976, %v5004
    %v5017 = vcombine.high %v4976, %v5004
    %v5018 = vcombine.low %v4983, %v5011
    %v5019 = vcombine.high %v4983, %v5011
    %v5020 = vcombine.low %v4853, %v4855
    %v5021 = vcombine.high %v4853, %v4855
    %v5022 = vcombine.low %v4857, %v4859
    %v5023 = vcombine.high %v4857, %v4859
    %v5024 = vcombine.low %v4861, %v4863
    %v5025 = vcombine.high %v4861, %v4863
    %v5026 = vcombine.low %v4865, %v4867
    %v5027 = vcombine.high %v4865, %v4867
    %v5029 = vunpack.c.l.s4 1966171168
    %v5030 = vunpack.c.0.s8 %v5029
    %v5031 = vlaneseq
    %v5032 = vshrl.u32 %v5031, 7
    %v5033 = vsub.s32 %v5030, %v5032
    %v5034 = vrot.slane %v5020, %v5033
    %v5036 = vunpack.c.l.s4 1966171168
    %v5037 = vunpack.c.0.s8 %v5036
    %v5038 = vlaneseq
    %v5039 = vshrl.u32 %v5038, 7
    %v5040 = vsub.s32 %v5037, %v5039
    %v5041 = vrot.slane %v5021, %v5040
    %v5043 = vunpack.c.l.s4 1966171168
    %v5044 = vunpack.c.0.s8 %v5043
    %v5045 = vlaneseq
    %v5046 = vshrl.u32 %v5045, 7
    %v5047 = vsub.s32 %v5044, %v5046
    %v5048 = vrot.slane %v5022, %v5047
    %v5050 = vunpack.c.l.s4 1966171168
    %v5051 = vunpack.c.0.s8 %v5050
    %v5052 = vlaneseq
    %v5053 = vshrl.u32 %v5052, 7
    %v5054 = vsub.s32 %v5051, %v5053
    %v5055 = vrot.slane %v5023, %v5054
    %v5057 = vunpack.c.l.s4 1966171168
    %v5058 = vunpack.c.0.s8 %v5057
    %v5059 = vlaneseq
    %v5060 = vshrl.u32 %v5059, 7
    %v5061 = vsub.s32 %v5058, %v5060
    %v5062 = vrot.slane %v5024, %v5061
    %v5064 = vunpack.c.l.s4 1966171168
    %v5065 = vunpack.c.0.s8 %v5064
    %v5066 = vlaneseq
    %v5067 = vshrl.u32 %v5066, 7
    %v5068 = vsub.s32 %v5065, %v5067
    %v5069 = vrot.slane %v5025, %v5068
    %v5071 = vunpack.c.l.s4 1966171168
    %v5072 = vunpack.c.0.s8 %v5071
    %v5073 = vlaneseq
    %v5074 = vshrl.u32 %v5073, 7
    %v5075 = vsub.s32 %v5072, %v5074
    %v5076 = vrot.slane %v5026, %v5075
    %v5078 = vunpack.c.l.s4 1966171168
    %v5079 = vunpack.c.0.s8 %v5078
    %v5080 = vlaneseq
    %v5081 = vshrl.u32 %v5080, 7
    %v5082 = vsub.s32 %v5079, %v5081
    %v5083 = vrot.slane %v5027, %v5082
    %v5084 = vcombine.low %v5034, %v5048
    %v5085 = vcombine.high %v5034, %v5048
    %v5086 = vcombine.low %v5041, %v5055
    %v5087 = vcombine.high %v5041, %v5055
    %v5088 = vcombine.low %v5062, %v5076
    %v5089 = vcombine.high %v5062, %v5076
    %v5090 = vcombine.low %v5069, %v5083
    %v5091 = vcombine.high %v5069, %v5083
    %v5093 = vunpack.c.l.s4 1966171168
    %v5094 = vunpack.c.0.s8 %v5093
    %v5095 = vlaneseq
    %v5096 = vshrl.u32 %v5095, 7
    %v5097 = vsub.s32 %v5094, %v5096
    %v5098 = vrot.slane %v5084, %v5097
    %v5100 = vunpack.c.l.s4 1966171168
    %v5101 = vunpack.c.0.s8 %v5100
    %v5102 = vlaneseq
    %v5103 = vshrl.u32 %v5102, 7
    %v5104 = vsub.s32 %v5101, %v5103
    %v5105 = vrot.slane %v5086, %v5104
    %v5107 = vunpack.c.l.s4 1966171168
    %v5108 = vunpack.c.0.s8 %v5107
    %v5109 = vlaneseq
    %v5110 = vshrl.u32 %v5109, 7
    %v5111 = vsub.s32 %v5108, %v5110
    %v5112 = vrot.slane %v5085, %v5111
    %v5114 = vunpack.c.l.s4 1966171168
    %v5115 = vunpack.c.0.s8 %v5114
    %v5116 = vlaneseq
    %v5117 = vshrl.u32 %v5116, 7
    %v5118 = vsub.s32 %v5115, %v5117
    %v5119 = vrot.slane %v5087, %v5118
    %v5121 = vunpack.c.l.s4 1966171168
    %v5122 = vunpack.c.0.s8 %v5121
    %v5123 = vlaneseq
    %v5124 = vshrl.u32 %v5123, 7
    %v5125 = vsub.s32 %v5122, %v5124
    %v5126 = vrot.slane %v5088, %v5125
    %v5128 = vunpack.c.l.s4 1966171168
    %v5129 = vunpack.c.0.s8 %v5128
    %v5130 = vlaneseq
    %v5131 = vshrl.u32 %v5130, 7
    %v5132 = vsub.s32 %v5129, %v5131
    %v5133 = vrot.slane %v5090, %v5132
    %v5135 = vunpack.c.l.s4 1966171168
    %v5136 = vunpack.c.0.s8 %v5135
    %v5137 = vlaneseq
    %v5138 = vshrl.u32 %v5137, 7
    %v5139 = vsub.s32 %v5136, %v5138
    %v5140 = vrot.slane %v5089, %v5139
    %v5142 = vunpack.c.l.s4 1966171168
    %v5143 = vunpack.c.0.s8 %v5142
    %v5144 = vlaneseq
    %v5145 = vshrl.u32 %v5144, 7
    %v5146 = vsub.s32 %v5143, %v5145
    %v5147 = vrot.slane %v5091, %v5146
    %v5148 = vcombine.low %v5098, %v5126
    %v5149 = vcombine.high %v5098, %v5126
    %v5150 = vcombine.low %v5105, %v5133
    %v5151 = vcombine.high %v5105, %v5133
    %v5152 = vcombine.low %v5112, %v5140
    %v5153 = vcombine.high %v5112, %v5140
    %v5154 = vcombine.low %v5119, %v5147
    %v5155 = vcombine.high %v5119, %v5147
    %5172 = vmatprep.subr.bf16.mxu0 %v651
    %5173 = vmatpush1.bf16.msra.mxu0 %v650
    %5174 = vmatprep.subr.bf16.mxu0 %v659
    %5175 = vmatpush1.bf16.msra.mxu0 %v658
    %5176 = vmatprep.subr.bf16.mxu0 %v667
    %5177 = vmatpush1.bf16.msra.mxu0 %v666
    %5178 = vmatprep.subr.bf16.mxu0 %v675
    %5179 = vmatpush1.bf16.msra.mxu0 %v674
    %5180 = vmatprep.subr.bf16.mxu0 %v683
    %5181 = vmatpush1.bf16.msra.mxu0 %v682
    %5182 = vmatprep.subr.bf16.mxu0 %v691
    %5183 = vmatpush1.bf16.msra.mxu0 %v690
    %5184 = vmatprep.subr.bf16.mxu0 %v699
    %5185 = vmatpush1.bf16.msra.mxu0 %v698
    %5186 = vmatprep.subr.bf16.mxu0 %v707
    %5187 = vmatpush1.bf16.msra.mxu0 %v706
    %5188 = vmatprep.subr.bf16.mxu0 %v715
    %5189 = vmatpush1.bf16.msra.mxu0 %v714
    %5190 = vmatprep.subr.bf16.mxu0 %v723
    %5191 = vmatpush1.bf16.msra.mxu0 %v722
    %5192 = vmatprep.subr.bf16.mxu0 %v731
    %5193 = vmatpush1.bf16.msra.mxu0 %v730
    %5194 = vmatprep.subr.bf16.mxu0 %v739
    %5195 = vmatpush1.bf16.msra.mxu0 %v738
    %5196 = vmatprep.subr.bf16.mxu0 %v747
    %5197 = vmatpush1.bf16.msra.mxu0 %v746
    %5198 = vmatprep.subr.bf16.mxu0 %v755
    %5199 = vmatpush1.bf16.msra.mxu0 %v754
    %5200 = vmatprep.subr.bf16.mxu0 %v763
    %5201 = vmatpush1.bf16.msra.mxu0 %v762
    %5202 = vmatprep.subr.bf16.mxu0 %v771
    %5203 = vmatpush1.bf16.msra.mxu0 %v770
    %5204 = vmatprep.mubr.bf16.mxu0 %v5016
    %5205 = vmatmul.mubr.bf16.gmra.mrb[0].mxu0 %v5012
    %v5206 = vpop.f32.mrb[0].mxu0
    %v5207 = vadd.f32 0.0, %v5206
    %v5208 = vpop.f32.mrb[0].mxu0
    %v5209 = vadd.f32 0.0, %v5208
    %v5210 = vpop.f32.mrb[0].mxu0
    %v5211 = vadd.f32 0.0, %v5210
    %v5212 = vpop.f32.mrb[0].mxu0
    %v5213 = vadd.f32 0.0, %v5212
    %5214 = vdwg.mxu0
    %5215 = vmatprep.subr.bf16.mxu0 %v779
    %5216 = vmatpush1.bf16.msra.mxu0 %v778
    %5217 = vmatprep.subr.bf16.mxu0 %v787
    %5218 = vmatpush1.bf16.msra.mxu0 %v786
    %5219 = vmatprep.subr.bf16.mxu0 %v795
    %5220 = vmatpush1.bf16.msra.mxu0 %v794
    %5221 = vmatprep.subr.bf16.mxu0 %v803
    %5222 = vmatpush1.bf16.msra.mxu0 %v802
    %5223 = vmatprep.subr.bf16.mxu0 %v811
    %5224 = vmatpush1.bf16.msra.mxu0 %v810
    %5225 = vmatprep.subr.bf16.mxu0 %v819
    %5226 = vmatpush1.bf16.msra.mxu0 %v818
    %5227 = vmatprep.subr.bf16.mxu0 %v827
    %5228 = vmatpush1.bf16.msra.mxu0 %v826
    %5229 = vmatprep.subr.bf16.mxu0 %v835
    %5230 = vmatpush1.bf16.msra.mxu0 %v834
    %5231 = vmatprep.subr.bf16.mxu0 %v843
    %5232 = vmatpush1.bf16.msra.mxu0 %v842
    %5233 = vmatprep.subr.bf16.mxu0 %v851
    %5234 = vmatpush1.bf16.msra.mxu0 %v850
    %5235 = vmatprep.subr.bf16.mxu0 %v859
    %5236 = vmatpush1.bf16.msra.mxu0 %v858
    %5237 = vmatprep.subr.bf16.mxu0 %v867
    %5238 = vmatpush1.bf16.msra.mxu0 %v866
    %5239 = vmatprep.subr.bf16.mxu0 %v875
    %5240 = vmatpush1.bf16.msra.mxu0 %v874
    %5241 = vmatprep.subr.bf16.mxu0 %v883
    %5242 = vmatpush1.bf16.msra.mxu0 %v882
    %5243 = vmatprep.subr.bf16.mxu0 %v891
    %5244 = vmatpush1.bf16.msra.mxu0 %v890
    %5245 = vmatprep.subr.bf16.mxu0 %v899
    %5246 = vmatpush1.bf16.msra.mxu0 %v898
    %5247 = vmatprep.mubr.bf16.mxu0 %v5017
    %5248 = vmatmul.mubr.bf16.gmra.mrb[0].mxu0 %v5013
    %v5249 = vpop.f32.mrb[0].mxu0
    %v5250 = vadd.f32 %v5207, %v5249
    %v5251 = vpop.f32.mrb[0].mxu0
    %v5252 = vadd.f32 %v5209, %v5251
    %v5253 = vpop.f32.mrb[0].mxu0
    %v5254 = vadd.f32 %v5211, %v5253
    %v5255 = vpop.f32.mrb[0].mxu0
    %v5256 = vadd.f32 %v5213, %v5255
    %5257 = vdwg.mxu0
    %5258 = vmatprep.subr.bf16.mxu0 %v907
    %5259 = vmatpush1.bf16.msra.mxu0 %v906
    %5260 = vmatprep.subr.bf16.mxu0 %v915
    %5261 = vmatpush1.bf16.msra.mxu0 %v914
    %5262 = vmatprep.subr.bf16.mxu0 %v923
    %5263 = vmatpush1.bf16.msra.mxu0 %v922
    %5264 = vmatprep.subr.bf16.mxu0 %v931
    %5265 = vmatpush1.bf16.msra.mxu0 %v930
    %5266 = vmatprep.subr.bf16.mxu0 %v939
    %5267 = vmatpush1.bf16.msra.mxu0 %v938
    %5268 = vmatprep.subr.bf16.mxu0 %v947
    %5269 = vmatpush1.bf16.msra.mxu0 %v946
    %5270 = vmatprep.subr.bf16.mxu0 %v955
    %5271 = vmatpush1.bf16.msra.mxu0 %v954
    %5272 = vmatprep.subr.bf16.mxu0 %v963
    %5273 = vmatpush1.bf16.msra.mxu0 %v962
    %5274 = vmatprep.subr.bf16.mxu0 %v971
    %5275 = vmatpush1.bf16.msra.mxu0 %v970
    %5276 = vmatprep.subr.bf16.mxu0 %v979
    %5277 = vmatpush1.bf16.msra.mxu0 %v978
    %5278 = vmatprep.subr.bf16.mxu0 %v987
    %5279 = vmatpush1.bf16.msra.mxu0 %v986
    %5280 = vmatprep.subr.bf16.mxu0 %v995
    %5281 = vmatpush1.bf16.msra.mxu0 %v994
    %5282 = vmatprep.subr.bf16.mxu0 %v1003
    %5283 = vmatpush1.bf16.msra.mxu0 %v1002
    %5284 = vmatprep.subr.bf16.mxu0 %v1011
    %5285 = vmatpush1.bf16.msra.mxu0 %v1010
    %5286 = vmatprep.subr.bf16.mxu0 %v1019
    %5287 = vmatpush1.bf16.msra.mxu0 %v1018
    %5288 = vmatprep.subr.bf16.mxu0 %v1027
    %5289 = vmatpush1.bf16.msra.mxu0 %v1026
    %5290 = vmatprep.mubr.bf16.mxu0 %v5018
    %5291 = vmatmul.mubr.bf16.gmra.mrb[0].mxu0 %v5014
    %v5292 = vpop.f32.mrb[0].mxu0
    %v5293 = vadd.f32 %v5250, %v5292
    %v5294 = vpop.f32.mrb[0].mxu0
    %v5295 = vadd.f32 %v5252, %v5294
    %v5296 = vpop.f32.mrb[0].mxu0
    %v5297 = vadd.f32 %v5254, %v5296
    %v5298 = vpop.f32.mrb[0].mxu0
    %v5299 = vadd.f32 %v5256, %v5298
    %5300 = vdwg.mxu0
    %5301 = vmatprep.subr.bf16.mxu0 %v1035
    %5302 = vmatpush1.bf16.msra.mxu0 %v1034
    %5303 = vmatprep.subr.bf16.mxu0 %v1043
    %5304 = vmatpush1.bf16.msra.mxu0 %v1042
    %5305 = vmatprep.subr.bf16.mxu0 %v1051
    %5306 = vmatpush1.bf16.msra.mxu0 %v1050
    %5307 = vmatprep.subr.bf16.mxu0 %v1059
    %5308 = vmatpush1.bf16.msra.mxu0 %v1058
    %5309 = vmatprep.subr.bf16.mxu0 %v1067
    %5310 = vmatpush1.bf16.msra.mxu0 %v1066
    %5311 = vmatprep.subr.bf16.mxu0 %v1075
    %5312 = vmatpush1.bf16.msra.mxu0 %v1074
    %5313 = vmatprep.subr.bf16.mxu0 %v1083
    %5314 = vmatpush1.bf16.msra.mxu0 %v1082
    %5315 = vmatprep.subr.bf16.mxu0 %v1091
    %5316 = vmatpush1.bf16.msra.mxu0 %v1090
    %5317 = vmatprep.subr.bf16.mxu0 %v1099
    %5318 = vmatpush1.bf16.msra.mxu0 %v1098
    %5319 = vmatprep.subr.bf16.mxu0 %v1107
    %5320 = vmatpush1.bf16.msra.mxu0 %v1106
    %5321 = vmatprep.subr.bf16.mxu0 %v1115
    %5322 = vmatpush1.bf16.msra.mxu0 %v1114
    %5323 = vmatprep.subr.bf16.mxu0 %v1123
    %5324 = vmatpush1.bf16.msra.mxu0 %v1122
    %5325 = vmatprep.subr.bf16.mxu0 %v1131
    %5326 = vmatpush1.bf16.msra.mxu0 %v1130
    %5327 = vmatprep.subr.bf16.mxu0 %v1139
    %5328 = vmatpush1.bf16.msra.mxu0 %v1138
    %5329 = vmatprep.subr.bf16.mxu0 %v1147
    %5330 = vmatpush1.bf16.msra.mxu0 %v1146
    %5331 = vmatprep.subr.bf16.mxu0 %v1155
    %5332 = vmatpush1.bf16.msra.mxu0 %v1154
    %5333 = vmatprep.mubr.bf16.mxu0 %v5019
    %5334 = vmatmul.mubr.bf16.gmra.mrb[0].mxu0 %v5015
    %v5335 = vpop.f32.mrb[0].mxu0
    %v5336 = vadd.f32 %v5293, %v5335
    %v5337 = vpop.f32.mrb[0].mxu0
    %v5338 = vadd.f32 %v5295, %v5337
    %v5339 = vpop.f32.mrb[0].mxu0
    %v5340 = vadd.f32 %v5297, %v5339
    %v5341 = vpop.f32.mrb[0].mxu0
    %v5342 = vadd.f32 %v5299, %v5341
    %5343 = vdwg.mxu0
    %5344 = vmatprep.subr.bf16.mxu0 %v1163
    %5345 = vmatpush1.bf16.msra.mxu0 %v1162
    %5346 = vmatprep.subr.bf16.mxu0 %v1171
    %5347 = vmatpush1.bf16.msra.mxu0 %v1170
    %5348 = vmatprep.subr.bf16.mxu0 %v1179
    %5349 = vmatpush1.bf16.msra.mxu0 %v1178
    %5350 = vmatprep.subr.bf16.mxu0 %v1187
    %5351 = vmatpush1.bf16.msra.mxu0 %v1186
    %5352 = vmatprep.subr.bf16.mxu0 %v1195
    %5353 = vmatpush1.bf16.msra.mxu0 %v1194
    %5354 = vmatprep.subr.bf16.mxu0 %v1203
    %5355 = vmatpush1.bf16.msra.mxu0 %v1202
    %5356 = vmatprep.subr.bf16.mxu0 %v1211
    %5357 = vmatpush1.bf16.msra.mxu0 %v1210
    %5358 = vmatprep.subr.bf16.mxu0 %v1219
    %5359 = vmatpush1.bf16.msra.mxu0 %v1218
    %5360 = vmatprep.subr.bf16.mxu0 %v1227
    %5361 = vmatpush1.bf16.msra.mxu0 %v1226
    %5362 = vmatprep.subr.bf16.mxu0 %v1235
    %5363 = vmatpush1.bf16.msra.mxu0 %v1234
    %5364 = vmatprep.subr.bf16.mxu0 %v1243
    %5365 = vmatpush1.bf16.msra.mxu0 %v1242
    %5366 = vmatprep.subr.bf16.mxu0 %v1251
    %5367 = vmatpush1.bf16.msra.mxu0 %v1250
    %5368 = vmatprep.subr.bf16.mxu0 %v1259
    %5369 = vmatpush1.bf16.msra.mxu0 %v1258
    %5370 = vmatprep.subr.bf16.mxu0 %v1267
    %5371 = vmatpush1.bf16.msra.mxu0 %v1266
    %5372 = vmatprep.subr.bf16.mxu0 %v1275
    %5373 = vmatpush1.bf16.msra.mxu0 %v1274
    %5374 = vmatprep.subr.bf16.mxu0 %v1283
    %5375 = vmatpush1.bf16.msra.mxu0 %v1282
    %5376 = vmatprep.mubr.bf16.mxu0 %v5152
    %5377 = vmatmul.mubr.bf16.gmra.mrb[0].mxu0 %v5148
    %v5378 = vpop.f32.mrb[0].mxu0
    %v5379 = vadd.f32 %v5336, %v5378
    %v5380 = vpop.f32.mrb[0].mxu0
    %v5381 = vadd.f32 %v5338, %v5380
    %v5382 = vpop.f32.mrb[0].mxu0
    %v5383 = vadd.f32 %v5340, %v5382
    %v5384 = vpop.f32.mrb[0].mxu0
    %v5385 = vadd.f32 %v5342, %v5384
    %5386 = vdwg.mxu0
    %5387 = vmatprep.subr.bf16.mxu0 %v1291
    %5388 = vmatpush1.bf16.msra.mxu0 %v1290
    %5389 = vmatprep.subr.bf16.mxu0 %v1299
    %5390 = vmatpush1.bf16.msra.mxu0 %v1298
    %5391 = vmatprep.subr.bf16.mxu0 %v1307
    %5392 = vmatpush1.bf16.msra.mxu0 %v1306
    %5393 = vmatprep.subr.bf16.mxu0 %v1315
    %5394 = vmatpush1.bf16.msra.mxu0 %v1314
    %5395 = vmatprep.subr.bf16.mxu0 %v1323
    %5396 = vmatpush1.bf16.msra.mxu0 %v1322
    %5397 = vmatprep.subr.bf16.mxu0 %v1331
    %5398 = vmatpush1.bf16.msra.mxu0 %v1330
    %5399 = vmatprep.subr.bf16.mxu0 %v1339
    %5400 = vmatpush1.bf16.msra.mxu0 %v1338
    %5401 = vmatprep.subr.bf16.mxu0 %v1347
    %5402 = vmatpush1.bf16.msra.mxu0 %v1346
    %5403 = vmatprep.subr.bf16.mxu0 %v1355
    %5404 = vmatpush1.bf16.msra.mxu0 %v1354
    %5405 = vmatprep.subr.bf16.mxu0 %v1363
    %5406 = vmatpush1.bf16.msra.mxu0 %v1362
    %5407 = vmatprep.subr.bf16.mxu0 %v1371
    %5408 = vmatpush1.bf16.msra.mxu0 %v1370
    %5409 = vmatprep.subr.bf16.mxu0 %v1379
    %5410 = vmatpush1.bf16.msra.mxu0 %v1378
    %5411 = vmatprep.subr.bf16.mxu0 %v1387
    %5412 = vmatpush1.bf16.msra.mxu0 %v1386
    %5413 = vmatprep.subr.bf16.mxu0 %v1395
    %5414 = vmatpush1.bf16.msra.mxu0 %v1394
    %5415 = vmatprep.subr.bf16.mxu0 %v1403
    %5416 = vmatpush1.bf16.msra.mxu0 %v1402
    %5417 = vmatprep.subr.bf16.mxu0 %v1411
    %5418 = vmatpush1.bf16.msra.mxu0 %v1410
    %5419 = vmatprep.mubr.bf16.mxu0 %v5153
    %5420 = vmatmul.mubr.bf16.gmra.mrb[0].mxu0 %v5149
    %v5421 = vpop.f32.mrb[0].mxu0
    %v5422 = vadd.f32 %v5379, %v5421
    %v5423 = vpop.f32.mrb[0].mxu0
    %v5424 = vadd.f32 %v5381, %v5423
    %v5425 = vpop.f32.mrb[0].mxu0
    %v5426 = vadd.f32 %v5383, %v5425
    %v5427 = vpop.f32.mrb[0].mxu0
    %v5428 = vadd.f32 %v5385, %v5427
    %5429 = vdwg.mxu0
    %5430 = vmatprep.subr.bf16.mxu0 %v1419
    %5431 = vmatpush1.bf16.msra.mxu0 %v1418
    %5432 = vmatprep.subr.bf16.mxu0 %v1427
    %5433 = vmatpush1.bf16.msra.mxu0 %v1426
    %5434 = vmatprep.subr.bf16.mxu0 %v1435
    %5435 = vmatpush1.bf16.msra.mxu0 %v1434
    %5436 = vmatprep.subr.bf16.mxu0 %v1443
    %5437 = vmatpush1.bf16.msra.mxu0 %v1442
    %5438 = vmatprep.subr.bf16.mxu0 %v1451
    %5439 = vmatpush1.bf16.msra.mxu0 %v1450
    %5440 = vmatprep.subr.bf16.mxu0 %v1459
    %5441 = vmatpush1.bf16.msra.mxu0 %v1458
    %5442 = vmatprep.subr.bf16.mxu0 %v1467
    %5443 = vmatpush1.bf16.msra.mxu0 %v1466
    %5444 = vmatprep.subr.bf16.mxu0 %v1475
    %5445 = vmatpush1.bf16.msra.mxu0 %v1474
    %5446 = vmatprep.subr.bf16.mxu0 %v1483
    %5447 = vmatpush1.bf16.msra.mxu0 %v1482
    %5448 = vmatprep.subr.bf16.mxu0 %v1491
    %5449 = vmatpush1.bf16.msra.mxu0 %v1490
    %5450 = vmatprep.subr.bf16.mxu0 %v1499
    %5451 = vmatpush1.bf16.msra.mxu0 %v1498
    %5452 = vmatprep.subr.bf16.mxu0 %v1507
    %5453 = vmatpush1.bf16.msra.mxu0 %v1506
    %5454 = vmatprep.subr.bf16.mxu0 %v1515
    %5455 = vmatpush1.bf16.msra.mxu0 %v1514
    %5456 = vmatprep.subr.bf16.mxu0 %v1523
    %5457 = vmatpush1.bf16.msra.mxu0 %v1522
    %5458 = vmatprep.subr.bf16.mxu0 %v1531
    %5459 = vmatpush1.bf16.msra.mxu0 %v1530
    %5460 = vmatprep.subr.bf16.mxu0 %v1539
    %5461 = vmatpush1.bf16.msra.mxu0 %v1538
    %5462 = vmatprep.mubr.bf16.mxu0 %v5154
    %5463 = vmatmul.mubr.bf16.gmra.mrb[0].mxu0 %v5150
    %v5464 = vpop.f32.mrb[0].mxu0
    %v5465 = vadd.f32 %v5422, %v5464
    %v5466 = vpop.f32.mrb[0].mxu0
    %v5467 = vadd.f32 %v5424, %v5466
    %v5468 = vpop.f32.mrb[0].mxu0
    %v5469 = vadd.f32 %v5426, %v5468
    %v5470 = vpop.f32.mrb[0].mxu0
    %v5471 = vadd.f32 %v5428, %v5470
    %5472 = vdwg.mxu0
    %5473 = vmatprep.subr.bf16.mxu0 %v1547
    %5474 = vmatpush1.bf16.msra.mxu0 %v1546
    %5475 = vmatprep.subr.bf16.mxu0 %v1555
    %5476 = vmatpush1.bf16.msra.mxu0 %v1554
    %5477 = vmatprep.subr.bf16.mxu0 %v1563
    %5478 = vmatpush1.bf16.msra.mxu0 %v1562
    %5479 = vmatprep.subr.bf16.mxu0 %v1571
    %5480 = vmatpush1.bf16.msra.mxu0 %v1570
    %5481 = vmatprep.subr.bf16.mxu0 %v1579
    %5482 = vmatpush1.bf16.msra.mxu0 %v1578
    %5483 = vmatprep.subr.bf16.mxu0 %v1587
    %5484 = vmatpush1.bf16.msra.mxu0 %v1586
    %5485 = vmatprep.subr.bf16.mxu0 %v1595
    %5486 = vmatpush1.bf16.msra.mxu0 %v1594
    %5487 = vmatprep.subr.bf16.mxu0 %v1603
    %5488 = vmatpush1.bf16.msra.mxu0 %v1602
    %5489 = vmatprep.subr.bf16.mxu0 %v1611
    %5490 = vmatpush1.bf16.msra.mxu0 %v1610
    %5491 = vmatprep.subr.bf16.mxu0 %v1619
    %5492 = vmatpush1.bf16.msra.mxu0 %v1618
    %5493 = vmatprep.subr.bf16.mxu0 %v1627
    %5494 = vmatpush1.bf16.msra.mxu0 %v1626
    %5495 = vmatprep.subr.bf16.mxu0 %v1635
    %5496 = vmatpush1.bf16.msra.mxu0 %v1634
    %5497 = vmatprep.subr.bf16.mxu0 %v1643
    %5498 = vmatpush1.bf16.msra.mxu0 %v1642
    %5499 = vmatprep.subr.bf16.mxu0 %v1651
    %5500 = vmatpush1.bf16.msra.mxu0 %v1650
    %5501 = vmatprep.subr.bf16.mxu0 %v1659
    %5502 = vmatpush1.bf16.msra.mxu0 %v1658
    %5503 = vmatprep.subr.bf16.mxu0 %v1667
    %5504 = vmatpush1.bf16.msra.mxu0 %v1666
    %5505 = vmatprep.mubr.bf16.mxu0 %v5155
    %5506 = vmatmul.mubr.bf16.gmra.mrb[0].mxu0 %v5151
    %v5507 = vpop.f32.mrb[0].mxu0
    %v5508 = vadd.f32 %v5465, %v5507
    %v5509 = vpop.f32.mrb[0].mxu0
    %v5510 = vadd.f32 %v5467, %v5509
    %v5511 = vpop.f32.mrb[0].mxu0
    %v5512 = vadd.f32 %v5469, %v5511
    %v5513 = vpop.f32.mrb[0].mxu0
    %v5514 = vadd.f32 %v5471, %v5513
    %5515 = vdwg.mxu0
    %5516 = vmatprep.subr.bf16.mxu0 %v653
    %5517 = vmatpush1.bf16.msra.mxu0 %v652
    %5518 = vmatprep.subr.bf16.mxu0 %v661
    %5519 = vmatpush1.bf16.msra.mxu0 %v660
    %5520 = vmatprep.subr.bf16.mxu0 %v669
    %5521 = vmatpush1.bf16.msra.mxu0 %v668
    %5522 = vmatprep.subr.bf16.mxu0 %v677
    %5523 = vmatpush1.bf16.msra.mxu0 %v676
    %5524 = vmatprep.subr.bf16.mxu0 %v685
    %5525 = vmatpush1.bf16.msra.mxu0 %v684
    %5526 = vmatprep.subr.bf16.mxu0 %v693
    %5527 = vmatpush1.bf16.msra.mxu0 %v692
    %5528 = vmatprep.subr.bf16.mxu0 %v701
    %5529 = vmatpush1.bf16.msra.mxu0 %v700
    %5530 = vmatprep.subr.bf16.mxu0 %v709
    %5531 = vmatpush1.bf16.msra.mxu0 %v708
    %5532 = vmatprep.subr.bf16.mxu0 %v717
    %5533 = vmatpush1.bf16.msra.mxu0 %v716
    %5534 = vmatprep.subr.bf16.mxu0 %v725
    %5535 = vmatpush1.bf16.msra.mxu0 %v724
    %5536 = vmatprep.subr.bf16.mxu0 %v733
    %5537 = vmatpush1.bf16.msra.mxu0 %v732
    %5538 = vmatprep.subr.bf16.mxu0 %v741
    %5539 = vmatpush1.bf16.msra.mxu0 %v740
    %5540 = vmatprep.subr.bf16.mxu0 %v749
    %5541 = vmatpush1.bf16.msra.mxu0 %v748
    %5542 = vmatprep.subr.bf16.mxu0 %v757
    %5543 = vmatpush1.bf16.msra.mxu0 %v756
    %5544 = vmatprep.subr.bf16.mxu0 %v765
    %5545 = vmatpush1.bf16.msra.mxu0 %v764
    %5546 = vmatprep.subr.bf16.mxu0 %v773
    %5547 = vmatpush1.bf16.msra.mxu0 %v772
    %5548 = vmatprep.mubr.bf16.mxu0 %v5016
    %5549 = vmatmul.mubr.bf16.gmra.mrb[0].mxu0 %v5012
    %v5550 = vpop.f32.mrb[0].mxu0
    %v5551 = vadd.f32 0.0, %v5550
    %v5552 = vpop.f32.mrb[0].mxu0
    %v5553 = vadd.f32 0.0, %v5552
    %v5554 = vpop.f32.mrb[0].mxu0
    %v5555 = vadd.f32 0.0, %v5554
    %v5556 = vpop.f32.mrb[0].mxu0
    %v5557 = vadd.f32 0.0, %v5556
    %5558 = vdwg.mxu0
    %5559 = vmatprep.subr.bf16.mxu0 %v781
    %5560 = vmatpush1.bf16.msra.mxu0 %v780
    %5561 = vmatprep.subr.bf16.mxu0 %v789
    %5562 = vmatpush1.bf16.msra.mxu0 %v788
    %5563 = vmatprep.subr.bf16.mxu0 %v797
    %5564 = vmatpush1.bf16.msra.mxu0 %v796
    %5565 = vmatprep.subr.bf16.mxu0 %v805
    %5566 = vmatpush1.bf16.msra.mxu0 %v804
    %5567 = vmatprep.subr.bf16.mxu0 %v813
    %5568 = vmatpush1.bf16.msra.mxu0 %v812
    %5569 = vmatprep.subr.bf16.mxu0 %v821
    %5570 = vmatpush1.bf16.msra.mxu0 %v820
    %5571 = vmatprep.subr.bf16.mxu0 %v829
    %5572 = vmatpush1.bf16.msra.mxu0 %v828
    %5573 = vmatprep.subr.bf16.mxu0 %v837
    %5574 = vmatpush1.bf16.msra.mxu0 %v836
    %5575 = vmatprep.subr.bf16.mxu0 %v845
    %5576 = vmatpush1.bf16.msra.mxu0 %v844
    %5577 = vmatprep.subr.bf16.mxu0 %v853
    %5578 = vmatpush1.bf16.msra.mxu0 %v852
    %5579 = vmatprep.subr.bf16.mxu0 %v861
    %5580 = vmatpush1.bf16.msra.mxu0 %v860
    %5581 = vmatprep.subr.bf16.mxu0 %v869
    %5582 = vmatpush1.bf16.msra.mxu0 %v868
    %5583 = vmatprep.subr.bf16.mxu0 %v877
    %5584 = vmatpush1.bf16.msra.mxu0 %v876
    %5585 = vmatprep.subr.bf16.mxu0 %v885
    %5586 = vmatpush1.bf16.msra.mxu0 %v884
    %5587 = vmatprep.subr.bf16.mxu0 %v893
    %5588 = vmatpush1.bf16.msra.mxu0 %v892
    %5589 = vmatprep.subr.bf16.mxu0 %v901
    %5590 = vmatpush1.bf16.msra.mxu0 %v900
    %5591 = vmatprep.mubr.bf16.mxu0 %v5017
    %5592 = vmatmul.mubr.bf16.gmra.mrb[0].mxu0 %v5013
    %v5593 = vpop.f32.mrb[0].mxu0
    %v5594 = vadd.f32 %v5551, %v5593
    %v5595 = vpop.f32.mrb[0].mxu0
    %v5596 = vadd.f32 %v5553, %v5595
    %v5597 = vpop.f32.mrb[0].mxu0
    %v5598 = vadd.f32 %v5555, %v5597
    %v5599 = vpop.f32.mrb[0].mxu0
    %v5600 = vadd.f32 %v5557, %v5599
    %5601 = vdwg.mxu0
    %5602 = vmatprep.subr.bf16.mxu0 %v909
    %5603 = vmatpush1.bf16.msra.mxu0 %v908
    %5604 = vmatprep.subr.bf16.mxu0 %v917
    %5605 = vmatpush1.bf16.msra.mxu0 %v916
    %5606 = vmatprep.subr.bf16.mxu0 %v925
    %5607 = vmatpush1.bf16.msra.mxu0 %v924
    %5608 = vmatprep.subr.bf16.mxu0 %v933
    %5609 = vmatpush1.bf16.msra.mxu0 %v932
    %5610 = vmatprep.subr.bf16.mxu0 %v941
    %5611 = vmatpush1.bf16.msra.mxu0 %v940
    %5612 = vmatprep.subr.bf16.mxu0 %v949
    %5613 = vmatpush1.bf16.msra.mxu0 %v948
    %5614 = vmatprep.subr.bf16.mxu0 %v957
    %5615 = vmatpush1.bf16.msra.mxu0 %v956
    %5616 = vmatprep.subr.bf16.mxu0 %v965
    %5617 = vmatpush1.bf16.msra.mxu0 %v964
    %5618 = vmatprep.subr.bf16.mxu0 %v973
    %5619 = vmatpush1.bf16.msra.mxu0 %v972
    %5620 = vmatprep.subr.bf16.mxu0 %v981
    %5621 = vmatpush1.bf16.msra.mxu0 %v980
    %5622 = vmatprep.subr.bf16.mxu0 %v989
    %5623 = vmatpush1.bf16.msra.mxu0 %v988
    %5624 = vmatprep.subr.bf16.mxu0 %v997
    %5625 = vmatpush1.bf16.msra.mxu0 %v996
    %5626 = vmatprep.subr.bf16.mxu0 %v1005
    %5627 = vmatpush1.bf16.msra.mxu0 %v1004
    %5628 = vmatprep.subr.bf16.mxu0 %v1013
    %5629 = vmatpush1.bf16.msra.mxu0 %v1012
    %5630 = vmatprep.subr.bf16.mxu0 %v1021
    %5631 = vmatpush1.bf16.msra.mxu0 %v1020
    %5632 = vmatprep.subr.bf16.mxu0 %v1029
    %5633 = vmatpush1.bf16.msra.mxu0 %v1028
    %5634 = vmatprep.mubr.bf16.mxu0 %v5018
    %5635 = vmatmul.mubr.bf16.gmra.mrb[0].mxu0 %v5014
    %v5636 = vpop.f32.mrb[0].mxu0
    %v5637 = vadd.f32 %v5594, %v5636
    %v5638 = vpop.f32.mrb[0].mxu0
    %v5639 = vadd.f32 %v5596, %v5638
    %v5640 = vpop.f32.mrb[0].mxu0
    %v5641 = vadd.f32 %v5598, %v5640
    %v5642 = vpop.f32.mrb[0].mxu0
    %v5643 = vadd.f32 %v5600, %v5642
    %5644 = vdwg.mxu0
    %5645 = vmatprep.subr.bf16.mxu0 %v1037
    %5646 = vmatpush1.bf16.msra.mxu0 %v1036
    %5647 = vmatprep.subr.bf16.mxu0 %v1045
    %5648 = vmatpush1.bf16.msra.mxu0 %v1044
    %5649 = vmatprep.subr.bf16.mxu0 %v1053
    %5650 = vmatpush1.bf16.msra.mxu0 %v1052
    %5651 = vmatprep.subr.bf16.mxu0 %v1061
    %5652 = vmatpush1.bf16.msra.mxu0 %v1060
    %5653 = vmatprep.subr.bf16.mxu0 %v1069
    %5654 = vmatpush1.bf16.msra.mxu0 %v1068
    %5655 = vmatprep.subr.bf16.mxu0 %v1077
    %5656 = vmatpush1.bf16.msra.mxu0 %v1076
    %5657 = vmatprep.subr.bf16.mxu0 %v1085
    %5658 = vmatpush1.bf16.msra.mxu0 %v1084
    %5659 = vmatprep.subr.bf16.mxu0 %v1093
    %5660 = vmatpush1.bf16.msra.mxu0 %v1092
    %5661 = vmatprep.subr.bf16.mxu0 %v1101
    %5662 = vmatpush1.bf16.msra.mxu0 %v1100
    %5663 = vmatprep.subr.bf16.mxu0 %v1109
    %5664 = vmatpush1.bf16.msra.mxu0 %v1108
    %5665 = vmatprep.subr.bf16.mxu0 %v1117
    %5666 = vmatpush1.bf16.msra.mxu0 %v1116
    %5667 = vmatprep.subr.bf16.mxu0 %v1125
    %5668 = vmatpush1.bf16.msra.mxu0 %v1124
    %5669 = vmatprep.subr.bf16.mxu0 %v1133
    %5670 = vmatpush1.bf16.msra.mxu0 %v1132
    %5671 = vmatprep.subr.bf16.mxu0 %v1141
    %5672 = vmatpush1.bf16.msra.mxu0 %v1140
    %5673 = vmatprep.subr.bf16.mxu0 %v1149
    %5674 = vmatpush1.bf16.msra.mxu0 %v1148
    %5675 = vmatprep.subr.bf16.mxu0 %v1157
    %5676 = vmatpush1.bf16.msra.mxu0 %v1156
    %5677 = vmatprep.mubr.bf16.mxu0 %v5019
    %5678 = vmatmul.mubr.bf16.gmra.mrb[0].mxu0 %v5015
    %v5679 = vpop.f32.mrb[0].mxu0
    %v5680 = vadd.f32 %v5637, %v5679
    %v5681 = vpop.f32.mrb[0].mxu0
    %v5682 = vadd.f32 %v5639, %v5681
    %v5683 = vpop.f32.mrb[0].mxu0
    %v5684 = vadd.f32 %v5641, %v5683
    %v5685 = vpop.f32.mrb[0].mxu0
    %v5686 = vadd.f32 %v5643, %v5685
    %5687 = vdwg.mxu0
    %5688 = vmatprep.subr.bf16.mxu0 %v1165
    %5689 = vmatpush1.bf16.msra.mxu0 %v1164
    %5690 = vmatprep.subr.bf16.mxu0 %v1173
    %5691 = vmatpush1.bf16.msra.mxu0 %v1172
    %5692 = vmatprep.subr.bf16.mxu0 %v1181
    %5693 = vmatpush1.bf16.msra.mxu0 %v1180
    %5694 = vmatprep.subr.bf16.mxu0 %v1189
    %5695 = vmatpush1.bf16.msra.mxu0 %v1188
    %5696 = vmatprep.subr.bf16.mxu0 %v1197
    %5697 = vmatpush1.bf16.msra.mxu0 %v1196
    %5698 = vmatprep.subr.bf16.mxu0 %v1205
    %5699 = vmatpush1.bf16.msra.mxu0 %v1204
    %5700 = vmatprep.subr.bf16.mxu0 %v1213
    %5701 = vmatpush1.bf16.msra.mxu0 %v1212
    %5702 = vmatprep.subr.bf16.mxu0 %v1221
    %5703 = vmatpush1.bf16.msra.mxu0 %v1220
    %5704 = vmatprep.subr.bf16.mxu0 %v1229
    %5705 = vmatpush1.bf16.msra.mxu0 %v1228
    %5706 = vmatprep.subr.bf16.mxu0 %v1237
    %5707 = vmatpush1.bf16.msra.mxu0 %v1236
    %5708 = vmatprep.subr.bf16.mxu0 %v1245
    %5709 = vmatpush1.bf16.msra.mxu0 %v1244
    %5710 = vmatprep.subr.bf16.mxu0 %v1253
    %5711 = vmatpush1.bf16.msra.mxu0 %v1252
    %5712 = vmatprep.subr.bf16.mxu0 %v1261
    %5713 = vmatpush1.bf16.msra.mxu0 %v1260
    %5714 = vmatprep.subr.bf16.mxu0 %v1269
    %5715 = vmatpush1.bf16.msra.mxu0 %v1268
    %5716 = vmatprep.subr.bf16.mxu0 %v1277
    %5717 = vmatpush1.bf16.msra.mxu0 %v1276
    %5718 = vmatprep.subr.bf16.mxu0 %v1285
    %5719 = vmatpush1.bf16.msra.mxu0 %v1284
    %5720 = vmatprep.mubr.bf16.mxu0 %v5152
    %5721 = vmatmul.mubr.bf16.gmra.mrb[0].mxu0 %v5148
    %v5722 = vpop.f32.mrb[0].mxu0
    %v5723 = vadd.f32 %v5680, %v5722
    %v5724 = vpop.f32.mrb[0].mxu0
    %v5725 = vadd.f32 %v5682, %v5724
    %v5726 = vpop.f32.mrb[0].mxu0
    %v5727 = vadd.f32 %v5684, %v5726
    %v5728 = vpop.f32.mrb[0].mxu0
    %v5729 = vadd.f32 %v5686, %v5728
    %5730 = vdwg.mxu0
    %5731 = vmatprep.subr.bf16.mxu0 %v1293
    %5732 = vmatpush1.bf16.msra.mxu0 %v1292
    %5733 = vmatprep.subr.bf16.mxu0 %v1301
    %5734 = vmatpush1.bf16.msra.mxu0 %v1300
    %5735 = vmatprep.subr.bf16.mxu0 %v1309
    %5736 = vmatpush1.bf16.msra.mxu0 %v1308
    %5737 = vmatprep.subr.bf16.mxu0 %v1317
    %5738 = vmatpush1.bf16.msra.mxu0 %v1316
    %5739 = vmatprep.subr.bf16.mxu0 %v1325
    %5740 = vmatpush1.bf16.msra.mxu0 %v1324
    %5741 = vmatprep.subr.bf16.mxu0 %v1333
    %5742 = vmatpush1.bf16.msra.mxu0 %v1332
    %5743 = vmatprep.subr.bf16.mxu0 %v1341
    %5744 = vmatpush1.bf16.msra.mxu0 %v1340
    %5745 = vmatprep.subr.bf16.mxu0 %v1349
    %5746 = vmatpush1.bf16.msra.mxu0 %v1348
    %5747 = vmatprep.subr.bf16.mxu0 %v1357
    %5748 = vmatpush1.bf16.msra.mxu0 %v1356
    %5749 = vmatprep.subr.bf16.mxu0 %v1365
    %5750 = vmatpush1.bf16.msra.mxu0 %v1364
    %5751 = vmatprep.subr.bf16.mxu0 %v1373
    %5752 = vmatpush1.bf16.msra.mxu0 %v1372
    %5753 = vmatprep.subr.bf16.mxu0 %v1381
    %5754 = vmatpush1.bf16.msra.mxu0 %v1380
    %5755 = vmatprep.subr.bf16.mxu0 %v1389
    %5756 = vmatpush1.bf16.msra.mxu0 %v1388
    %5757 = vmatprep.subr.bf16.mxu0 %v1397
    %5758 = vmatpush1.bf16.msra.mxu0 %v1396
    %5759 = vmatprep.subr.bf16.mxu0 %v1405
    %5760 = vmatpush1.bf16.msra.mxu0 %v1404
    %5761 = vmatprep.subr.bf16.mxu0 %v1413
    %5762 = vmatpush1.bf16.msra.mxu0 %v1412
    %5763 = vmatprep.mubr.bf16.mxu0 %v5153
    %5764 = vmatmul.mubr.bf16.gmra.mrb[0].mxu0 %v5149
    %v5765 = vpop.f32.mrb[0].mxu0
    %v5766 = vadd.f32 %v5723, %v5765
    %v5767 = vpop.f32.mrb[0].mxu0
    %v5768 = vadd.f32 %v5725, %v5767
    %v5769 = vpop.f32.mrb[0].mxu0
    %v5770 = vadd.f32 %v5727, %v5769
    %v5771 = vpop.f32.mrb[0].mxu0
    %v5772 = vadd.f32 %v5729, %v5771
    %5773 = vdwg.mxu0
    %5774 = vmatprep.subr.bf16.mxu0 %v1421
    %5775 = vmatpush1.bf16.msra.mxu0 %v1420
    %5776 = vmatprep.subr.bf16.mxu0 %v1429
    %5777 = vmatpush1.bf16.msra.mxu0 %v1428
    %5778 = vmatprep.subr.bf16.mxu0 %v1437
    %5779 = vmatpush1.bf16.msra.mxu0 %v1436
    %5780 = vmatprep.subr.bf16.mxu0 %v1445
    %5781 = vmatpush1.bf16.msra.mxu0 %v1444
    %5782 = vmatprep.subr.bf16.mxu0 %v1453
    %5783 = vmatpush1.bf16.msra.mxu0 %v1452
    %5784 = vmatprep.subr.bf16.mxu0 %v1461
    %5785 = vmatpush1.bf16.msra.mxu0 %v1460
    %5786 = vmatprep.subr.bf16.mxu0 %v1469
    %5787 = vmatpush1.bf16.msra.mxu0 %v1468
    %5788 = vmatprep.subr.bf16.mxu0 %v1477
    %5789 = vmatpush1.bf16.msra.mxu0 %v1476
    %5790 = vmatprep.subr.bf16.mxu0 %v1485
    %5791 = vmatpush1.bf16.msra.mxu0 %v1484
    %5792 = vmatprep.subr.bf16.mxu0 %v1493
    %5793 = vmatpush1.bf16.msra.mxu0 %v1492
    %5794 = vmatprep.subr.bf16.mxu0 %v1501
    %5795 = vmatpush1.bf16.msra.mxu0 %v1500
    %5796 = vmatprep.subr.bf16.mxu0 %v1509
    %5797 = vmatpush1.bf16.msra.mxu0 %v1508
    %5798 = vmatprep.subr.bf16.mxu0 %v1517
    %5799 = vmatpush1.bf16.msra.mxu0 %v1516
    %5800 = vmatprep.subr.bf16.mxu0 %v1525
    %5801 = vmatpush1.bf16.msra.mxu0 %v1524
    %5802 = vmatprep.subr.bf16.mxu0 %v1533
    %5803 = vmatpush1.bf16.msra.mxu0 %v1532
    %5804 = vmatprep.subr.bf16.mxu0 %v1541
    %5805 = vmatpush1.bf16.msra.mxu0 %v1540
    %5806 = vmatprep.mubr.bf16.mxu0 %v5154
    %5807 = vmatmul.mubr.bf16.gmra.mrb[0].mxu0 %v5150
    %v5808 = vpop.f32.mrb[0].mxu0
    %v5809 = vadd.f32 %v5766, %v5808
    %v5810 = vpop.f32.mrb[0].mxu0
    %v5811 = vadd.f32 %v5768, %v5810
    %v5812 = vpop.f32.mrb[0].mxu0
    %v5813 = vadd.f32 %v5770, %v5812
    %v5814 = vpop.f32.mrb[0].mxu0
    %v5815 = vadd.f32 %v5772, %v5814
    %5816 = vdwg.mxu0
    %5817 = vmatprep.subr.bf16.mxu0 %v1549
    %5818 = vmatpush1.bf16.msra.mxu0 %v1548
    %5819 = vmatprep.subr.bf16.mxu0 %v1557
    %5820 = vmatpush1.bf16.msra.mxu0 %v1556
    %5821 = vmatprep.subr.bf16.mxu0 %v1565
    %5822 = vmatpush1.bf16.msra.mxu0 %v1564
    %5823 = vmatprep.subr.bf16.mxu0 %v1573
    %5824 = vmatpush1.bf16.msra.mxu0 %v1572
    %5825 = vmatprep.subr.bf16.mxu0 %v1581
    %5826 = vmatpush1.bf16.msra.mxu0 %v1580
    %5827 = vmatprep.subr.bf16.mxu0 %v1589
    %5828 = vmatpush1.bf16.msra.mxu0 %v1588
    %5829 = vmatprep.subr.bf16.mxu0 %v1597
    %5830 = vmatpush1.bf16.msra.mxu0 %v1596
    %5831 = vmatprep.subr.bf16.mxu0 %v1605
    %5832 = vmatpush1.bf16.msra.mxu0 %v1604
    %5833 = vmatprep.subr.bf16.mxu0 %v1613
    %5834 = vmatpush1.bf16.msra.mxu0 %v1612
    %5835 = vmatprep.subr.bf16.mxu0 %v1621
    %5836 = vmatpush1.bf16.msra.mxu0 %v1620
    %5837 = vmatprep.subr.bf16.mxu0 %v1629
    %5838 = vmatpush1.bf16.msra.mxu0 %v1628
    %5839 = vmatprep.subr.bf16.mxu0 %v1637
    %5840 = vmatpush1.bf16.msra.mxu0 %v1636
    %5841 = vmatprep.subr.bf16.mxu0 %v1645
    %5842 = vmatpush1.bf16.msra.mxu0 %v1644
    %5843 = vmatprep.subr.bf16.mxu0 %v1653
    %5844 = vmatpush1.bf16.msra.mxu0 %v1652
    %5845 = vmatprep.subr.bf16.mxu0 %v1661
    %5846 = vmatpush1.bf16.msra.mxu0 %v1660
    %5847 = vmatprep.subr.bf16.mxu0 %v1669
    %5848 = vmatpush1.bf16.msra.mxu0 %v1668
    %5849 = vmatprep.mubr.bf16.mxu0 %v5155
    %5850 = vmatmul.mubr.bf16.gmra.mrb[0].mxu0 %v5151
    %v5851 = vpop.f32.mrb[0].mxu0
    %v5852 = vadd.f32 %v5809, %v5851
    %v5853 = vpop.f32.mrb[0].mxu0
    %v5854 = vadd.f32 %v5811, %v5853
    %v5855 = vpop.f32.mrb[0].mxu0
    %v5856 = vadd.f32 %v5813, %v5855
    %v5857 = vpop.f32.mrb[0].mxu0
    %v5858 = vadd.f32 %v5815, %v5857
    %5859 = vdwg.mxu0
    %5860 = vmatprep.subr.bf16.mxu0 %v655
    %5861 = vmatpush1.bf16.msra.mxu0 %v654
    %5862 = vmatprep.subr.bf16.mxu0 %v663
    %5863 = vmatpush1.bf16.msra.mxu0 %v662
    %5864 = vmatprep.subr.bf16.mxu0 %v671
    %5865 = vmatpush1.bf16.msra.mxu0 %v670
    %5866 = vmatprep.subr.bf16.mxu0 %v679
    %5867 = vmatpush1.bf16.msra.mxu0 %v678
    %5868 = vmatprep.subr.bf16.mxu0 %v687
    %5869 = vmatpush1.bf16.msra.mxu0 %v686
    %5870 = vmatprep.subr.bf16.mxu0 %v695
    %5871 = vmatpush1.bf16.msra.mxu0 %v694
    %5872 = vmatprep.subr.bf16.mxu0 %v703
    %5873 = vmatpush1.bf16.msra.mxu0 %v702
    %5874 = vmatprep.subr.bf16.mxu0 %v711
    %5875 = vmatpush1.bf16.msra.mxu0 %v710
    %5876 = vmatprep.subr.bf16.mxu0 %v719
    %5877 = vmatpush1.bf16.msra.mxu0 %v718
    %5878 = vmatprep.subr.bf16.mxu0 %v727
    %5879 = vmatpush1.bf16.msra.mxu0 %v726
    %5880 = vmatprep.subr.bf16.mxu0 %v735
    %5881 = vmatpush1.bf16.msra.mxu0 %v734
    %5882 = vmatprep.subr.bf16.mxu0 %v743
    %5883 = vmatpush1.bf16.msra.mxu0 %v742
    %5884 = vmatprep.subr.bf16.mxu0 %v751
    %5885 = vmatpush1.bf16.msra.mxu0 %v750
    %5886 = vmatprep.subr.bf16.mxu0 %v759
    %5887 = vmatpush1.bf16.msra.mxu0 %v758
    %5888 = vmatprep.subr.bf16.mxu0 %v767
    %5889 = vmatpush1.bf16.msra.mxu0 %v766
    %5890 = vmatprep.subr.bf16.mxu0 %v775
    %5891 = vmatpush1.bf16.msra.mxu0 %v774
    %5892 = vmatprep.mubr.bf16.mxu0 %v5016
    %5893 = vmatmul.mubr.bf16.gmra.mrb[0].mxu0 %v5012
    %v5894 = vpop.f32.mrb[0].mxu0
    %v5895 = vadd.f32 0.0, %v5894
    %v5896 = vpop.f32.mrb[0].mxu0
    %v5897 = vadd.f32 0.0, %v5896
    %v5898 = vpop.f32.mrb[0].mxu0
    %v5899 = vadd.f32 0.0, %v5898
    %v5900 = vpop.f32.mrb[0].mxu0
    %v5901 = vadd.f32 0.0, %v5900
    %5902 = vdwg.mxu0
    %5903 = vmatprep.subr.bf16.mxu0 %v783
    %5904 = vmatpush1.bf16.msra.mxu0 %v782
    %5905 = vmatprep.subr.bf16.mxu0 %v791
    %5906 = vmatpush1.bf16.msra.mxu0 %v790
    %5907 = vmatprep.subr.bf16.mxu0 %v799
    %5908 = vmatpush1.bf16.msra.mxu0 %v798
    %5909 = vmatprep.subr.bf16.mxu0 %v807
    %5910 = vmatpush1.bf16.msra.mxu0 %v806
    %5911 = vmatprep.subr.bf16.mxu0 %v815
    %5912 = vmatpush1.bf16.msra.mxu0 %v814
    %5913 = vmatprep.subr.bf16.mxu0 %v823
    %5914 = vmatpush1.bf16.msra.mxu0 %v822
    %5915 = vmatprep.subr.bf16.mxu0 %v831
    %5916 = vmatpush1.bf16.msra.mxu0 %v830
    %5917 = vmatprep.subr.bf16.mxu0 %v839
    %5918 = vmatpush1.bf16.msra.mxu0 %v838
    %5919 = vmatprep.subr.bf16.mxu0 %v847
    %5920 = vmatpush1.bf16.msra.mxu0 %v846
    %5921 = vmatprep.subr.bf16.mxu0 %v855
    %5922 = vmatpush1.bf16.msra.mxu0 %v854
    %5923 = vmatprep.subr.bf16.mxu0 %v863
    %5924 = vmatpush1.bf16.msra.mxu0 %v862
    %5925 = vmatprep.subr.bf16.mxu0 %v871
    %5926 = vmatpush1.bf16.msra.mxu0 %v870
    %5927 = vmatprep.subr.bf16.mxu0 %v879
    %5928 = vmatpush1.bf16.msra.mxu0 %v878
    %5929 = vmatprep.subr.bf16.mxu0 %v887
    %5930 = vmatpush1.bf16.msra.mxu0 %v886
    %5931 = vmatprep.subr.bf16.mxu0 %v895
    %5932 = vmatpush1.bf16.msra.mxu0 %v894
    %5933 = vmatprep.subr.bf16.mxu0 %v903
    %5934 = vmatpush1.bf16.msra.mxu0 %v902
    %5935 = vmatprep.mubr.bf16.mxu0 %v5017
    %5936 = vmatmul.mubr.bf16.gmra.mrb[0].mxu0 %v5013
    %v5937 = vpop.f32.mrb[0].mxu0
    %v5938 = vadd.f32 %v5895, %v5937
    %v5939 = vpop.f32.mrb[0].mxu0
    %v5940 = vadd.f32 %v5897, %v5939
    %v5941 = vpop.f32.mrb[0].mxu0
    %v5942 = vadd.f32 %v5899, %v5941
    %v5943 = vpop.f32.mrb[0].mxu0
    %v5944 = vadd.f32 %v5901, %v5943
    %5945 = vdwg.mxu0
    %5946 = vmatprep.subr.bf16.mxu0 %v911
    %5947 = vmatpush1.bf16.msra.mxu0 %v910
    %5948 = vmatprep.subr.bf16.mxu0 %v919
    %5949 = vmatpush1.bf16.msra.mxu0 %v918
    %5950 = vmatprep.subr.bf16.mxu0 %v927
    %5951 = vmatpush1.bf16.msra.mxu0 %v926
    %5952 = vmatprep.subr.bf16.mxu0 %v935
    %5953 = vmatpush1.bf16.msra.mxu0 %v934
    %5954 = vmatprep.subr.bf16.mxu0 %v943
    %5955 = vmatpush1.bf16.msra.mxu0 %v942
    %5956 = vmatprep.subr.bf16.mxu0 %v951
    %5957 = vmatpush1.bf16.msra.mxu0 %v950
    %5958 = vmatprep.subr.bf16.mxu0 %v959
    %5959 = vmatpush1.bf16.msra.mxu0 %v958
    %5960 = vmatprep.subr.bf16.mxu0 %v967
    %5961 = vmatpush1.bf16.msra.mxu0 %v966
    %5962 = vmatprep.subr.bf16.mxu0 %v975
    %5963 = vmatpush1.bf16.msra.mxu0 %v974
    %5964 = vmatprep.subr.bf16.mxu0 %v983
    %5965 = vmatpush1.bf16.msra.mxu0 %v982
    %5966 = vmatprep.subr.bf16.mxu0 %v991
    %5967 = vmatpush1.bf16.msra.mxu0 %v990
    %5968 = vmatprep.subr.bf16.mxu0 %v999
    %5969 = vmatpush1.bf16.msra.mxu0 %v998
    %5970 = vmatprep.subr.bf16.mxu0 %v1007
    %5971 = vmatpush1.bf16.msra.mxu0 %v1006
    %5972 = vmatprep.subr.bf16.mxu0 %v1015
    %5973 = vmatpush1.bf16.msra.mxu0 %v1014
    %5974 = vmatprep.subr.bf16.mxu0 %v1023
    %5975 = vmatpush1.bf16.msra.mxu0 %v1022
    %5976 = vmatprep.subr.bf16.mxu0 %v1031
    %5977 = vmatpush1.bf16.msra.mxu0 %v1030
    %5978 = vmatprep.mubr.bf16.mxu0 %v5018
    %5979 = vmatmul.mubr.bf16.gmra.mrb[0].mxu0 %v5014
    %v5980 = vpop.f32.mrb[0].mxu0
    %v5981 = vadd.f32 %v5938, %v5980
    %v5982 = vpop.f32.mrb[0].mxu0
    %v5983 = vadd.f32 %v5940, %v5982
    %v5984 = vpop.f32.mrb[0].mxu0
    %v5985 = vadd.f32 %v5942, %v5984
    %v5986 = vpop.f32.mrb[0].mxu0
    %v5987 = vadd.f32 %v5944, %v5986
    %5988 = vdwg.mxu0
    %5989 = vmatprep.subr.bf16.mxu0 %v1039
    %5990 = vmatpush1.bf16.msra.mxu0 %v1038
    %5991 = vmatprep.subr.bf16.mxu0 %v1047
    %5992 = vmatpush1.bf16.msra.mxu0 %v1046
    %5993 = vmatprep.subr.bf16.mxu0 %v1055
    %5994 = vmatpush1.bf16.msra.mxu0 %v1054
    %5995 = vmatprep.subr.bf16.mxu0 %v1063
    %5996 = vmatpush1.bf16.msra.mxu0 %v1062
    %5997 = vmatprep.subr.bf16.mxu0 %v1071
    %5998 = vmatpush1.bf16.msra.mxu0 %v1070
    %5999 = vmatprep.subr.bf16.mxu0 %v1079
    %6000 = vmatpush1.bf16.msra.mxu0 %v1078
    %6001 = vmatprep.subr.bf16.mxu0 %v1087
    %6002 = vmatpush1.bf16.msra.mxu0 %v1086
    %6003 = vmatprep.subr.bf16.mxu0 %v1095
    %6004 = vmatpush1.bf16.msra.mxu0 %v1094
    %6005 = vmatprep.subr.bf16.mxu0 %v1103
    %6006 = vmatpush1.bf16.msra.mxu0 %v1102
    %6007 = vmatprep.subr.bf16.mxu0 %v1111
    %6008 = vmatpush1.bf16.msra.mxu0 %v1110
    %6009 = vmatprep.subr.bf16.mxu0 %v1119
    %6010 = vmatpush1.bf16.msra.mxu0 %v1118
    %6011 = vmatprep.subr.bf16.mxu0 %v1127
    %6012 = vmatpush1.bf16.msra.mxu0 %v1126
    %6013 = vmatprep.subr.bf16.mxu0 %v1135
    %6014 = vmatpush1.bf16.msra.mxu0 %v1134
    %6015 = vmatprep.subr.bf16.mxu0 %v1143
    %6016 = vmatpush1.bf16.msra.mxu0 %v1142
    %6017 = vmatprep.subr.bf16.mxu0 %v1151
    %6018 = vmatpush1.bf16.msra.mxu0 %v1150
    %6019 = vmatprep.subr.bf16.mxu0 %v1159
    %6020 = vmatpush1.bf16.msra.mxu0 %v1158
    %6021 = vmatprep.mubr.bf16.mxu0 %v5019
    %6022 = vmatmul.mubr.bf16.gmra.mrb[0].mxu0 %v5015
    %v6023 = vpop.f32.mrb[0].mxu0
    %v6024 = vadd.f32 %v5981, %v6023
    %v6025 = vpop.f32.mrb[0].mxu0
    %v6026 = vadd.f32 %v5983, %v6025
    %v6027 = vpop.f32.mrb[0].mxu0
    %v6028 = vadd.f32 %v5985, %v6027
    %v6029 = vpop.f32.mrb[0].mxu0
    %v6030 = vadd.f32 %v5987, %v6029
    %6031 = vdwg.mxu0
    %6032 = vmatprep.subr.bf16.mxu0 %v1167
    %6033 = vmatpush1.bf16.msra.mxu0 %v1166
    %6034 = vmatprep.subr.bf16.mxu0 %v1175
    %6035 = vmatpush1.bf16.msra.mxu0 %v1174
    %6036 = vmatprep.subr.bf16.mxu0 %v1183
    %6037 = vmatpush1.bf16.msra.mxu0 %v1182
    %6038 = vmatprep.subr.bf16.mxu0 %v1191
    %6039 = vmatpush1.bf16.msra.mxu0 %v1190
    %6040 = vmatprep.subr.bf16.mxu0 %v1199
    %6041 = vmatpush1.bf16.msra.mxu0 %v1198
    %6042 = vmatprep.subr.bf16.mxu0 %v1207
    %6043 = vmatpush1.bf16.msra.mxu0 %v1206
    %6044 = vmatprep.subr.bf16.mxu0 %v1215
    %6045 = vmatpush1.bf16.msra.mxu0 %v1214
    %6046 = vmatprep.subr.bf16.mxu0 %v1223
    %6047 = vmatpush1.bf16.msra.mxu0 %v1222
    %6048 = vmatprep.subr.bf16.mxu0 %v1231
    %6049 = vmatpush1.bf16.msra.mxu0 %v1230
    %6050 = vmatprep.subr.bf16.mxu0 %v1239
    %6051 = vmatpush1.bf16.msra.mxu0 %v1238
    %6052 = vmatprep.subr.bf16.mxu0 %v1247
    %6053 = vmatpush1.bf16.msra.mxu0 %v1246
    %6054 = vmatprep.subr.bf16.mxu0 %v1255
    %6055 = vmatpush1.bf16.msra.mxu0 %v1254
    %6056 = vmatprep.subr.bf16.mxu0 %v1263
    %6057 = vmatpush1.bf16.msra.mxu0 %v1262
    %6058 = vmatprep.subr.bf16.mxu0 %v1271
    %6059 = vmatpush1.bf16.msra.mxu0 %v1270
    %6060 = vmatprep.subr.bf16.mxu0 %v1279
    %6061 = vmatpush1.bf16.msra.mxu0 %v1278
    %6062 = vmatprep.subr.bf16.mxu0 %v1287
    %6063 = vmatpush1.bf16.msra.mxu0 %v1286
    %6064 = vmatprep.mubr.bf16.mxu0 %v5152
    %6065 = vmatmul.mubr.bf16.gmra.mrb[0].mxu0 %v5148
    %v6066 = vpop.f32.mrb[0].mxu0
    %v6067 = vadd.f32 %v6024, %v6066
    %v6068 = vpop.f32.mrb[0].mxu0
    %v6069 = vadd.f32 %v6026, %v6068
    %v6070 = vpop.f32.mrb[0].mxu0
    %v6071 = vadd.f32 %v6028, %v6070
    %v6072 = vpop.f32.mrb[0].mxu0
    %v6073 = vadd.f32 %v6030, %v6072
    %6074 = vdwg.mxu0
    %6075 = vmatprep.subr.bf16.mxu0 %v1295
    %6076 = vmatpush1.bf16.msra.mxu0 %v1294
    %6077 = vmatprep.subr.bf16.mxu0 %v1303
    %6078 = vmatpush1.bf16.msra.mxu0 %v1302
    %6079 = vmatprep.subr.bf16.mxu0 %v1311
    %6080 = vmatpush1.bf16.msra.mxu0 %v1310
    %6081 = vmatprep.subr.bf16.mxu0 %v1319
    %6082 = vmatpush1.bf16.msra.mxu0 %v1318
    %6083 = vmatprep.subr.bf16.mxu0 %v1327
    %6084 = vmatpush1.bf16.msra.mxu0 %v1326
    %6085 = vmatprep.subr.bf16.mxu0 %v1335
    %6086 = vmatpush1.bf16.msra.mxu0 %v1334
    %6087 = vmatprep.subr.bf16.mxu0 %v1343
    %6088 = vmatpush1.bf16.msra.mxu0 %v1342
    %6089 = vmatprep.subr.bf16.mxu0 %v1351
    %6090 = vmatpush1.bf16.msra.mxu0 %v1350
    %6091 = vmatprep.subr.bf16.mxu0 %v1359
    %6092 = vmatpush1.bf16.msra.mxu0 %v1358
    %6093 = vmatprep.subr.bf16.mxu0 %v1367
    %6094 = vmatpush1.bf16.msra.mxu0 %v1366
    %6095 = vmatprep.subr.bf16.mxu0 %v1375
    %6096 = vmatpush1.bf16.msra.mxu0 %v1374
    %6097 = vmatprep.subr.bf16.mxu0 %v1383
    %6098 = vmatpush1.bf16.msra.mxu0 %v1382
    %6099 = vmatprep.subr.bf16.mxu0 %v1391
    %6100 = vmatpush1.bf16.msra.mxu0 %v1390
    %6101 = vmatprep.subr.bf16.mxu0 %v1399
    %6102 = vmatpush1.bf16.msra.mxu0 %v1398
    %6103 = vmatprep.subr.bf16.mxu0 %v1407
    %6104 = vmatpush1.bf16.msra.mxu0 %v1406
    %6105 = vmatprep.subr.bf16.mxu0 %v1415
    %6106 = vmatpush1.bf16.msra.mxu0 %v1414
    %6107 = vmatprep.mubr.bf16.mxu0 %v5153
    %6108 = vmatmul.mubr.bf16.gmra.mrb[0].mxu0 %v5149
    %v6109 = vpop.f32.mrb[0].mxu0
    %v6110 = vadd.f32 %v6067, %v6109
    %v6111 = vpop.f32.mrb[0].mxu0
    %v6112 = vadd.f32 %v6069, %v6111
    %v6113 = vpop.f32.mrb[0].mxu0
    %v6114 = vadd.f32 %v6071, %v6113
    %v6115 = vpop.f32.mrb[0].mxu0
    %v6116 = vadd.f32 %v6073, %v6115
    %6117 = vdwg.mxu0
    %6118 = vmatprep.subr.bf16.mxu0 %v1423
    %6119 = vmatpush1.bf16.msra.mxu0 %v1422
    %6120 = vmatprep.subr.bf16.mxu0 %v1431
    %6121 = vmatpush1.bf16.msra.mxu0 %v1430
    %6122 = vmatprep.subr.bf16.mxu0 %v1439
    %6123 = vmatpush1.bf16.msra.mxu0 %v1438
    %6124 = vmatprep.subr.bf16.mxu0 %v1447
    %6125 = vmatpush1.bf16.msra.mxu0 %v1446
    %6126 = vmatprep.subr.bf16.mxu0 %v1455
    %6127 = vmatpush1.bf16.msra.mxu0 %v1454
    %6128 = vmatprep.subr.bf16.mxu0 %v1463
    %6129 = vmatpush1.bf16.msra.mxu0 %v1462
    %6130 = vmatprep.subr.bf16.mxu0 %v1471
    %6131 = vmatpush1.bf16.msra.mxu0 %v1470
    %6132 = vmatprep.subr.bf16.mxu0 %v1479
    %6133 = vmatpush1.bf16.msra.mxu0 %v1478
    %6134 = vmatprep.subr.bf16.mxu0 %v1487
    %6135 = vmatpush1.bf16.msra.mxu0 %v1486
    %6136 = vmatprep.subr.bf16.mxu0 %v1495
    %6137 = vmatpush1.bf16.msra.mxu0 %v1494
    %6138 = vmatprep.subr.bf16.mxu0 %v1503
    %6139 = vmatpush1.bf16.msra.mxu0 %v1502
    %6140 = vmatprep.subr.bf16.mxu0 %v1511
    %6141 = vmatpush1.bf16.msra.mxu0 %v1510
    %6142 = vmatprep.subr.bf16.mxu0 %v1519
    %6143 = vmatpush1.bf16.msra.mxu0 %v1518
    %6144 = vmatprep.subr.bf16.mxu0 %v1527
    %6145 = vmatpush1.bf16.msra.mxu0 %v1526
    %6146 = vmatprep.subr.bf16.mxu0 %v1535
    %6147 = vmatpush1.bf16.msra.mxu0 %v1534
    %6148 = vmatprep.subr.bf16.mxu0 %v1543
    %6149 = vmatpush1.bf16.msra.mxu0 %v1542
    %6150 = vmatprep.mubr.bf16.mxu0 %v5154
    %6151 = vmatmul.mubr.bf16.gmra.mrb[0].mxu0 %v5150
    %v6152 = vpop.f32.mrb[0].mxu0
    %v6153 = vadd.f32 %v6110, %v6152
    %v6154 = vpop.f32.mrb[0].mxu0
    %v6155 = vadd.f32 %v6112, %v6154
    %v6156 = vpop.f32.mrb[0].mxu0
    %v6157 = vadd.f32 %v6114, %v6156
    %v6158 = vpop.f32.mrb[0].mxu0
    %v6159 = vadd.f32 %v6116, %v6158
    %6160 = vdwg.mxu0
    %6161 = vmatprep.subr.bf16.mxu0 %v1551
    %6162 = vmatpush1.bf16.msra.mxu0 %v1550
    %6163 = vmatprep.subr.bf16.mxu0 %v1559
    %6164 = vmatpush1.bf16.msra.mxu0 %v1558
    %6165 = vmatprep.subr.bf16.mxu0 %v1567
    %6166 = vmatpush1.bf16.msra.mxu0 %v1566
    %6167 = vmatprep.subr.bf16.mxu0 %v1575
    %6168 = vmatpush1.bf16.msra.mxu0 %v1574
    %6169 = vmatprep.subr.bf16.mxu0 %v1583
    %6170 = vmatpush1.bf16.msra.mxu0 %v1582
    %6171 = vmatprep.subr.bf16.mxu0 %v1591
    %6172 = vmatpush1.bf16.msra.mxu0 %v1590
    %6173 = vmatprep.subr.bf16.mxu0 %v1599
    %6174 = vmatpush1.bf16.msra.mxu0 %v1598
    %6175 = vmatprep.subr.bf16.mxu0 %v1607
    %6176 = vmatpush1.bf16.msra.mxu0 %v1606
    %6177 = vmatprep.subr.bf16.mxu0 %v1615
    %6178 = vmatpush1.bf16.msra.mxu0 %v1614
    %6179 = vmatprep.subr.bf16.mxu0 %v1623
    %6180 = vmatpush1.bf16.msra.mxu0 %v1622
    %6181 = vmatprep.subr.bf16.mxu0 %v1631
    %6182 = vmatpush1.bf16.msra.mxu0 %v1630
    %6183 = vmatprep.subr.bf16.mxu0 %v1639
    %6184 = vmatpush1.bf16.msra.mxu0 %v1638
    %6185 = vmatprep.subr.bf16.mxu0 %v1647
    %6186 = vmatpush1.bf16.msra.mxu0 %v1646
    %6187 = vmatprep.subr.bf16.mxu0 %v1655
    %6188 = vmatpush1.bf16.msra.mxu0 %v1654
    %6189 = vmatprep.subr.bf16.mxu0 %v1663
    %6190 = vmatpush1.bf16.msra.mxu0 %v1662
    %6191 = vmatprep.subr.bf16.mxu0 %v1671
    %6192 = vmatpush1.bf16.msra.mxu0 %v1670
    %6193 = vmatprep.mubr.bf16.mxu0 %v5155
    %6194 = vmatmul.mubr.bf16.gmra.mrb[0].mxu0 %v5151
    %v6195 = vpop.f32.mrb[0].mxu0
    %v6196 = vadd.f32 %v6153, %v6195
    %v6197 = vpop.f32.mrb[0].mxu0
    %v6198 = vadd.f32 %v6155, %v6197
    %v6199 = vpop.f32.mrb[0].mxu0
    %v6200 = vadd.f32 %v6157, %v6199
    %v6201 = vpop.f32.mrb[0].mxu0
    %v6202 = vadd.f32 %v6159, %v6201
    %6203 = vdwg.mxu0
    %6204 = vmatprep.subr.bf16.mxu0 %v657
    %6205 = vmatpush1.bf16.msra.mxu0 %v656
    %6206 = vmatprep.subr.bf16.mxu0 %v665
    %6207 = vmatpush1.bf16.msra.mxu0 %v664
    %6208 = vmatprep.subr.bf16.mxu0 %v673
    %6209 = vmatpush1.bf16.msra.mxu0 %v672
    %6210 = vmatprep.subr.bf16.mxu0 %v681
    %6211 = vmatpush1.bf16.msra.mxu0 %v680
    %6212 = vmatprep.subr.bf16.mxu0 %v689
    %6213 = vmatpush1.bf16.msra.mxu0 %v688
    %6214 = vmatprep.subr.bf16.mxu0 %v697
    %6215 = vmatpush1.bf16.msra.mxu0 %v696
    %6216 = vmatprep.subr.bf16.mxu0 %v705
    %6217 = vmatpush1.bf16.msra.mxu0 %v704
    %6218 = vmatprep.subr.bf16.mxu0 %v713
    %6219 = vmatpush1.bf16.msra.mxu0 %v712
    %6220 = vmatprep.subr.bf16.mxu0 %v721
    %6221 = vmatpush1.bf16.msra.mxu0 %v720
    %6222 = vmatprep.subr.bf16.mxu0 %v729
    %6223 = vmatpush1.bf16.msra.mxu0 %v728
    %6224 = vmatprep.subr.bf16.mxu0 %v737
    %6225 = vmatpush1.bf16.msra.mxu0 %v736
    %6226 = vmatprep.subr.bf16.mxu0 %v745
    %6227 = vmatpush1.bf16.msra.mxu0 %v744
    %6228 = vmatprep.subr.bf16.mxu0 %v753
    %6229 = vmatpush1.bf16.msra.mxu0 %v752
    %6230 = vmatprep.subr.bf16.mxu0 %v761
    %6231 = vmatpush1.bf16.msra.mxu0 %v760
    %6232 = vmatprep.subr.bf16.mxu0 %v769
    %6233 = vmatpush1.bf16.msra.mxu0 %v768
    %6234 = vmatprep.subr.bf16.mxu0 %v777
    %6235 = vmatpush1.bf16.msra.mxu0 %v776
    %6236 = vmatprep.mubr.bf16.mxu0 %v5016
    %6237 = vmatmul.mubr.bf16.gmra.mrb[0].mxu0 %v5012
    %v6238 = vpop.f32.mrb[0].mxu0
    %v6239 = vadd.f32 0.0, %v6238
    %v6240 = vpop.f32.mrb[0].mxu0
    %v6241 = vadd.f32 0.0, %v6240
    %v6242 = vpop.f32.mrb[0].mxu0
    %v6243 = vadd.f32 0.0, %v6242
    %v6244 = vpop.f32.mrb[0].mxu0
    %v6245 = vadd.f32 0.0, %v6244
    %6246 = vdwg.mxu0
    %6247 = vmatprep.subr.bf16.mxu0 %v785
    %6248 = vmatpush1.bf16.msra.mxu0 %v784
    %6249 = vmatprep.subr.bf16.mxu0 %v793
    %6250 = vmatpush1.bf16.msra.mxu0 %v792
    %6251 = vmatprep.subr.bf16.mxu0 %v801
    %6252 = vmatpush1.bf16.msra.mxu0 %v800
    %6253 = vmatprep.subr.bf16.mxu0 %v809
    %6254 = vmatpush1.bf16.msra.mxu0 %v808
    %6255 = vmatprep.subr.bf16.mxu0 %v817
    %6256 = vmatpush1.bf16.msra.mxu0 %v816
    %6257 = vmatprep.subr.bf16.mxu0 %v825
    %6258 = vmatpush1.bf16.msra.mxu0 %v824
    %6259 = vmatprep.subr.bf16.mxu0 %v833
    %6260 = vmatpush1.bf16.msra.mxu0 %v832
    %6261 = vmatprep.subr.bf16.mxu0 %v841
    %6262 = vmatpush1.bf16.msra.mxu0 %v840
    %6263 = vmatprep.subr.bf16.mxu0 %v849
    %6264 = vmatpush1.bf16.msra.mxu0 %v848
    %6265 = vmatprep.subr.bf16.mxu0 %v857
    %6266 = vmatpush1.bf16.msra.mxu0 %v856
    %6267 = vmatprep.subr.bf16.mxu0 %v865
    %6268 = vmatpush1.bf16.msra.mxu0 %v864
    %6269 = vmatprep.subr.bf16.mxu0 %v873
    %6270 = vmatpush1.bf16.msra.mxu0 %v872
    %6271 = vmatprep.subr.bf16.mxu0 %v881
    %6272 = vmatpush1.bf16.msra.mxu0 %v880
    %6273 = vmatprep.subr.bf16.mxu0 %v889
    %6274 = vmatpush1.bf16.msra.mxu0 %v888
    %6275 = vmatprep.subr.bf16.mxu0 %v897
    %6276 = vmatpush1.bf16.msra.mxu0 %v896
    %6277 = vmatprep.subr.bf16.mxu0 %v905
    %6278 = vmatpush1.bf16.msra.mxu0 %v904
    %6279 = vmatprep.mubr.bf16.mxu0 %v5017
    %6280 = vmatmul.mubr.bf16.gmra.mrb[0].mxu0 %v5013
    %v6281 = vpop.f32.mrb[0].mxu0
    %v6282 = vadd.f32 %v6239, %v6281
    %v6283 = vpop.f32.mrb[0].mxu0
    %v6284 = vadd.f32 %v6241, %v6283
    %v6285 = vpop.f32.mrb[0].mxu0
    %v6286 = vadd.f32 %v6243, %v6285
    %v6287 = vpop.f32.mrb[0].mxu0
    %v6288 = vadd.f32 %v6245, %v6287
    %6289 = vdwg.mxu0
    %6290 = vmatprep.subr.bf16.mxu0 %v913
    %6291 = vmatpush1.bf16.msra.mxu0 %v912
    %6292 = vmatprep.subr.bf16.mxu0 %v921
    %6293 = vmatpush1.bf16.msra.mxu0 %v920
    %6294 = vmatprep.subr.bf16.mxu0 %v929
    %6295 = vmatpush1.bf16.msra.mxu0 %v928
    %6296 = vmatprep.subr.bf16.mxu0 %v937
    %6297 = vmatpush1.bf16.msra.mxu0 %v936
    %6298 = vmatprep.subr.bf16.mxu0 %v945
    %6299 = vmatpush1.bf16.msra.mxu0 %v944
    %6300 = vmatprep.subr.bf16.mxu0 %v953
    %6301 = vmatpush1.bf16.msra.mxu0 %v952
    %6302 = vmatprep.subr.bf16.mxu0 %v961
    %6303 = vmatpush1.bf16.msra.mxu0 %v960
    %6304 = vmatprep.subr.bf16.mxu0 %v969
    %6305 = vmatpush1.bf16.msra.mxu0 %v968
    %6306 = vmatprep.subr.bf16.mxu0 %v977
    %6307 = vmatpush1.bf16.msra.mxu0 %v976
    %6308 = vmatprep.subr.bf16.mxu0 %v985
    %6309 = vmatpush1.bf16.msra.mxu0 %v984
    %6310 = vmatprep.subr.bf16.mxu0 %v993
    %6311 = vmatpush1.bf16.msra.mxu0 %v992
    %6312 = vmatprep.subr.bf16.mxu0 %v1001
    %6313 = vmatpush1.bf16.msra.mxu0 %v1000
    %6314 = vmatprep.subr.bf16.mxu0 %v1009
    %6315 = vmatpush1.bf16.msra.mxu0 %v1008
    %6316 = vmatprep.subr.bf16.mxu0 %v1017
    %6317 = vmatpush1.bf16.msra.mxu0 %v1016
    %6318 = vmatprep.subr.bf16.mxu0 %v1025
    %6319 = vmatpush1.bf16.msra.mxu0 %v1024
    %6320 = vmatprep.subr.bf16.mxu0 %v1033
    %6321 = vmatpush1.bf16.msra.mxu0 %v1032
    %6322 = vmatprep.mubr.bf16.mxu0 %v5018
    %6323 = vmatmul.mubr.bf16.gmra.mrb[0].mxu0 %v5014
    %v6324 = vpop.f32.mrb[0].mxu0
    %v6325 = vadd.f32 %v6282, %v6324
    %v6326 = vpop.f32.mrb[0].mxu0
    %v6327 = vadd.f32 %v6284, %v6326
    %v6328 = vpop.f32.mrb[0].mxu0
    %v6329 = vadd.f32 %v6286, %v6328
    %v6330 = vpop.f32.mrb[0].mxu0
    %v6331 = vadd.f32 %v6288, %v6330
    %6332 = vdwg.mxu0
    %6333 = vmatprep.subr.bf16.mxu0 %v1041
    %6334 = vmatpush1.bf16.msra.mxu0 %v1040
    %6335 = vmatprep.subr.bf16.mxu0 %v1049
    %6336 = vmatpush1.bf16.msra.mxu0 %v1048
    %6337 = vmatprep.subr.bf16.mxu0 %v1057
    %6338 = vmatpush1.bf16.msra.mxu0 %v1056
    %6339 = vmatprep.subr.bf16.mxu0 %v1065
    %6340 = vmatpush1.bf16.msra.mxu0 %v1064
    %6341 = vmatprep.subr.bf16.mxu0 %v1073
    %6342 = vmatpush1.bf16.msra.mxu0 %v1072
    %6343 = vmatprep.subr.bf16.mxu0 %v1081
    %6344 = vmatpush1.bf16.msra.mxu0 %v1080
    %6345 = vmatprep.subr.bf16.mxu0 %v1089
    %6346 = vmatpush1.bf16.msra.mxu0 %v1088
    %6347 = vmatprep.subr.bf16.mxu0 %v1097
    %6348 = vmatpush1.bf16.msra.mxu0 %v1096
    %6349 = vmatprep.subr.bf16.mxu0 %v1105
    %6350 = vmatpush1.bf16.msra.mxu0 %v1104
    %6351 = vmatprep.subr.bf16.mxu0 %v1113
    %6352 = vmatpush1.bf16.msra.mxu0 %v1112
    %6353 = vmatprep.subr.bf16.mxu0 %v1121
    %6354 = vmatpush1.bf16.msra.mxu0 %v1120
    %6355 = vmatprep.subr.bf16.mxu0 %v1129
    %6356 = vmatpush1.bf16.msra.mxu0 %v1128
    %6357 = vmatprep.subr.bf16.mxu0 %v1137
    %6358 = vmatpush1.bf16.msra.mxu0 %v1136
    %6359 = vmatprep.subr.bf16.mxu0 %v1145
    %6360 = vmatpush1.bf16.msra.mxu0 %v1144
    %6361 = vmatprep.subr.bf16.mxu0 %v1153
    %6362 = vmatpush1.bf16.msra.mxu0 %v1152
    %6363 = vmatprep.subr.bf16.mxu0 %v1161
    %6364 = vmatpush1.bf16.msra.mxu0 %v1160
    %6365 = vmatprep.mubr.bf16.mxu0 %v5019
    %6366 = vmatmul.mubr.bf16.gmra.mrb[0].mxu0 %v5015
    %v6367 = vpop.f32.mrb[0].mxu0
    %v6368 = vadd.f32 %v6325, %v6367
    %v6369 = vpop.f32.mrb[0].mxu0
    %v6370 = vadd.f32 %v6327, %v6369
    %v6371 = vpop.f32.mrb[0].mxu0
    %v6372 = vadd.f32 %v6329, %v6371
    %v6373 = vpop.f32.mrb[0].mxu0
    %v6374 = vadd.f32 %v6331, %v6373
    %6375 = vdwg.mxu0
    %6376 = vmatprep.subr.bf16.mxu0 %v1169
    %6377 = vmatpush1.bf16.msra.mxu0 %v1168
    %6378 = vmatprep.subr.bf16.mxu0 %v1177
    %6379 = vmatpush1.bf16.msra.mxu0 %v1176
    %6380 = vmatprep.subr.bf16.mxu0 %v1185
    %6381 = vmatpush1.bf16.msra.mxu0 %v1184
    %6382 = vmatprep.subr.bf16.mxu0 %v1193
    %6383 = vmatpush1.bf16.msra.mxu0 %v1192
    %6384 = vmatprep.subr.bf16.mxu0 %v1201
    %6385 = vmatpush1.bf16.msra.mxu0 %v1200
    %6386 = vmatprep.subr.bf16.mxu0 %v1209
    %6387 = vmatpush1.bf16.msra.mxu0 %v1208
    %6388 = vmatprep.subr.bf16.mxu0 %v1217
    %6389 = vmatpush1.bf16.msra.mxu0 %v1216
    %6390 = vmatprep.subr.bf16.mxu0 %v1225
    %6391 = vmatpush1.bf16.msra.mxu0 %v1224
    %6392 = vmatprep.subr.bf16.mxu0 %v1233
    %6393 = vmatpush1.bf16.msra.mxu0 %v1232
    %6394 = vmatprep.subr.bf16.mxu0 %v1241
    %6395 = vmatpush1.bf16.msra.mxu0 %v1240
    %6396 = vmatprep.subr.bf16.mxu0 %v1249
    %6397 = vmatpush1.bf16.msra.mxu0 %v1248
    %6398 = vmatprep.subr.bf16.mxu0 %v1257
    %6399 = vmatpush1.bf16.msra.mxu0 %v1256
    %6400 = vmatprep.subr.bf16.mxu0 %v1265
    %6401 = vmatpush1.bf16.msra.mxu0 %v1264
    %6402 = vmatprep.subr.bf16.mxu0 %v1273
    %6403 = vmatpush1.bf16.msra.mxu0 %v1272
    %6404 = vmatprep.subr.bf16.mxu0 %v1281
    %6405 = vmatpush1.bf16.msra.mxu0 %v1280
    %6406 = vmatprep.subr.bf16.mxu0 %v1289
    %6407 = vmatpush1.bf16.msra.mxu0 %v1288
    %6408 = vmatprep.mubr.bf16.mxu0 %v5152
    %6409 = vmatmul.mubr.bf16.gmra.mrb[0].mxu0 %v5148
    %v6410 = vpop.f32.mrb[0].mxu0
    %v6411 = vadd.f32 %v6368, %v6410
    %v6412 = vpop.f32.mrb[0].mxu0
    %v6413 = vadd.f32 %v6370, %v6412
    %v6414 = vpop.f32.mrb[0].mxu0
    %v6415 = vadd.f32 %v6372, %v6414
    %v6416 = vpop.f32.mrb[0].mxu0
    %v6417 = vadd.f32 %v6374, %v6416
    %6418 = vdwg.mxu0
    %6419 = vmatprep.subr.bf16.mxu0 %v1297
    %6420 = vmatpush1.bf16.msra.mxu0 %v1296
    %6421 = vmatprep.subr.bf16.mxu0 %v1305
    %6422 = vmatpush1.bf16.msra.mxu0 %v1304
    %6423 = vmatprep.subr.bf16.mxu0 %v1313
    %6424 = vmatpush1.bf16.msra.mxu0 %v1312
    %6425 = vmatprep.subr.bf16.mxu0 %v1321
    %6426 = vmatpush1.bf16.msra.mxu0 %v1320
    %6427 = vmatprep.subr.bf16.mxu0 %v1329
    %6428 = vmatpush1.bf16.msra.mxu0 %v1328
    %6429 = vmatprep.subr.bf16.mxu0 %v1337
    %6430 = vmatpush1.bf16.msra.mxu0 %v1336
    %6431 = vmatprep.subr.bf16.mxu0 %v1345
    %6432 = vmatpush1.bf16.msra.mxu0 %v1344
    %6433 = vmatprep.subr.bf16.mxu0 %v1353
    %6434 = vmatpush1.bf16.msra.mxu0 %v1352
    %6435 = vmatprep.subr.bf16.mxu0 %v1361
    %6436 = vmatpush1.bf16.msra.mxu0 %v1360
    %6437 = vmatprep.subr.bf16.mxu0 %v1369
    %6438 = vmatpush1.bf16.msra.mxu0 %v1368
    %6439 = vmatprep.subr.bf16.mxu0 %v1377
    %6440 = vmatpush1.bf16.msra.mxu0 %v1376
    %6441 = vmatprep.subr.bf16.mxu0 %v1385
    %6442 = vmatpush1.bf16.msra.mxu0 %v1384
    %6443 = vmatprep.subr.bf16.mxu0 %v1393
    %6444 = vmatpush1.bf16.msra.mxu0 %v1392
    %6445 = vmatprep.subr.bf16.mxu0 %v1401
    %6446 = vmatpush1.bf16.msra.mxu0 %v1400
    %6447 = vmatprep.subr.bf16.mxu0 %v1409
    %6448 = vmatpush1.bf16.msra.mxu0 %v1408
    %6449 = vmatprep.subr.bf16.mxu0 %v1417
    %6450 = vmatpush1.bf16.msra.mxu0 %v1416
    %6451 = vmatprep.mubr.bf16.mxu0 %v5153
    %6452 = vmatmul.mubr.bf16.gmra.mrb[0].mxu0 %v5149
    %v6453 = vpop.f32.mrb[0].mxu0
    %v6454 = vadd.f32 %v6411, %v6453
    %v6455 = vpop.f32.mrb[0].mxu0
    %v6456 = vadd.f32 %v6413, %v6455
    %v6457 = vpop.f32.mrb[0].mxu0
    %v6458 = vadd.f32 %v6415, %v6457
    %v6459 = vpop.f32.mrb[0].mxu0
    %v6460 = vadd.f32 %v6417, %v6459
    %6461 = vdwg.mxu0
    %6462 = vmatprep.subr.bf16.mxu0 %v1425
    %6463 = vmatpush1.bf16.msra.mxu0 %v1424
    %6464 = vmatprep.subr.bf16.mxu0 %v1433
    %6465 = vmatpush1.bf16.msra.mxu0 %v1432
    %6466 = vmatprep.subr.bf16.mxu0 %v1441
    %6467 = vmatpush1.bf16.msra.mxu0 %v1440
    %6468 = vmatprep.subr.bf16.mxu0 %v1449
    %6469 = vmatpush1.bf16.msra.mxu0 %v1448
    %6470 = vmatprep.subr.bf16.mxu0 %v1457
    %6471 = vmatpush1.bf16.msra.mxu0 %v1456
    %6472 = vmatprep.subr.bf16.mxu0 %v1465
    %6473 = vmatpush1.bf16.msra.mxu0 %v1464
    %6474 = vmatprep.subr.bf16.mxu0 %v1473
    %6475 = vmatpush1.bf16.msra.mxu0 %v1472
    %6476 = vmatprep.subr.bf16.mxu0 %v1481
    %6477 = vmatpush1.bf16.msra.mxu0 %v1480
    %6478 = vmatprep.subr.bf16.mxu0 %v1489
    %6479 = vmatpush1.bf16.msra.mxu0 %v1488
    %6480 = vmatprep.subr.bf16.mxu0 %v1497
    %6481 = vmatpush1.bf16.msra.mxu0 %v1496
    %6482 = vmatprep.subr.bf16.mxu0 %v1505
    %6483 = vmatpush1.bf16.msra.mxu0 %v1504
    %6484 = vmatprep.subr.bf16.mxu0 %v1513
    %6485 = vmatpush1.bf16.msra.mxu0 %v1512
    %6486 = vmatprep.subr.bf16.mxu0 %v1521
    %6487 = vmatpush1.bf16.msra.mxu0 %v1520
    %6488 = vmatprep.subr.bf16.mxu0 %v1529
    %6489 = vmatpush1.bf16.msra.mxu0 %v1528
    %6490 = vmatprep.subr.bf16.mxu0 %v1537
    %6491 = vmatpush1.bf16.msra.mxu0 %v1536
    %6492 = vmatprep.subr.bf16.mxu0 %v1545
    %6493 = vmatpush1.bf16.msra.mxu0 %v1544
    %6494 = vmatprep.mubr.bf16.mxu0 %v5154
    %6495 = vmatmul.mubr.bf16.gmra.mrb[0].mxu0 %v5150
    %v6496 = vpop.f32.mrb[0].mxu0
    %v6497 = vadd.f32 %v6454, %v6496
    %v6498 = vpop.f32.mrb[0].mxu0
    %v6499 = vadd.f32 %v6456, %v6498
    %v6500 = vpop.f32.mrb[0].mxu0
    %v6501 = vadd.f32 %v6458, %v6500
    %v6502 = vpop.f32.mrb[0].mxu0
    %v6503 = vadd.f32 %v6460, %v6502
    %6504 = vdwg.mxu0
    %6505 = vmatprep.subr.bf16.mxu0 %v1553
    %6506 = vmatpush1.bf16.msra.mxu0 %v1552
    %6507 = vmatprep.subr.bf16.mxu0 %v1561
    %6508 = vmatpush1.bf16.msra.mxu0 %v1560
    %6509 = vmatprep.subr.bf16.mxu0 %v1569
    %6510 = vmatpush1.bf16.msra.mxu0 %v1568
    %6511 = vmatprep.subr.bf16.mxu0 %v1577
    %6512 = vmatpush1.bf16.msra.mxu0 %v1576
    %6513 = vmatprep.subr.bf16.mxu0 %v1585
    %6514 = vmatpush1.bf16.msra.mxu0 %v1584
    %6515 = vmatprep.subr.bf16.mxu0 %v1593
    %6516 = vmatpush1.bf16.msra.mxu0 %v1592
    %6517 = vmatprep.subr.bf16.mxu0 %v1601
    %6518 = vmatpush1.bf16.msra.mxu0 %v1600
    %6519 = vmatprep.subr.bf16.mxu0 %v1609
    %6520 = vmatpush1.bf16.msra.mxu0 %v1608
    %6521 = vmatprep.subr.bf16.mxu0 %v1617
    %6522 = vmatpush1.bf16.msra.mxu0 %v1616
    %6523 = vmatprep.subr.bf16.mxu0 %v1625
    %6524 = vmatpush1.bf16.msra.mxu0 %v1624
    %6525 = vmatprep.subr.bf16.mxu0 %v1633
    %6526 = vmatpush1.bf16.msra.mxu0 %v1632
    %6527 = vmatprep.subr.bf16.mxu0 %v1641
    %6528 = vmatpush1.bf16.msra.mxu0 %v1640
    %6529 = vmatprep.subr.bf16.mxu0 %v1649
    %6530 = vmatpush1.bf16.msra.mxu0 %v1648
    %6531 = vmatprep.subr.bf16.mxu0 %v1657
    %6532 = vmatpush1.bf16.msra.mxu0 %v1656
    %6533 = vmatprep.subr.bf16.mxu0 %v1665
    %6534 = vmatpush1.bf16.msra.mxu0 %v1664
    %6535 = vmatprep.subr.bf16.mxu0 %v1673
    %6536 = vmatpush1.bf16.msra.mxu0 %v1672
    %6537 = vmatprep.mubr.bf16.mxu0 %v5155
    %6538 = vmatmul.mubr.bf16.gmra.mrb[0].mxu0 %v5151
    %v6539 = vpop.f32.mrb[0].mxu0
    %v6540 = vadd.f32 %v6497, %v6539
    %v6541 = vpop.f32.mrb[0].mxu0
    %v6542 = vadd.f32 %v6499, %v6541
    %v6543 = vpop.f32.mrb[0].mxu0
    %v6544 = vadd.f32 %v6501, %v6543
    %v6545 = vpop.f32.mrb[0].mxu0
    %v6546 = vadd.f32 %v6503, %v6545
    %6547 = vdwg.mxu0
    %v6548 = vld [vmem:[#allocation5] sm:$0xff]
    %v6550 = vlaneseq
    %v6551 = vshrl.u32 %v6550, 7
    %v6552 = vsub.s32 0, %v6551
    %v6553 = vrot.slane %v6548, %v6552
    %v6554 = vlaneseq
    %v6555 = vshrl.u32 %v6554, 7
    %v6556 = vsub.s32 1, %v6555
    %v6557 = vrot.slane %v6548, %v6556
    %v6558 = vlaneseq
    %v6559 = vshrl.u32 %v6558, 7
    %v6560 = vsub.s32 2, %v6559
    %v6561 = vrot.slane %v6548, %v6560
    %v6562 = vlaneseq
    %v6563 = vshrl.u32 %v6562, 7
    %v6564 = vsub.s32 3, %v6563
    %v6565 = vrot.slane %v6548, %v6564
    %v6566 = vlaneseq
    %v6567 = vshrl.u32 %v6566, 7
    %v6568 = vsub.s32 4, %v6567
    %v6569 = vrot.slane %v6548, %v6568
    %v6570 = vlaneseq
    %v6571 = vshrl.u32 %v6570, 7
    %v6572 = vsub.s32 5, %v6571
    %v6573 = vrot.slane %v6548, %v6572
    %v6574 = vlaneseq
    %v6575 = vshrl.u32 %v6574, 7
    %v6576 = vsub.s32 6, %v6575
    %v6577 = vrot.slane %v6548, %v6576
    %v6578 = vlaneseq
    %v6579 = vshrl.u32 %v6578, 7
    %v6580 = vsub.s32 7, %v6579
    %v6581 = vrot.slane %v6548, %v6580
    %v6590 = vmul.f32 %v5508, %v6553
    %v6591 = vmul.f32 %v5510, %v6557
    %v6592 = vmul.f32 %v5852, %v6561
    %v6593 = vmul.f32 %v5854, %v6565
    %v6594 = vmul.f32 %v6196, %v6569
    %v6595 = vmul.f32 %v6198, %v6573
    %v6596 = vmul.f32 %v6540, %v6577
    %v6597 = vmul.f32 %v6542, %v6581
    %v6598 = vmul.f32 %v5512, %v6553
    %v6599 = vmul.f32 %v5514, %v6557
    %v6600 = vmul.f32 %v5856, %v6561
    %v6601 = vmul.f32 %v5858, %v6565
    %v6602 = vmul.f32 %v6200, %v6569
    %v6603 = vmul.f32 %v6202, %v6573
    %v6604 = vmul.f32 %v6544, %v6577
    %v6605 = vmul.f32 %v6546, %v6581
    %v6606 = vld [vmem:[#allocation7] sm:$0xff]
    %v6608 = vlaneseq
    %v6609 = vshrl.u32 %v6608, 7
    %v6610 = vsub.s32 0, %v6609
    %v6611 = vrot.slane %v6606, %v6610
    %v6612 = vlaneseq
    %v6613 = vshrl.u32 %v6612, 7
    %v6614 = vsub.s32 1, %v6613
    %v6615 = vrot.slane %v6606, %v6614
    %v6616 = vlaneseq
    %v6617 = vshrl.u32 %v6616, 7
    %v6618 = vsub.s32 2, %v6617
    %v6619 = vrot.slane %v6606, %v6618
    %v6620 = vlaneseq
    %v6621 = vshrl.u32 %v6620, 7
    %v6622 = vsub.s32 3, %v6621
    %v6623 = vrot.slane %v6606, %v6622
    %v6624 = vlaneseq
    %v6625 = vshrl.u32 %v6624, 7
    %v6626 = vsub.s32 4, %v6625
    %v6627 = vrot.slane %v6606, %v6626
    %v6628 = vlaneseq
    %v6629 = vshrl.u32 %v6628, 7
    %v6630 = vsub.s32 5, %v6629
    %v6631 = vrot.slane %v6606, %v6630
    %v6632 = vlaneseq
    %v6633 = vshrl.u32 %v6632, 7
    %v6634 = vsub.s32 6, %v6633
    %v6635 = vrot.slane %v6606, %v6634
    %v6636 = vlaneseq
    %v6637 = vshrl.u32 %v6636, 7
    %v6638 = vsub.s32 7, %v6637
    %v6639 = vrot.slane %v6606, %v6638
    %v6648 = vadd.f32 %v6590, %v6611
    %v6649 = vadd.f32 %v6591, %v6615
    %v6650 = vadd.f32 %v6592, %v6619
    %v6651 = vadd.f32 %v6593, %v6623
    %v6652 = vadd.f32 %v6594, %v6627
    %v6653 = vadd.f32 %v6595, %v6631
    %v6654 = vadd.f32 %v6596, %v6635
    %v6655 = vadd.f32 %v6597, %v6639
    %v6656 = vadd.f32 %v6598, %v6611
    %v6657 = vadd.f32 %v6599, %v6615
    %v6658 = vadd.f32 %v6600, %v6619
    %v6659 = vadd.f32 %v6601, %v6623
    %v6660 = vadd.f32 %v6602, %v6627
    %v6661 = vadd.f32 %v6603, %v6631
    %v6662 = vadd.f32 %v6604, %v6635
    %v6663 = vadd.f32 %v6605, %v6639
    %v6664 = vmax.f32 %v6648, 0.0
    %v6665 = vmax.f32 %v6649, 0.0
    %v6666 = vmax.f32 %v6650, 0.0
    %v6667 = vmax.f32 %v6651, 0.0
    %v6668 = vmax.f32 %v6652, 0.0
    %v6669 = vmax.f32 %v6653, 0.0
    %v6670 = vmax.f32 %v6654, 0.0
    %v6671 = vmax.f32 %v6655, 0.0
    %v6672 = vmax.f32 %v6656, 0.0
    %v6673 = vmax.f32 %v6657, 0.0
    %v6674 = vmax.f32 %v6658, 0.0
    %v6675 = vmax.f32 %v6659, 0.0
    %v6676 = vmax.f32 %v6660, 0.0
    %v6677 = vmax.f32 %v6661, 0.0
    %v6678 = vmax.f32 %v6662, 0.0
    %v6679 = vmax.f32 %v6663, 0.0
    %v6680 = vpack.c.bf16 %v6672, %v6664
    %v6681 = vpack.c.bf16 %v6673, %v6665
    %v6682 = vpack.c.bf16 %v6674, %v6666
    %v6683 = vpack.c.bf16 %v6675, %v6667
    %v6684 = vpack.c.bf16 %v6676, %v6668
    %v6685 = vpack.c.bf16 %v6677, %v6669
    %v6686 = vpack.c.bf16 %v6678, %v6670
    %v6687 = vpack.c.bf16 %v6679, %v6671
    %6688 = vmatprep.subr.bf16.mxu0 %v1803
    %6689 = vmatpush1.bf16.msra.mxu0 %v1802
    %6690 = vmatprep.subr.bf16.mxu0 %v1807
    %6691 = vmatpush1.bf16.msra.mxu0 %v1806
    %6692 = vmatprep.subr.bf16.mxu0 %v1811
    %6693 = vmatpush1.bf16.msra.mxu0 %v1810
    %6694 = vmatprep.subr.bf16.mxu0 %v1815
    %6695 = vmatpush1.bf16.msra.mxu0 %v1814
    %6696 = vmatprep.subr.bf16.mxu0 %v1819
    %6697 = vmatpush1.bf16.msra.mxu0 %v1818
    %6698 = vmatprep.subr.bf16.mxu0 %v1823
    %6699 = vmatpush1.bf16.msra.mxu0 %v1822
    %6700 = vmatprep.subr.bf16.mxu0 %v1827
    %6701 = vmatpush1.bf16.msra.mxu0 %v1826
    %6702 = vmatprep.subr.bf16.mxu0 %v1831
    %6703 = vmatpush1.bf16.msra.mxu0 %v1830
    %6704 = vmatprep.subr.bf16.mxu0 %v1835
    %6705 = vmatpush1.bf16.msra.mxu0 %v1834
    %6706 = vmatprep.subr.bf16.mxu0 %v1839
    %6707 = vmatpush1.bf16.msra.mxu0 %v1838
    %6708 = vmatprep.subr.bf16.mxu0 %v1843
    %6709 = vmatpush1.bf16.msra.mxu0 %v1842
    %6710 = vmatprep.subr.bf16.mxu0 %v1847
    %6711 = vmatpush1.bf16.msra.mxu0 %v1846
    %6712 = vmatprep.subr.bf16.mxu0 %v1851
    %6713 = vmatpush1.bf16.msra.mxu0 %v1850
    %6714 = vmatprep.subr.bf16.mxu0 %v1855
    %6715 = vmatpush1.bf16.msra.mxu0 %v1854
    %6716 = vmatprep.subr.bf16.mxu0 %v1859
    %6717 = vmatpush1.bf16.msra.mxu0 %v1858
    %6718 = vmatprep.subr.bf16.mxu0 %v1863
    %6719 = vmatpush1.bf16.msra.mxu0 %v1862
    %6720 = vmatprep.mubr.bf16.mxu0 %v6681
    %6721 = vmatmul.mubr.bf16.gmra.mrb[0].mxu0 %v6680
    %v6722 = vpop.f32.mrb[0].mxu0
    %v6723 = vadd.f32 0.0, %v6722
    %v6724 = vpop.f32.mrb[0].mxu0
    %v6725 = vadd.f32 0.0, %v6724
    %v6726 = vpop.f32.mrb[0].mxu0
    %v6727 = vadd.f32 0.0, %v6726
    %v6728 = vpop.f32.mrb[0].mxu0
    %v6729 = vadd.f32 0.0, %v6728
    %6730 = vdwg.mxu0
    %6731 = vmatprep.subr.bf16.mxu0 %v1867
    %6732 = vmatpush1.bf16.msra.mxu0 %v1866
    %6733 = vmatprep.subr.bf16.mxu0 %v1871
    %6734 = vmatpush1.bf16.msra.mxu0 %v1870
    %6735 = vmatprep.subr.bf16.mxu0 %v1875
    %6736 = vmatpush1.bf16.msra.mxu0 %v1874
    %6737 = vmatprep.subr.bf16.mxu0 %v1879
    %6738 = vmatpush1.bf16.msra.mxu0 %v1878
    %6739 = vmatprep.subr.bf16.mxu0 %v1883
    %6740 = vmatpush1.bf16.msra.mxu0 %v1882
    %6741 = vmatprep.subr.bf16.mxu0 %v1887
    %6742 = vmatpush1.bf16.msra.mxu0 %v1886
    %6743 = vmatprep.subr.bf16.mxu0 %v1891
    %6744 = vmatpush1.bf16.msra.mxu0 %v1890
    %6745 = vmatprep.subr.bf16.mxu0 %v1895
    %6746 = vmatpush1.bf16.msra.mxu0 %v1894
    %6747 = vmatprep.subr.bf16.mxu0 %v1899
    %6748 = vmatpush1.bf16.msra.mxu0 %v1898
    %6749 = vmatprep.subr.bf16.mxu0 %v1903
    %6750 = vmatpush1.bf16.msra.mxu0 %v1902
    %6751 = vmatprep.subr.bf16.mxu0 %v1907
    %6752 = vmatpush1.bf16.msra.mxu0 %v1906
    %6753 = vmatprep.subr.bf16.mxu0 %v1911
    %6754 = vmatpush1.bf16.msra.mxu0 %v1910
    %6755 = vmatprep.subr.bf16.mxu0 %v1915
    %6756 = vmatpush1.bf16.msra.mxu0 %v1914
    %6757 = vmatprep.subr.bf16.mxu0 %v1919
    %6758 = vmatpush1.bf16.msra.mxu0 %v1918
    %6759 = vmatprep.subr.bf16.mxu0 %v1923
    %6760 = vmatpush1.bf16.msra.mxu0 %v1922
    %6761 = vmatprep.subr.bf16.mxu0 %v1927
    %6762 = vmatpush1.bf16.msra.mxu0 %v1926
    %6763 = vmatprep.mubr.bf16.mxu0 %v6683
    %6764 = vmatmul.mubr.bf16.gmra.mrb[0].mxu0 %v6682
    %v6765 = vpop.f32.mrb[0].mxu0
    %v6766 = vadd.f32 %v6723, %v6765
    %v6767 = vpop.f32.mrb[0].mxu0
    %v6768 = vadd.f32 %v6725, %v6767
    %v6769 = vpop.f32.mrb[0].mxu0
    %v6770 = vadd.f32 %v6727, %v6769
    %v6771 = vpop.f32.mrb[0].mxu0
    %v6772 = vadd.f32 %v6729, %v6771
    %6773 = vdwg.mxu0
    %6774 = vmatprep.subr.bf16.mxu0 %v1931
    %6775 = vmatpush1.bf16.msra.mxu0 %v1930
    %6776 = vmatprep.subr.bf16.mxu0 %v1935
    %6777 = vmatpush1.bf16.msra.mxu0 %v1934
    %6778 = vmatprep.subr.bf16.mxu0 %v1939
    %6779 = vmatpush1.bf16.msra.mxu0 %v1938
    %6780 = vmatprep.subr.bf16.mxu0 %v1943
    %6781 = vmatpush1.bf16.msra.mxu0 %v1942
    %6782 = vmatprep.subr.bf16.mxu0 %v1947
    %6783 = vmatpush1.bf16.msra.mxu0 %v1946
    %6784 = vmatprep.subr.bf16.mxu0 %v1951
    %6785 = vmatpush1.bf16.msra.mxu0 %v1950
    %6786 = vmatprep.subr.bf16.mxu0 %v1955
    %6787 = vmatpush1.bf16.msra.mxu0 %v1954
    %6788 = vmatprep.subr.bf16.mxu0 %v1959
    %6789 = vmatpush1.bf16.msra.mxu0 %v1958
    %6790 = vmatprep.subr.bf16.mxu0 %v1963
    %6791 = vmatpush1.bf16.msra.mxu0 %v1962
    %6792 = vmatprep.subr.bf16.mxu0 %v1967
    %6793 = vmatpush1.bf16.msra.mxu0 %v1966
    %6794 = vmatprep.subr.bf16.mxu0 %v1971
    %6795 = vmatpush1.bf16.msra.mxu0 %v1970
    %6796 = vmatprep.subr.bf16.mxu0 %v1975
    %6797 = vmatpush1.bf16.msra.mxu0 %v1974
    %6798 = vmatprep.subr.bf16.mxu0 %v1979
    %6799 = vmatpush1.bf16.msra.mxu0 %v1978
    %6800 = vmatprep.subr.bf16.mxu0 %v1983
    %6801 = vmatpush1.bf16.msra.mxu0 %v1982
    %6802 = vmatprep.subr.bf16.mxu0 %v1987
    %6803 = vmatpush1.bf16.msra.mxu0 %v1986
    %6804 = vmatprep.subr.bf16.mxu0 %v1991
    %6805 = vmatpush1.bf16.msra.mxu0 %v1990
    %6806 = vmatprep.mubr.bf16.mxu0 %v6685
    %6807 = vmatmul.mubr.bf16.gmra.mrb[0].mxu0 %v6684
    %v6808 = vpop.f32.mrb[0].mxu0
    %v6809 = vadd.f32 %v6766, %v6808
    %v6810 = vpop.f32.mrb[0].mxu0
    %v6811 = vadd.f32 %v6768, %v6810
    %v6812 = vpop.f32.mrb[0].mxu0
    %v6813 = vadd.f32 %v6770, %v6812
    %v6814 = vpop.f32.mrb[0].mxu0
    %v6815 = vadd.f32 %v6772, %v6814
    %6816 = vdwg.mxu0
    %6817 = vmatprep.subr.bf16.mxu0 %v1995
    %6818 = vmatpush1.bf16.msra.mxu0 %v1994
    %6819 = vmatprep.subr.bf16.mxu0 %v1999
    %6820 = vmatpush1.bf16.msra.mxu0 %v1998
    %6821 = vmatprep.subr.bf16.mxu0 %v2003
    %6822 = vmatpush1.bf16.msra.mxu0 %v2002
    %6823 = vmatprep.subr.bf16.mxu0 %v2007
    %6824 = vmatpush1.bf16.msra.mxu0 %v2006
    %6825 = vmatprep.subr.bf16.mxu0 %v2011
    %6826 = vmatpush1.bf16.msra.mxu0 %v2010
    %6827 = vmatprep.subr.bf16.mxu0 %v2015
    %6828 = vmatpush1.bf16.msra.mxu0 %v2014
    %6829 = vmatprep.subr.bf16.mxu0 %v2019
    %6830 = vmatpush1.bf16.msra.mxu0 %v2018
    %6831 = vmatprep.subr.bf16.mxu0 %v2023
    %6832 = vmatpush1.bf16.msra.mxu0 %v2022
    %6833 = vmatprep.subr.bf16.mxu0 %v2027
    %6834 = vmatpush1.bf16.msra.mxu0 %v2026
    %6835 = vmatprep.subr.bf16.mxu0 %v2031
    %6836 = vmatpush1.bf16.msra.mxu0 %v2030
    %6837 = vmatprep.subr.bf16.mxu0 %v2035
    %6838 = vmatpush1.bf16.msra.mxu0 %v2034
    %6839 = vmatprep.subr.bf16.mxu0 %v2039
    %6840 = vmatpush1.bf16.msra.mxu0 %v2038
    %6841 = vmatprep.subr.bf16.mxu0 %v2043
    %6842 = vmatpush1.bf16.msra.mxu0 %v2042
    %6843 = vmatprep.subr.bf16.mxu0 %v2047
    %6844 = vmatpush1.bf16.msra.mxu0 %v2046
    %6845 = vmatprep.subr.bf16.mxu0 %v2051
    %6846 = vmatpush1.bf16.msra.mxu0 %v2050
    %6847 = vmatprep.subr.bf16.mxu0 %v2055
    %6848 = vmatpush1.bf16.msra.mxu0 %v2054
    %6849 = vmatprep.mubr.bf16.mxu0 %v6687
    %6850 = vmatmul.mubr.bf16.gmra.mrb[0].mxu0 %v6686
    %v6851 = vpop.f32.mrb[0].mxu0
    %v6852 = vadd.f32 %v6809, %v6851
    %v6853 = vpop.f32.mrb[0].mxu0
    %v6854 = vadd.f32 %v6811, %v6853
    %v6855 = vpop.f32.mrb[0].mxu0
    %v6856 = vadd.f32 %v6813, %v6855
    %v6857 = vpop.f32.mrb[0].mxu0
    %v6858 = vadd.f32 %v6815, %v6857
    %6859 = vdwg.mxu0
    %6860 = vmatprep.subr.bf16.mxu0 %v1805
    %6861 = vmatpush1.bf16.msra.mxu0 %v1804
    %6862 = vmatprep.subr.bf16.mxu0 %v1809
    %6863 = vmatpush1.bf16.msra.mxu0 %v1808
    %6864 = vmatprep.subr.bf16.mxu0 %v1813
    %6865 = vmatpush1.bf16.msra.mxu0 %v1812
    %6866 = vmatprep.subr.bf16.mxu0 %v1817
    %6867 = vmatpush1.bf16.msra.mxu0 %v1816
    %6868 = vmatprep.subr.bf16.mxu0 %v1821
    %6869 = vmatpush1.bf16.msra.mxu0 %v1820
    %6870 = vmatprep.subr.bf16.mxu0 %v1825
    %6871 = vmatpush1.bf16.msra.mxu0 %v1824
    %6872 = vmatprep.subr.bf16.mxu0 %v1829
    %6873 = vmatpush1.bf16.msra.mxu0 %v1828
    %6874 = vmatprep.subr.bf16.mxu0 %v1833
    %6875 = vmatpush1.bf16.msra.mxu0 %v1832
    %6876 = vmatprep.subr.bf16.mxu0 %v1837
    %6877 = vmatpush1.bf16.msra.mxu0 %v1836
    %6878 = vmatprep.subr.bf16.mxu0 %v1841
    %6879 = vmatpush1.bf16.msra.mxu0 %v1840
    %6880 = vmatprep.subr.bf16.mxu0 %v1845
    %6881 = vmatpush1.bf16.msra.mxu0 %v1844
    %6882 = vmatprep.subr.bf16.mxu0 %v1849
    %6883 = vmatpush1.bf16.msra.mxu0 %v1848
    %6884 = vmatprep.subr.bf16.mxu0 %v1853
    %6885 = vmatpush1.bf16.msra.mxu0 %v1852
    %6886 = vmatprep.subr.bf16.mxu0 %v1857
    %6887 = vmatpush1.bf16.msra.mxu0 %v1856
    %6888 = vmatprep.subr.bf16.mxu0 %v1861
    %6889 = vmatpush1.bf16.msra.mxu0 %v1860
    %6890 = vmatprep.subr.bf16.mxu0 %v1865
    %6891 = vmatpush1.bf16.msra.mxu0 %v1864
    %6892 = vmatprep.mubr.bf16.mxu0 %v6681
    %6893 = vmatmul.mubr.bf16.gmra.mrb[0].mxu0 %v6680
    %v6894 = vpop.f32.mrb[0].mxu0
    %v6895 = vadd.f32 0.0, %v6894
    %v6896 = vpop.f32.mrb[0].mxu0
    %v6897 = vadd.f32 0.0, %v6896
    %v6898 = vpop.f32.mrb[0].mxu0
    %v6899 = vadd.f32 0.0, %v6898
    %v6900 = vpop.f32.mrb[0].mxu0
    %v6901 = vadd.f32 0.0, %v6900
    %6902 = vdwg.mxu0
    %6903 = vmatprep.subr.bf16.mxu0 %v1869
    %6904 = vmatpush1.bf16.msra.mxu0 %v1868
    %6905 = vmatprep.subr.bf16.mxu0 %v1873
    %6906 = vmatpush1.bf16.msra.mxu0 %v1872
    %6907 = vmatprep.subr.bf16.mxu0 %v1877
    %6908 = vmatpush1.bf16.msra.mxu0 %v1876
    %6909 = vmatprep.subr.bf16.mxu0 %v1881
    %6910 = vmatpush1.bf16.msra.mxu0 %v1880
    %6911 = vmatprep.subr.bf16.mxu0 %v1885
    %6912 = vmatpush1.bf16.msra.mxu0 %v1884
    %6913 = vmatprep.subr.bf16.mxu0 %v1889
    %6914 = vmatpush1.bf16.msra.mxu0 %v1888
    %6915 = vmatprep.subr.bf16.mxu0 %v1893
    %6916 = vmatpush1.bf16.msra.mxu0 %v1892
    %6917 = vmatprep.subr.bf16.mxu0 %v1897
    %6918 = vmatpush1.bf16.msra.mxu0 %v1896
    %6919 = vmatprep.subr.bf16.mxu0 %v1901
    %6920 = vmatpush1.bf16.msra.mxu0 %v1900
    %6921 = vmatprep.subr.bf16.mxu0 %v1905
    %6922 = vmatpush1.bf16.msra.mxu0 %v1904
    %6923 = vmatprep.subr.bf16.mxu0 %v1909
    %6924 = vmatpush1.bf16.msra.mxu0 %v1908
    %6925 = vmatprep.subr.bf16.mxu0 %v1913
    %6926 = vmatpush1.bf16.msra.mxu0 %v1912
    %6927 = vmatprep.subr.bf16.mxu0 %v1917
    %6928 = vmatpush1.bf16.msra.mxu0 %v1916
    %6929 = vmatprep.subr.bf16.mxu0 %v1921
    %6930 = vmatpush1.bf16.msra.mxu0 %v1920
    %6931 = vmatprep.subr.bf16.mxu0 %v1925
    %6932 = vmatpush1.bf16.msra.mxu0 %v1924
    %6933 = vmatprep.subr.bf16.mxu0 %v1929
    %6934 = vmatpush1.bf16.msra.mxu0 %v1928
    %6935 = vmatprep.mubr.bf16.mxu0 %v6683
    %6936 = vmatmul.mubr.bf16.gmra.mrb[0].mxu0 %v6682
    %v6937 = vpop.f32.mrb[0].mxu0
    %v6938 = vadd.f32 %v6895, %v6937
    %v6939 = vpop.f32.mrb[0].mxu0
    %v6940 = vadd.f32 %v6897, %v6939
    %v6941 = vpop.f32.mrb[0].mxu0
    %v6942 = vadd.f32 %v6899, %v6941
    %v6943 = vpop.f32.mrb[0].mxu0
    %v6944 = vadd.f32 %v6901, %v6943
    %6945 = vdwg.mxu0
    %6946 = vmatprep.subr.bf16.mxu0 %v1933
    %6947 = vmatpush1.bf16.msra.mxu0 %v1932
    %6948 = vmatprep.subr.bf16.mxu0 %v1937
    %6949 = vmatpush1.bf16.msra.mxu0 %v1936
    %6950 = vmatprep.subr.bf16.mxu0 %v1941
    %6951 = vmatpush1.bf16.msra.mxu0 %v1940
    %6952 = vmatprep.subr.bf16.mxu0 %v1945
    %6953 = vmatpush1.bf16.msra.mxu0 %v1944
    %6954 = vmatprep.subr.bf16.mxu0 %v1949
    %6955 = vmatpush1.bf16.msra.mxu0 %v1948
    %6956 = vmatprep.subr.bf16.mxu0 %v1953
    %6957 = vmatpush1.bf16.msra.mxu0 %v1952
    %6958 = vmatprep.subr.bf16.mxu0 %v1957
    %6959 = vmatpush1.bf16.msra.mxu0 %v1956
    %6960 = vmatprep.subr.bf16.mxu0 %v1961
    %6961 = vmatpush1.bf16.msra.mxu0 %v1960
    %6962 = vmatprep.subr.bf16.mxu0 %v1965
    %6963 = vmatpush1.bf16.msra.mxu0 %v1964
    %6964 = vmatprep.subr.bf16.mxu0 %v1969
    %6965 = vmatpush1.bf16.msra.mxu0 %v1968
    %6966 = vmatprep.subr.bf16.mxu0 %v1973
    %6967 = vmatpush1.bf16.msra.mxu0 %v1972
    %6968 = vmatprep.subr.bf16.mxu0 %v1977
    %6969 = vmatpush1.bf16.msra.mxu0 %v1976
    %6970 = vmatprep.subr.bf16.mxu0 %v1981
    %6971 = vmatpush1.bf16.msra.mxu0 %v1980
    %6972 = vmatprep.subr.bf16.mxu0 %v1985
    %6973 = vmatpush1.bf16.msra.mxu0 %v1984
    %6974 = vmatprep.subr.bf16.mxu0 %v1989
    %6975 = vmatpush1.bf16.msra.mxu0 %v1988
    %6976 = vmatprep.subr.bf16.mxu0 %v1993
    %6977 = vmatpush1.bf16.msra.mxu0 %v1992
    %6978 = vmatprep.mubr.bf16.mxu0 %v6685
    %6979 = vmatmul.mubr.bf16.gmra.mrb[0].mxu0 %v6684
    %v6980 = vpop.f32.mrb[0].mxu0
    %v6981 = vadd.f32 %v6938, %v6980
    %v6982 = vpop.f32.mrb[0].mxu0
    %v6983 = vadd.f32 %v6940, %v6982
    %v6984 = vpop.f32.mrb[0].mxu0
    %v6985 = vadd.f32 %v6942, %v6984
    %v6986 = vpop.f32.mrb[0].mxu0
    %v6987 = vadd.f32 %v6944, %v6986
    %6988 = vdwg.mxu0
    %6989 = vmatprep.subr.bf16.mxu0 %v1997
    %6990 = vmatpush1.bf16.msra.mxu0 %v1996
    %6991 = vmatprep.subr.bf16.mxu0 %v2001
    %6992 = vmatpush1.bf16.msra.mxu0 %v2000
    %6993 = vmatprep.subr.bf16.mxu0 %v2005
    %6994 = vmatpush1.bf16.msra.mxu0 %v2004
    %6995 = vmatprep.subr.bf16.mxu0 %v2009
    %6996 = vmatpush1.bf16.msra.mxu0 %v2008
    %6997 = vmatprep.subr.bf16.mxu0 %v2013
    %6998 = vmatpush1.bf16.msra.mxu0 %v2012
    %6999 = vmatprep.subr.bf16.mxu0 %v2017
    %7000 = vmatpush1.bf16.msra.mxu0 %v2016
    %7001 = vmatprep.subr.bf16.mxu0 %v2021
    %7002 = vmatpush1.bf16.msra.mxu0 %v2020
    %7003 = vmatprep.subr.bf16.mxu0 %v2025
    %7004 = vmatpush1.bf16.msra.mxu0 %v2024
    %7005 = vmatprep.subr.bf16.mxu0 %v2029
    %7006 = vmatpush1.bf16.msra.mxu0 %v2028
    %7007 = vmatprep.subr.bf16.mxu0 %v2033
    %7008 = vmatpush1.bf16.msra.mxu0 %v2032
    %7009 = vmatprep.subr.bf16.mxu0 %v2037
    %7010 = vmatpush1.bf16.msra.mxu0 %v2036
    %7011 = vmatprep.subr.bf16.mxu0 %v2041
    %7012 = vmatpush1.bf16.msra.mxu0 %v2040
    %7013 = vmatprep.subr.bf16.mxu0 %v2045
    %7014 = vmatpush1.bf16.msra.mxu0 %v2044
    %7015 = vmatprep.subr.bf16.mxu0 %v2049
    %7016 = vmatpush1.bf16.msra.mxu0 %v2048
    %7017 = vmatprep.subr.bf16.mxu0 %v2053
    %7018 = vmatpush1.bf16.msra.mxu0 %v2052
    %7019 = vmatprep.subr.bf16.mxu0 %v2057
    %7020 = vmatpush1.bf16.msra.mxu0 %v2056
    %7021 = vmatprep.mubr.bf16.mxu0 %v6687
    %7022 = vmatmul.mubr.bf16.gmra.mrb[0].mxu0 %v6686
    %v7023 = vpop.f32.mrb[0].mxu0
    %v7024 = vadd.f32 %v6981, %v7023
    %v7025 = vpop.f32.mrb[0].mxu0
    %v7026 = vadd.f32 %v6983, %v7025
    %v7027 = vpop.f32.mrb[0].mxu0
    %v7028 = vadd.f32 %v6985, %v7027
    %v7029 = vpop.f32.mrb[0].mxu0
    %v7030 = vadd.f32 %v6987, %v7029
    %7031 = vdwg.mxu0
    %v7032 = vld [vmem:[#allocation10] sm:$0xf]
    %v7034 = vlaneseq
    %v7035 = vshrl.u32 %v7034, 7
    %v7036 = vsub.s32 0, %v7035
    %v7037 = vrot.slane %v7032, %v7036
    %v7038 = vlaneseq
    %v7039 = vshrl.u32 %v7038, 7
    %v7040 = vsub.s32 1, %v7039
    %v7041 = vrot.slane %v7032, %v7040
    %v7042 = vlaneseq
    %v7043 = vshrl.u32 %v7042, 7
    %v7044 = vsub.s32 2, %v7043
    %v7045 = vrot.slane %v7032, %v7044
    %v7046 = vlaneseq
    %v7047 = vshrl.u32 %v7046, 7
    %v7048 = vsub.s32 3, %v7047
    %v7049 = vrot.slane %v7032, %v7048
    %v7054 = vmul.f32 %v6852, %v7037
    %v7055 = vmul.f32 %v6854, %v7041
    %v7056 = vmul.f32 %v7024, %v7045
    %v7057 = vmul.f32 %v7026, %v7049
    %v7058 = vmul.f32 %v6856, %v7037
    %v7059 = vmul.f32 %v6858, %v7041
    %v7060 = vmul.f32 %v7028, %v7045
    %v7061 = vmul.f32 %v7030, %v7049
    %v7062 = vld [vmem:[#allocation11] sm:$0xf]
    %v7064 = vlaneseq
    %v7065 = vshrl.u32 %v7064, 7
    %v7066 = vsub.s32 0, %v7065
    %v7067 = vrot.slane %v7062, %v7066
    %v7068 = vlaneseq
    %v7069 = vshrl.u32 %v7068, 7
    %v7070 = vsub.s32 1, %v7069
    %v7071 = vrot.slane %v7062, %v7070
    %v7072 = vlaneseq
    %v7073 = vshrl.u32 %v7072, 7
    %v7074 = vsub.s32 2, %v7073
    %v7075 = vrot.slane %v7062, %v7074
    %v7076 = vlaneseq
    %v7077 = vshrl.u32 %v7076, 7
    %v7078 = vsub.s32 3, %v7077
    %v7079 = vrot.slane %v7062, %v7078
    %v7084 = vadd.f32 %v7054, %v7067
    %v7085 = vadd.f32 %v7055, %v7071
    %v7086 = vadd.f32 %v7056, %v7075
    %v7087 = vadd.f32 %v7057, %v7079
    %v7088 = vadd.f32 %v7058, %v7067
    %v7089 = vadd.f32 %v7059, %v7071
    %v7090 = vadd.f32 %v7060, %v7075
    %v7091 = vadd.f32 %v7061, %v7079
    %v7092 = vmax.f32 %v7084, 0.0
    %v7093 = vmax.f32 %v7085, 0.0
    %v7094 = vmax.f32 %v7086, 0.0
    %v7095 = vmax.f32 %v7087, 0.0
    %v7096 = vmax.f32 %v7088, 0.0
    %v7097 = vmax.f32 %v7089, 0.0
    %v7098 = vmax.f32 %v7090, 0.0
    %v7099 = vmax.f32 %v7091, 0.0
    %v7100 = vpack.c.bf16 %v7096, %v7092
    %v7101 = vpack.c.bf16 %v7097, %v7093
    %v7102 = vpack.c.bf16 %v7098, %v7094
    %v7103 = vpack.c.bf16 %v7099, %v7095
    %v7104 = vld [vmem:[#allocation14] sm:$0x3]
    %v7106 = vlaneseq
    %v7107 = vshrl.u32 %v7106, 7
    %v7108 = vsub.s32 0, %v7107
    %v7109 = vrot.slane %v7104, %v7108
    %v7110 = vlaneseq
    %v7111 = vshrl.u32 %v7110, 7
    %v7112 = vsub.s32 1, %v7111
    %v7113 = vrot.slane %v7104, %v7112
    %7116 = vmatprep.subr.bf16.mxu0 %v4579
    %7117 = vmatpush1.bf16.msra.mxu0 %v4578
    %7118 = vmatprep.subr.bf16.mxu0 %v4581
    %7119 = vmatpush1.bf16.msra.mxu0 %v4580
    %7120 = vmatprep.subr.bf16.mxu0 %v4583
    %7121 = vmatpush1.bf16.msra.mxu0 %v4582
    %7122 = vmatprep.subr.bf16.mxu0 %v4585
    %7123 = vmatpush1.bf16.msra.mxu0 %v4584
    %7124 = vmatprep.subr.bf16.mxu0 %v4587
    %7125 = vmatpush1.bf16.msra.mxu0 %v4586
    %7126 = vmatprep.subr.bf16.mxu0 %v4589
    %7127 = vmatpush1.bf16.msra.mxu0 %v4588
    %7128 = vmatprep.subr.bf16.mxu0 %v4591
    %7129 = vmatpush1.bf16.msra.mxu0 %v4590
    %7130 = vmatprep.subr.bf16.mxu0 %v4593
    %7131 = vmatpush1.bf16.msra.mxu0 %v4592
    %7132 = vmatprep.subr.bf16.mxu0 %v4595
    %7133 = vmatpush1.bf16.msra.mxu0 %v4594
    %7134 = vmatprep.subr.bf16.mxu0 %v4597
    %7135 = vmatpush1.bf16.msra.mxu0 %v4596
    %7136 = vmatprep.subr.bf16.mxu0 %v4599
    %7137 = vmatpush1.bf16.msra.mxu0 %v4598
    %7138 = vmatprep.subr.bf16.mxu0 %v4601
    %7139 = vmatpush1.bf16.msra.mxu0 %v4600
    %7140 = vmatprep.subr.bf16.mxu0 %v4603
    %7141 = vmatpush1.bf16.msra.mxu0 %v4602
    %7142 = vmatprep.subr.bf16.mxu0 %v4605
    %7143 = vmatpush1.bf16.msra.mxu0 %v4604
    %7144 = vmatprep.subr.bf16.mxu0 %v4607
    %7145 = vmatpush1.bf16.msra.mxu0 %v4606
    %7146 = vmatprep.subr.bf16.mxu0 %v4609
    %7147 = vmatpush1.bf16.msra.mxu0 %v4608
    %7148 = vmatprep.mubr.bf16.mxu0 %v7101
    %7149 = vmatmul.mubr.bf16.gmra.mrb[0].mxu0 %v7100
    %v7150 = vpop.f32.mrb[0].mxu0
    %v7151 = vadd.f32 %v7109, %v7150
    %v7152 = vpop.f32.mrb[0].mxu0
    %v7153 = vadd.f32 %v7113, %v7152
    %v7154 = vpop.f32.mrb[0].mxu0
    %v7155 = vadd.f32 %v7109, %v7154
    %v7156 = vpop.f32.mrb[0].mxu0
    %v7157 = vadd.f32 %v7113, %v7156
    %7158 = vdwg.mxu0
    %7159 = vmatprep.subr.bf16.mxu0 %v4611
    %7160 = vmatpush1.bf16.msra.mxu0 %v4610
    %7161 = vmatprep.subr.bf16.mxu0 %v4613
    %7162 = vmatpush1.bf16.msra.mxu0 %v4612
    %7163 = vmatprep.subr.bf16.mxu0 %v4615
    %7164 = vmatpush1.bf16.msra.mxu0 %v4614
    %7165 = vmatprep.subr.bf16.mxu0 %v4617
    %7166 = vmatpush1.bf16.msra.mxu0 %v4616
    %7167 = vmatprep.subr.bf16.mxu0 %v4619
    %7168 = vmatpush1.bf16.msra.mxu0 %v4618
    %7169 = vmatprep.subr.bf16.mxu0 %v4621
    %7170 = vmatpush1.bf16.msra.mxu0 %v4620
    %7171 = vmatprep.subr.bf16.mxu0 %v4623
    %7172 = vmatpush1.bf16.msra.mxu0 %v4622
    %7173 = vmatprep.subr.bf16.mxu0 %v4625
    %7174 = vmatpush1.bf16.msra.mxu0 %v4624
    %7175 = vmatprep.subr.bf16.mxu0 %v4627
    %7176 = vmatpush1.bf16.msra.mxu0 %v4626
    %7177 = vmatprep.subr.bf16.mxu0 %v4629
    %7178 = vmatpush1.bf16.msra.mxu0 %v4628
    %7179 = vmatprep.subr.bf16.mxu0 %v4631
    %7180 = vmatpush1.bf16.msra.mxu0 %v4630
    %7181 = vmatprep.subr.bf16.mxu0 %v4633
    %7182 = vmatpush1.bf16.msra.mxu0 %v4632
    %7183 = vmatprep.subr.bf16.mxu0 %v4635
    %7184 = vmatpush1.bf16.msra.mxu0 %v4634
    %7185 = vmatprep.subr.bf16.mxu0 %v4637
    %7186 = vmatpush1.bf16.msra.mxu0 %v4636
    %7187 = vmatprep.subr.bf16.mxu0 %v4639
    %7188 = vmatpush1.bf16.msra.mxu0 %v4638
    %7189 = vmatprep.subr.bf16.mxu0 %v4641
    %7190 = vmatpush1.bf16.msra.mxu0 %v4640
    %7191 = vmatprep.mubr.bf16.mxu0 %v7103
    %7192 = vmatmul.mubr.bf16.gmra.mrb[0].mxu0 %v7102
    %v7193 = vpop.f32.mrb[0].mxu0
    %v7194 = vadd.f32 %v7151, %v7193
    %v7195 = vpop.f32.mrb[0].mxu0
    %v7196 = vadd.f32 %v7153, %v7195
    %v7197 = vpop.f32.mrb[0].mxu0
    %v7198 = vadd.f32 %v7155, %v7197
    %v7199 = vpop.f32.mrb[0].mxu0
    %v7200 = vadd.f32 %v7157, %v7199
    %7201 = vdwg.mxu0
    %v7202 = vmax.f32 %v7194, 0.0
    %v7203 = vmax.f32 %v7196, 0.0
    %v7204 = vmax.f32 %v7198, 0.0
    %v7205 = vmax.f32 %v7200, 0.0
    %v7210 = vcombine.low %v7202, %v7203
    %v7211 = vcombine.high %v7202, %v7203
    %v7213 = vunpack.c.l.s4 1983009808
    %v7214 = vunpack.c.0.s8 %v7213
    %v7215 = vlaneseq
    %v7216 = vshrl.u32 %v7215, 7
    %v7217 = vsub.s32 %v7214, %v7216
    %v7218 = vrot.slane %v7210, %v7217
    %v7220 = vunpack.c.l.s4 1983009808
    %v7221 = vunpack.c.0.s8 %v7220
    %v7222 = vlaneseq
    %v7223 = vshrl.u32 %v7222, 7
    %v7224 = vsub.s32 %v7221, %v7223
    %v7225 = vrot.slane %v7211, %v7224
    %v7226 = vcombine.high %v7218, %v7218
    %v7227 = vcombine.high %v7225, %v7225
    %v7228 = vcombine.low %v7204, %v7205
    %v7229 = vcombine.high %v7204, %v7205
    %v7231 = vunpack.c.l.s4 1983009808
    %v7232 = vunpack.c.0.s8 %v7231
    %v7233 = vlaneseq
    %v7234 = vshrl.u32 %v7233, 7
    %v7235 = vsub.s32 %v7232, %v7234
    %v7236 = vrot.slane %v7228, %v7235
    %v7238 = vunpack.c.l.s4 1983009808
    %v7239 = vunpack.c.0.s8 %v7238
    %v7240 = vlaneseq
    %v7241 = vshrl.u32 %v7240, 7
    %v7242 = vsub.s32 %v7239, %v7241
    %v7243 = vrot.slane %v7229, %v7242
    %v7244 = vcombine.high %v7236, %v7236
    %v7245 = vcombine.high %v7243, %v7243
    %7254 = vst [vmem:[#allocation17] sm:$0xf] %v7218
    %7255 = vst [vmem:[#allocation17 + $0x4] sm:$0xf] %v7226
    %7256 = vst [vmem:[#allocation17 + $0x8] sm:$0xf] %v7225
    %7257 = vst [vmem:[#allocation17 + $0xc] sm:$0xf] %v7227
    %7258 = vst [vmem:[#allocation17 + $0x10] sm:$0xf] %v7236
    %7259 = vst [vmem:[#allocation17 + $0x14] sm:$0xf] %v7244
    %7260 = vst [vmem:[#allocation17 + $0x18] sm:$0xf] %v7243
    %7261 = vst [vmem:[#allocation17 + $0x1c] sm:$0xf] %v7245
    // Predicated region
    $region74: #{siamese_forward.1} parent=1 // pred_check
      _
    $region75: #{siamese_forward.1} parent=1 // pred_check_branch
      %7263 = sbr.rel (0) target = $region77
    $region76: #{siamese_forward.1} parent=1 // pred_region
      %s7265 = ssub.s32 512, 64
      %7266 = vsyncadd [#allocation4], %s7265
      %s7267 = sshll.u32 [#allocation16], 4
      %s7268 = int_to_ptr.vmem [resolvable:$true] %s7267
      %7273 = dma.vmem_to_hbm [thread:$0]  %s7268, 64, %s10, [#allocation4], 64, 64, 4
    $region77: #{siamese_forward.1} parent=1 // pred_fallthru
      _
    // Predicated region
    $region78: #{siamese_forward.1} parent=1 // pred_check
      _
    $region79: #{siamese_forward.1} parent=1 // pred_check_branch
      %7275 = sbr.rel (0) target = $region81
    $region80: #{siamese_forward.1} parent=1 // pred_region
      %s7277 = ssub.s32 512, 64
      %7278 = vsyncadd [#allocation18], %s7277
      %s7279 = sshll.u32 [#allocation17], 4
      %s7280 = int_to_ptr.vmem [resolvable:$true] %s7279
      %7285 = dma.vmem_to_hbm [thread:$0]  %s7280, 64, %s11, [#allocation18], 64, 64, 4
    $region81: #{siamese_forward.1} parent=1 // pred_fallthru
      _
    // Predicated region
    $region82: #{siamese_forward.1} parent=1 // pred_check
      _
    $region83: #{siamese_forward.1} parent=1 // pred_check_branch
      %7287 = sbr.rel (0) target = $region85
    $region84: #{siamese_forward.1} parent=1 // pred_region
      %7288 = dma.done [#allocation4], 512
    $region85: #{siamese_forward.1} parent=1 // pred_fallthru
      _
    // Predicated region
    $region86: #{siamese_forward.1} parent=1 // pred_check
      _
    $region87: #{siamese_forward.1} parent=1 // pred_check_branch
      %7290 = sbr.rel (0) target = $region89
    $region88: #{siamese_forward.1} parent=1 // pred_region
      %7291 = dma.done [#allocation18], 512
    $region89: #{siamese_forward.1} parent=1 // pred_fallthru
      _
    %7292 = vsyncpa [#allocation3], 1
    %7293 = vsyncpa [#allocation6], 1
    %7294 = vsyncpa [#allocation9], 1
    %7295 = vsyncpa [#allocation12], 1
    %7296 = vsyncpa [#allocation15], 1
    %7297 = vsyncpa [#allocation4], 1
    %7298 = vsyncpa [#allocation18], 1

</llo_original>
